<compile_context>
chip_gen: v6e
topology: v6e:2x2x1
jax: 0.10.0
libtpu: 0.0.40
codegen_flags: <defaults>
</compile_context>

<pallas_src>
import functools

import jax
import jax.numpy as jnp
import numpy as np
from jax.experimental import pallas as pl
from jax.experimental.pallas import tpu as pltpu

# ----------------------------- fixed geometry ---------------------------------
H1, W1 = 12, 12              # stage-1 spatial size (fc1 = 3*3*32 forces 12x12 input)
H2, W2 = 6, 6                # after pool1
H3, W3 = 3, 3                # after pool2
WP1, WP2 = W1 + 2, W2 + 2    # padded row widths (14, 8)
P1, P2 = 208, 80             # per-image row strides of the padded slabs (mult. of 8)
C1, C2 = 16, 32              # channel counts
DH, DOUT = 250, 2
BASE1, BASE2 = 1, 7          # row of padded pixel (0,0) inside padA / padC,padD
STORE1 = BASE1 + WP1 + 1     # 16: 8-aligned row of output pixel (0,0), stage 1
STORE2 = BASE2 + WP2 + 1     # 16: same for stage 2
V1, V2 = H1 * WP1, H2 * WP2  # 168 / 48 conv-output rows per image
K1 = 152                     # per-image gather width for pool1 (>= 151, mult. of 8)


# ----------------------------- in-kernel helpers ------------------------------
def _conv3x3_relu(src_ref, w_ref, b_ref, length, wp, base):
    """3x3 / pad-1 conv (+bias, ReLU) over a zero-padded bf16 row-slab scratch ref.

    Padded pixel (r, c) of image b lives at row b*stride + base + r*wp + c.
    Output row m = b*stride + h*wp + w is output pixel (h, w); rows with w >= W
    (and inter-image slack rows) hold garbage that the caller masks out."""
    acc = jnp.dot(src_ref[base:base + length, :], w_ref[0],
                  preferred_element_type=jnp.float32)
    for t in range(1, 9):
        dy, dx = divmod(t, 3)
        off = base + dy * wp + dx
        acc = acc + jnp.dot(src_ref[off:off + length, :], w_ref[t],
                            preferred_element_type=jnp.float32)
    return jnp.maximum(acc + b_ref[...], 0.0)


def _net_kernel(bb,
                x_ref, w11_ref, b11_ref, w12_ref, b12_ref,
                w21_ref, b21_ref, w22_ref, b22_ref,
                m1_ref, m2_ref, sel1_ref, sel2_ref,
                wf1_ref, bf1_ref, wf2_ref, bf2_ref,
                o_ref,
                padA, padC, padD):
    L1 = (bb - 1) * P1 + V1           # stage-1 conv-output slab rows
    L2 = (bb - 1) * P2 + V2           # stage-2 conv-output slab rows
    LV1, LH1 = L1 - WP1, L1 - WP1 - 1
    LV2, LH2 = L2 - WP2, L2 - WP2 - 1

    # -------- stage 1: conv1_1 (im2col, K=27) -> conv1_2 -> 2x2 max-pool ------
    y = jnp.dot(x_ref[...], w11_ref[...], preferred_element_type=jnp.float32)
    y = jnp.maximum(y + b11_ref[...], 0.0)
    m1 = m1_ref[...]
    for b in range(bb):
        # zero only the halo rows; the interior is overwritten every step
        padA[b * P1:b * P1 + STORE1, :] = jnp.zeros((STORE1, C1), jnp.bfloat16)
        padA[b * P1 + STORE1 + V1:(b + 1) * P1, :] = jnp.zeros(
            (P1 - STORE1 - V1, C1), jnp.bfloat16)
        padA[b * P1 + STORE1:b * P1 + STORE1 + V1, :] = (
            y[b * P1:b * P1 + V1, :] * m1).astype(jnp.bfloat16)

    y = _conv3x3_relu(padA, w12_ref, b12_ref, L1, WP1, BASE1)
    vmax = jnp.maximum(y[0:LV1, :], y[WP1:WP1 + LV1, :])          # vertical 2-max
    hmax = jnp.maximum(vmax[0:LH1, :], vmax[1:1 + LH1, :]).astype(jnp.bfloat16)
    sel1 = sel1_ref[...]
    for b in range(bb):
        # per-image 0/1 gather (80 x 152) -> full padded stage-2 stride (no halo
        # zeroing needed for padC: every row is written here)
        blk = jnp.dot(sel1, hmax[b * P1:b * P1 + K1, :],
                      preferred_element_type=jnp.float32)
        padC[b * P2:(b + 1) * P2, :] = blk.astype(jnp.bfloat16)

    # -------- stage 2: conv2_1 -> conv2_2 -> 2x2 max-pool ----------------------
    y = _conv3x3_relu(padC, w21_ref, b21_ref, L2, WP2, BASE2)
    m2 = m2_ref[...]
    for b in range(bb):
        padD[b * P2:b * P2 + STORE2, :] = jnp.zeros((STORE2, C2), jnp.bfloat16)
        padD[b * P2 + STORE2 + V2:(b + 1) * P2, :] = jnp.zeros(
            (P2 - STORE2 - V2, C2), jnp.bfloat16)
        padD[b * P2 + STORE2:b * P2 + STORE2 + V2, :] = (
            y[b * P2:b * P2 + V2, :] * m2).astype(jnp.bfloat16)

    y = _conv3x3_relu(padD, w22_ref, b22_ref, L2, WP2, BASE2)
    vmax = jnp.maximum(y[0:LV2, :], y[WP2:WP2 + LV2, :])
    hmax = jnp.maximum(vmax[0:LH2, :], vmax[1:1 + LH2, :]).astype(jnp.bfloat16)
    # pool2 -> fc-input layout (row = (h*3 + w)*bb + b, channels last)
    fc_in = jnp.dot(sel2_ref[...], hmax,
                    preferred_element_type=jnp.float32).astype(jnp.bfloat16)

    # -------- fc1 (+ReLU) -> fc2 (+sigmoid) ------------------------------------
    acc = jnp.dot(fc_in[0:bb, :], wf1_ref[0], preferred_element_type=jnp.float32)
    for p in range(1, H3 * W3):
        acc = acc + jnp.dot(fc_in[p * bb:(p + 1) * bb, :], wf1_ref[p],
                            preferred_element_type=jnp.float32)
    hid = jnp.maximum(acc + bf1_ref[...], 0.0).astype(jnp.bfloat16)
    logits = jnp.dot(hid, wf2_ref[...],
                     preferred_element_type=jnp.float32) + bf2_ref[...]
    o_ref[:, 0, :] = jax.nn.sigmoid(logits)


# ----------------------------- host-side constants -----------------------------
def _mask_constants():
    """Per-image validity masks for the conv-output row slabs (w < W columns)."""
    m1 = np.zeros((V1, C1), np.float32)
    for h in range(H1):
        m1[h * WP1:h * WP1 + W1, :] = 1.0
    m2 = np.zeros((V2, C2), np.float32)
    for h in range(H2):
        m2[h * WP2:h * WP2 + W2, :] = 1.0
    return jnp.asarray(m1), jnp.asarray(m2)


def _pool_selectors(bb):
    """0/1 gather matrices: per-image pool-1 selector and full-batch pool-2 selector."""
    sel1 = np.zeros((P2, K1), np.float32)
    for h in range(H2):
        for w in range(W2):
            sel1[STORE2 + h * WP2 + w, 2 * h * WP1 + 2 * w] = 1.0
    LH2 = (bb - 1) * P2 + V2 - WP2 - 1
    sel2 = np.zeros((H3 * W3 * bb, LH2), np.float32)
    for b in range(bb):
        for h in range(H3):
            for w in range(W3):
                sel2[(h * W3 + w) * bb + b, b * P2 + 2 * h * WP2 + 2 * w] = 1.0
    # exact in bf16 (values are 0/1): halves VMEM and DMA for the constants
    return jnp.asarray(sel1, jnp.bfloat16), jnp.asarray(sel2, jnp.bfloat16)


# ----------------------------- forward pass -----------------------------------
def net_forward(params, x_nchw):
    B, cin, H, W = x_nchw.shape
    assert (H, W) == (H1, W1), "fc1 = 3*3*32 requires a 12x12 spatial input"

    # grid >= 2 whenever B >= 2 (v7x: both TensorCores busy); bb grows with B (<= 8)
    bb = max(1, min(8, (B + 1) // 2))
    grid = -(-B // bb)                 # ceil div
    bpad = grid * bb

    # NCHW -> NHWC, spatial zero-pad, host-side im2col (27 = 9 taps x cin columns),
    # flatten to the 2-D row-slab layout with per-image stride P1.
    x = jnp.transpose(x_nchw, (0, 2, 3, 1)).astype(jnp.float32)
    if bpad != B:
        x = jnp.pad(x, ((0, bpad - B), (0, 0), (0, 0), (0, 0)))
    xp = jnp.pad(x, ((0, 0), (1, 1), (1, 1), (0, 0)))                # (bpad,14,14,cin)
    pat = jnp.stack([xp[:, dy:dy + H1, dx:dx + W1, :]
                     for dy in range(3) for dx in range(3)], axis=3)  # (bpad,12,12,9,cin)
    pat = pat.reshape(bpad, H1, W1, 9 * cin)
    pat = jnp.pad(pat, ((0, 0), (0, 0), (0, WP1 - W1), (0, 0)))       # (bpad,12,14,27)
    pat = pat.reshape(bpad, V1, 9 * cin)
    pat = jnp.pad(pat, ((0, 0), (0, P1 - V1), (0, 0)))                # (bpad,P1,27)
    x2d = pat.reshape(bpad * P1, 9 * cin).astype(jnp.bfloat16)

    m1, m2 = _mask_constants()
    sel1, sel2 = _pool_selectors(bb)

    def conv_w(name):
        w, b = params[name]
        return (w.reshape(9, w.shape[2], w.shape[3]).astype(jnp.bfloat16),
                b.reshape(1, -1).astype(jnp.float32))

    w11, b11 = params["conv1_1"]
    w11f = w11.reshape(9 * cin, C1).astype(jnp.bfloat16)
    b11 = b11.reshape(1, -1).astype(jnp.float32)
    w12, b12 = conv_w("conv1_2")
    w21, b21 = conv_w("conv2_1")
    w22, b22 = conv_w("conv2_2")

    wf1, bf1 = params["fc1"]
    # torch flattens NCHW (din index = c*9 + h*3 + w); the kernel consumes the
    # activation in HWC order, so permute the fc1 weight rows to match.
    wf1 = wf1.reshape(C2, H3 * W3, DH).transpose(1, 0, 2).astype(jnp.bfloat16)
    bf1 = bf1.reshape(1, DH).astype(jnp.float32)
    wf2, bf2 = params["fc2"]
    wf2 = wf2.astype(jnp.bfloat16)
    bf2 = bf2.reshape(1, DOUT).astype(jnp.float32)

    operands = (x2d, w11f, b11, w12, b12, w21, b21, w22, b22,
                m1, m2, sel1, sel2, wf1, bf1, wf2, bf2)

    def const_spec(arr):
        nd = arr.ndim
        return pl.BlockSpec(arr.shape, lambda i, _nd=nd: (0,) * _nd)

    in_specs = [pl.BlockSpec((bb * P1, 9 * cin), lambda i: (i, 0))]
    in_specs += [const_spec(a) for a in operands[1:]]

    out = pl.pallas_call(
        functools.partial(_net_kernel, bb),
        grid=(grid,),
        in_specs=in_specs,
        out_specs=pl.BlockSpec((bb, 1, DOUT), lambda i: (i, 0, 0)),
        out_shape=jax.ShapeDtypeStruct((bpad, 1, DOUT), jnp.float32),
        scratch_shapes=[
            pltpu.VMEM((bb * P1, C1), jnp.bfloat16),   # padA: padded conv1_2 input
            pltpu.VMEM((bb * P2, C1), jnp.bfloat16),   # padC: padded conv2_1 input
            pltpu.VMEM((bb * P2, C2), jnp.bfloat16),   # padD: padded conv2_2 input
        ],
        compiler_params=pltpu.CompilerParams(
            dimension_semantics=("parallel",),
            vmem_limit_bytes=32 * 1024 * 1024),
    )(*operands)
    return out[:B, 0, :]


# ----------------------------- parameters -------------------------------------
def init_params(key, in_channel):
    def conv_init(k, cin, cout):
        k1, k2 = jax.random.split(k)
        bound = 1.0 / np.sqrt(cin * 9.0)
        w = jax.random.uniform(k1, (3, 3, cin, cout), jnp.float32, -bound, bound)
        b = jax.random.uniform(k2, (cout,), jnp.float32, -bound, bound)
        return w, b

    def fc_init(k, din, dout):
        k1, k2 = jax.random.split(k)
        bound = 1.0 / np.sqrt(float(din))
        w = jax.random.uniform(k1, (din, dout), jnp.float32, -bound, bound)
        b = jax.random.uniform(k2, (dout,), jnp.float32, -bound, bound)
        return w, b

    keys = jax.random.split(key, 6)
    return {
        "conv1_1": conv_init(keys[0], in_channel, C1),
        "conv1_2": conv_init(keys[1], C1, C1),
        "conv2_1": conv_init(keys[2], C1, C2),
        "conv2_2": conv_init(keys[3], C2, C2),
        "fc1": fc_init(keys[4], H3 * W3 * C2, DH),
        "fc2": fc_init(keys[5], DH, DOUT),
    }


# ----------------------------- pure-JAX reference ------------------------------
def net_forward_reference(params, x_nchw):
    hi = jax.lax.Precision.HIGHEST
    x = jnp.transpose(x_nchw, (0, 2, 3, 1)).astype(jnp.float32)

    def conv(x, w, b):
        y = jax.lax.conv_general_dilated(
            x, w, window_strides=(1, 1), padding="SAME",
            dimension_numbers=("NHWC", "HWIO", "NHWC"), precision=hi)
        return jax.nn.relu(y + b)

    def pool(x):
        b_, h, w, c = x.shape
        return x.reshape(b_, h // 2, 2, w // 2, 2, c).max(axis=(2, 4))

    x = pool(conv(conv(x, *params["conv1_1"]), *params["conv1_2"]))
    x = pool(conv(conv(x, *params["conv2_1"]), *params["conv2_2"]))
    x = jnp.transpose(x, (0, 3, 1, 2)).reshape(x.shape[0], -1)     # torch NCHW flatten
    x = jax.nn.relu(jnp.dot(x, params["fc1"][0], precision=hi) + params["fc1"][1])
    x = jax.nn.sigmoid(jnp.dot(x, params["fc2"][0], precision=hi) + params["fc2"][1])
    return x


if __name__ == "__main__":
    key = jax.random.PRNGKey(0)
    pkey, xkey = jax.random.split(key)
    in_channel = 3
    params = init_params(pkey, in_channel)
    x = jax.random.normal(xkey, (2, in_channel, 12, 12), jnp.float32)

    fwd = jax.jit(net_forward)
    out = jax.block_until_ready(fwd(params, x))

    assert out.shape == (2, 2)
    assert bool(jnp.all(jnp.isfinite(out)))
    assert bool(jnp.all((out >= 0.0) & (out <= 1.0)))   # sigmoid range

    # Kernel matmuls run at TPU default (bf16-operand) MXU precision with f32
    # accumulation; reference runs at Precision.HIGHEST, hence the 2e-3 tolerance.
    ref = net_forward_reference(params, x)
    err = float(jnp.max(jnp.abs(out - ref)))
    assert err < 2e-3, f"mismatch vs reference: {err}"
    print("KERNEL_OK")
</pallas_src>

<mosaic_0001>
module attributes {stable_mosaic.version = 11 : i64} {
  func.func @_net_kernel(%arg0: i32, %arg1: memref<208x27xbf16, #tpu.memory_space<vmem>>, %arg2: memref<27x16xbf16, #tpu.memory_space<vmem>>, %arg3: memref<1x16xf32, #tpu.memory_space<vmem>>, %arg4: memref<9x16x16xbf16, #tpu.memory_space<vmem>>, %arg5: memref<1x16xf32, #tpu.memory_space<vmem>>, %arg6: memref<9x16x32xbf16, #tpu.memory_space<vmem>>, %arg7: memref<1x32xf32, #tpu.memory_space<vmem>>, %arg8: memref<9x32x32xbf16, #tpu.memory_space<vmem>>, %arg9: memref<1x32xf32, #tpu.memory_space<vmem>>, %arg10: memref<168x16xf32, #tpu.memory_space<vmem>>, %arg11: memref<48x32xf32, #tpu.memory_space<vmem>>, %arg12: memref<80x152xbf16, #tpu.memory_space<vmem>>, %arg13: memref<9x39xbf16, #tpu.memory_space<vmem>>, %arg14: memref<9x32x250xbf16, #tpu.memory_space<vmem>>, %arg15: memref<1x250xf32, #tpu.memory_space<vmem>>, %arg16: memref<250x2xbf16, #tpu.memory_space<vmem>>, %arg17: memref<1x2xf32, #tpu.memory_space<vmem>>, %arg18: memref<1x1x2xf32, #tpu.memory_space<vmem>>, %arg19: memref<208x16xbf16, #tpu.memory_space<vmem>>, %arg20: memref<80x16xbf16, #tpu.memory_space<vmem>>, %arg21: memref<80x32xbf16, #tpu.memory_space<vmem>>) attributes {dimension_semantics = [#tpu.dimension_semantics<parallel>], iteration_bounds = array<i64: 2>, scalar_prefetch = 0 : i64, scratch_operands = 3 : i64, tpu.core_type = #tpu.core_type<tc>, window_params = [{transform_indices = @transform_0, window_bounds = array<i64: 208, 27>}, {pipeline_mode = #tpu.pipeline_mode<synchronous>, transform_indices = @transform_1, window_bounds = array<i64: 27, 16>}, {pipeline_mode = #tpu.pipeline_mode<synchronous>, transform_indices = @transform_2, window_bounds = array<i64: 1, 16>}, {pipeline_mode = #tpu.pipeline_mode<synchronous>, transform_indices = @transform_3, window_bounds = array<i64: 9, 16, 16>}, {pipeline_mode = #tpu.pipeline_mode<synchronous>, transform_indices = @transform_4, window_bounds = array<i64: 1, 16>}, {pipeline_mode = #tpu.pipeline_mode<synchronous>, transform_indices = @transform_5, window_bounds = array<i64: 9, 16, 32>}, {pipeline_mode = #tpu.pipeline_mode<synchronous>, transform_indices = @transform_6, window_bounds = array<i64: 1, 32>}, {pipeline_mode = #tpu.pipeline_mode<synchronous>, transform_indices = @transform_7, window_bounds = array<i64: 9, 32, 32>}, {pipeline_mode = #tpu.pipeline_mode<synchronous>, transform_indices = @transform_8, window_bounds = array<i64: 1, 32>}, {pipeline_mode = #tpu.pipeline_mode<synchronous>, transform_indices = @transform_9, window_bounds = array<i64: 168, 16>}, {pipeline_mode = #tpu.pipeline_mode<synchronous>, transform_indices = @transform_10, window_bounds = array<i64: 48, 32>}, {pipeline_mode = #tpu.pipeline_mode<synchronous>, transform_indices = @transform_11, window_bounds = array<i64: 80, 152>}, {pipeline_mode = #tpu.pipeline_mode<synchronous>, transform_indices = @transform_12, window_bounds = array<i64: 9, 39>}, {pipeline_mode = #tpu.pipeline_mode<synchronous>, transform_indices = @transform_13, window_bounds = array<i64: 9, 32, 250>}, {pipeline_mode = #tpu.pipeline_mode<synchronous>, transform_indices = @transform_14, window_bounds = array<i64: 1, 250>}, {pipeline_mode = #tpu.pipeline_mode<synchronous>, transform_indices = @transform_15, window_bounds = array<i64: 250, 2>}, {pipeline_mode = #tpu.pipeline_mode<synchronous>, transform_indices = @transform_16, window_bounds = array<i64: 1, 2>}, {transform_indices = @transform_17, window_bounds = array<i64: 1, 1, 2>}]} {
    %c0 = arith.constant 0 : index
    %c0_0 = arith.constant 0 : index
    %0 = vector.load %arg1[%c0, %c0_0] : memref<208x27xbf16, #tpu.memory_space<vmem>>, vector<208x27xbf16>
    %c0_1 = arith.constant 0 : index
    %c0_2 = arith.constant 0 : index
    %1 = vector.load %arg2[%c0_1, %c0_2] : memref<27x16xbf16, #tpu.memory_space<vmem>>, vector<27x16xbf16>
    %cst = arith.constant dense<0.000000e+00> : vector<208x16xf32>
    %2 = tpu.matmul %0, %1, %cst {dimension_numbers = #tpu.dot_dimension_numbers<[1], [0], [0], [1], [0, 0, 1, 1], [], []>} : vector<208x27xbf16>, vector<27x16xbf16>, vector<208x16xf32> -> vector<208x16xf32>
    %c0_3 = arith.constant 0 : index
    %c0_4 = arith.constant 0 : index
    %3 = vector.load %arg3[%c0_3, %c0_4] : memref<1x16xf32, #tpu.memory_space<vmem>>, vector<1x16xf32>
    %4 = vector.broadcast %3 : vector<1x16xf32> to vector<208x16xf32>
    %5 = arith.addf %2, %4 : vector<208x16xf32>
    %cst_5 = arith.constant 0.000000e+00 : f32
    %6 = vector.broadcast %cst_5 : f32 to vector<208x16xf32>
    %7 = arith.maximumf %5, %6 : vector<208x16xf32>
    %c0_6 = arith.constant 0 : index
    %c0_7 = arith.constant 0 : index
    %8 = vector.load %arg10[%c0_6, %c0_7] : memref<168x16xf32, #tpu.memory_space<vmem>>, vector<168x16xf32>
    %cst_8 = arith.constant 0.000000e+00 : bf16
    %9 = vector.broadcast %cst_8 : bf16 to vector<16x16xbf16>
    %c0_9 = arith.constant 0 : index
    %c0_10 = arith.constant 0 : index
    %10 = vector.load %arg19[%c0_9, %c0_10] : memref<208x16xbf16, #tpu.memory_space<vmem>>, vector<16x16xbf16>
    tpu.vector_store %arg19[%c0_9, %c0_10], %9 {strides = array<i32>} : memref<208x16xbf16, #tpu.memory_space<vmem>>, vector<16x16xbf16>,
    %cst_11 = arith.constant 0.000000e+00 : bf16
    %11 = vector.broadcast %cst_11 : bf16 to vector<24x16xbf16>
    %c184 = arith.constant 184 : index
    %c0_12 = arith.constant 0 : index
    %12 = vector.load %arg19[%c184, %c0_12] : memref<208x16xbf16, #tpu.memory_space<vmem>>, vector<24x16xbf16>
    tpu.vector_store %arg19[%c184, %c0_12], %11 {strides = array<i32>} : memref<208x16xbf16, #tpu.memory_space<vmem>>, vector<24x16xbf16>,
    %13 = vector.extract_strided_slice %7 {offsets = [0, 0], sizes = [168, 16], strides = [1, 1]} : vector<208x16xf32> to vector<168x16xf32>
    %14 = arith.mulf %13, %8 : vector<168x16xf32>
    %15 = arith.truncf %14 : vector<168x16xf32> to vector<168x16xbf16>
    %c16 = arith.constant 16 : index
    %c0_13 = arith.constant 0 : index
    %16 = vector.load %arg19[%c16, %c0_13] : memref<208x16xbf16, #tpu.memory_space<vmem>>, vector<168x16xbf16>
    tpu.vector_store %arg19[%c16, %c0_13], %15 {strides = array<i32>} : memref<208x16xbf16, #tpu.memory_space<vmem>>, vector<168x16xbf16>,
    %c1 = arith.constant 1 : index
    %c0_14 = arith.constant 0 : index
    %17 = vector.load %arg19[%c1, %c0_14] : memref<208x16xbf16, #tpu.memory_space<vmem>>, vector<168x16xbf16>
    %c0_15 = arith.constant 0 : index
    %c0_16 = arith.constant 0 : index
    %c0_17 = arith.constant 0 : index
    %18 = vector.load %arg4[%c0_15, %c0_16, %c0_17] : memref<9x16x16xbf16, #tpu.memory_space<vmem>>, vector<1x16x16xbf16>
    %19 = vector.shape_cast %18 : vector<1x16x16xbf16> to vector<16x16xbf16>
    %cst_18 = arith.constant dense<0.000000e+00> : vector<168x16xf32>
    %20 = tpu.matmul %17, %19, %cst_18 {dimension_numbers = #tpu.dot_dimension_numbers<[1], [0], [0], [1], [0, 0, 1, 1], [], []>} : vector<168x16xbf16>, vector<16x16xbf16>, vector<168x16xf32> -> vector<168x16xf32>
    %c2 = arith.constant 2 : index
    %c0_19 = arith.constant 0 : index
    %21 = vector.load %arg19[%c2, %c0_19] : memref<208x16xbf16, #tpu.memory_space<vmem>>, vector<168x16xbf16>
    %c1_20 = arith.constant 1 : index
    %c0_21 = arith.constant 0 : index
    %c0_22 = arith.constant 0 : index
    %22 = vector.load %arg4[%c1_20, %c0_21, %c0_22] : memref<9x16x16xbf16, #tpu.memory_space<vmem>>, vector<1x16x16xbf16>
    %23 = vector.shape_cast %22 : vector<1x16x16xbf16> to vector<16x16xbf16>
    %cst_23 = arith.constant dense<0.000000e+00> : vector<168x16xf32>
    %24 = tpu.matmul %21, %23, %cst_23 {dimension_numbers = #tpu.dot_dimension_numbers<[1], [0], [0], [1], [0, 0, 1, 1], [], []>} : vector<168x16xbf16>, vector<16x16xbf16>, vector<168x16xf32> -> vector<168x16xf32>
    %25 = arith.addf %20, %24 : vector<168x16xf32>
    %c3 = arith.constant 3 : index
    %c0_24 = arith.constant 0 : index
    %26 = vector.load %arg19[%c3, %c0_24] : memref<208x16xbf16, #tpu.memory_space<vmem>>, vector<168x16xbf16>
    %c2_25 = arith.constant 2 : index
    %c0_26 = arith.constant 0 : index
    %c0_27 = arith.constant 0 : index
    %27 = vector.load %arg4[%c2_25, %c0_26, %c0_27] : memref<9x16x16xbf16, #tpu.memory_space<vmem>>, vector<1x16x16xbf16>
    %28 = vector.shape_cast %27 : vector<1x16x16xbf16> to vector<16x16xbf16>
    %cst_28 = arith.constant dense<0.000000e+00> : vector<168x16xf32>
    %29 = tpu.matmul %26, %28, %cst_28 {dimension_numbers = #tpu.dot_dimension_numbers<[1], [0], [0], [1], [0, 0, 1, 1], [], []>} : vector<168x16xbf16>, vector<16x16xbf16>, vector<168x16xf32> -> vector<168x16xf32>
    %30 = arith.addf %25, %29 : vector<168x16xf32>
    %c15 = arith.constant 15 : index
    %c0_29 = arith.constant 0 : index
    %31 = vector.load %arg19[%c15, %c0_29] : memref<208x16xbf16, #tpu.memory_space<vmem>>, vector<168x16xbf16>
    %c3_30 = arith.constant 3 : index
    %c0_31 = arith.constant 0 : index
    %c0_32 = arith.constant 0 : index
    %32 = vector.load %arg4[%c3_30, %c0_31, %c0_32] : memref<9x16x16xbf16, #tpu.memory_space<vmem>>, vector<1x16x16xbf16>
    %33 = vector.shape_cast %32 : vector<1x16x16xbf16> to vector<16x16xbf16>
    %cst_33 = arith.constant dense<0.000000e+00> : vector<168x16xf32>
    %34 = tpu.matmul %31, %33, %cst_33 {dimension_numbers = #tpu.dot_dimension_numbers<[1], [0], [0], [1], [0, 0, 1, 1], [], []>} : vector<168x16xbf16>, vector<16x16xbf16>, vector<168x16xf32> -> vector<168x16xf32>
    %35 = arith.addf %30, %34 : vector<168x16xf32>
    %c16_34 = arith.constant 16 : index
    %c0_35 = arith.constant 0 : index
    %36 = vector.load %arg19[%c16_34, %c0_35] : memref<208x16xbf16, #tpu.memory_space<vmem>>, vector<168x16xbf16>
    %c4 = arith.constant 4 : index
    %c0_36 = arith.constant 0 : index
    %c0_37 = arith.constant 0 : index
    %37 = vector.load %arg4[%c4, %c0_36, %c0_37] : memref<9x16x16xbf16, #tpu.memory_space<vmem>>, vector<1x16x16xbf16>
    %38 = vector.shape_cast %37 : vector<1x16x16xbf16> to vector<16x16xbf16>
    %cst_38 = arith.constant dense<0.000000e+00> : vector<168x16xf32>
    %39 = tpu.matmul %36, %38, %cst_38 {dimension_numbers = #tpu.dot_dimension_numbers<[1], [0], [0], [1], [0, 0, 1, 1], [], []>} : vector<168x16xbf16>, vector<16x16xbf16>, vector<168x16xf32> -> vector<168x16xf32>
    %40 = arith.addf %35, %39 : vector<168x16xf32>
    %c17 = arith.constant 17 : index
    %c0_39 = arith.constant 0 : index
    %41 = vector.load %arg19[%c17, %c0_39] : memref<208x16xbf16, #tpu.memory_space<vmem>>, vector<168x16xbf16>
    %c5 = arith.constant 5 : index
    %c0_40 = arith.constant 0 : index
    %c0_41 = arith.constant 0 : index
    %42 = vector.load %arg4[%c5, %c0_40, %c0_41] : memref<9x16x16xbf16, #tpu.memory_space<vmem>>, vector<1x16x16xbf16>
    %43 = vector.shape_cast %42 : vector<1x16x16xbf16> to vector<16x16xbf16>
    %cst_42 = arith.constant dense<0.000000e+00> : vector<168x16xf32>
    %44 = tpu.matmul %41, %43, %cst_42 {dimension_numbers = #tpu.dot_dimension_numbers<[1], [0], [0], [1], [0, 0, 1, 1], [], []>} : vector<168x16xbf16>, vector<16x16xbf16>, vector<168x16xf32> -> vector<168x16xf32>
    %45 = arith.addf %40, %44 : vector<168x16xf32>
    %c29 = arith.constant 29 : index
    %c0_43 = arith.constant 0 : index
    %46 = vector.load %arg19[%c29, %c0_43] : memref<208x16xbf16, #tpu.memory_space<vmem>>, vector<168x16xbf16>
    %c6 = arith.constant 6 : index
    %c0_44 = arith.constant 0 : index
    %c0_45 = arith.constant 0 : index
    %47 = vector.load %arg4[%c6, %c0_44, %c0_45] : memref<9x16x16xbf16, #tpu.memory_space<vmem>>, vector<1x16x16xbf16>
    %48 = vector.shape_cast %47 : vector<1x16x16xbf16> to vector<16x16xbf16>
    %cst_46 = arith.constant dense<0.000000e+00> : vector<168x16xf32>
    %49 = tpu.matmul %46, %48, %cst_46 {dimension_numbers = #tpu.dot_dimension_numbers<[1], [0], [0], [1], [0, 0, 1, 1], [], []>} : vector<168x16xbf16>, vector<16x16xbf16>, vector<168x16xf32> -> vector<168x16xf32>
    %50 = arith.addf %45, %49 : vector<168x16xf32>
    %c30 = arith.constant 30 : index
    %c0_47 = arith.constant 0 : index
    %51 = vector.load %arg19[%c30, %c0_47] : memref<208x16xbf16, #tpu.memory_space<vmem>>, vector<168x16xbf16>
    %c7 = arith.constant 7 : index
    %c0_48 = arith.constant 0 : index
    %c0_49 = arith.constant 0 : index
    %52 = vector.load %arg4[%c7, %c0_48, %c0_49] : memref<9x16x16xbf16, #tpu.memory_space<vmem>>, vector<1x16x16xbf16>
    %53 = vector.shape_cast %52 : vector<1x16x16xbf16> to vector<16x16xbf16>
    %cst_50 = arith.constant dense<0.000000e+00> : vector<168x16xf32>
    %54 = tpu.matmul %51, %53, %cst_50 {dimension_numbers = #tpu.dot_dimension_numbers<[1], [0], [0], [1], [0, 0, 1, 1], [], []>} : vector<168x16xbf16>, vector<16x16xbf16>, vector<168x16xf32> -> vector<168x16xf32>
    %55 = arith.addf %50, %54 : vector<168x16xf32>
    %c31 = arith.constant 31 : index
    %c0_51 = arith.constant 0 : index
    %56 = vector.load %arg19[%c31, %c0_51] : memref<208x16xbf16, #tpu.memory_space<vmem>>, vector<168x16xbf16>
    %c8 = arith.constant 8 : index
    %c0_52 = arith.constant 0 : index
    %c0_53 = arith.constant 0 : index
    %57 = vector.load %arg4[%c8, %c0_52, %c0_53] : memref<9x16x16xbf16, #tpu.memory_space<vmem>>, vector<1x16x16xbf16>
    %58 = vector.shape_cast %57 : vector<1x16x16xbf16> to vector<16x16xbf16>
    %cst_54 = arith.constant dense<0.000000e+00> : vector<168x16xf32>
    %59 = tpu.matmul %56, %58, %cst_54 {dimension_numbers = #tpu.dot_dimension_numbers<[1], [0], [0], [1], [0, 0, 1, 1], [], []>} : vector<168x16xbf16>, vector<16x16xbf16>, vector<168x16xf32> -> vector<168x16xf32>
    %60 = arith.addf %55, %59 : vector<168x16xf32>
    %c0_55 = arith.constant 0 : index
    %c0_56 = arith.constant 0 : index
    %61 = vector.load %arg5[%c0_55, %c0_56] : memref<1x16xf32, #tpu.memory_space<vmem>>, vector<1x16xf32>
    %62 = vector.broadcast %61 : vector<1x16xf32> to vector<168x16xf32>
    %63 = arith.addf %60, %62 : vector<168x16xf32>
    %cst_57 = arith.constant 0.000000e+00 : f32
    %64 = vector.broadcast %cst_57 : f32 to vector<168x16xf32>
    %65 = arith.maximumf %63, %64 : vector<168x16xf32>
    %66 = vector.extract_strided_slice %65 {offsets = [0, 0], sizes = [154, 16], strides = [1, 1]} : vector<168x16xf32> to vector<154x16xf32>
    %67 = vector.extract_strided_slice %65 {offsets = [14, 0], sizes = [154, 16], strides = [1, 1]} : vector<168x16xf32> to vector<154x16xf32>
    %68 = arith.maximumf %66, %67 : vector<154x16xf32>
    %69 = vector.extract_strided_slice %68 {offsets = [0, 0], sizes = [153, 16], strides = [1, 1]} : vector<154x16xf32> to vector<153x16xf32>
    %70 = vector.extract_strided_slice %68 {offsets = [1, 0], sizes = [153, 16], strides = [1, 1]} : vector<154x16xf32> to vector<153x16xf32>
    %71 = arith.maximumf %69, %70 : vector<153x16xf32>
    %72 = arith.truncf %71 : vector<153x16xf32> to vector<153x16xbf16>
    %c0_58 = arith.constant 0 : index
    %c0_59 = arith.constant 0 : index
    %73 = vector.load %arg12[%c0_58, %c0_59] : memref<80x152xbf16, #tpu.memory_space<vmem>>, vector<80x152xbf16>
    %74 = vector.extract_strided_slice %72 {offsets = [0, 0], sizes = [152, 16], strides = [1, 1]} : vector<153x16xbf16> to vector<152x16xbf16>
    %cst_60 = arith.constant dense<0.000000e+00> : vector<80x16xf32>
    %75 = tpu.matmul %73, %74, %cst_60 {dimension_numbers = #tpu.dot_dimension_numbers<[1], [0], [0], [1], [0, 0, 1, 1], [], []>} : vector<80x152xbf16>, vector<152x16xbf16>, vector<80x16xf32> -> vector<80x16xf32>
    %76 = arith.truncf %75 : vector<80x16xf32> to vector<80x16xbf16>
    %c0_61 = arith.constant 0 : index
    %c0_62 = arith.constant 0 : index
    %77 = vector.load %arg20[%c0_61, %c0_62] : memref<80x16xbf16, #tpu.memory_space<vmem>>, vector<80x16xbf16>
    tpu.vector_store %arg20[%c0_61, %c0_62], %76 {strides = array<i32>} : memref<80x16xbf16, #tpu.memory_space<vmem>>, vector<80x16xbf16>,
    %c7_63 = arith.constant 7 : index
    %c0_64 = arith.constant 0 : index
    %78 = vector.load %arg20[%c7_63, %c0_64] : memref<80x16xbf16, #tpu.memory_space<vmem>>, vector<48x16xbf16>
    %c0_65 = arith.constant 0 : index
    %c0_66 = arith.constant 0 : index
    %c0_67 = arith.constant 0 : index
    %79 = vector.load %arg6[%c0_65, %c0_66, %c0_67] : memref<9x16x32xbf16, #tpu.memory_space<vmem>>, vector<1x16x32xbf16>
    %80 = vector.shape_cast %79 : vector<1x16x32xbf16> to vector<16x32xbf16>
    %cst_68 = arith.constant dense<0.000000e+00> : vector<48x32xf32>
    %81 = tpu.matmul %78, %80, %cst_68 {dimension_numbers = #tpu.dot_dimension_numbers<[1], [0], [0], [1], [0, 0, 1, 1], [], []>} : vector<48x16xbf16>, vector<16x32xbf16>, vector<48x32xf32> -> vector<48x32xf32>
    %c8_69 = arith.constant 8 : index
    %c0_70 = arith.constant 0 : index
    %82 = vector.load %arg20[%c8_69, %c0_70] : memref<80x16xbf16, #tpu.memory_space<vmem>>, vector<48x16xbf16>
    %c1_71 = arith.constant 1 : index
    %c0_72 = arith.constant 0 : index
    %c0_73 = arith.constant 0 : index
    %83 = vector.load %arg6[%c1_71, %c0_72, %c0_73] : memref<9x16x32xbf16, #tpu.memory_space<vmem>>, vector<1x16x32xbf16>
    %84 = vector.shape_cast %83 : vector<1x16x32xbf16> to vector<16x32xbf16>
    %cst_74 = arith.constant dense<0.000000e+00> : vector<48x32xf32>
    %85 = tpu.matmul %82, %84, %cst_74 {dimension_numbers = #tpu.dot_dimension_numbers<[1], [0], [0], [1], [0, 0, 1, 1], [], []>} : vector<48x16xbf16>, vector<16x32xbf16>, vector<48x32xf32> -> vector<48x32xf32>
    %86 = arith.addf %81, %85 : vector<48x32xf32>
    %c9 = arith.constant 9 : index
    %c0_75 = arith.constant 0 : index
    %87 = vector.load %arg20[%c9, %c0_75] : memref<80x16xbf16, #tpu.memory_space<vmem>>, vector<48x16xbf16>
    %c2_76 = arith.constant 2 : index
    %c0_77 = arith.constant 0 : index
    %c0_78 = arith.constant 0 : index
    %88 = vector.load %arg6[%c2_76, %c0_77, %c0_78] : memref<9x16x32xbf16, #tpu.memory_space<vmem>>, vector<1x16x32xbf16>
    %89 = vector.shape_cast %88 : vector<1x16x32xbf16> to vector<16x32xbf16>
    %cst_79 = arith.constant dense<0.000000e+00> : vector<48x32xf32>
    %90 = tpu.matmul %87, %89, %cst_79 {dimension_numbers = #tpu.dot_dimension_numbers<[1], [0], [0], [1], [0, 0, 1, 1], [], []>} : vector<48x16xbf16>, vector<16x32xbf16>, vector<48x32xf32> -> vector<48x32xf32>
    %91 = arith.addf %86, %90 : vector<48x32xf32>
    %c15_80 = arith.constant 15 : index
    %c0_81 = arith.constant 0 : index
    %92 = vector.load %arg20[%c15_80, %c0_81] : memref<80x16xbf16, #tpu.memory_space<vmem>>, vector<48x16xbf16>
    %c3_82 = arith.constant 3 : index
    %c0_83 = arith.constant 0 : index
    %c0_84 = arith.constant 0 : index
    %93 = vector.load %arg6[%c3_82, %c0_83, %c0_84] : memref<9x16x32xbf16, #tpu.memory_space<vmem>>, vector<1x16x32xbf16>
    %94 = vector.shape_cast %93 : vector<1x16x32xbf16> to vector<16x32xbf16>
    %cst_85 = arith.constant dense<0.000000e+00> : vector<48x32xf32>
    %95 = tpu.matmul %92, %94, %cst_85 {dimension_numbers = #tpu.dot_dimension_numbers<[1], [0], [0], [1], [0, 0, 1, 1], [], []>} : vector<48x16xbf16>, vector<16x32xbf16>, vector<48x32xf32> -> vector<48x32xf32>
    %96 = arith.addf %91, %95 : vector<48x32xf32>
    %c16_86 = arith.constant 16 : index
    %c0_87 = arith.constant 0 : index
    %97 = vector.load %arg20[%c16_86, %c0_87] : memref<80x16xbf16, #tpu.memory_space<vmem>>, vector<48x16xbf16>
    %c4_88 = arith.constant 4 : index
    %c0_89 = arith.constant 0 : index
    %c0_90 = arith.constant 0 : index
    %98 = vector.load %arg6[%c4_88, %c0_89, %c0_90] : memref<9x16x32xbf16, #tpu.memory_space<vmem>>, vector<1x16x32xbf16>
    %99 = vector.shape_cast %98 : vector<1x16x32xbf16> to vector<16x32xbf16>
    %cst_91 = arith.constant dense<0.000000e+00> : vector<48x32xf32>
    %100 = tpu.matmul %97, %99, %cst_91 {dimension_numbers = #tpu.dot_dimension_numbers<[1], [0], [0], [1], [0, 0, 1, 1], [], []>} : vector<48x16xbf16>, vector<16x32xbf16>, vector<48x32xf32> -> vector<48x32xf32>
    %101 = arith.addf %96, %100 : vector<48x32xf32>
    %c17_92 = arith.constant 17 : index
    %c0_93 = arith.constant 0 : index
    %102 = vector.load %arg20[%c17_92, %c0_93] : memref<80x16xbf16, #tpu.memory_space<vmem>>, vector<48x16xbf16>
    %c5_94 = arith.constant 5 : index
    %c0_95 = arith.constant 0 : index
    %c0_96 = arith.constant 0 : index
    %103 = vector.load %arg6[%c5_94, %c0_95, %c0_96] : memref<9x16x32xbf16, #tpu.memory_space<vmem>>, vector<1x16x32xbf16>
    %104 = vector.shape_cast %103 : vector<1x16x32xbf16> to vector<16x32xbf16>
    %cst_97 = arith.constant dense<0.000000e+00> : vector<48x32xf32>
    %105 = tpu.matmul %102, %104, %cst_97 {dimension_numbers = #tpu.dot_dimension_numbers<[1], [0], [0], [1], [0, 0, 1, 1], [], []>} : vector<48x16xbf16>, vector<16x32xbf16>, vector<48x32xf32> -> vector<48x32xf32>
    %106 = arith.addf %101, %105 : vector<48x32xf32>
    %c23 = arith.constant 23 : index
    %c0_98 = arith.constant 0 : index
    %107 = vector.load %arg20[%c23, %c0_98] : memref<80x16xbf16, #tpu.memory_space<vmem>>, vector<48x16xbf16>
    %c6_99 = arith.constant 6 : index
    %c0_100 = arith.constant 0 : index
    %c0_101 = arith.constant 0 : index
    %108 = vector.load %arg6[%c6_99, %c0_100, %c0_101] : memref<9x16x32xbf16, #tpu.memory_space<vmem>>, vector<1x16x32xbf16>
    %109 = vector.shape_cast %108 : vector<1x16x32xbf16> to vector<16x32xbf16>
    %cst_102 = arith.constant dense<0.000000e+00> : vector<48x32xf32>
    %110 = tpu.matmul %107, %109, %cst_102 {dimension_numbers = #tpu.dot_dimension_numbers<[1], [0], [0], [1], [0, 0, 1, 1], [], []>} : vector<48x16xbf16>, vector<16x32xbf16>, vector<48x32xf32> -> vector<48x32xf32>
    %111 = arith.addf %106, %110 : vector<48x32xf32>
    %c24 = arith.constant 24 : index
    %c0_103 = arith.constant 0 : index
    %112 = vector.load %arg20[%c24, %c0_103] : memref<80x16xbf16, #tpu.memory_space<vmem>>, vector<48x16xbf16>
    %c7_104 = arith.constant 7 : index
    %c0_105 = arith.constant 0 : index
    %c0_106 = arith.constant 0 : index
    %113 = vector.load %arg6[%c7_104, %c0_105, %c0_106] : memref<9x16x32xbf16, #tpu.memory_space<vmem>>, vector<1x16x32xbf16>
    %114 = vector.shape_cast %113 : vector<1x16x32xbf16> to vector<16x32xbf16>
    %cst_107 = arith.constant dense<0.000000e+00> : vector<48x32xf32>
    %115 = tpu.matmul %112, %114, %cst_107 {dimension_numbers = #tpu.dot_dimension_numbers<[1], [0], [0], [1], [0, 0, 1, 1], [], []>} : vector<48x16xbf16>, vector<16x32xbf16>, vector<48x32xf32> -> vector<48x32xf32>
    %116 = arith.addf %111, %115 : vector<48x32xf32>
    %c25 = arith.constant 25 : index
    %c0_108 = arith.constant 0 : index
    %117 = vector.load %arg20[%c25, %c0_108] : memref<80x16xbf16, #tpu.memory_space<vmem>>, vector<48x16xbf16>
    %c8_109 = arith.constant 8 : index
    %c0_110 = arith.constant 0 : index
    %c0_111 = arith.constant 0 : index
    %118 = vector.load %arg6[%c8_109, %c0_110, %c0_111] : memref<9x16x32xbf16, #tpu.memory_space<vmem>>, vector<1x16x32xbf16>
    %119 = vector.shape_cast %118 : vector<1x16x32xbf16> to vector<16x32xbf16>
    %cst_112 = arith.constant dense<0.000000e+00> : vector<48x32xf32>
    %120 = tpu.matmul %117, %119, %cst_112 {dimension_numbers = #tpu.dot_dimension_numbers<[1], [0], [0], [1], [0, 0, 1, 1], [], []>} : vector<48x16xbf16>, vector<16x32xbf16>, vector<48x32xf32> -> vector<48x32xf32>
    %121 = arith.addf %116, %120 : vector<48x32xf32>
    %c0_113 = arith.constant 0 : index
    %c0_114 = arith.constant 0 : index
    %122 = vector.load %arg7[%c0_113, %c0_114] : memref<1x32xf32, #tpu.memory_space<vmem>>, vector<1x32xf32>
    %123 = vector.broadcast %122 : vector<1x32xf32> to vector<48x32xf32>
    %124 = arith.addf %121, %123 : vector<48x32xf32>
    %cst_115 = arith.constant 0.000000e+00 : f32
    %125 = vector.broadcast %cst_115 : f32 to vector<48x32xf32>
    %126 = arith.maximumf %124, %125 : vector<48x32xf32>
    %c0_116 = arith.constant 0 : index
    %c0_117 = arith.constant 0 : index
    %127 = vector.load %arg11[%c0_116, %c0_117] : memref<48x32xf32, #tpu.memory_space<vmem>>, vector<48x32xf32>
    %cst_118 = arith.constant 0.000000e+00 : bf16
    %128 = vector.broadcast %cst_118 : bf16 to vector<16x32xbf16>
    %c0_119 = arith.constant 0 : index
    %c0_120 = arith.constant 0 : index
    %129 = vector.load %arg21[%c0_119, %c0_120] : memref<80x32xbf16, #tpu.memory_space<vmem>>, vector<16x32xbf16>
    tpu.vector_store %arg21[%c0_119, %c0_120], %128 {strides = array<i32>} : memref<80x32xbf16, #tpu.memory_space<vmem>>, vector<16x32xbf16>,
    %cst_121 = arith.constant 0.000000e+00 : bf16
    %130 = vector.broadcast %cst_121 : bf16 to vector<16x32xbf16>
    %c64 = arith.constant 64 : index
    %c0_122 = arith.constant 0 : index
    %131 = vector.load %arg21[%c64, %c0_122] : memref<80x32xbf16, #tpu.memory_space<vmem>>, vector<16x32xbf16>
    tpu.vector_store %arg21[%c64, %c0_122], %130 {strides = array<i32>} : memref<80x32xbf16, #tpu.memory_space<vmem>>, vector<16x32xbf16>,
    %132 = arith.mulf %126, %127 : vector<48x32xf32>
    %133 = arith.truncf %132 : vector<48x32xf32> to vector<48x32xbf16>
    %c16_123 = arith.constant 16 : index
    %c0_124 = arith.constant 0 : index
    %134 = vector.load %arg21[%c16_123, %c0_124] : memref<80x32xbf16, #tpu.memory_space<vmem>>, vector<48x32xbf16>
    tpu.vector_store %arg21[%c16_123, %c0_124], %133 {strides = array<i32>} : memref<80x32xbf16, #tpu.memory_space<vmem>>, vector<48x32xbf16>,
    %c7_125 = arith.constant 7 : index
    %c0_126 = arith.constant 0 : index
    %135 = vector.load %arg21[%c7_125, %c0_126] : memref<80x32xbf16, #tpu.memory_space<vmem>>, vector<48x32xbf16>
    %c0_127 = arith.constant 0 : index
    %c0_128 = arith.constant 0 : index
    %c0_129 = arith.constant 0 : index
    %136 = vector.load %arg8[%c0_127, %c0_128, %c0_129] : memref<9x32x32xbf16, #tpu.memory_space<vmem>>, vector<1x32x32xbf16>
    %137 = vector.shape_cast %136 : vector<1x32x32xbf16> to vector<32x32xbf16>
    %cst_130 = arith.constant dense<0.000000e+00> : vector<48x32xf32>
    %138 = tpu.matmul %135, %137, %cst_130 {dimension_numbers = #tpu.dot_dimension_numbers<[1], [0], [0], [1], [0, 0, 1, 1], [], []>} : vector<48x32xbf16>, vector<32x32xbf16>, vector<48x32xf32> -> vector<48x32xf32>
    %c8_131 = arith.constant 8 : index
    %c0_132 = arith.constant 0 : index
    %139 = vector.load %arg21[%c8_131, %c0_132] : memref<80x32xbf16, #tpu.memory_space<vmem>>, vector<48x32xbf16>
    %c1_133 = arith.constant 1 : index
    %c0_134 = arith.constant 0 : index
    %c0_135 = arith.constant 0 : index
    %140 = vector.load %arg8[%c1_133, %c0_134, %c0_135] : memref<9x32x32xbf16, #tpu.memory_space<vmem>>, vector<1x32x32xbf16>
    %141 = vector.shape_cast %140 : vector<1x32x32xbf16> to vector<32x32xbf16>
    %cst_136 = arith.constant dense<0.000000e+00> : vector<48x32xf32>
    %142 = tpu.matmul %139, %141, %cst_136 {dimension_numbers = #tpu.dot_dimension_numbers<[1], [0], [0], [1], [0, 0, 1, 1], [], []>} : vector<48x32xbf16>, vector<32x32xbf16>, vector<48x32xf32> -> vector<48x32xf32>
    %143 = arith.addf %138, %142 : vector<48x32xf32>
    %c9_137 = arith.constant 9 : index
    %c0_138 = arith.constant 0 : index
    %144 = vector.load %arg21[%c9_137, %c0_138] : memref<80x32xbf16, #tpu.memory_space<vmem>>, vector<48x32xbf16>
    %c2_139 = arith.constant 2 : index
    %c0_140 = arith.constant 0 : index
    %c0_141 = arith.constant 0 : index
    %145 = vector.load %arg8[%c2_139, %c0_140, %c0_141] : memref<9x32x32xbf16, #tpu.memory_space<vmem>>, vector<1x32x32xbf16>
    %146 = vector.shape_cast %145 : vector<1x32x32xbf16> to vector<32x32xbf16>
    %cst_142 = arith.constant dense<0.000000e+00> : vector<48x32xf32>
    %147 = tpu.matmul %144, %146, %cst_142 {dimension_numbers = #tpu.dot_dimension_numbers<[1], [0], [0], [1], [0, 0, 1, 1], [], []>} : vector<48x32xbf16>, vector<32x32xbf16>, vector<48x32xf32> -> vector<48x32xf32>
    %148 = arith.addf %143, %147 : vector<48x32xf32>
    %c15_143 = arith.constant 15 : index
    %c0_144 = arith.constant 0 : index
    %149 = vector.load %arg21[%c15_143, %c0_144] : memref<80x32xbf16, #tpu.memory_space<vmem>>, vector<48x32xbf16>
    %c3_145 = arith.constant 3 : index
    %c0_146 = arith.constant 0 : index
    %c0_147 = arith.constant 0 : index
    %150 = vector.load %arg8[%c3_145, %c0_146, %c0_147] : memref<9x32x32xbf16, #tpu.memory_space<vmem>>, vector<1x32x32xbf16>
    %151 = vector.shape_cast %150 : vector<1x32x32xbf16> to vector<32x32xbf16>
    %cst_148 = arith.constant dense<0.000000e+00> : vector<48x32xf32>
    %152 = tpu.matmul %149, %151, %cst_148 {dimension_numbers = #tpu.dot_dimension_numbers<[1], [0], [0], [1], [0, 0, 1, 1], [], []>} : vector<48x32xbf16>, vector<32x32xbf16>, vector<48x32xf32> -> vector<48x32xf32>
    %153 = arith.addf %148, %152 : vector<48x32xf32>
    %c16_149 = arith.constant 16 : index
    %c0_150 = arith.constant 0 : index
    %154 = vector.load %arg21[%c16_149, %c0_150] : memref<80x32xbf16, #tpu.memory_space<vmem>>, vector<48x32xbf16>
    %c4_151 = arith.constant 4 : index
    %c0_152 = arith.constant 0 : index
    %c0_153 = arith.constant 0 : index
    %155 = vector.load %arg8[%c4_151, %c0_152, %c0_153] : memref<9x32x32xbf16, #tpu.memory_space<vmem>>, vector<1x32x32xbf16>
    %156 = vector.shape_cast %155 : vector<1x32x32xbf16> to vector<32x32xbf16>
    %cst_154 = arith.constant dense<0.000000e+00> : vector<48x32xf32>
    %157 = tpu.matmul %154, %156, %cst_154 {dimension_numbers = #tpu.dot_dimension_numbers<[1], [0], [0], [1], [0, 0, 1, 1], [], []>} : vector<48x32xbf16>, vector<32x32xbf16>, vector<48x32xf32> -> vector<48x32xf32>
    %158 = arith.addf %153, %157 : vector<48x32xf32>
    %c17_155 = arith.constant 17 : index
    %c0_156 = arith.constant 0 : index
    %159 = vector.load %arg21[%c17_155, %c0_156] : memref<80x32xbf16, #tpu.memory_space<vmem>>, vector<48x32xbf16>
    %c5_157 = arith.constant 5 : index
    %c0_158 = arith.constant 0 : index
    %c0_159 = arith.constant 0 : index
    %160 = vector.load %arg8[%c5_157, %c0_158, %c0_159] : memref<9x32x32xbf16, #tpu.memory_space<vmem>>, vector<1x32x32xbf16>
    %161 = vector.shape_cast %160 : vector<1x32x32xbf16> to vector<32x32xbf16>
    %cst_160 = arith.constant dense<0.000000e+00> : vector<48x32xf32>
    %162 = tpu.matmul %159, %161, %cst_160 {dimension_numbers = #tpu.dot_dimension_numbers<[1], [0], [0], [1], [0, 0, 1, 1], [], []>} : vector<48x32xbf16>, vector<32x32xbf16>, vector<48x32xf32> -> vector<48x32xf32>
    %163 = arith.addf %158, %162 : vector<48x32xf32>
    %c23_161 = arith.constant 23 : index
    %c0_162 = arith.constant 0 : index
    %164 = vector.load %arg21[%c23_161, %c0_162] : memref<80x32xbf16, #tpu.memory_space<vmem>>, vector<48x32xbf16>
    %c6_163 = arith.constant 6 : index
    %c0_164 = arith.constant 0 : index
    %c0_165 = arith.constant 0 : index
    %165 = vector.load %arg8[%c6_163, %c0_164, %c0_165] : memref<9x32x32xbf16, #tpu.memory_space<vmem>>, vector<1x32x32xbf16>
    %166 = vector.shape_cast %165 : vector<1x32x32xbf16> to vector<32x32xbf16>
    %cst_166 = arith.constant dense<0.000000e+00> : vector<48x32xf32>
    %167 = tpu.matmul %164, %166, %cst_166 {dimension_numbers = #tpu.dot_dimension_numbers<[1], [0], [0], [1], [0, 0, 1, 1], [], []>} : vector<48x32xbf16>, vector<32x32xbf16>, vector<48x32xf32> -> vector<48x32xf32>
    %168 = arith.addf %163, %167 : vector<48x32xf32>
    %c24_167 = arith.constant 24 : index
    %c0_168 = arith.constant 0 : index
    %169 = vector.load %arg21[%c24_167, %c0_168] : memref<80x32xbf16, #tpu.memory_space<vmem>>, vector<48x32xbf16>
    %c7_169 = arith.constant 7 : index
    %c0_170 = arith.constant 0 : index
    %c0_171 = arith.constant 0 : index
    %170 = vector.load %arg8[%c7_169, %c0_170, %c0_171] : memref<9x32x32xbf16, #tpu.memory_space<vmem>>, vector<1x32x32xbf16>
    %171 = vector.shape_cast %170 : vector<1x32x32xbf16> to vector<32x32xbf16>
    %cst_172 = arith.constant dense<0.000000e+00> : vector<48x32xf32>
    %172 = tpu.matmul %169, %171, %cst_172 {dimension_numbers = #tpu.dot_dimension_numbers<[1], [0], [0], [1], [0, 0, 1, 1], [], []>} : vector<48x32xbf16>, vector<32x32xbf16>, vector<48x32xf32> -> vector<48x32xf32>
    %173 = arith.addf %168, %172 : vector<48x32xf32>
    %c25_173 = arith.constant 25 : index
    %c0_174 = arith.constant 0 : index
    %174 = vector.load %arg21[%c25_173, %c0_174] : memref<80x32xbf16, #tpu.memory_space<vmem>>, vector<48x32xbf16>
    %c8_175 = arith.constant 8 : index
    %c0_176 = arith.constant 0 : index
    %c0_177 = arith.constant 0 : index
    %175 = vector.load %arg8[%c8_175, %c0_176, %c0_177] : memref<9x32x32xbf16, #tpu.memory_space<vmem>>, vector<1x32x32xbf16>
    %176 = vector.shape_cast %175 : vector<1x32x32xbf16> to vector<32x32xbf16>
    %cst_178 = arith.constant dense<0.000000e+00> : vector<48x32xf32>
    %177 = tpu.matmul %174, %176, %cst_178 {dimension_numbers = #tpu.dot_dimension_numbers<[1], [0], [0], [1], [0, 0, 1, 1], [], []>} : vector<48x32xbf16>, vector<32x32xbf16>, vector<48x32xf32> -> vector<48x32xf32>
    %178 = arith.addf %173, %177 : vector<48x32xf32>
    %c0_179 = arith.constant 0 : index
    %c0_180 = arith.constant 0 : index
    %179 = vector.load %arg9[%c0_179, %c0_180] : memref<1x32xf32, #tpu.memory_space<vmem>>, vector<1x32xf32>
    %180 = vector.broadcast %179 : vector<1x32xf32> to vector<48x32xf32>
    %181 = arith.addf %178, %180 : vector<48x32xf32>
    %cst_181 = arith.constant 0.000000e+00 : f32
    %182 = vector.broadcast %cst_181 : f32 to vector<48x32xf32>
    %183 = arith.maximumf %181, %182 : vector<48x32xf32>
    %184 = vector.extract_strided_slice %183 {offsets = [0, 0], sizes = [40, 32], strides = [1, 1]} : vector<48x32xf32> to vector<40x32xf32>
    %185 = vector.extract_strided_slice %183 {offsets = [8, 0], sizes = [40, 32], strides = [1, 1]} : vector<48x32xf32> to vector<40x32xf32>
    %186 = arith.maximumf %184, %185 : vector<40x32xf32>
    %187 = vector.extract_strided_slice %186 {offsets = [0, 0], sizes = [39, 32], strides = [1, 1]} : vector<40x32xf32> to vector<39x32xf32>
    %188 = vector.extract_strided_slice %186 {offsets = [1, 0], sizes = [39, 32], strides = [1, 1]} : vector<40x32xf32> to vector<39x32xf32>
    %189 = arith.maximumf %187, %188 : vector<39x32xf32>
    %190 = arith.truncf %189 : vector<39x32xf32> to vector<39x32xbf16>
    %c0_182 = arith.constant 0 : index
    %c0_183 = arith.constant 0 : index
    %191 = vector.load %arg13[%c0_182, %c0_183] : memref<9x39xbf16, #tpu.memory_space<vmem>>, vector<9x39xbf16>
    %cst_184 = arith.constant dense<0.000000e+00> : vector<9x32xf32>
    %192 = tpu.matmul %191, %190, %cst_184 {dimension_numbers = #tpu.dot_dimension_numbers<[1], [0], [0], [1], [0, 0, 1, 1], [], []>} : vector<9x39xbf16>, vector<39x32xbf16>, vector<9x32xf32> -> vector<9x32xf32>
    %193 = arith.truncf %192 : vector<9x32xf32> to vector<9x32xbf16>
    %194 = vector.extract_strided_slice %193 {offsets = [0, 0], sizes = [1, 32], strides = [1, 1]} : vector<9x32xbf16> to vector<1x32xbf16>
    %c0_185 = arith.constant 0 : index
    %c0_186 = arith.constant 0 : index
    %c0_187 = arith.constant 0 : index
    %195 = vector.load %arg14[%c0_185, %c0_186, %c0_187] : memref<9x32x250xbf16, #tpu.memory_space<vmem>>, vector<1x32x250xbf16>
    %196 = vector.shape_cast %195 : vector<1x32x250xbf16> to vector<32x250xbf16>
    %cst_188 = arith.constant dense<0.000000e+00> : vector<1x250xf32>
    %197 = tpu.matmul %194, %196, %cst_188 {dimension_numbers = #tpu.dot_dimension_numbers<[1], [0], [0], [1], [0, 0, 1, 1], [], []>} : vector<1x32xbf16>, vector<32x250xbf16>, vector<1x250xf32> -> vector<1x250xf32>
    %198 = vector.extract_strided_slice %193 {offsets = [1, 0], sizes = [1, 32], strides = [1, 1]} : vector<9x32xbf16> to vector<1x32xbf16>
    %c1_189 = arith.constant 1 : index
    %c0_190 = arith.constant 0 : index
    %c0_191 = arith.constant 0 : index
    %199 = vector.load %arg14[%c1_189, %c0_190, %c0_191] : memref<9x32x250xbf16, #tpu.memory_space<vmem>>, vector<1x32x250xbf16>
    %200 = vector.shape_cast %199 : vector<1x32x250xbf16> to vector<32x250xbf16>
    %cst_192 = arith.constant dense<0.000000e+00> : vector<1x250xf32>
    %201 = tpu.matmul %198, %200, %cst_192 {dimension_numbers = #tpu.dot_dimension_numbers<[1], [0], [0], [1], [0, 0, 1, 1], [], []>} : vector<1x32xbf16>, vector<32x250xbf16>, vector<1x250xf32> -> vector<1x250xf32>
    %202 = arith.addf %197, %201 : vector<1x250xf32>
    %203 = vector.extract_strided_slice %193 {offsets = [2, 0], sizes = [1, 32], strides = [1, 1]} : vector<9x32xbf16> to vector<1x32xbf16>
    %c2_193 = arith.constant 2 : index
    %c0_194 = arith.constant 0 : index
    %c0_195 = arith.constant 0 : index
    %204 = vector.load %arg14[%c2_193, %c0_194, %c0_195] : memref<9x32x250xbf16, #tpu.memory_space<vmem>>, vector<1x32x250xbf16>
    %205 = vector.shape_cast %204 : vector<1x32x250xbf16> to vector<32x250xbf16>
    %cst_196 = arith.constant dense<0.000000e+00> : vector<1x250xf32>
    %206 = tpu.matmul %203, %205, %cst_196 {dimension_numbers = #tpu.dot_dimension_numbers<[1], [0], [0], [1], [0, 0, 1, 1], [], []>} : vector<1x32xbf16>, vector<32x250xbf16>, vector<1x250xf32> -> vector<1x250xf32>
    %207 = arith.addf %202, %206 : vector<1x250xf32>
    %208 = vector.extract_strided_slice %193 {offsets = [3, 0], sizes = [1, 32], strides = [1, 1]} : vector<9x32xbf16> to vector<1x32xbf16>
    %c3_197 = arith.constant 3 : index
    %c0_198 = arith.constant 0 : index
    %c0_199 = arith.constant 0 : index
    %209 = vector.load %arg14[%c3_197, %c0_198, %c0_199] : memref<9x32x250xbf16, #tpu.memory_space<vmem>>, vector<1x32x250xbf16>
    %210 = vector.shape_cast %209 : vector<1x32x250xbf16> to vector<32x250xbf16>
    %cst_200 = arith.constant dense<0.000000e+00> : vector<1x250xf32>
    %211 = tpu.matmul %208, %210, %cst_200 {dimension_numbers = #tpu.dot_dimension_numbers<[1], [0], [0], [1], [0, 0, 1, 1], [], []>} : vector<1x32xbf16>, vector<32x250xbf16>, vector<1x250xf32> -> vector<1x250xf32>
    %212 = arith.addf %207, %211 : vector<1x250xf32>
    %213 = vector.extract_strided_slice %193 {offsets = [4, 0], sizes = [1, 32], strides = [1, 1]} : vector<9x32xbf16> to vector<1x32xbf16>
    %c4_201 = arith.constant 4 : index
    %c0_202 = arith.constant 0 : index
    %c0_203 = arith.constant 0 : index
    %214 = vector.load %arg14[%c4_201, %c0_202, %c0_203] : memref<9x32x250xbf16, #tpu.memory_space<vmem>>, vector<1x32x250xbf16>
    %215 = vector.shape_cast %214 : vector<1x32x250xbf16> to vector<32x250xbf16>
    %cst_204 = arith.constant dense<0.000000e+00> : vector<1x250xf32>
    %216 = tpu.matmul %213, %215, %cst_204 {dimension_numbers = #tpu.dot_dimension_numbers<[1], [0], [0], [1], [0, 0, 1, 1], [], []>} : vector<1x32xbf16>, vector<32x250xbf16>, vector<1x250xf32> -> vector<1x250xf32>
    %217 = arith.addf %212, %216 : vector<1x250xf32>
    %218 = vector.extract_strided_slice %193 {offsets = [5, 0], sizes = [1, 32], strides = [1, 1]} : vector<9x32xbf16> to vector<1x32xbf16>
    %c5_205 = arith.constant 5 : index
    %c0_206 = arith.constant 0 : index
    %c0_207 = arith.constant 0 : index
    %219 = vector.load %arg14[%c5_205, %c0_206, %c0_207] : memref<9x32x250xbf16, #tpu.memory_space<vmem>>, vector<1x32x250xbf16>
    %220 = vector.shape_cast %219 : vector<1x32x250xbf16> to vector<32x250xbf16>
    %cst_208 = arith.constant dense<0.000000e+00> : vector<1x250xf32>
    %221 = tpu.matmul %218, %220, %cst_208 {dimension_numbers = #tpu.dot_dimension_numbers<[1], [0], [0], [1], [0, 0, 1, 1], [], []>} : vector<1x32xbf16>, vector<32x250xbf16>, vector<1x250xf32> -> vector<1x250xf32>
    %222 = arith.addf %217, %221 : vector<1x250xf32>
    %223 = vector.extract_strided_slice %193 {offsets = [6, 0], sizes = [1, 32], strides = [1, 1]} : vector<9x32xbf16> to vector<1x32xbf16>
    %c6_209 = arith.constant 6 : index
    %c0_210 = arith.constant 0 : index
    %c0_211 = arith.constant 0 : index
    %224 = vector.load %arg14[%c6_209, %c0_210, %c0_211] : memref<9x32x250xbf16, #tpu.memory_space<vmem>>, vector<1x32x250xbf16>
    %225 = vector.shape_cast %224 : vector<1x32x250xbf16> to vector<32x250xbf16>
    %cst_212 = arith.constant dense<0.000000e+00> : vector<1x250xf32>
    %226 = tpu.matmul %223, %225, %cst_212 {dimension_numbers = #tpu.dot_dimension_numbers<[1], [0], [0], [1], [0, 0, 1, 1], [], []>} : vector<1x32xbf16>, vector<32x250xbf16>, vector<1x250xf32> -> vector<1x250xf32>
    %227 = arith.addf %222, %226 : vector<1x250xf32>
    %228 = vector.extract_strided_slice %193 {offsets = [7, 0], sizes = [1, 32], strides = [1, 1]} : vector<9x32xbf16> to vector<1x32xbf16>
    %c7_213 = arith.constant 7 : index
    %c0_214 = arith.constant 0 : index
    %c0_215 = arith.constant 0 : index
    %229 = vector.load %arg14[%c7_213, %c0_214, %c0_215] : memref<9x32x250xbf16, #tpu.memory_space<vmem>>, vector<1x32x250xbf16>
    %230 = vector.shape_cast %229 : vector<1x32x250xbf16> to vector<32x250xbf16>
    %cst_216 = arith.constant dense<0.000000e+00> : vector<1x250xf32>
    %231 = tpu.matmul %228, %230, %cst_216 {dimension_numbers = #tpu.dot_dimension_numbers<[1], [0], [0], [1], [0, 0, 1, 1], [], []>} : vector<1x32xbf16>, vector<32x250xbf16>, vector<1x250xf32> -> vector<1x250xf32>
    %232 = arith.addf %227, %231 : vector<1x250xf32>
    %233 = vector.extract_strided_slice %193 {offsets = [8, 0], sizes = [1, 32], strides = [1, 1]} : vector<9x32xbf16> to vector<1x32xbf16>
    %c8_217 = arith.constant 8 : index
    %c0_218 = arith.constant 0 : index
    %c0_219 = arith.constant 0 : index
    %234 = vector.load %arg14[%c8_217, %c0_218, %c0_219] : memref<9x32x250xbf16, #tpu.memory_space<vmem>>, vector<1x32x250xbf16>
    %235 = vector.shape_cast %234 : vector<1x32x250xbf16> to vector<32x250xbf16>
    %cst_220 = arith.constant dense<0.000000e+00> : vector<1x250xf32>
    %236 = tpu.matmul %233, %235, %cst_220 {dimension_numbers = #tpu.dot_dimension_numbers<[1], [0], [0], [1], [0, 0, 1, 1], [], []>} : vector<1x32xbf16>, vector<32x250xbf16>, vector<1x250xf32> -> vector<1x250xf32>
    %237 = arith.addf %232, %236 : vector<1x250xf32>
    %c0_221 = arith.constant 0 : index
    %c0_222 = arith.constant 0 : index
    %238 = vector.load %arg15[%c0_221, %c0_222] : memref<1x250xf32, #tpu.memory_space<vmem>>, vector<1x250xf32>
    %239 = arith.addf %237, %238 : vector<1x250xf32>
    %cst_223 = arith.constant 0.000000e+00 : f32
    %240 = vector.broadcast %cst_223 : f32 to vector<1x250xf32>
    %241 = arith.maximumf %239, %240 : vector<1x250xf32>
    %242 = arith.truncf %241 : vector<1x250xf32> to vector<1x250xbf16>
    %c0_224 = arith.constant 0 : index
    %c0_225 = arith.constant 0 : index
    %243 = vector.load %arg16[%c0_224, %c0_225] : memref<250x2xbf16, #tpu.memory_space<vmem>>, vector<250x2xbf16>
    %cst_226 = arith.constant dense<0.000000e+00> : vector<1x2xf32>
    %244 = tpu.matmul %242, %243, %cst_226 {dimension_numbers = #tpu.dot_dimension_numbers<[1], [0], [0], [1], [0, 0, 1, 1], [], []>} : vector<1x250xbf16>, vector<250x2xbf16>, vector<1x2xf32> -> vector<1x2xf32>
    %c0_227 = arith.constant 0 : index
    %c0_228 = arith.constant 0 : index
    %245 = vector.load %arg17[%c0_227, %c0_228] : memref<1x2xf32, #tpu.memory_space<vmem>>, vector<1x2xf32>
    %246 = arith.addf %244, %245 : vector<1x2xf32>
    %247 = arith.negf %246 : vector<1x2xf32>
    %248 = math.exp %247 : vector<1x2xf32>
    %cst_229 = arith.constant 1.000000e+00 : f32
    %249 = vector.broadcast %cst_229 : f32 to vector<1x2xf32>
    %250 = arith.addf %249, %248 : vector<1x2xf32>
    %251 = arith.divf %249, %250 : vector<1x2xf32>
    %c0_230 = arith.constant 0 : index
    %c0_231 = arith.constant 0 : index
    %c0_232 = arith.constant 0 : index
    %252 = vector.load %arg18[%c0_230, %c0_231, %c0_232] : memref<1x1x2xf32, #tpu.memory_space<vmem>>, vector<1x1x2xf32>
    %253 = vector.shape_cast %252 : vector<1x1x2xf32> to vector<1x2xf32>
    %254 = vector.shape_cast %251 : vector<1x2xf32> to vector<1x1x2xf32>
    tpu.vector_store %arg18[%c0_230, %c0_231, %c0_232], %254 {strides = array<i32>} : memref<1x1x2xf32, #tpu.memory_space<vmem>>, vector<1x1x2xf32>,
    return
  }
  func.func @transform_0(%arg0: i32) -> (i32, i32) {
    %c0_i32 = arith.constant 0 : i32
    %c0_i32_0 = arith.constant 0 : i32
    return %arg0, %c0_i32 : i32, i32
  }
  func.func @transform_1(%arg0: i32) -> (i32, i32) {
    %c0_i32 = arith.constant 0 : i32
    %c0_i32_0 = arith.constant 0 : i32
    %c0_i32_1 = arith.constant 0 : i32
    return %c0_i32, %c0_i32_0 : i32, i32
  }
  func.func @transform_2(%arg0: i32) -> (i32, i32) {
    %c0_i32 = arith.constant 0 : i32
    %c0_i32_0 = arith.constant 0 : i32
    %c0_i32_1 = arith.constant 0 : i32
    return %c0_i32, %c0_i32_0 : i32, i32
  }
  func.func @transform_3(%arg0: i32) -> (i32, i32, i32) {
    %c0_i32 = arith.constant 0 : i32
    %c0_i32_0 = arith.constant 0 : i32
    %c0_i32_1 = arith.constant 0 : i32
    %c0_i32_2 = arith.constant 0 : i32
    return %c0_i32, %c0_i32_0, %c0_i32_1 : i32, i32, i32
  }
  func.func @transform_4(%arg0: i32) -> (i32, i32) {
    %c0_i32 = arith.constant 0 : i32
    %c0_i32_0 = arith.constant 0 : i32
    %c0_i32_1 = arith.constant 0 : i32
    return %c0_i32, %c0_i32_0 : i32, i32
  }
  func.func @transform_5(%arg0: i32) -> (i32, i32, i32) {
    %c0_i32 = arith.constant 0 : i32
    %c0_i32_0 = arith.constant 0 : i32
    %c0_i32_1 = arith.constant 0 : i32
    %c0_i32_2 = arith.constant 0 : i32
    return %c0_i32, %c0_i32_0, %c0_i32_1 : i32, i32, i32
  }
  func.func @transform_6(%arg0: i32) -> (i32, i32) {
    %c0_i32 = arith.constant 0 : i32
    %c0_i32_0 = arith.constant 0 : i32
    %c0_i32_1 = arith.constant 0 : i32
    return %c0_i32, %c0_i32_0 : i32, i32
  }
  func.func @transform_7(%arg0: i32) -> (i32, i32, i32) {
    %c0_i32 = arith.constant 0 : i32
    %c0_i32_0 = arith.constant 0 : i32
    %c0_i32_1 = arith.constant 0 : i32
    %c0_i32_2 = arith.constant 0 : i32
    return %c0_i32, %c0_i32_0, %c0_i32_1 : i32, i32, i32
  }
  func.func @transform_8(%arg0: i32) -> (i32, i32) {
    %c0_i32 = arith.constant 0 : i32
    %c0_i32_0 = arith.constant 0 : i32
    %c0_i32_1 = arith.constant 0 : i32
    return %c0_i32, %c0_i32_0 : i32, i32
  }
  func.func @transform_9(%arg0: i32) -> (i32, i32) {
    %c0_i32 = arith.constant 0 : i32
    %c0_i32_0 = arith.constant 0 : i32
    %c0_i32_1 = arith.constant 0 : i32
    return %c0_i32, %c0_i32_0 : i32, i32
  }
  func.func @transform_10(%arg0: i32) -> (i32, i32) {
    %c0_i32 = arith.constant 0 : i32
    %c0_i32_0 = arith.constant 0 : i32
    %c0_i32_1 = arith.constant 0 : i32
    return %c0_i32, %c0_i32_0 : i32, i32
  }
  func.func @transform_11(%arg0: i32) -> (i32, i32) {
    %c0_i32 = arith.constant 0 : i32
    %c0_i32_0 = arith.constant 0 : i32
    %c0_i32_1 = arith.constant 0 : i32
    return %c0_i32, %c0_i32_0 : i32, i32
  }
  func.func @transform_12(%arg0: i32) -> (i32, i32) {
    %c0_i32 = arith.constant 0 : i32
    %c0_i32_0 = arith.constant 0 : i32
    %c0_i32_1 = arith.constant 0 : i32
    return %c0_i32, %c0_i32_0 : i32, i32
  }
  func.func @transform_13(%arg0: i32) -> (i32, i32, i32) {
    %c0_i32 = arith.constant 0 : i32
    %c0_i32_0 = arith.constant 0 : i32
    %c0_i32_1 = arith.constant 0 : i32
    %c0_i32_2 = arith.constant 0 : i32
    return %c0_i32, %c0_i32_0, %c0_i32_1 : i32, i32, i32
  }
  func.func @transform_14(%arg0: i32) -> (i32, i32) {
    %c0_i32 = arith.constant 0 : i32
    %c0_i32_0 = arith.constant 0 : i32
    %c0_i32_1 = arith.constant 0 : i32
    return %c0_i32, %c0_i32_0 : i32, i32
  }
  func.func @transform_15(%arg0: i32) -> (i32, i32) {
    %c0_i32 = arith.constant 0 : i32
    %c0_i32_0 = arith.constant 0 : i32
    %c0_i32_1 = arith.constant 0 : i32
    return %c0_i32, %c0_i32_0 : i32, i32
  }
  func.func @transform_16(%arg0: i32) -> (i32, i32) {
    %c0_i32 = arith.constant 0 : i32
    %c0_i32_0 = arith.constant 0 : i32
    %c0_i32_1 = arith.constant 0 : i32
    return %c0_i32, %c0_i32_0 : i32, i32
  }
  func.func @transform_17(%arg0: i32) -> (i32, i32, i32) {
    %c0_i32 = arith.constant 0 : i32
    %c0_i32_0 = arith.constant 0 : i32
    %c0_i32_1 = arith.constant 0 : i32
    return %arg0, %c0_i32, %c0_i32_0 : i32, i32, i32
  }
}

</mosaic_0001>

<llo_original>
// kernel: net_forward.1
$region0: #{net_forward.1}
  #allocation0 [shape = 'u32[]', space=smem, size = 0x4, offset = 0x4, fixed_abs, tag = 'smem constant byte address 0x4 - core index']
  #allocation1 [shape = 'u32[144,128]{1,0:T(1,128)}', space=vmem, size = 0x12000, scoped, tag = 'internal scratch']
  #allocation2 [shape = 'bf16[208,16]{1,0:T(8,128)(2,1)}', space=vmem, size = 0xd000, scoped, tag = 'scratch operand']
  #allocation3 [shape = 'bf16[80,16]{1,0:T(8,128)(2,1)}', space=vmem, size = 0x5000, scoped, tag = 'scratch operand']
  #allocation4 [shape = 'bf16[80,32]{1,0:T(8,128)(2,1)}', space=vmem, size = 0x5000, scoped, tag = 'scratch operand']
  %s0 = inlined_call_operand.vmem [shape: bf16[416,27], index: 0, kind: input, shape index: {}]
  %s1 = inlined_call_operand.vmem [shape: bf16[27,16], index: 1, kind: input, shape index: {}]
  %s2 = inlined_call_operand.vmem [shape: f32[1,16], index: 2, kind: input, shape index: {}]
  %s3 = inlined_call_operand.vmem [shape: bf16[9,16,16], index: 3, kind: input, shape index: {}]
  %s4 = inlined_call_operand.vmem [shape: f32[1,16], index: 4, kind: input, shape index: {}]
  %s5 = inlined_call_operand.vmem [shape: bf16[9,16,32], index: 5, kind: input, shape index: {}]
  %s6 = inlined_call_operand.vmem [shape: f32[1,32], index: 6, kind: input, shape index: {}]
  %s7 = inlined_call_operand.vmem [shape: bf16[9,32,32], index: 7, kind: input, shape index: {}]
  %s8 = inlined_call_operand.vmem [shape: f32[1,32], index: 8, kind: input, shape index: {}]
  %s9 = inlined_call_operand.vmem [shape: f32[168,16], index: 9, kind: input, shape index: {}]
  %s10 = inlined_call_operand.vmem [shape: f32[48,32], index: 10, kind: input, shape index: {}]
  %s11 = inlined_call_operand.vmem [shape: bf16[80,152], index: 11, kind: input, shape index: {}]
  %s12 = inlined_call_operand.vmem [shape: bf16[9,39], index: 12, kind: input, shape index: {}]
  %s13 = inlined_call_operand.vmem [shape: bf16[9,32,250], index: 13, kind: input, shape index: {}]
  %s14 = inlined_call_operand.vmem [shape: f32[1,250], index: 14, kind: input, shape index: {}]
  %s15 = inlined_call_operand.vmem [shape: bf16[250,2], index: 15, kind: input, shape index: {}]
  %s16 = inlined_call_operand.vmem [shape: f32[1,2], index: 16, kind: input, shape index: {}]
  %s17 = inlined_call_operand.hbm [shape: f32[2,1,2], index: 17, kind: output, shape index: {}]
  %s18 = sld [smem:[#allocation0]]
  $region101: #{net_forward.1} parent=0
    _
  %s20 = ssub.s32 1, %s18
  %s21 = scalar_select 0, %s20, %s18
  $region1: #{net_forward.1} parent=0
    #allocation5 [shape = 'u8[1024]{0}', space=vmem, size = 0x400, scoped, tag = 'output window, operand 0']
    #allocation6 [shape = 's32[2]{0}', space=sflag, size = 0x8, scoped, tag = 'scoped memory for net_forward.1']
    %22 = vsyncpa [#allocation6], 0
    %s23 = scalar_lea.sflag [#allocation6], 1
    %24 = vsyncpa %s23, 0
    loop: start=0, step=1, limit=4
    $region2: #{net_forward.1} parent=1 // loop_pre_header
      _
    $region3: #{net_forward.1} parent=1 // loop_header
      %s26 = sphi 0, %s30
      %p27 = scmp.ge.s32.totalorder %s26, 4
      %s36 = sphi 0, %s38
      %s39 = sphi 0, %s36
      %s40 = sphi 0, %s39
      %s56 = sphi 0, %s40
      %s60 = sphi 0, %s60
      %s62 = sphi 0, %s60
      %s63 = sphi 0, %s62
      %s77 = sphi 0, %s63
      %s81 = sphi 0, %s81
      %s83 = sphi 0, %s81
      %s84 = sphi 0, %s83
      %s98 = sphi 0, %s84
      %s102 = sphi 0, %s102
      %s104 = sphi 0, %s102
      %s105 = sphi 0, %s104
      %s119 = sphi 0, %s105
      %s123 = sphi 0, %s123
      %s125 = sphi 0, %s123
      %s126 = sphi 0, %s125
      %s140 = sphi 0, %s126
      %s144 = sphi 0, %s144
      %s146 = sphi 0, %s144
      %s147 = sphi 0, %s146
      %s161 = sphi 0, %s147
      %s165 = sphi 0, %s165
      %s167 = sphi 0, %s165
      %s168 = sphi 0, %s167
      %s182 = sphi 0, %s168
      %s186 = sphi 0, %s186
      %s188 = sphi 0, %s186
      %s189 = sphi 0, %s188
      %s203 = sphi 0, %s189
      %s207 = sphi 0, %s207
      %s209 = sphi 0, %s207
      %s210 = sphi 0, %s209
      %s224 = sphi 0, %s210
      %s228 = sphi 0, %s228
      %s230 = sphi 0, %s228
      %s231 = sphi 0, %s230
      %s245 = sphi 0, %s231
      %s249 = sphi 0, %s249
      %s251 = sphi 0, %s249
      %s252 = sphi 0, %s251
      %s266 = sphi 0, %s252
      %s270 = sphi 0, %s270
      %s272 = sphi 0, %s270
      %s273 = sphi 0, %s272
      %s287 = sphi 0, %s273
      %s291 = sphi 0, %s291
      %s293 = sphi 0, %s291
      %s294 = sphi 0, %s293
      %s308 = sphi 0, %s294
      %s312 = sphi 0, %s312
      %s314 = sphi 0, %s312
      %s315 = sphi 0, %s314
      %s329 = sphi 0, %s315
      %s333 = sphi 0, %s333
      %s335 = sphi 0, %s333
      %s336 = sphi 0, %s335
      %s350 = sphi 0, %s336
      %s354 = sphi 0, %s354
      %s356 = sphi 0, %s354
      %s357 = sphi 0, %s356
      %s371 = sphi 0, %s357
      %s375 = sphi 0, %s375
      %s377 = sphi 0, %s375
      %s378 = sphi 0, %s377
      %s392 = sphi 0, %s378
      %s398 = sphi 0, %s400
      %s401 = sphi 0, %s398
      %s402 = sphi 0, %s401
      %s418 = sphi 0, %s402
    $region4: #{net_forward.1} parent=1 // loop_header_branch
      %29 = sbr.rel (%p27) target = $region8
    $region5: #{net_forward.1} parent=1 // loop_body
      %s31 = ssub.s32 %s26, 1
      %s32 = ssub.s32 %s26, 2
      %s33 = sadd.s32 %s26, 1
      %s34 = ssub.s32 %s26, %s33
      %p35 = scmp.eq.s32.totalorder %s34, 0
      %s37 = sadd.s32 %s36, 1
      %s38 = scalar_select %p35, %s36, %s37
      %p41 = pneg %p35
      %p42 = scmp.eq.s32.totalorder %s26, 1
      %p43 = por %p41, %p42
      %p44 = scmp.ne.s32.totalorder %s36, %s39
      %p45 = scmp.eq.s32.totalorder %s26, 0
      %p46 = por %p44, %p45
      %p47 = scmp.ne.s32.totalorder %s36, %s39
      %p48 = scmp.eq.s32.totalorder %s31, 1
      %p49 = por %p47, %p48
      %p50 = scmp.ne.s32.totalorder %s39, %s40
      %p51 = scmp.eq.s32.totalorder %s31, 0
      %p52 = por %p50, %p51
      %p53 = scmp.ne.s32.totalorder %s39, %s40
      %p54 = scmp.eq.s32.totalorder %s32, 1
      %p55 = por %p53, %p54
      %p57 = scmp.ne.s32.totalorder %s40, %s56
      %p58 = scmp.eq.s32.totalorder %s32, 0
      %p59 = por %p57, %p58
      %s61 = sadd.s32 %s60, 1
      %p64 = scmp.eq.s32.totalorder %s26, 1
      %p65 = scmp.ne.s32.totalorder %s60, %s62
      %p66 = scmp.eq.s32.totalorder %s26, 0
      %p67 = por %p65, %p66
      %p68 = scmp.ne.s32.totalorder %s60, %s62
      %p69 = scmp.eq.s32.totalorder %s31, 1
      %p70 = por %p68, %p69
      %p71 = scmp.ne.s32.totalorder %s62, %s63
      %p72 = scmp.eq.s32.totalorder %s31, 0
      %p73 = por %p71, %p72
      %p74 = scmp.ne.s32.totalorder %s62, %s63
      %p75 = scmp.eq.s32.totalorder %s32, 1
      %p76 = por %p74, %p75
      %p78 = scmp.ne.s32.totalorder %s63, %s77
      %p79 = scmp.eq.s32.totalorder %s32, 0
      %p80 = por %p78, %p79
      %s82 = sadd.s32 %s81, 1
      %p85 = scmp.eq.s32.totalorder %s26, 1
      %p86 = scmp.ne.s32.totalorder %s81, %s83
      %p87 = scmp.eq.s32.totalorder %s26, 0
      %p88 = por %p86, %p87
      %p89 = scmp.ne.s32.totalorder %s81, %s83
      %p90 = scmp.eq.s32.totalorder %s31, 1
      %p91 = por %p89, %p90
      %p92 = scmp.ne.s32.totalorder %s83, %s84
      %p93 = scmp.eq.s32.totalorder %s31, 0
      %p94 = por %p92, %p93
      %p95 = scmp.ne.s32.totalorder %s83, %s84
      %p96 = scmp.eq.s32.totalorder %s32, 1
      %p97 = por %p95, %p96
      %p99 = scmp.ne.s32.totalorder %s84, %s98
      %p100 = scmp.eq.s32.totalorder %s32, 0
      %p101 = por %p99, %p100
      %s103 = sadd.s32 %s102, 1
      %p106 = scmp.eq.s32.totalorder %s26, 1
      %p107 = scmp.ne.s32.totalorder %s102, %s104
      %p108 = scmp.eq.s32.totalorder %s26, 0
      %p109 = por %p107, %p108
      %p110 = scmp.ne.s32.totalorder %s102, %s104
      %p111 = scmp.eq.s32.totalorder %s31, 1
      %p112 = por %p110, %p111
      %p113 = scmp.ne.s32.totalorder %s104, %s105
      %p114 = scmp.eq.s32.totalorder %s31, 0
      %p115 = por %p113, %p114
      %p116 = scmp.ne.s32.totalorder %s104, %s105
      %p117 = scmp.eq.s32.totalorder %s32, 1
      %p118 = por %p116, %p117
      %p120 = scmp.ne.s32.totalorder %s105, %s119
      %p121 = scmp.eq.s32.totalorder %s32, 0
      %p122 = por %p120, %p121
      %s124 = sadd.s32 %s123, 1
      %p127 = scmp.eq.s32.totalorder %s26, 1
      %p128 = scmp.ne.s32.totalorder %s123, %s125
      %p129 = scmp.eq.s32.totalorder %s26, 0
      %p130 = por %p128, %p129
      %p131 = scmp.ne.s32.totalorder %s123, %s125
      %p132 = scmp.eq.s32.totalorder %s31, 1
      %p133 = por %p131, %p132
      %p134 = scmp.ne.s32.totalorder %s125, %s126
      %p135 = scmp.eq.s32.totalorder %s31, 0
      %p136 = por %p134, %p135
      %p137 = scmp.ne.s32.totalorder %s125, %s126
      %p138 = scmp.eq.s32.totalorder %s32, 1
      %p139 = por %p137, %p138
      %p141 = scmp.ne.s32.totalorder %s126, %s140
      %p142 = scmp.eq.s32.totalorder %s32, 0
      %p143 = por %p141, %p142
      %s145 = sadd.s32 %s144, 1
      %p148 = scmp.eq.s32.totalorder %s26, 1
      %p149 = scmp.ne.s32.totalorder %s144, %s146
      %p150 = scmp.eq.s32.totalorder %s26, 0
      %p151 = por %p149, %p150
      %p152 = scmp.ne.s32.totalorder %s144, %s146
      %p153 = scmp.eq.s32.totalorder %s31, 1
      %p154 = por %p152, %p153
      %p155 = scmp.ne.s32.totalorder %s146, %s147
      %p156 = scmp.eq.s32.totalorder %s31, 0
      %p157 = por %p155, %p156
      %p158 = scmp.ne.s32.totalorder %s146, %s147
      %p159 = scmp.eq.s32.totalorder %s32, 1
      %p160 = por %p158, %p159
      %p162 = scmp.ne.s32.totalorder %s147, %s161
      %p163 = scmp.eq.s32.totalorder %s32, 0
      %p164 = por %p162, %p163
      %s166 = sadd.s32 %s165, 1
      %p169 = scmp.eq.s32.totalorder %s26, 1
      %p170 = scmp.ne.s32.totalorder %s165, %s167
      %p171 = scmp.eq.s32.totalorder %s26, 0
      %p172 = por %p170, %p171
      %p173 = scmp.ne.s32.totalorder %s165, %s167
      %p174 = scmp.eq.s32.totalorder %s31, 1
      %p175 = por %p173, %p174
      %p176 = scmp.ne.s32.totalorder %s167, %s168
      %p177 = scmp.eq.s32.totalorder %s31, 0
      %p178 = por %p176, %p177
      %p179 = scmp.ne.s32.totalorder %s167, %s168
      %p180 = scmp.eq.s32.totalorder %s32, 1
      %p181 = por %p179, %p180
      %p183 = scmp.ne.s32.totalorder %s168, %s182
      %p184 = scmp.eq.s32.totalorder %s32, 0
      %p185 = por %p183, %p184
      %s187 = sadd.s32 %s186, 1
      %p190 = scmp.eq.s32.totalorder %s26, 1
      %p191 = scmp.ne.s32.totalorder %s186, %s188
      %p192 = scmp.eq.s32.totalorder %s26, 0
      %p193 = por %p191, %p192
      %p194 = scmp.ne.s32.totalorder %s186, %s188
      %p195 = scmp.eq.s32.totalorder %s31, 1
      %p196 = por %p194, %p195
      %p197 = scmp.ne.s32.totalorder %s188, %s189
      %p198 = scmp.eq.s32.totalorder %s31, 0
      %p199 = por %p197, %p198
      %p200 = scmp.ne.s32.totalorder %s188, %s189
      %p201 = scmp.eq.s32.totalorder %s32, 1
      %p202 = por %p200, %p201
      %p204 = scmp.ne.s32.totalorder %s189, %s203
      %p205 = scmp.eq.s32.totalorder %s32, 0
      %p206 = por %p204, %p205
      %s208 = sadd.s32 %s207, 1
      %p211 = scmp.eq.s32.totalorder %s26, 1
      %p212 = scmp.ne.s32.totalorder %s207, %s209
      %p213 = scmp.eq.s32.totalorder %s26, 0
      %p214 = por %p212, %p213
      %p215 = scmp.ne.s32.totalorder %s207, %s209
      %p216 = scmp.eq.s32.totalorder %s31, 1
      %p217 = por %p215, %p216
      %p218 = scmp.ne.s32.totalorder %s209, %s210
      %p219 = scmp.eq.s32.totalorder %s31, 0
      %p220 = por %p218, %p219
      %p221 = scmp.ne.s32.totalorder %s209, %s210
      %p222 = scmp.eq.s32.totalorder %s32, 1
      %p223 = por %p221, %p222
      %p225 = scmp.ne.s32.totalorder %s210, %s224
      %p226 = scmp.eq.s32.totalorder %s32, 0
      %p227 = por %p225, %p226
      %s229 = sadd.s32 %s228, 1
      %p232 = scmp.eq.s32.totalorder %s26, 1
      %p233 = scmp.ne.s32.totalorder %s228, %s230
      %p234 = scmp.eq.s32.totalorder %s26, 0
      %p235 = por %p233, %p234
      %p236 = scmp.ne.s32.totalorder %s228, %s230
      %p237 = scmp.eq.s32.totalorder %s31, 1
      %p238 = por %p236, %p237
      %p239 = scmp.ne.s32.totalorder %s230, %s231
      %p240 = scmp.eq.s32.totalorder %s31, 0
      %p241 = por %p239, %p240
      %p242 = scmp.ne.s32.totalorder %s230, %s231
      %p243 = scmp.eq.s32.totalorder %s32, 1
      %p244 = por %p242, %p243
      %p246 = scmp.ne.s32.totalorder %s231, %s245
      %p247 = scmp.eq.s32.totalorder %s32, 0
      %p248 = por %p246, %p247
      %s250 = sadd.s32 %s249, 1
      %p253 = scmp.eq.s32.totalorder %s26, 1
      %p254 = scmp.ne.s32.totalorder %s249, %s251
      %p255 = scmp.eq.s32.totalorder %s26, 0
      %p256 = por %p254, %p255
      %p257 = scmp.ne.s32.totalorder %s249, %s251
      %p258 = scmp.eq.s32.totalorder %s31, 1
      %p259 = por %p257, %p258
      %p260 = scmp.ne.s32.totalorder %s251, %s252
      %p261 = scmp.eq.s32.totalorder %s31, 0
      %p262 = por %p260, %p261
      %p263 = scmp.ne.s32.totalorder %s251, %s252
      %p264 = scmp.eq.s32.totalorder %s32, 1
      %p265 = por %p263, %p264
      %p267 = scmp.ne.s32.totalorder %s252, %s266
      %p268 = scmp.eq.s32.totalorder %s32, 0
      %p269 = por %p267, %p268
      %s271 = sadd.s32 %s270, 1
      %p274 = scmp.eq.s32.totalorder %s26, 1
      %p275 = scmp.ne.s32.totalorder %s270, %s272
      %p276 = scmp.eq.s32.totalorder %s26, 0
      %p277 = por %p275, %p276
      %p278 = scmp.ne.s32.totalorder %s270, %s272
      %p279 = scmp.eq.s32.totalorder %s31, 1
      %p280 = por %p278, %p279
      %p281 = scmp.ne.s32.totalorder %s272, %s273
      %p282 = scmp.eq.s32.totalorder %s31, 0
      %p283 = por %p281, %p282
      %p284 = scmp.ne.s32.totalorder %s272, %s273
      %p285 = scmp.eq.s32.totalorder %s32, 1
      %p286 = por %p284, %p285
      %p288 = scmp.ne.s32.totalorder %s273, %s287
      %p289 = scmp.eq.s32.totalorder %s32, 0
      %p290 = por %p288, %p289
      %s292 = sadd.s32 %s291, 1
      %p295 = scmp.eq.s32.totalorder %s26, 1
      %p296 = scmp.ne.s32.totalorder %s291, %s293
      %p297 = scmp.eq.s32.totalorder %s26, 0
      %p298 = por %p296, %p297
      %p299 = scmp.ne.s32.totalorder %s291, %s293
      %p300 = scmp.eq.s32.totalorder %s31, 1
      %p301 = por %p299, %p300
      %p302 = scmp.ne.s32.totalorder %s293, %s294
      %p303 = scmp.eq.s32.totalorder %s31, 0
      %p304 = por %p302, %p303
      %p305 = scmp.ne.s32.totalorder %s293, %s294
      %p306 = scmp.eq.s32.totalorder %s32, 1
      %p307 = por %p305, %p306
      %p309 = scmp.ne.s32.totalorder %s294, %s308
      %p310 = scmp.eq.s32.totalorder %s32, 0
      %p311 = por %p309, %p310
      %s313 = sadd.s32 %s312, 1
      %p316 = scmp.eq.s32.totalorder %s26, 1
      %p317 = scmp.ne.s32.totalorder %s312, %s314
      %p318 = scmp.eq.s32.totalorder %s26, 0
      %p319 = por %p317, %p318
      %p320 = scmp.ne.s32.totalorder %s312, %s314
      %p321 = scmp.eq.s32.totalorder %s31, 1
      %p322 = por %p320, %p321
      %p323 = scmp.ne.s32.totalorder %s314, %s315
      %p324 = scmp.eq.s32.totalorder %s31, 0
      %p325 = por %p323, %p324
      %p326 = scmp.ne.s32.totalorder %s314, %s315
      %p327 = scmp.eq.s32.totalorder %s32, 1
      %p328 = por %p326, %p327
      %p330 = scmp.ne.s32.totalorder %s315, %s329
      %p331 = scmp.eq.s32.totalorder %s32, 0
      %p332 = por %p330, %p331
      %s334 = sadd.s32 %s333, 1
      %p337 = scmp.eq.s32.totalorder %s26, 1
      %p338 = scmp.ne.s32.totalorder %s333, %s335
      %p339 = scmp.eq.s32.totalorder %s26, 0
      %p340 = por %p338, %p339
      %p341 = scmp.ne.s32.totalorder %s333, %s335
      %p342 = scmp.eq.s32.totalorder %s31, 1
      %p343 = por %p341, %p342
      %p344 = scmp.ne.s32.totalorder %s335, %s336
      %p345 = scmp.eq.s32.totalorder %s31, 0
      %p346 = por %p344, %p345
      %p347 = scmp.ne.s32.totalorder %s335, %s336
      %p348 = scmp.eq.s32.totalorder %s32, 1
      %p349 = por %p347, %p348
      %p351 = scmp.ne.s32.totalorder %s336, %s350
      %p352 = scmp.eq.s32.totalorder %s32, 0
      %p353 = por %p351, %p352
      %s355 = sadd.s32 %s354, 1
      %p358 = scmp.eq.s32.totalorder %s26, 1
      %p359 = scmp.ne.s32.totalorder %s354, %s356
      %p360 = scmp.eq.s32.totalorder %s26, 0
      %p361 = por %p359, %p360
      %p362 = scmp.ne.s32.totalorder %s354, %s356
      %p363 = scmp.eq.s32.totalorder %s31, 1
      %p364 = por %p362, %p363
      %p365 = scmp.ne.s32.totalorder %s356, %s357
      %p366 = scmp.eq.s32.totalorder %s31, 0
      %p367 = por %p365, %p366
      %p368 = scmp.ne.s32.totalorder %s356, %s357
      %p369 = scmp.eq.s32.totalorder %s32, 1
      %p370 = por %p368, %p369
      %p372 = scmp.ne.s32.totalorder %s357, %s371
      %p373 = scmp.eq.s32.totalorder %s32, 0
      %p374 = por %p372, %p373
      %s376 = sadd.s32 %s375, 1
      %p379 = scmp.eq.s32.totalorder %s26, 1
      %p380 = scmp.ne.s32.totalorder %s375, %s377
      %p381 = scmp.eq.s32.totalorder %s26, 0
      %p382 = por %p380, %p381
      %p383 = scmp.ne.s32.totalorder %s375, %s377
      %p384 = scmp.eq.s32.totalorder %s31, 1
      %p385 = por %p383, %p384
      %p386 = scmp.ne.s32.totalorder %s377, %s378
      %p387 = scmp.eq.s32.totalorder %s31, 0
      %p388 = por %p386, %p387
      %p389 = scmp.ne.s32.totalorder %s377, %s378
      %p390 = scmp.eq.s32.totalorder %s32, 1
      %p391 = por %p389, %p390
      %p393 = scmp.ne.s32.totalorder %s378, %s392
      %p394 = scmp.eq.s32.totalorder %s32, 0
      %p395 = por %p393, %p394
      %s396 = ssub.s32 %s26, %s33
      %p397 = scmp.eq.s32.totalorder %s396, 0
      %s399 = sadd.s32 %s398, 1
      %s400 = scalar_select %p397, %s398, %s399
      %p403 = pneg %p397
      %p404 = scmp.eq.s32.totalorder %s26, 1
      %p405 = por %p403, %p404
      %p406 = scmp.ne.s32.totalorder %s398, %s401
      %p407 = scmp.eq.s32.totalorder %s26, 0
      %p408 = por %p406, %p407
      %p409 = scmp.ne.s32.totalorder %s398, %s401
      %p410 = scmp.eq.s32.totalorder %s31, 1
      %p411 = por %p409, %p410
      %p412 = scmp.ne.s32.totalorder %s401, %s402
      %p413 = scmp.eq.s32.totalorder %s31, 0
      %p414 = por %p412, %p413
      %p415 = scmp.ne.s32.totalorder %s401, %s402
      %p416 = scmp.eq.s32.totalorder %s32, 1
      %p417 = por %p415, %p416
      %p419 = scmp.ne.s32.totalorder %s402, %s418
      %p420 = scmp.eq.s32.totalorder %s32, 0
      %p421 = por %p419, %p420
      %p422 = scmp.le.s32.totalorder 1, %s26
      %p423 = scmp.lt.s32.totalorder %s26, 3
      %p424 = pnand %p422, %p423
      %p425 = pneg %p424
      // Predicated region
      $region9: #{net_forward.1} parent=5 // pred_check
        _
      $region10: #{net_forward.1} parent=5 // pred_check_branch
        %427 = sbr.rel (%p424) target = $region12
      $region11: #{net_forward.1} parent=5 // pred_region
        %s428 = ssub.s32 %s26, 1
        // Predicated region
        $region13: #{net_forward.1} parent=11 // pred_check
          %p429 = pneg %p73
        $region14: #{net_forward.1} parent=11 // pred_check_branch
          %431 = sbr.rel (%p429) target = $region16
        $region15: #{net_forward.1} parent=11 // pred_region
          _
        $region16: #{net_forward.1} parent=11 // pred_fallthru
          _
        // Predicated region
        $region17: #{net_forward.1} parent=11 // pred_check
          %p432 = pneg %p94
        $region18: #{net_forward.1} parent=11 // pred_check_branch
          %434 = sbr.rel (%p432) target = $region20
        $region19: #{net_forward.1} parent=11 // pred_region
          _
        $region20: #{net_forward.1} parent=11 // pred_fallthru
          _
        // Predicated region
        $region21: #{net_forward.1} parent=11 // pred_check
          %p435 = pneg %p115
        $region22: #{net_forward.1} parent=11 // pred_check_branch
          %437 = sbr.rel (%p435) target = $region24
        $region23: #{net_forward.1} parent=11 // pred_region
          _
        $region24: #{net_forward.1} parent=11 // pred_fallthru
          _
        // Predicated region
        $region25: #{net_forward.1} parent=11 // pred_check
          %p438 = pneg %p136
        $region26: #{net_forward.1} parent=11 // pred_check_branch
          %440 = sbr.rel (%p438) target = $region28
        $region27: #{net_forward.1} parent=11 // pred_region
          _
        $region28: #{net_forward.1} parent=11 // pred_fallthru
          _
        // Predicated region
        $region29: #{net_forward.1} parent=11 // pred_check
          %p441 = pneg %p157
        $region30: #{net_forward.1} parent=11 // pred_check_branch
          %443 = sbr.rel (%p441) target = $region32
        $region31: #{net_forward.1} parent=11 // pred_region
          _
        $region32: #{net_forward.1} parent=11 // pred_fallthru
          _
        // Predicated region
        $region33: #{net_forward.1} parent=11 // pred_check
          %p444 = pneg %p178
        $region34: #{net_forward.1} parent=11 // pred_check_branch
          %446 = sbr.rel (%p444) target = $region36
        $region35: #{net_forward.1} parent=11 // pred_region
          _
        $region36: #{net_forward.1} parent=11 // pred_fallthru
          _
        // Predicated region
        $region37: #{net_forward.1} parent=11 // pred_check
          %p447 = pneg %p199
        $region38: #{net_forward.1} parent=11 // pred_check_branch
          %449 = sbr.rel (%p447) target = $region40
        $region39: #{net_forward.1} parent=11 // pred_region
          _
        $region40: #{net_forward.1} parent=11 // pred_fallthru
          _
        // Predicated region
        $region41: #{net_forward.1} parent=11 // pred_check
          %p450 = pneg %p220
        $region42: #{net_forward.1} parent=11 // pred_check_branch
          %452 = sbr.rel (%p450) target = $region44
        $region43: #{net_forward.1} parent=11 // pred_region
          _
        $region44: #{net_forward.1} parent=11 // pred_fallthru
          _
        // Predicated region
        $region45: #{net_forward.1} parent=11 // pred_check
          %p453 = pneg %p241
        $region46: #{net_forward.1} parent=11 // pred_check_branch
          %455 = sbr.rel (%p453) target = $region48
        $region47: #{net_forward.1} parent=11 // pred_region
          _
        $region48: #{net_forward.1} parent=11 // pred_fallthru
          _
        // Predicated region
        $region49: #{net_forward.1} parent=11 // pred_check
          %p456 = pneg %p262
        $region50: #{net_forward.1} parent=11 // pred_check_branch
          %458 = sbr.rel (%p456) target = $region52
        $region51: #{net_forward.1} parent=11 // pred_region
          _
        $region52: #{net_forward.1} parent=11 // pred_fallthru
          _
        // Predicated region
        $region53: #{net_forward.1} parent=11 // pred_check
          %p459 = pneg %p283
        $region54: #{net_forward.1} parent=11 // pred_check_branch
          %461 = sbr.rel (%p459) target = $region56
        $region55: #{net_forward.1} parent=11 // pred_region
          _
        $region56: #{net_forward.1} parent=11 // pred_fallthru
          _
        // Predicated region
        $region57: #{net_forward.1} parent=11 // pred_check
          %p462 = pneg %p304
        $region58: #{net_forward.1} parent=11 // pred_check_branch
          %464 = sbr.rel (%p462) target = $region60
        $region59: #{net_forward.1} parent=11 // pred_region
          _
        $region60: #{net_forward.1} parent=11 // pred_fallthru
          _
        // Predicated region
        $region61: #{net_forward.1} parent=11 // pred_check
          %p465 = pneg %p325
        $region62: #{net_forward.1} parent=11 // pred_check_branch
          %467 = sbr.rel (%p465) target = $region64
        $region63: #{net_forward.1} parent=11 // pred_region
          _
        $region64: #{net_forward.1} parent=11 // pred_fallthru
          _
        // Predicated region
        $region65: #{net_forward.1} parent=11 // pred_check
          %p468 = pneg %p346
        $region66: #{net_forward.1} parent=11 // pred_check_branch
          %470 = sbr.rel (%p468) target = $region68
        $region67: #{net_forward.1} parent=11 // pred_region
          _
        $region68: #{net_forward.1} parent=11 // pred_fallthru
          _
        // Predicated region
        $region69: #{net_forward.1} parent=11 // pred_check
          %p471 = pneg %p367
        $region70: #{net_forward.1} parent=11 // pred_check_branch
          %473 = sbr.rel (%p471) target = $region72
        $region71: #{net_forward.1} parent=11 // pred_region
          _
        $region72: #{net_forward.1} parent=11 // pred_fallthru
          _
        // Predicated region
        $region73: #{net_forward.1} parent=11 // pred_check
          %p474 = pneg %p388
        $region74: #{net_forward.1} parent=11 // pred_check_branch
          %476 = sbr.rel (%p474) target = $region76
        $region75: #{net_forward.1} parent=11 // pred_region
          _
        $region76: #{net_forward.1} parent=11 // pred_fallthru
          _
      $region12: #{net_forward.1} parent=5 // pred_fallthru
        _
      %p477 = scmp.lt.s32.totalorder %s26, 2
      // Predicated region
      $region77: #{net_forward.1} parent=5 // pred_check
        %p478 = pneg %p477
      $region78: #{net_forward.1} parent=5 // pred_check_branch
        %480 = sbr.rel (%p478) target = $region80
      $region79: #{net_forward.1} parent=5 // pred_region
        // Predicated region
        $region81: #{net_forward.1} parent=79 // pred_check
          %p481 = pneg %p46
        $region82: #{net_forward.1} parent=79 // pred_check_branch
          %483 = sbr.rel (%p481) target = $region84
        $region83: #{net_forward.1} parent=79 // pred_region
          %s484 = smul.u32 26, %s26
          %p485 = scmp.lt.s32.totalorder %s484, 51
          %s486 = scalar_select %p485, %s484, 51
          %s487 = smul.addr %s486, 4
          %s488 = scalar_lea.vmem %s0, %s487
          %s489 = smul.u32 26, %s26
        $region84: #{net_forward.1} parent=79 // pred_fallthru
          _
      $region80: #{net_forward.1} parent=5 // pred_fallthru
        _
      %p490 = scmp.le.s32.totalorder 1, %s26
      %p491 = scmp.lt.s32.totalorder %s26, 3
      %p492 = pnand %p490, %p491
      %p493 = pneg %p492
      // Predicated region
      $region85: #{net_forward.1} parent=5 // pred_check
        _
      $region86: #{net_forward.1} parent=5 // pred_check_branch
        %495 = sbr.rel (%p492) target = $region88
      $region87: #{net_forward.1} parent=5 // pred_region
        %s496 = ssub.s32 %s26, 1
        %s497 = smul.u32 26, %s31
        %p498 = scmp.lt.s32.totalorder %s497, 51
        %s499 = scalar_select %p498, %s497, 51
        %s500 = smul.addr %s499, 4
        %s501 = scalar_lea.vmem %s0, %s500
        %p502 = pneg %p52
        %p503 = pneg %p49
        %p504 = pneg %p73
        %p505 = pneg %p70
        %p506 = pneg %p94
        %p507 = pneg %p91
        %p508 = pneg %p115
        %p509 = pneg %p112
        %p510 = pneg %p136
        %p511 = pneg %p133
        %p512 = pneg %p157
        %p513 = pneg %p154
        %p514 = pneg %p178
        %p515 = pneg %p175
        %p516 = pneg %p199
        %p517 = pneg %p196
        %p518 = pneg %p220
        %p519 = pneg %p217
        %p520 = pneg %p241
        %p521 = pneg %p238
        %p522 = pneg %p262
        %p523 = pneg %p259
        %p524 = pneg %p283
        %p525 = pneg %p280
        %p526 = pneg %p304
        %p527 = pneg %p301
        %p528 = pneg %p325
        %p529 = pneg %p322
        %p530 = pneg %p346
        %p531 = pneg %p343
        %p532 = pneg %p367
        %p533 = pneg %p364
        %p534 = pneg %p388
        %p535 = pneg %p385
        %p536 = pneg %p414
        %p537 = pneg %p411
        %s538 = sand.u32 %s401, 1
        %s539 = scalar_lea.sflag [#allocation6], %s538
        %s540 = sand.u32 %s401, 1
        %s541 = scalar_lea.vmem [#allocation5], %s540
        %s542 = smul.u32 26, %s31
        %p543 = scmp.lt.s32.totalorder %s542, 51
        %s544 = scalar_select %p543, %s542, 51
        %s545 = smul.addr %s544, 4
        %s546 = scalar_lea.vmem %s0, %s545
        %s547 = smul.u32 26, %s31
        %v549 = vld [vmem:[%s546] sm:$0xf]
        %v550 = vld [vmem:[%s546 + $0x4] sm:$0xf]
        %v551 = vld [vmem:[%s546 + $0x8] sm:$0xf]
        %v552 = vld [vmem:[%s546 + $0xc] sm:$0xf]
        %v553 = vld [vmem:[%s546 + $0x10] sm:$0xf]
        %v554 = vld [vmem:[%s546 + $0x14] sm:$0xf]
        %v555 = vld [vmem:[%s546 + $0x18] sm:$0xf]
        %v556 = vld [vmem:[%s546 + $0x1c] sm:$0xf]
        %v557 = vld [vmem:[%s546 + $0x20] sm:$0xf]
        %v558 = vld [vmem:[%s546 + $0x24] sm:$0xf]
        %v559 = vld [vmem:[%s546 + $0x28] sm:$0xf]
        %v560 = vld [vmem:[%s546 + $0x2c] sm:$0xf]
        %v561 = vld [vmem:[%s546 + $0x30] sm:$0xf]
        %v562 = vld [vmem:[%s546 + $0x34] sm:$0xf]
        %v563 = vld [vmem:[%s546 + $0x38] sm:$0xf]
        %v564 = vld [vmem:[%s546 + $0x3c] sm:$0xf]
        %v565 = vld [vmem:[%s546 + $0x40] sm:$0xf]
        %v566 = vld [vmem:[%s546 + $0x44] sm:$0xf]
        %v567 = vld [vmem:[%s546 + $0x48] sm:$0xf]
        %v568 = vld [vmem:[%s546 + $0x4c] sm:$0xf]
        %v569 = vld [vmem:[%s546 + $0x50] sm:$0xf]
        %v570 = vld [vmem:[%s546 + $0x54] sm:$0xf]
        %v571 = vld [vmem:[%s546 + $0x58] sm:$0xf]
        %v572 = vld [vmem:[%s546 + $0x5c] sm:$0xf]
        %v573 = vld [vmem:[%s546 + $0x60] sm:$0xf]
        %v574 = vld [vmem:[%s546 + $0x64] sm:$0xf]
        %v575 = vld [vmem:[%s1] sm:$0xf]
        %v576 = vld [vmem:[%s1 + $0x4] sm:$0xf]
        %v577 = vld [vmem:[%s1 + $0x8] sm:$0xf]
        %v578 = vld [vmem:[%s1 + $0xc] sm:$0x3]
        %v579 = vld [vmem:[%s2] sm:$0x1]
        %v581 = vlaneseq
        %v582 = vshrl.u32 %v581, 7
        %v583 = vsub.s32 0, %v582
        %v584 = vrot.slane %v579, %v583
        %v612 = vunpack.c.l.b16 %v549
        %v613 = vunpack.c.l.b16 %v550
        %v614 = vunpack.c.l.b16 %v551
        %v615 = vunpack.c.l.b16 %v552
        %v616 = vunpack.c.l.b16 %v553
        %v617 = vunpack.c.l.b16 %v554
        %v618 = vunpack.c.l.b16 %v555
        %v619 = vunpack.c.l.b16 %v556
        %v620 = vunpack.c.l.b16 %v557
        %v621 = vunpack.c.l.b16 %v558
        %v622 = vunpack.c.l.b16 %v559
        %v623 = vunpack.c.l.b16 %v560
        %v624 = vunpack.c.l.b16 %v561
        %v625 = vunpack.c.l.b16 %v562
        %v626 = vunpack.c.l.b16 %v563
        %v627 = vunpack.c.l.b16 %v564
        %v628 = vunpack.c.l.b16 %v565
        %v629 = vunpack.c.l.b16 %v566
        %v630 = vunpack.c.l.b16 %v567
        %v631 = vunpack.c.l.b16 %v568
        %v632 = vunpack.c.l.b16 %v569
        %v633 = vunpack.c.l.b16 %v570
        %v634 = vunpack.c.l.b16 %v571
        %v635 = vunpack.c.l.b16 %v572
        %v636 = vunpack.c.l.b16 %v573
        %v637 = vunpack.c.l.b16 %v574
        %v638 = vpack.c.b16 %v613, %v612
        %v639 = vpack.c.b16 %v615, %v614
        %v640 = vpack.c.b16 %v617, %v616
        %v641 = vpack.c.b16 %v619, %v618
        %v642 = vpack.c.b16 %v621, %v620
        %v643 = vpack.c.b16 %v623, %v622
        %v644 = vpack.c.b16 %v625, %v624
        %v645 = vpack.c.b16 %v627, %v626
        %v646 = vpack.c.b16 %v629, %v628
        %v647 = vpack.c.b16 %v631, %v630
        %v648 = vpack.c.b16 %v633, %v632
        %v649 = vpack.c.b16 %v635, %v634
        %v650 = vpack.c.b16 %v637, %v636
        %v655 = vunpack.c.l.b16 %v575
        %v656 = vunpack.c.l.b16 %v576
        %v657 = vunpack.c.l.b16 %v577
        %v658 = vunpack.c.l.b16 %v578
        %v659 = vpack.c.b16 %v656, %v655
        %v660 = vpack.c.b16 %v658, %v657
        %vm662 = vcmask 220160
        %v664 = vsel %vm662, %v638, 0
        %v667 = vsel %vm662, %v639, 0
        %v670 = vsel %vm662, %v640, 0
        %v673 = vsel %vm662, %v641, 0
        %v676 = vsel %vm662, %v642, 0
        %v679 = vsel %vm662, %v643, 0
        %v682 = vsel %vm662, %v644, 0
        %v685 = vsel %vm662, %v645, 0
        %v688 = vsel %vm662, %v646, 0
        %v691 = vsel %vm662, %v647, 0
        %v694 = vsel %vm662, %v648, 0
        %v697 = vsel %vm662, %v649, 0
        %v700 = vsel %vm662, %v650, 0
        %vm702 = vcmask 1044480
        %vm703 = vcmask 1045504
        %v704 = vsel %vm702, 4294967295, 65535
        %v705 = vsel %vm703, %v704, 0
        %v707 = vand.u32 %v660, %v705
        %709 = vmatprep.subr.bf16.mxu0 0
        %710 = vmatpush1.bf16.msra.mxu0 0
        %711 = vmatprep.subr.bf16.mxu0 0
        %712 = vmatpush1.bf16.msra.mxu0 0
        %713 = vmatprep.subr.bf16.mxu0 0
        %714 = vmatpush1.bf16.msra.mxu0 0
        %715 = vmatprep.subr.bf16.mxu0 0
        %716 = vmatpush1.bf16.msra.mxu0 0
        %717 = vmatprep.subr.bf16.mxu0 0
        %718 = vmatpush1.bf16.msra.mxu0 0
        %719 = vmatprep.subr.bf16.mxu0 0
        %720 = vmatpush1.bf16.msra.mxu0 0
        %721 = vmatprep.subr.bf16.mxu0 0
        %722 = vmatpush1.bf16.msra.mxu0 %v707
        %723 = vmatprep.subr.bf16.mxu0 0
        %724 = vmatpush1.bf16.msra.mxu0 %v659
        %725 = vmatprep.subr.bf16.mxu0 0
        %726 = vmatpush2.bf16.msra.mxu0 0
        %727 = vmatprep.subr.bf16.mxu0 0
        %728 = vmatpush2.bf16.msra.mxu0 0
        %729 = vmatprep.subr.bf16.mxu0 0
        %730 = vmatpush2.bf16.msra.mxu0 0
        %731 = vmatprep.subr.bf16.mxu0 0
        %732 = vmatpush2.bf16.msra.mxu0 0
        %733 = vmatprep.subr.bf16.mxu0 0
        %734 = vmatpush2.bf16.msra.mxu0 0
        %735 = vmatprep.subr.bf16.mxu0 0
        %736 = vmatpush2.bf16.msra.mxu0 0
        %737 = vmatprep.subr.bf16.mxu0 0
        %738 = vmatpush2.bf16.msra.mxu0 0
        %739 = vmatprep.subr.bf16.mxu0 0
        %740 = vmatpush2.bf16.msra.mxu0 0
        %741 = vmatprep.mubr.bf16.mxu0 0
        %742 = vmatmul.mubr.bf16.gmra.mxu0 %v664
        %v743 = vpop.f32.mrf.mxu0
        %v744 = vadd.f32 %v584, %v743
        %v745 = vpop.f32.mrf.mxu0
        %v746 = vpop.f32.mrf.mxu0
        %v747 = vadd.f32 %v584, %v746
        %v748 = vpop.f32.mrf.mxu0
        %749 = vmatprep.mubr.bf16.mxu0 0
        %750 = vmatmul.mubr.bf16.gmra.mxu0 %v667
        %v751 = vpop.f32.mrf.mxu0
        %v752 = vadd.f32 %v584, %v751
        %v753 = vpop.f32.mrf.mxu0
        %v754 = vpop.f32.mrf.mxu0
        %v755 = vadd.f32 %v584, %v754
        %v756 = vpop.f32.mrf.mxu0
        %757 = vmatprep.mubr.bf16.mxu0 0
        %758 = vmatmul.mubr.bf16.gmra.mxu0 %v670
        %v759 = vpop.f32.mrf.mxu0
        %v760 = vadd.f32 %v584, %v759
        %v761 = vpop.f32.mrf.mxu0
        %v762 = vpop.f32.mrf.mxu0
        %v763 = vadd.f32 %v584, %v762
        %v764 = vpop.f32.mrf.mxu0
        %765 = vmatprep.mubr.bf16.mxu0 0
        %766 = vmatmul.mubr.bf16.gmra.mxu0 %v673
        %v767 = vpop.f32.mrf.mxu0
        %v768 = vadd.f32 %v584, %v767
        %v769 = vpop.f32.mrf.mxu0
        %v770 = vpop.f32.mrf.mxu0
        %v771 = vadd.f32 %v584, %v770
        %v772 = vpop.f32.mrf.mxu0
        %773 = vmatprep.mubr.bf16.mxu0 0
        %774 = vmatmul.mubr.bf16.gmra.mxu0 %v676
        %v775 = vpop.f32.mrf.mxu0
        %v776 = vadd.f32 %v584, %v775
        %v777 = vpop.f32.mrf.mxu0
        %v778 = vpop.f32.mrf.mxu0
        %v779 = vadd.f32 %v584, %v778
        %v780 = vpop.f32.mrf.mxu0
        %781 = vmatprep.mubr.bf16.mxu0 0
        %782 = vmatmul.mubr.bf16.gmra.mxu0 %v679
        %v783 = vpop.f32.mrf.mxu0
        %v784 = vadd.f32 %v584, %v783
        %v785 = vpop.f32.mrf.mxu0
        %v786 = vpop.f32.mrf.mxu0
        %v787 = vadd.f32 %v584, %v786
        %v788 = vpop.f32.mrf.mxu0
        %789 = vmatprep.mubr.bf16.mxu0 0
        %790 = vmatmul.mubr.bf16.gmra.mxu0 %v682
        %v791 = vpop.f32.mrf.mxu0
        %v792 = vadd.f32 %v584, %v791
        %v793 = vpop.f32.mrf.mxu0
        %v794 = vpop.f32.mrf.mxu0
        %v795 = vadd.f32 %v584, %v794
        %v796 = vpop.f32.mrf.mxu0
        %797 = vmatprep.mubr.bf16.mxu0 0
        %798 = vmatmul.mubr.bf16.gmra.mxu0 %v685
        %v799 = vpop.f32.mrf.mxu0
        %v800 = vadd.f32 %v584, %v799
        %v801 = vpop.f32.mrf.mxu0
        %v802 = vpop.f32.mrf.mxu0
        %v803 = vadd.f32 %v584, %v802
        %v804 = vpop.f32.mrf.mxu0
        %805 = vmatprep.mubr.bf16.mxu0 0
        %806 = vmatmul.mubr.bf16.gmra.mxu0 %v688
        %v807 = vpop.f32.mrf.mxu0
        %v808 = vadd.f32 %v584, %v807
        %v809 = vpop.f32.mrf.mxu0
        %v810 = vpop.f32.mrf.mxu0
        %v811 = vadd.f32 %v584, %v810
        %v812 = vpop.f32.mrf.mxu0
        %813 = vmatprep.mubr.bf16.mxu0 0
        %814 = vmatmul.mubr.bf16.gmra.mxu0 %v691
        %v815 = vpop.f32.mrf.mxu0
        %v816 = vadd.f32 %v584, %v815
        %v817 = vpop.f32.mrf.mxu0
        %v818 = vpop.f32.mrf.mxu0
        %v819 = vadd.f32 %v584, %v818
        %v820 = vpop.f32.mrf.mxu0
        %821 = vmatprep.mubr.bf16.mxu0 0
        %822 = vmatmul.mubr.bf16.gmra.mxu0 %v694
        %v823 = vpop.f32.mrf.mxu0
        %v824 = vadd.f32 %v584, %v823
        %v825 = vpop.f32.mrf.mxu0
        %v826 = vpop.f32.mrf.mxu0
        %v827 = vpop.f32.mrf.mxu0
        %828 = vmatprep.mubr.bf16.mxu0 0
        %829 = vmatmul.mubr.bf16.gmra.mxu0 %v697
        %v830 = vpop.f32.mrf.mxu0
        %v831 = vpop.f32.mrf.mxu0
        %v832 = vpop.f32.mrf.mxu0
        %v833 = vpop.f32.mrf.mxu0
        %834 = vmatprep.mubr.bf16.mxu0 0
        %835 = vmatmul.mubr.bf16.gmra.mxu0 %v700
        %v836 = vpop.f32.mrf.mxu0
        %v837 = vpop.f32.mrf.mxu0
        %v838 = vpop.f32.mrf.mxu0
        %v839 = vpop.f32.mrf.mxu0
        %840 = vdwg.mxu0
        %v841 = vmax.f32 %v744, 0.0
        %v842 = vmax.f32 %v747, 0.0
        %v843 = vmax.f32 %v752, 0.0
        %v844 = vmax.f32 %v755, 0.0
        %v845 = vmax.f32 %v760, 0.0
        %v846 = vmax.f32 %v763, 0.0
        %v847 = vmax.f32 %v768, 0.0
        %v848 = vmax.f32 %v771, 0.0
        %v849 = vmax.f32 %v776, 0.0
        %v850 = vmax.f32 %v779, 0.0
        %v851 = vmax.f32 %v784, 0.0
        %v852 = vmax.f32 %v787, 0.0
        %v853 = vmax.f32 %v792, 0.0
        %v854 = vmax.f32 %v795, 0.0
        %v855 = vmax.f32 %v800, 0.0
        %v856 = vmax.f32 %v803, 0.0
        %v857 = vmax.f32 %v808, 0.0
        %v858 = vmax.f32 %v811, 0.0
        %v859 = vmax.f32 %v816, 0.0
        %v860 = vmax.f32 %v819, 0.0
        %v861 = vmax.f32 %v824, 0.0
        %v862 = vld [vmem:[%s9] sm:$0xff]
        %v863 = vld [vmem:[%s9 + $0x8] sm:$0xff]
        %v864 = vld [vmem:[%s9 + $0x10] sm:$0xff]
        %v865 = vld [vmem:[%s9 + $0x18] sm:$0xff]
        %v866 = vld [vmem:[%s9 + $0x20] sm:$0xff]
        %v867 = vld [vmem:[%s9 + $0x28] sm:$0xff]
        %v868 = vld [vmem:[%s9 + $0x30] sm:$0xff]
        %v869 = vld [vmem:[%s9 + $0x38] sm:$0xff]
        %v870 = vld [vmem:[%s9 + $0x40] sm:$0xff]
        %v871 = vld [vmem:[%s9 + $0x48] sm:$0xff]
        %v872 = vld [vmem:[%s9 + $0x50] sm:$0xff]
        %v873 = vld [vmem:[%s9 + $0x58] sm:$0xff]
        %v874 = vld [vmem:[%s9 + $0x60] sm:$0xff]
        %v875 = vld [vmem:[%s9 + $0x68] sm:$0xff]
        %v876 = vld [vmem:[%s9 + $0x70] sm:$0xff]
        %v877 = vld [vmem:[%s9 + $0x78] sm:$0xff]
        %v878 = vld [vmem:[%s9 + $0x80] sm:$0xff]
        %v879 = vld [vmem:[%s9 + $0x88] sm:$0xff]
        %v880 = vld [vmem:[%s9 + $0x90] sm:$0xff]
        %v881 = vld [vmem:[%s9 + $0x98] sm:$0xff]
        %v882 = vld [vmem:[%s9 + $0xa0] sm:$0xff]
        %vm883 = vcmask 125952
        %884 = vst.msk [vmem:[#allocation2] sm:$0xf] %vm883, 0
        %885 = vst.msk [vmem:[#allocation2 + $0x4] sm:$0xf] %vm883, 0
        %886 = vst.msk [vmem:[#allocation2 + $0x5c] sm:$0xf] %vm883, 0
        %887 = vst.msk [vmem:[#allocation2 + $0x60] sm:$0xf] %vm883, 0
        %888 = vst.msk [vmem:[#allocation2 + $0x64] sm:$0xf] %vm883, 0
        %v889 = vmul.f32 %v841, %v862
        %v890 = vmul.f32 %v842, %v863
        %v891 = vmul.f32 %v843, %v864
        %v892 = vmul.f32 %v844, %v865
        %v893 = vmul.f32 %v845, %v866
        %v894 = vmul.f32 %v846, %v867
        %v895 = vmul.f32 %v847, %v868
        %v896 = vmul.f32 %v848, %v869
        %v897 = vmul.f32 %v849, %v870
        %v898 = vmul.f32 %v850, %v871
        %v899 = vmul.f32 %v851, %v872
        %v900 = vmul.f32 %v852, %v873
        %v901 = vmul.f32 %v853, %v874
        %v902 = vmul.f32 %v854, %v875
        %v903 = vmul.f32 %v855, %v876
        %v904 = vmul.f32 %v856, %v877
        %v905 = vmul.f32 %v857, %v878
        %v906 = vmul.f32 %v858, %v879
        %v907 = vmul.f32 %v859, %v880
        %v908 = vmul.f32 %v860, %v881
        %v909 = vmul.f32 %v861, %v882
        %v910 = vpack.c.bf16 %v890, %v889
        %v911 = vpack.c.bf16 %v892, %v891
        %v912 = vpack.c.bf16 %v894, %v893
        %v913 = vpack.c.bf16 %v896, %v895
        %v914 = vpack.c.bf16 %v898, %v897
        %v915 = vpack.c.bf16 %v900, %v899
        %v916 = vpack.c.bf16 %v902, %v901
        %v917 = vpack.c.bf16 %v904, %v903
        %v918 = vpack.c.bf16 %v906, %v905
        %v919 = vpack.c.bf16 %v908, %v907
        %v920 = vpack.c.bf16 %v909, %v909
        %v932 = vunpack.c.l.b16 %v910
        %v933 = vunpack.c.h.b16 %v910
        %v934 = vunpack.c.l.b16 %v911
        %v935 = vunpack.c.h.b16 %v911
        %v936 = vunpack.c.l.b16 %v912
        %v937 = vunpack.c.h.b16 %v912
        %v938 = vunpack.c.l.b16 %v913
        %v939 = vunpack.c.h.b16 %v913
        %v940 = vunpack.c.l.b16 %v914
        %v941 = vunpack.c.h.b16 %v914
        %v942 = vunpack.c.l.b16 %v915
        %v943 = vunpack.c.h.b16 %v915
        %v944 = vunpack.c.l.b16 %v916
        %v945 = vunpack.c.h.b16 %v916
        %v946 = vunpack.c.l.b16 %v917
        %v947 = vunpack.c.h.b16 %v917
        %v948 = vunpack.c.l.b16 %v918
        %v949 = vunpack.c.h.b16 %v918
        %v950 = vunpack.c.l.b16 %v919
        %v951 = vunpack.c.h.b16 %v919
        %v952 = vunpack.c.l.b16 %v920
        %v953 = vpack.c.b16 %v932, %v932
        %v954 = vpack.c.b16 %v933, %v933
        %v955 = vpack.c.b16 %v934, %v934
        %v956 = vpack.c.b16 %v935, %v935
        %v957 = vpack.c.b16 %v936, %v936
        %v958 = vpack.c.b16 %v937, %v937
        %v959 = vpack.c.b16 %v938, %v938
        %v960 = vpack.c.b16 %v939, %v939
        %v961 = vpack.c.b16 %v940, %v940
        %v962 = vpack.c.b16 %v941, %v941
        %v963 = vpack.c.b16 %v942, %v942
        %v964 = vpack.c.b16 %v943, %v943
        %v965 = vpack.c.b16 %v944, %v944
        %v966 = vpack.c.b16 %v945, %v945
        %v967 = vpack.c.b16 %v946, %v946
        %v968 = vpack.c.b16 %v947, %v947
        %v969 = vpack.c.b16 %v948, %v948
        %v970 = vpack.c.b16 %v949, %v949
        %v971 = vpack.c.b16 %v950, %v950
        %v972 = vpack.c.b16 %v951, %v951
        %v973 = vpack.c.b16 %v952, %v952
        %995 = vst.msk [vmem:[#allocation2 + $0x8] sm:$0xf] %vm883, %v953
        %996 = vst.msk [vmem:[#allocation2 + $0xc] sm:$0xf] %vm883, %v954
        %997 = vst.msk [vmem:[#allocation2 + $0x10] sm:$0xf] %vm883, %v955
        %998 = vst.msk [vmem:[#allocation2 + $0x14] sm:$0xf] %vm883, %v956
        %999 = vst.msk [vmem:[#allocation2 + $0x18] sm:$0xf] %vm883, %v957
        %1000 = vst.msk [vmem:[#allocation2 + $0x1c] sm:$0xf] %vm883, %v958
        %1001 = vst.msk [vmem:[#allocation2 + $0x20] sm:$0xf] %vm883, %v959
        %1002 = vst.msk [vmem:[#allocation2 + $0x24] sm:$0xf] %vm883, %v960
        %1003 = vst.msk [vmem:[#allocation2 + $0x28] sm:$0xf] %vm883, %v961
        %1004 = vst.msk [vmem:[#allocation2 + $0x2c] sm:$0xf] %vm883, %v962
        %1005 = vst.msk [vmem:[#allocation2 + $0x30] sm:$0xf] %vm883, %v963
        %1006 = vst.msk [vmem:[#allocation2 + $0x34] sm:$0xf] %vm883, %v964
        %1007 = vst.msk [vmem:[#allocation2 + $0x38] sm:$0xf] %vm883, %v965
        %1008 = vst.msk [vmem:[#allocation2 + $0x3c] sm:$0xf] %vm883, %v966
        %1009 = vst.msk [vmem:[#allocation2 + $0x40] sm:$0xf] %vm883, %v967
        %1010 = vst.msk [vmem:[#allocation2 + $0x44] sm:$0xf] %vm883, %v968
        %1011 = vst.msk [vmem:[#allocation2 + $0x48] sm:$0xf] %vm883, %v969
        %1012 = vst.msk [vmem:[#allocation2 + $0x4c] sm:$0xf] %vm883, %v970
        %1013 = vst.msk [vmem:[#allocation2 + $0x50] sm:$0xf] %vm883, %v971
        %1014 = vst.msk [vmem:[#allocation2 + $0x54] sm:$0xf] %vm883, %v972
        %1015 = vst.msk [vmem:[#allocation2 + $0x58] sm:$0xf] %vm883, %v973
        %v1016 = vld [vmem:[#allocation2] sm:$0xf]
        %v1017 = vld [vmem:[#allocation2 + $0x4] sm:$0xf]
        %v1018 = vld [vmem:[#allocation2 + $0x8] sm:$0xf]
        %v1019 = vld [vmem:[#allocation2 + $0xc] sm:$0xf]
        %v1020 = vld [vmem:[#allocation2 + $0x10] sm:$0xf]
        %v1021 = vld [vmem:[#allocation2 + $0x14] sm:$0xf]
        %v1022 = vld [vmem:[#allocation2 + $0x18] sm:$0xf]
        %v1023 = vld [vmem:[#allocation2 + $0x1c] sm:$0xf]
        %v1024 = vld [vmem:[#allocation2 + $0x20] sm:$0xf]
        %v1025 = vld [vmem:[#allocation2 + $0x24] sm:$0xf]
        %v1026 = vld [vmem:[#allocation2 + $0x28] sm:$0xf]
        %v1027 = vld [vmem:[#allocation2 + $0x2c] sm:$0xf]
        %v1028 = vld [vmem:[#allocation2 + $0x30] sm:$0xf]
        %v1029 = vld [vmem:[#allocation2 + $0x34] sm:$0xf]
        %v1030 = vld [vmem:[#allocation2 + $0x38] sm:$0xf]
        %v1031 = vld [vmem:[#allocation2 + $0x3c] sm:$0xf]
        %v1032 = vld [vmem:[#allocation2 + $0x40] sm:$0xf]
        %v1033 = vld [vmem:[#allocation2 + $0x44] sm:$0xf]
        %v1034 = vld [vmem:[#allocation2 + $0x48] sm:$0xf]
        %v1035 = vld [vmem:[#allocation2 + $0x4c] sm:$0xf]
        %v1036 = vld [vmem:[#allocation2 + $0x50] sm:$0xf]
        %v1037 = vld [vmem:[#allocation2 + $0x54] sm:$0x1]
        %v1038 = vld [vmem:[%s3] sm:$0xf]
        %v1039 = vld [vmem:[%s3 + $0x4] sm:$0xf]
        %v1040 = vld [vmem:[#allocation2] sm:$0xe]
        %s1041 = scalar_lea.vmem %s3, 8
        %v1042 = vld [vmem:[%s1041] sm:$0xf]
        %v1043 = vld [vmem:[%s1041 + $0x4] sm:$0xf]
        %v1066 = vunpack.c.l.b16 %v1040
        %v1067 = vunpack.c.l.b16 %v1017
        %v1068 = vunpack.c.l.b16 %v1018
        %v1069 = vunpack.c.l.b16 %v1019
        %v1070 = vunpack.c.l.b16 %v1020
        %v1071 = vunpack.c.l.b16 %v1021
        %v1072 = vunpack.c.l.b16 %v1022
        %v1073 = vunpack.c.l.b16 %v1023
        %v1074 = vunpack.c.l.b16 %v1024
        %v1075 = vunpack.c.l.b16 %v1025
        %v1076 = vunpack.c.l.b16 %v1026
        %v1077 = vunpack.c.l.b16 %v1027
        %v1078 = vunpack.c.l.b16 %v1028
        %v1079 = vunpack.c.l.b16 %v1029
        %v1080 = vunpack.c.l.b16 %v1030
        %v1081 = vunpack.c.l.b16 %v1031
        %v1082 = vunpack.c.l.b16 %v1032
        %v1083 = vunpack.c.l.b16 %v1033
        %v1084 = vunpack.c.l.b16 %v1034
        %v1085 = vunpack.c.l.b16 %v1035
        %v1086 = vunpack.c.l.b16 %v1036
        %v1087 = vunpack.c.l.b16 %v1037
        %v1088 = vpack.c.b16 %v1067, %v1066
        %v1089 = vpack.c.b16 %v1069, %v1068
        %v1090 = vpack.c.b16 %v1071, %v1070
        %v1091 = vpack.c.b16 %v1073, %v1072
        %v1092 = vpack.c.b16 %v1075, %v1074
        %v1093 = vpack.c.b16 %v1077, %v1076
        %v1094 = vpack.c.b16 %v1079, %v1078
        %v1095 = vpack.c.b16 %v1081, %v1080
        %v1096 = vpack.c.b16 %v1083, %v1082
        %v1097 = vpack.c.b16 %v1085, %v1084
        %v1098 = vpack.c.b16 %v1087, %v1086
        %vm1099 = vcmask 1046528
        %v1100 = vrot.slane %v1088, 1
        %v1101 = vrot.slane %v1089, 1
        %v1102 = vsel %vm1099, %v1100, %v1101
        %v1103 = vrot.slane %v1090, 1
        %v1104 = vsel %vm1099, %v1101, %v1103
        %v1105 = vrot.slane %v1091, 1
        %v1106 = vsel %vm1099, %v1103, %v1105
        %v1107 = vrot.slane %v1092, 1
        %v1108 = vsel %vm1099, %v1105, %v1107
        %v1109 = vrot.slane %v1093, 1
        %v1110 = vsel %vm1099, %v1107, %v1109
        %v1111 = vrot.slane %v1094, 1
        %v1112 = vsel %vm1099, %v1109, %v1111
        %v1113 = vrot.slane %v1095, 1
        %v1114 = vsel %vm1099, %v1111, %v1113
        %v1115 = vrot.slane %v1096, 1
        %v1116 = vsel %vm1099, %v1113, %v1115
        %v1117 = vrot.slane %v1097, 1
        %v1118 = vsel %vm1099, %v1115, %v1117
        %v1119 = vrot.slane %v1098, 1
        %v1120 = vsel %vm1099, %v1117, %v1119
        %v1123 = vunpack.c.l.b16 %v1042
        %v1124 = vunpack.c.l.b16 %v1043
        %v1125 = vpack.c.b16 %v1124, %v1123
        %vm1127 = vcmask 130048
        %v1129 = vsel %vm1127, %v1102, 0
        %v1132 = vsel %vm1127, %v1104, 0
        %v1135 = vsel %vm1127, %v1106, 0
        %v1138 = vsel %vm1127, %v1108, 0
        %v1141 = vsel %vm1127, %v1110, 0
        %v1144 = vsel %vm1127, %v1112, 0
        %v1147 = vsel %vm1127, %v1114, 0
        %v1150 = vsel %vm1127, %v1116, 0
        %v1153 = vsel %vm1127, %v1118, 0
        %v1156 = vsel %vm1127, %v1120, 0
        %v1159 = vsel %vm1127, %v1119, 0
        %1161 = vmatprep.subr.bf16.mxu0 0
        %1162 = vmatpush1.bf16.msra.mxu0 0
        %1163 = vmatprep.subr.bf16.mxu0 0
        %1164 = vmatpush1.bf16.msra.mxu0 0
        %1165 = vmatprep.subr.bf16.mxu0 0
        %1166 = vmatpush1.bf16.msra.mxu0 0
        %1167 = vmatprep.subr.bf16.mxu0 0
        %1168 = vmatpush1.bf16.msra.mxu0 0
        %1169 = vmatprep.subr.bf16.mxu0 0
        %1170 = vmatpush1.bf16.msra.mxu0 0
        %1171 = vmatprep.subr.bf16.mxu0 0
        %1172 = vmatpush1.bf16.msra.mxu0 0
        %1173 = vmatprep.subr.bf16.mxu0 0
        %1174 = vmatpush1.bf16.msra.mxu0 0
        %1175 = vmatprep.subr.bf16.mxu0 0
        %1176 = vmatpush1.bf16.msra.mxu0 %v1125
        %1177 = vmatprep.subr.bf16.mxu0 0
        %1178 = vmatpush2.bf16.msra.mxu0 0
        %1179 = vmatprep.subr.bf16.mxu0 0
        %1180 = vmatpush2.bf16.msra.mxu0 0
        %1181 = vmatprep.subr.bf16.mxu0 0
        %1182 = vmatpush2.bf16.msra.mxu0 0
        %1183 = vmatprep.subr.bf16.mxu0 0
        %1184 = vmatpush2.bf16.msra.mxu0 0
        %1185 = vmatprep.subr.bf16.mxu0 0
        %1186 = vmatpush2.bf16.msra.mxu0 0
        %1187 = vmatprep.subr.bf16.mxu0 0
        %1188 = vmatpush2.bf16.msra.mxu0 0
        %1189 = vmatprep.subr.bf16.mxu0 0
        %1190 = vmatpush2.bf16.msra.mxu0 0
        %1191 = vmatprep.subr.bf16.mxu0 0
        %1192 = vmatpush2.bf16.msra.mxu0 0
        %1193 = vmatprep.mubr.bf16.mxu0 0
        %1194 = vmatmul.mubr.bf16.gmra.mxu0 %v1129
        %v1195 = vpop.f32.mrf.mxu0
        %v1196 = vadd.f32 0.0, %v1195
        %v1197 = vpop.f32.mrf.mxu0
        %v1198 = vpop.f32.mrf.mxu0
        %v1199 = vadd.f32 0.0, %v1198
        %v1200 = vpop.f32.mrf.mxu0
        %1201 = vmatprep.mubr.bf16.mxu0 0
        %1202 = vmatmul.mubr.bf16.gmra.mxu0 %v1132
        %v1203 = vpop.f32.mrf.mxu0
        %v1204 = vadd.f32 0.0, %v1203
        %v1205 = vpop.f32.mrf.mxu0
        %v1206 = vpop.f32.mrf.mxu0
        %v1207 = vadd.f32 0.0, %v1206
        %v1208 = vpop.f32.mrf.mxu0
        %1209 = vmatprep.mubr.bf16.mxu0 0
        %1210 = vmatmul.mubr.bf16.gmra.mxu0 %v1135
        %v1211 = vpop.f32.mrf.mxu0
        %v1212 = vadd.f32 0.0, %v1211
        %v1213 = vpop.f32.mrf.mxu0
        %v1214 = vpop.f32.mrf.mxu0
        %v1215 = vadd.f32 0.0, %v1214
        %v1216 = vpop.f32.mrf.mxu0
        %1217 = vmatprep.mubr.bf16.mxu0 0
        %1218 = vmatmul.mubr.bf16.gmra.mxu0 %v1138
        %v1219 = vpop.f32.mrf.mxu0
        %v1220 = vadd.f32 0.0, %v1219
        %v1221 = vpop.f32.mrf.mxu0
        %v1222 = vpop.f32.mrf.mxu0
        %v1223 = vadd.f32 0.0, %v1222
        %v1224 = vpop.f32.mrf.mxu0
        %1225 = vmatprep.mubr.bf16.mxu0 0
        %1226 = vmatmul.mubr.bf16.gmra.mxu0 %v1141
        %v1227 = vpop.f32.mrf.mxu0
        %v1228 = vadd.f32 0.0, %v1227
        %v1229 = vpop.f32.mrf.mxu0
        %v1230 = vpop.f32.mrf.mxu0
        %v1231 = vadd.f32 0.0, %v1230
        %v1232 = vpop.f32.mrf.mxu0
        %1233 = vmatprep.mubr.bf16.mxu0 0
        %1234 = vmatmul.mubr.bf16.gmra.mxu0 %v1144
        %v1235 = vpop.f32.mrf.mxu0
        %v1236 = vadd.f32 0.0, %v1235
        %v1237 = vpop.f32.mrf.mxu0
        %v1238 = vpop.f32.mrf.mxu0
        %v1239 = vadd.f32 0.0, %v1238
        %v1240 = vpop.f32.mrf.mxu0
        %1241 = vmatprep.mubr.bf16.mxu0 0
        %1242 = vmatmul.mubr.bf16.gmra.mxu0 %v1147
        %v1243 = vpop.f32.mrf.mxu0
        %v1244 = vadd.f32 0.0, %v1243
        %v1245 = vpop.f32.mrf.mxu0
        %v1246 = vpop.f32.mrf.mxu0
        %v1247 = vadd.f32 0.0, %v1246
        %v1248 = vpop.f32.mrf.mxu0
        %1249 = vmatprep.mubr.bf16.mxu0 0
        %1250 = vmatmul.mubr.bf16.gmra.mxu0 %v1150
        %v1251 = vpop.f32.mrf.mxu0
        %v1252 = vadd.f32 0.0, %v1251
        %v1253 = vpop.f32.mrf.mxu0
        %v1254 = vpop.f32.mrf.mxu0
        %v1255 = vadd.f32 0.0, %v1254
        %v1256 = vpop.f32.mrf.mxu0
        %1257 = vmatprep.mubr.bf16.mxu0 0
        %1258 = vmatmul.mubr.bf16.gmra.mxu0 %v1153
        %v1259 = vpop.f32.mrf.mxu0
        %v1260 = vadd.f32 0.0, %v1259
        %v1261 = vpop.f32.mrf.mxu0
        %v1262 = vpop.f32.mrf.mxu0
        %v1263 = vadd.f32 0.0, %v1262
        %v1264 = vpop.f32.mrf.mxu0
        %1265 = vmatprep.mubr.bf16.mxu0 0
        %1266 = vmatmul.mubr.bf16.gmra.mxu0 %v1156
        %v1267 = vpop.f32.mrf.mxu0
        %v1268 = vadd.f32 0.0, %v1267
        %v1269 = vpop.f32.mrf.mxu0
        %v1270 = vpop.f32.mrf.mxu0
        %v1271 = vadd.f32 0.0, %v1270
        %v1272 = vpop.f32.mrf.mxu0
        %1273 = vmatprep.mubr.bf16.mxu0 0
        %1274 = vmatmul.mubr.bf16.gmra.mxu0 %v1159
        %v1275 = vpop.f32.mrf.mxu0
        %v1276 = vadd.f32 0.0, %v1275
        %v1277 = vpop.f32.mrf.mxu0
        %v1278 = vpop.f32.mrf.mxu0
        %v1279 = vpop.f32.mrf.mxu0
        %1280 = vdwg.mxu0
        %v1282 = vunpack.c.l.b16 %v1016
        %v1283 = vpack.c.b16 %v1067, %v1282
        %vm1284 = vsmask.f32 7424
        %v1286 = vshrl.u32 %v1283, 16
        %v1288 = vshll.u32 %v1283, 16
        %v1290 = vrot.slane %v1288, 1
        %v1291 = vor.u32 %v1286, %v1290
        %v1293 = vshll.u32 %v1089, 16
        %v1295 = vrot.slane %v1293, 1
        %v1296 = vsel %vm1284, %v1291, %v1295
        %v1297 = vshrl.u32 %v1089, 16
        %v1299 = vor.u32 %v1297, %v1295
        %v1301 = vshll.u32 %v1090, 16
        %v1303 = vrot.slane %v1301, 1
        %v1304 = vsel %vm1284, %v1299, %v1303
        %v1305 = vshrl.u32 %v1090, 16
        %v1307 = vor.u32 %v1305, %v1303
        %v1309 = vshll.u32 %v1091, 16
        %v1311 = vrot.slane %v1309, 1
        %v1312 = vsel %vm1284, %v1307, %v1311
        %v1313 = vshrl.u32 %v1091, 16
        %v1315 = vor.u32 %v1313, %v1311
        %v1317 = vshll.u32 %v1092, 16
        %v1319 = vrot.slane %v1317, 1
        %v1320 = vsel %vm1284, %v1315, %v1319
        %v1321 = vshrl.u32 %v1092, 16
        %v1323 = vor.u32 %v1321, %v1319
        %v1325 = vshll.u32 %v1093, 16
        %v1327 = vrot.slane %v1325, 1
        %v1328 = vsel %vm1284, %v1323, %v1327
        %v1329 = vshrl.u32 %v1093, 16
        %v1331 = vor.u32 %v1329, %v1327
        %v1333 = vshll.u32 %v1094, 16
        %v1335 = vrot.slane %v1333, 1
        %v1336 = vsel %vm1284, %v1331, %v1335
        %v1337 = vshrl.u32 %v1094, 16
        %v1339 = vor.u32 %v1337, %v1335
        %v1341 = vshll.u32 %v1095, 16
        %v1343 = vrot.slane %v1341, 1
        %v1344 = vsel %vm1284, %v1339, %v1343
        %v1345 = vshrl.u32 %v1095, 16
        %v1347 = vor.u32 %v1345, %v1343
        %v1349 = vshll.u32 %v1096, 16
        %v1351 = vrot.slane %v1349, 1
        %v1352 = vsel %vm1284, %v1347, %v1351
        %v1353 = vshrl.u32 %v1096, 16
        %v1355 = vor.u32 %v1353, %v1351
        %v1357 = vshll.u32 %v1097, 16
        %v1359 = vrot.slane %v1357, 1
        %v1360 = vsel %vm1284, %v1355, %v1359
        %v1361 = vshrl.u32 %v1097, 16
        %v1363 = vor.u32 %v1361, %v1359
        %v1365 = vshll.u32 %v1098, 16
        %v1367 = vrot.slane %v1365, 1
        %v1368 = vsel %vm1284, %v1363, %v1367
        %v1369 = vshrl.u32 %v1098, 16
        %v1371 = vor.u32 %v1369, %v1367
        %v1374 = vunpack.c.l.b16 %v1038
        %v1375 = vunpack.c.l.b16 %v1039
        %v1376 = vpack.c.b16 %v1375, %v1374
        %v1379 = vsel %vm1127, %v1296, 0
        %v1382 = vsel %vm1127, %v1304, 0
        %v1385 = vsel %vm1127, %v1312, 0
        %v1388 = vsel %vm1127, %v1320, 0
        %v1391 = vsel %vm1127, %v1328, 0
        %v1394 = vsel %vm1127, %v1336, 0
        %v1397 = vsel %vm1127, %v1344, 0
        %v1400 = vsel %vm1127, %v1352, 0
        %v1403 = vsel %vm1127, %v1360, 0
        %v1406 = vsel %vm1127, %v1368, 0
        %v1409 = vsel %vm1127, %v1371, 0
        %1411 = vmatprep.subr.bf16.mxu0 0
        %1412 = vmatpush1.bf16.msra.mxu0 0
        %1413 = vmatprep.subr.bf16.mxu0 0
        %1414 = vmatpush1.bf16.msra.mxu0 0
        %1415 = vmatprep.subr.bf16.mxu0 0
        %1416 = vmatpush1.bf16.msra.mxu0 0
        %1417 = vmatprep.subr.bf16.mxu0 0
        %1418 = vmatpush1.bf16.msra.mxu0 0
        %1419 = vmatprep.subr.bf16.mxu0 0
        %1420 = vmatpush1.bf16.msra.mxu0 0
        %1421 = vmatprep.subr.bf16.mxu0 0
        %1422 = vmatpush1.bf16.msra.mxu0 0
        %1423 = vmatprep.subr.bf16.mxu0 0
        %1424 = vmatpush1.bf16.msra.mxu0 0
        %1425 = vmatprep.subr.bf16.mxu0 0
        %1426 = vmatpush1.bf16.msra.mxu0 %v1376
        %1427 = vmatprep.subr.bf16.mxu0 0
        %1428 = vmatpush2.bf16.msra.mxu0 0
        %1429 = vmatprep.subr.bf16.mxu0 0
        %1430 = vmatpush2.bf16.msra.mxu0 0
        %1431 = vmatprep.subr.bf16.mxu0 0
        %1432 = vmatpush2.bf16.msra.mxu0 0
        %1433 = vmatprep.subr.bf16.mxu0 0
        %1434 = vmatpush2.bf16.msra.mxu0 0
        %1435 = vmatprep.subr.bf16.mxu0 0
        %1436 = vmatpush2.bf16.msra.mxu0 0
        %1437 = vmatprep.subr.bf16.mxu0 0
        %1438 = vmatpush2.bf16.msra.mxu0 0
        %1439 = vmatprep.subr.bf16.mxu0 0
        %1440 = vmatpush2.bf16.msra.mxu0 0
        %1441 = vmatprep.subr.bf16.mxu0 0
        %1442 = vmatpush2.bf16.msra.mxu0 0
        %1443 = vmatprep.mubr.bf16.mxu0 0
        %1444 = vmatmul.mubr.bf16.gmra.mxu0 %v1379
        %v1445 = vpop.f32.mrf.mxu0
        %v1446 = vadd.f32 %v1196, %v1445
        %v1447 = vpop.f32.mrf.mxu0
        %v1448 = vpop.f32.mrf.mxu0
        %v1449 = vadd.f32 %v1199, %v1448
        %v1450 = vpop.f32.mrf.mxu0
        %1451 = vmatprep.mubr.bf16.mxu0 0
        %1452 = vmatmul.mubr.bf16.gmra.mxu0 %v1382
        %v1453 = vpop.f32.mrf.mxu0
        %v1454 = vadd.f32 %v1204, %v1453
        %v1455 = vpop.f32.mrf.mxu0
        %v1456 = vpop.f32.mrf.mxu0
        %v1457 = vadd.f32 %v1207, %v1456
        %v1458 = vpop.f32.mrf.mxu0
        %1459 = vmatprep.mubr.bf16.mxu0 0
        %1460 = vmatmul.mubr.bf16.gmra.mxu0 %v1385
        %v1461 = vpop.f32.mrf.mxu0
        %v1462 = vadd.f32 %v1212, %v1461
        %v1463 = vpop.f32.mrf.mxu0
        %v1464 = vpop.f32.mrf.mxu0
        %v1465 = vadd.f32 %v1215, %v1464
        %v1466 = vpop.f32.mrf.mxu0
        %1467 = vmatprep.mubr.bf16.mxu0 0
        %1468 = vmatmul.mubr.bf16.gmra.mxu0 %v1388
        %v1469 = vpop.f32.mrf.mxu0
        %v1470 = vadd.f32 %v1220, %v1469
        %v1471 = vpop.f32.mrf.mxu0
        %v1472 = vpop.f32.mrf.mxu0
        %v1473 = vadd.f32 %v1223, %v1472
        %v1474 = vpop.f32.mrf.mxu0
        %1475 = vmatprep.mubr.bf16.mxu0 0
        %1476 = vmatmul.mubr.bf16.gmra.mxu0 %v1391
        %v1477 = vpop.f32.mrf.mxu0
        %v1478 = vadd.f32 %v1228, %v1477
        %v1479 = vpop.f32.mrf.mxu0
        %v1480 = vpop.f32.mrf.mxu0
        %v1481 = vadd.f32 %v1231, %v1480
        %v1482 = vpop.f32.mrf.mxu0
        %1483 = vmatprep.mubr.bf16.mxu0 0
        %1484 = vmatmul.mubr.bf16.gmra.mxu0 %v1394
        %v1485 = vpop.f32.mrf.mxu0
        %v1486 = vadd.f32 %v1236, %v1485
        %v1487 = vpop.f32.mrf.mxu0
        %v1488 = vpop.f32.mrf.mxu0
        %v1489 = vadd.f32 %v1239, %v1488
        %v1490 = vpop.f32.mrf.mxu0
        %1491 = vmatprep.mubr.bf16.mxu0 0
        %1492 = vmatmul.mubr.bf16.gmra.mxu0 %v1397
        %v1493 = vpop.f32.mrf.mxu0
        %v1494 = vadd.f32 %v1244, %v1493
        %v1495 = vpop.f32.mrf.mxu0
        %v1496 = vpop.f32.mrf.mxu0
        %v1497 = vadd.f32 %v1247, %v1496
        %v1498 = vpop.f32.mrf.mxu0
        %1499 = vmatprep.mubr.bf16.mxu0 0
        %1500 = vmatmul.mubr.bf16.gmra.mxu0 %v1400
        %v1501 = vpop.f32.mrf.mxu0
        %v1502 = vadd.f32 %v1252, %v1501
        %v1503 = vpop.f32.mrf.mxu0
        %v1504 = vpop.f32.mrf.mxu0
        %v1505 = vadd.f32 %v1255, %v1504
        %v1506 = vpop.f32.mrf.mxu0
        %1507 = vmatprep.mubr.bf16.mxu0 0
        %1508 = vmatmul.mubr.bf16.gmra.mxu0 %v1403
        %v1509 = vpop.f32.mrf.mxu0
        %v1510 = vadd.f32 %v1260, %v1509
        %v1511 = vpop.f32.mrf.mxu0
        %v1512 = vpop.f32.mrf.mxu0
        %v1513 = vadd.f32 %v1263, %v1512
        %v1514 = vpop.f32.mrf.mxu0
        %1515 = vmatprep.mubr.bf16.mxu0 0
        %1516 = vmatmul.mubr.bf16.gmra.mxu0 %v1406
        %v1517 = vpop.f32.mrf.mxu0
        %v1518 = vadd.f32 %v1268, %v1517
        %v1519 = vpop.f32.mrf.mxu0
        %v1520 = vpop.f32.mrf.mxu0
        %v1521 = vadd.f32 %v1271, %v1520
        %v1522 = vpop.f32.mrf.mxu0
        %1523 = vmatprep.mubr.bf16.mxu0 0
        %1524 = vmatmul.mubr.bf16.gmra.mxu0 %v1409
        %v1525 = vpop.f32.mrf.mxu0
        %v1526 = vadd.f32 %v1276, %v1525
        %v1527 = vpop.f32.mrf.mxu0
        %v1528 = vpop.f32.mrf.mxu0
        %v1529 = vpop.f32.mrf.mxu0
        %1530 = vdwg.mxu0
        %v1531 = vld [vmem:[#allocation2 + $0x54] sm:$0x3]
        %s1532 = scalar_lea.vmem %s3, 16
        %v1533 = vld [vmem:[%s1532] sm:$0xf]
        %v1534 = vld [vmem:[%s1532 + $0x4] sm:$0xf]
        %v1536 = vunpack.c.l.b16 %v1531
        %v1537 = vpack.c.b16 %v1536, %v1086
        %vm1538 = vsmask.f32 6400
        %v1540 = vshrl.u32 %v1088, 16
        %v1542 = vrot.slane %v1540, 1
        %v1543 = vshll.u32 %v1088, 16
        %v1545 = vrot.slane %v1543, 2
        %v1546 = vor.u32 %v1542, %v1545
        %v1547 = vrot.slane %v1297, 1
        %v1548 = vrot.slane %v1293, 2
        %v1549 = vor.u32 %v1547, %v1548
        %v1550 = vsel %vm1538, %v1546, %v1549
        %v1551 = vrot.slane %v1305, 1
        %v1552 = vrot.slane %v1301, 2
        %v1553 = vor.u32 %v1551, %v1552
        %v1554 = vsel %vm1538, %v1549, %v1553
        %v1555 = vrot.slane %v1313, 1
        %v1556 = vrot.slane %v1309, 2
        %v1557 = vor.u32 %v1555, %v1556
        %v1558 = vsel %vm1538, %v1553, %v1557
        %v1559 = vrot.slane %v1321, 1
        %v1560 = vrot.slane %v1317, 2
        %v1561 = vor.u32 %v1559, %v1560
        %v1562 = vsel %vm1538, %v1557, %v1561
        %v1563 = vrot.slane %v1329, 1
        %v1564 = vrot.slane %v1325, 2
        %v1565 = vor.u32 %v1563, %v1564
        %v1566 = vsel %vm1538, %v1561, %v1565
        %v1567 = vrot.slane %v1337, 1
        %v1568 = vrot.slane %v1333, 2
        %v1569 = vor.u32 %v1567, %v1568
        %v1570 = vsel %vm1538, %v1565, %v1569
        %v1571 = vrot.slane %v1345, 1
        %v1572 = vrot.slane %v1341, 2
        %v1573 = vor.u32 %v1571, %v1572
        %v1574 = vsel %vm1538, %v1569, %v1573
        %v1575 = vrot.slane %v1353, 1
        %v1576 = vrot.slane %v1349, 2
        %v1577 = vor.u32 %v1575, %v1576
        %v1578 = vsel %vm1538, %v1573, %v1577
        %v1579 = vrot.slane %v1361, 1
        %v1580 = vrot.slane %v1357, 2
        %v1581 = vor.u32 %v1579, %v1580
        %v1582 = vsel %vm1538, %v1577, %v1581
        %v1584 = vshrl.u32 %v1537, 16
        %v1586 = vrot.slane %v1584, 1
        %v1587 = vshll.u32 %v1537, 16
        %v1589 = vrot.slane %v1587, 2
        %v1590 = vor.u32 %v1586, %v1589
        %v1591 = vsel %vm1538, %v1581, %v1590
        %v1594 = vunpack.c.l.b16 %v1533
        %v1595 = vunpack.c.l.b16 %v1534
        %v1596 = vpack.c.b16 %v1595, %v1594
        %v1599 = vsel %vm1127, %v1550, 0
        %v1602 = vsel %vm1127, %v1554, 0
        %v1605 = vsel %vm1127, %v1558, 0
        %v1608 = vsel %vm1127, %v1562, 0
        %v1611 = vsel %vm1127, %v1566, 0
        %v1614 = vsel %vm1127, %v1570, 0
        %v1617 = vsel %vm1127, %v1574, 0
        %v1620 = vsel %vm1127, %v1578, 0
        %v1623 = vsel %vm1127, %v1582, 0
        %v1626 = vsel %vm1127, %v1591, 0
        %v1629 = vsel %vm1127, %v1590, 0
        %1631 = vmatprep.subr.bf16.mxu0 0
        %1632 = vmatpush1.bf16.msra.mxu0 0
        %1633 = vmatprep.subr.bf16.mxu0 0
        %1634 = vmatpush1.bf16.msra.mxu0 0
        %1635 = vmatprep.subr.bf16.mxu0 0
        %1636 = vmatpush1.bf16.msra.mxu0 0
        %1637 = vmatprep.subr.bf16.mxu0 0
        %1638 = vmatpush1.bf16.msra.mxu0 0
        %1639 = vmatprep.subr.bf16.mxu0 0
        %1640 = vmatpush1.bf16.msra.mxu0 0
        %1641 = vmatprep.subr.bf16.mxu0 0
        %1642 = vmatpush1.bf16.msra.mxu0 0
        %1643 = vmatprep.subr.bf16.mxu0 0
        %1644 = vmatpush1.bf16.msra.mxu0 0
        %1645 = vmatprep.subr.bf16.mxu0 0
        %1646 = vmatpush1.bf16.msra.mxu0 %v1596
        %1647 = vmatprep.subr.bf16.mxu0 0
        %1648 = vmatpush2.bf16.msra.mxu0 0
        %1649 = vmatprep.subr.bf16.mxu0 0
        %1650 = vmatpush2.bf16.msra.mxu0 0
        %1651 = vmatprep.subr.bf16.mxu0 0
        %1652 = vmatpush2.bf16.msra.mxu0 0
        %1653 = vmatprep.subr.bf16.mxu0 0
        %1654 = vmatpush2.bf16.msra.mxu0 0
        %1655 = vmatprep.subr.bf16.mxu0 0
        %1656 = vmatpush2.bf16.msra.mxu0 0
        %1657 = vmatprep.subr.bf16.mxu0 0
        %1658 = vmatpush2.bf16.msra.mxu0 0
        %1659 = vmatprep.subr.bf16.mxu0 0
        %1660 = vmatpush2.bf16.msra.mxu0 0
        %1661 = vmatprep.subr.bf16.mxu0 0
        %1662 = vmatpush2.bf16.msra.mxu0 0
        %1663 = vmatprep.mubr.bf16.mxu0 0
        %1664 = vmatmul.mubr.bf16.gmra.mxu0 %v1599
        %v1665 = vpop.f32.mrf.mxu0
        %v1666 = vadd.f32 0.0, %v1665
        %v1667 = vpop.f32.mrf.mxu0
        %v1668 = vpop.f32.mrf.mxu0
        %v1669 = vadd.f32 0.0, %v1668
        %v1670 = vpop.f32.mrf.mxu0
        %1671 = vmatprep.mubr.bf16.mxu0 0
        %1672 = vmatmul.mubr.bf16.gmra.mxu0 %v1602
        %v1673 = vpop.f32.mrf.mxu0
        %v1674 = vadd.f32 0.0, %v1673
        %v1675 = vpop.f32.mrf.mxu0
        %v1676 = vpop.f32.mrf.mxu0
        %v1677 = vadd.f32 0.0, %v1676
        %v1678 = vpop.f32.mrf.mxu0
        %1679 = vmatprep.mubr.bf16.mxu0 0
        %1680 = vmatmul.mubr.bf16.gmra.mxu0 %v1605
        %v1681 = vpop.f32.mrf.mxu0
        %v1682 = vadd.f32 0.0, %v1681
        %v1683 = vpop.f32.mrf.mxu0
        %v1684 = vpop.f32.mrf.mxu0
        %v1685 = vadd.f32 0.0, %v1684
        %v1686 = vpop.f32.mrf.mxu0
        %1687 = vmatprep.mubr.bf16.mxu0 0
        %1688 = vmatmul.mubr.bf16.gmra.mxu0 %v1608
        %v1689 = vpop.f32.mrf.mxu0
        %v1690 = vadd.f32 0.0, %v1689
        %v1691 = vpop.f32.mrf.mxu0
        %v1692 = vpop.f32.mrf.mxu0
        %v1693 = vadd.f32 0.0, %v1692
        %v1694 = vpop.f32.mrf.mxu0
        %1695 = vmatprep.mubr.bf16.mxu0 0
        %1696 = vmatmul.mubr.bf16.gmra.mxu0 %v1611
        %v1697 = vpop.f32.mrf.mxu0
        %v1698 = vadd.f32 0.0, %v1697
        %v1699 = vpop.f32.mrf.mxu0
        %v1700 = vpop.f32.mrf.mxu0
        %v1701 = vadd.f32 0.0, %v1700
        %v1702 = vpop.f32.mrf.mxu0
        %1703 = vmatprep.mubr.bf16.mxu0 0
        %1704 = vmatmul.mubr.bf16.gmra.mxu0 %v1614
        %v1705 = vpop.f32.mrf.mxu0
        %v1706 = vadd.f32 0.0, %v1705
        %v1707 = vpop.f32.mrf.mxu0
        %v1708 = vpop.f32.mrf.mxu0
        %v1709 = vadd.f32 0.0, %v1708
        %v1710 = vpop.f32.mrf.mxu0
        %1711 = vmatprep.mubr.bf16.mxu0 0
        %1712 = vmatmul.mubr.bf16.gmra.mxu0 %v1617
        %v1713 = vpop.f32.mrf.mxu0
        %v1714 = vadd.f32 0.0, %v1713
        %v1715 = vpop.f32.mrf.mxu0
        %v1716 = vpop.f32.mrf.mxu0
        %v1717 = vadd.f32 0.0, %v1716
        %v1718 = vpop.f32.mrf.mxu0
        %1719 = vmatprep.mubr.bf16.mxu0 0
        %1720 = vmatmul.mubr.bf16.gmra.mxu0 %v1620
        %v1721 = vpop.f32.mrf.mxu0
        %v1722 = vadd.f32 0.0, %v1721
        %v1723 = vpop.f32.mrf.mxu0
        %v1724 = vpop.f32.mrf.mxu0
        %v1725 = vadd.f32 0.0, %v1724
        %v1726 = vpop.f32.mrf.mxu0
        %1727 = vmatprep.mubr.bf16.mxu0 0
        %1728 = vmatmul.mubr.bf16.gmra.mxu0 %v1623
        %v1729 = vpop.f32.mrf.mxu0
        %v1730 = vadd.f32 0.0, %v1729
        %v1731 = vpop.f32.mrf.mxu0
        %v1732 = vpop.f32.mrf.mxu0
        %v1733 = vadd.f32 0.0, %v1732
        %v1734 = vpop.f32.mrf.mxu0
        %1735 = vmatprep.mubr.bf16.mxu0 0
        %1736 = vmatmul.mubr.bf16.gmra.mxu0 %v1626
        %v1737 = vpop.f32.mrf.mxu0
        %v1738 = vadd.f32 0.0, %v1737
        %v1739 = vpop.f32.mrf.mxu0
        %v1740 = vpop.f32.mrf.mxu0
        %v1741 = vadd.f32 0.0, %v1740
        %v1742 = vpop.f32.mrf.mxu0
        %1743 = vmatprep.mubr.bf16.mxu0 0
        %1744 = vmatmul.mubr.bf16.gmra.mxu0 %v1629
        %v1745 = vpop.f32.mrf.mxu0
        %v1746 = vadd.f32 0.0, %v1745
        %v1747 = vpop.f32.mrf.mxu0
        %v1748 = vpop.f32.mrf.mxu0
        %v1749 = vpop.f32.mrf.mxu0
        %1750 = vdwg.mxu0
        %v1751 = vadd.f32 %v1446, %v1666
        %v1752 = vadd.f32 %v1449, %v1669
        %v1753 = vadd.f32 %v1454, %v1674
        %v1754 = vadd.f32 %v1457, %v1677
        %v1755 = vadd.f32 %v1462, %v1682
        %v1756 = vadd.f32 %v1465, %v1685
        %v1757 = vadd.f32 %v1470, %v1690
        %v1758 = vadd.f32 %v1473, %v1693
        %v1759 = vadd.f32 %v1478, %v1698
        %v1760 = vadd.f32 %v1481, %v1701
        %v1761 = vadd.f32 %v1486, %v1706
        %v1762 = vadd.f32 %v1489, %v1709
        %v1763 = vadd.f32 %v1494, %v1714
        %v1764 = vadd.f32 %v1497, %v1717
        %v1765 = vadd.f32 %v1502, %v1722
        %v1766 = vadd.f32 %v1505, %v1725
        %v1767 = vadd.f32 %v1510, %v1730
        %v1768 = vadd.f32 %v1513, %v1733
        %v1769 = vadd.f32 %v1518, %v1738
        %v1770 = vadd.f32 %v1521, %v1741
        %v1771 = vadd.f32 %v1526, %v1746
        %v1772 = vld [vmem:[#allocation2 + $0x4] sm:$0x8]
        %v1773 = vld [vmem:[#allocation2 + $0x8] sm:$0xf]
        %v1774 = vld [vmem:[#allocation2 + $0xc] sm:$0xf]
        %v1775 = vld [vmem:[#allocation2 + $0x10] sm:$0xf]
        %v1776 = vld [vmem:[#allocation2 + $0x14] sm:$0xf]
        %v1777 = vld [vmem:[#allocation2 + $0x18] sm:$0xf]
        %v1778 = vld [vmem:[#allocation2 + $0x1c] sm:$0xf]
        %v1779 = vld [vmem:[#allocation2 + $0x20] sm:$0xf]
        %v1780 = vld [vmem:[#allocation2 + $0x24] sm:$0xf]
        %v1781 = vld [vmem:[#allocation2 + $0x28] sm:$0xf]
        %v1782 = vld [vmem:[#allocation2 + $0x2c] sm:$0xf]
        %v1783 = vld [vmem:[#allocation2 + $0x30] sm:$0xf]
        %v1784 = vld [vmem:[#allocation2 + $0x34] sm:$0xf]
        %v1785 = vld [vmem:[#allocation2 + $0x38] sm:$0xf]
        %v1786 = vld [vmem:[#allocation2 + $0x3c] sm:$0xf]
        %v1787 = vld [vmem:[#allocation2 + $0x40] sm:$0xf]
        %v1788 = vld [vmem:[#allocation2 + $0x44] sm:$0xf]
        %v1789 = vld [vmem:[#allocation2 + $0x48] sm:$0xf]
        %v1790 = vld [vmem:[#allocation2 + $0x4c] sm:$0xf]
        %v1791 = vld [vmem:[#allocation2 + $0x50] sm:$0xf]
        %v1792 = vld [vmem:[#allocation2 + $0x54] sm:$0xf]
        %v1793 = vld [vmem:[#allocation2 + $0x58] sm:$0xf]
        %s1794 = scalar_lea.vmem %s3, 24
        %v1795 = vld [vmem:[%s1794] sm:$0xf]
        %v1796 = vld [vmem:[%s1794 + $0x4] sm:$0xf]
        %v1819 = vunpack.c.l.b16 %v1772
        %v1820 = vunpack.c.l.b16 %v1773
        %v1821 = vunpack.c.l.b16 %v1774
        %v1822 = vunpack.c.l.b16 %v1775
        %v1823 = vunpack.c.l.b16 %v1776
        %v1824 = vunpack.c.l.b16 %v1777
        %v1825 = vunpack.c.l.b16 %v1778
        %v1826 = vunpack.c.l.b16 %v1779
        %v1827 = vunpack.c.l.b16 %v1780
        %v1828 = vunpack.c.l.b16 %v1781
        %v1829 = vunpack.c.l.b16 %v1782
        %v1830 = vunpack.c.l.b16 %v1783
        %v1831 = vunpack.c.l.b16 %v1784
        %v1832 = vunpack.c.l.b16 %v1785
        %v1833 = vunpack.c.l.b16 %v1786
        %v1834 = vunpack.c.l.b16 %v1787
        %v1835 = vunpack.c.l.b16 %v1788
        %v1836 = vunpack.c.l.b16 %v1789
        %v1837 = vunpack.c.l.b16 %v1790
        %v1838 = vunpack.c.l.b16 %v1791
        %v1839 = vunpack.c.l.b16 %v1792
        %v1840 = vunpack.c.l.b16 %v1793
        %v1841 = vpack.c.b16 %v1820, %v1819
        %v1842 = vpack.c.b16 %v1822, %v1821
        %v1843 = vpack.c.b16 %v1824, %v1823
        %v1844 = vpack.c.b16 %v1826, %v1825
        %v1845 = vpack.c.b16 %v1828, %v1827
        %v1846 = vpack.c.b16 %v1830, %v1829
        %v1847 = vpack.c.b16 %v1832, %v1831
        %v1848 = vpack.c.b16 %v1834, %v1833
        %v1849 = vpack.c.b16 %v1836, %v1835
        %v1850 = vpack.c.b16 %v1838, %v1837
        %v1851 = vpack.c.b16 %v1840, %v1839
        %vm1852 = vsmask.f32 4352
        %v1854 = vshrl.u32 %v1841, 16
        %v1856 = vrot.slane %v1854, 3
        %v1857 = vshll.u32 %v1841, 16
        %v1859 = vrot.slane %v1857, 4
        %v1860 = vor.u32 %v1856, %v1859
        %v1862 = vshrl.u32 %v1842, 16
        %v1864 = vrot.slane %v1862, 3
        %v1865 = vshll.u32 %v1842, 16
        %v1867 = vrot.slane %v1865, 4
        %v1868 = vor.u32 %v1864, %v1867
        %v1869 = vsel %vm1852, %v1860, %v1868
        %v1871 = vshrl.u32 %v1843, 16
        %v1873 = vrot.slane %v1871, 3
        %v1874 = vshll.u32 %v1843, 16
        %v1876 = vrot.slane %v1874, 4
        %v1877 = vor.u32 %v1873, %v1876
        %v1878 = vsel %vm1852, %v1868, %v1877
        %v1880 = vshrl.u32 %v1844, 16
        %v1882 = vrot.slane %v1880, 3
        %v1883 = vshll.u32 %v1844, 16
        %v1885 = vrot.slane %v1883, 4
        %v1886 = vor.u32 %v1882, %v1885
        %v1887 = vsel %vm1852, %v1877, %v1886
        %v1889 = vshrl.u32 %v1845, 16
        %v1891 = vrot.slane %v1889, 3
        %v1892 = vshll.u32 %v1845, 16
        %v1894 = vrot.slane %v1892, 4
        %v1895 = vor.u32 %v1891, %v1894
        %v1896 = vsel %vm1852, %v1886, %v1895
        %v1898 = vshrl.u32 %v1846, 16
        %v1900 = vrot.slane %v1898, 3
        %v1901 = vshll.u32 %v1846, 16
        %v1903 = vrot.slane %v1901, 4
        %v1904 = vor.u32 %v1900, %v1903
        %v1905 = vsel %vm1852, %v1895, %v1904
        %v1907 = vshrl.u32 %v1847, 16
        %v1909 = vrot.slane %v1907, 3
        %v1910 = vshll.u32 %v1847, 16
        %v1912 = vrot.slane %v1910, 4
        %v1913 = vor.u32 %v1909, %v1912
        %v1914 = vsel %vm1852, %v1904, %v1913
        %v1916 = vshrl.u32 %v1848, 16
        %v1918 = vrot.slane %v1916, 3
        %v1919 = vshll.u32 %v1848, 16
        %v1921 = vrot.slane %v1919, 4
        %v1922 = vor.u32 %v1918, %v1921
        %v1923 = vsel %vm1852, %v1913, %v1922
        %v1925 = vshrl.u32 %v1849, 16
        %v1927 = vrot.slane %v1925, 3
        %v1928 = vshll.u32 %v1849, 16
        %v1930 = vrot.slane %v1928, 4
        %v1931 = vor.u32 %v1927, %v1930
        %v1932 = vsel %vm1852, %v1922, %v1931
        %v1934 = vshrl.u32 %v1850, 16
        %v1936 = vrot.slane %v1934, 3
        %v1937 = vshll.u32 %v1850, 16
        %v1939 = vrot.slane %v1937, 4
        %v1940 = vor.u32 %v1936, %v1939
        %v1941 = vsel %vm1852, %v1931, %v1940
        %v1943 = vshrl.u32 %v1851, 16
        %v1945 = vrot.slane %v1943, 3
        %v1946 = vshll.u32 %v1851, 16
        %v1948 = vrot.slane %v1946, 4
        %v1949 = vor.u32 %v1945, %v1948
        %v1950 = vsel %vm1852, %v1940, %v1949
        %v1953 = vunpack.c.l.b16 %v1795
        %v1954 = vunpack.c.l.b16 %v1796
        %v1955 = vpack.c.b16 %v1954, %v1953
        %v1958 = vsel %vm1127, %v1869, 0
        %v1961 = vsel %vm1127, %v1878, 0
        %v1964 = vsel %vm1127, %v1887, 0
        %v1967 = vsel %vm1127, %v1896, 0
        %v1970 = vsel %vm1127, %v1905, 0
        %v1973 = vsel %vm1127, %v1914, 0
        %v1976 = vsel %vm1127, %v1923, 0
        %v1979 = vsel %vm1127, %v1932, 0
        %v1982 = vsel %vm1127, %v1941, 0
        %v1985 = vsel %vm1127, %v1950, 0
        %v1988 = vsel %vm1127, %v1949, 0
        %1990 = vmatprep.subr.bf16.mxu0 0
        %1991 = vmatpush1.bf16.msra.mxu0 0
        %1992 = vmatprep.subr.bf16.mxu0 0
        %1993 = vmatpush1.bf16.msra.mxu0 0
        %1994 = vmatprep.subr.bf16.mxu0 0
        %1995 = vmatpush1.bf16.msra.mxu0 0
        %1996 = vmatprep.subr.bf16.mxu0 0
        %1997 = vmatpush1.bf16.msra.mxu0 0
        %1998 = vmatprep.subr.bf16.mxu0 0
        %1999 = vmatpush1.bf16.msra.mxu0 0
        %2000 = vmatprep.subr.bf16.mxu0 0
        %2001 = vmatpush1.bf16.msra.mxu0 0
        %2002 = vmatprep.subr.bf16.mxu0 0
        %2003 = vmatpush1.bf16.msra.mxu0 0
        %2004 = vmatprep.subr.bf16.mxu0 0
        %2005 = vmatpush1.bf16.msra.mxu0 %v1955
        %2006 = vmatprep.subr.bf16.mxu0 0
        %2007 = vmatpush2.bf16.msra.mxu0 0
        %2008 = vmatprep.subr.bf16.mxu0 0
        %2009 = vmatpush2.bf16.msra.mxu0 0
        %2010 = vmatprep.subr.bf16.mxu0 0
        %2011 = vmatpush2.bf16.msra.mxu0 0
        %2012 = vmatprep.subr.bf16.mxu0 0
        %2013 = vmatpush2.bf16.msra.mxu0 0
        %2014 = vmatprep.subr.bf16.mxu0 0
        %2015 = vmatpush2.bf16.msra.mxu0 0
        %2016 = vmatprep.subr.bf16.mxu0 0
        %2017 = vmatpush2.bf16.msra.mxu0 0
        %2018 = vmatprep.subr.bf16.mxu0 0
        %2019 = vmatpush2.bf16.msra.mxu0 0
        %2020 = vmatprep.subr.bf16.mxu0 0
        %2021 = vmatpush2.bf16.msra.mxu0 0
        %2022 = vmatprep.mubr.bf16.mxu0 0
        %2023 = vmatmul.mubr.bf16.gmra.mxu0 %v1958
        %v2024 = vpop.f32.mrf.mxu0
        %v2025 = vadd.f32 0.0, %v2024
        %v2026 = vpop.f32.mrf.mxu0
        %v2027 = vpop.f32.mrf.mxu0
        %v2028 = vadd.f32 0.0, %v2027
        %v2029 = vpop.f32.mrf.mxu0
        %2030 = vmatprep.mubr.bf16.mxu0 0
        %2031 = vmatmul.mubr.bf16.gmra.mxu0 %v1961
        %v2032 = vpop.f32.mrf.mxu0
        %v2033 = vadd.f32 0.0, %v2032
        %v2034 = vpop.f32.mrf.mxu0
        %v2035 = vpop.f32.mrf.mxu0
        %v2036 = vadd.f32 0.0, %v2035
        %v2037 = vpop.f32.mrf.mxu0
        %2038 = vmatprep.mubr.bf16.mxu0 0
        %2039 = vmatmul.mubr.bf16.gmra.mxu0 %v1964
        %v2040 = vpop.f32.mrf.mxu0
        %v2041 = vadd.f32 0.0, %v2040
        %v2042 = vpop.f32.mrf.mxu0
        %v2043 = vpop.f32.mrf.mxu0
        %v2044 = vadd.f32 0.0, %v2043
        %v2045 = vpop.f32.mrf.mxu0
        %2046 = vmatprep.mubr.bf16.mxu0 0
        %2047 = vmatmul.mubr.bf16.gmra.mxu0 %v1967
        %v2048 = vpop.f32.mrf.mxu0
        %v2049 = vadd.f32 0.0, %v2048
        %v2050 = vpop.f32.mrf.mxu0
        %v2051 = vpop.f32.mrf.mxu0
        %v2052 = vadd.f32 0.0, %v2051
        %v2053 = vpop.f32.mrf.mxu0
        %2054 = vmatprep.mubr.bf16.mxu0 0
        %2055 = vmatmul.mubr.bf16.gmra.mxu0 %v1970
        %v2056 = vpop.f32.mrf.mxu0
        %v2057 = vadd.f32 0.0, %v2056
        %v2058 = vpop.f32.mrf.mxu0
        %v2059 = vpop.f32.mrf.mxu0
        %v2060 = vadd.f32 0.0, %v2059
        %v2061 = vpop.f32.mrf.mxu0
        %2062 = vmatprep.mubr.bf16.mxu0 0
        %2063 = vmatmul.mubr.bf16.gmra.mxu0 %v1973
        %v2064 = vpop.f32.mrf.mxu0
        %v2065 = vadd.f32 0.0, %v2064
        %v2066 = vpop.f32.mrf.mxu0
        %v2067 = vpop.f32.mrf.mxu0
        %v2068 = vadd.f32 0.0, %v2067
        %v2069 = vpop.f32.mrf.mxu0
        %2070 = vmatprep.mubr.bf16.mxu0 0
        %2071 = vmatmul.mubr.bf16.gmra.mxu0 %v1976
        %v2072 = vpop.f32.mrf.mxu0
        %v2073 = vadd.f32 0.0, %v2072
        %v2074 = vpop.f32.mrf.mxu0
        %v2075 = vpop.f32.mrf.mxu0
        %v2076 = vadd.f32 0.0, %v2075
        %v2077 = vpop.f32.mrf.mxu0
        %2078 = vmatprep.mubr.bf16.mxu0 0
        %2079 = vmatmul.mubr.bf16.gmra.mxu0 %v1979
        %v2080 = vpop.f32.mrf.mxu0
        %v2081 = vadd.f32 0.0, %v2080
        %v2082 = vpop.f32.mrf.mxu0
        %v2083 = vpop.f32.mrf.mxu0
        %v2084 = vadd.f32 0.0, %v2083
        %v2085 = vpop.f32.mrf.mxu0
        %2086 = vmatprep.mubr.bf16.mxu0 0
        %2087 = vmatmul.mubr.bf16.gmra.mxu0 %v1982
        %v2088 = vpop.f32.mrf.mxu0
        %v2089 = vadd.f32 0.0, %v2088
        %v2090 = vpop.f32.mrf.mxu0
        %v2091 = vpop.f32.mrf.mxu0
        %v2092 = vadd.f32 0.0, %v2091
        %v2093 = vpop.f32.mrf.mxu0
        %2094 = vmatprep.mubr.bf16.mxu0 0
        %2095 = vmatmul.mubr.bf16.gmra.mxu0 %v1985
        %v2096 = vpop.f32.mrf.mxu0
        %v2097 = vadd.f32 0.0, %v2096
        %v2098 = vpop.f32.mrf.mxu0
        %v2099 = vpop.f32.mrf.mxu0
        %v2100 = vadd.f32 0.0, %v2099
        %v2101 = vpop.f32.mrf.mxu0
        %2102 = vmatprep.mubr.bf16.mxu0 0
        %2103 = vmatmul.mubr.bf16.gmra.mxu0 %v1988
        %v2104 = vpop.f32.mrf.mxu0
        %v2105 = vadd.f32 0.0, %v2104
        %v2106 = vpop.f32.mrf.mxu0
        %v2107 = vpop.f32.mrf.mxu0
        %v2108 = vpop.f32.mrf.mxu0
        %2109 = vdwg.mxu0
        %v2110 = vadd.f32 %v1751, %v2025
        %v2111 = vadd.f32 %v1752, %v2028
        %v2112 = vadd.f32 %v1753, %v2033
        %v2113 = vadd.f32 %v1754, %v2036
        %v2114 = vadd.f32 %v1755, %v2041
        %v2115 = vadd.f32 %v1756, %v2044
        %v2116 = vadd.f32 %v1757, %v2049
        %v2117 = vadd.f32 %v1758, %v2052
        %v2118 = vadd.f32 %v1759, %v2057
        %v2119 = vadd.f32 %v1760, %v2060
        %v2120 = vadd.f32 %v1761, %v2065
        %v2121 = vadd.f32 %v1762, %v2068
        %v2122 = vadd.f32 %v1763, %v2073
        %v2123 = vadd.f32 %v1764, %v2076
        %v2124 = vadd.f32 %v1765, %v2081
        %v2125 = vadd.f32 %v1766, %v2084
        %v2126 = vadd.f32 %v1767, %v2089
        %v2127 = vadd.f32 %v1768, %v2092
        %v2128 = vadd.f32 %v1769, %v2097
        %v2129 = vadd.f32 %v1770, %v2100
        %v2130 = vadd.f32 %v1771, %v2105
        %s2131 = scalar_lea.vmem %s3, 32
        %v2132 = vld [vmem:[%s2131] sm:$0xf]
        %v2133 = vld [vmem:[%s2131 + $0x4] sm:$0xf]
        %v2134 = vpack.c.b16 %v1821, %v1820
        %v2135 = vpack.c.b16 %v1823, %v1822
        %v2136 = vpack.c.b16 %v1825, %v1824
        %v2137 = vpack.c.b16 %v1827, %v1826
        %v2138 = vpack.c.b16 %v1829, %v1828
        %v2139 = vpack.c.b16 %v1831, %v1830
        %v2140 = vpack.c.b16 %v1833, %v1832
        %v2141 = vpack.c.b16 %v1835, %v1834
        %v2142 = vpack.c.b16 %v1837, %v1836
        %v2143 = vpack.c.b16 %v1839, %v1838
        %v2144 = vpack.c.b16 %v1840, %v1840
        %v2147 = vunpack.c.l.b16 %v2132
        %v2148 = vunpack.c.l.b16 %v2133
        %v2149 = vpack.c.b16 %v2148, %v2147
        %v2152 = vsel %vm1127, %v2134, 0
        %v2155 = vsel %vm1127, %v2135, 0
        %v2158 = vsel %vm1127, %v2136, 0
        %v2161 = vsel %vm1127, %v2137, 0
        %v2164 = vsel %vm1127, %v2138, 0
        %v2167 = vsel %vm1127, %v2139, 0
        %v2170 = vsel %vm1127, %v2140, 0
        %v2173 = vsel %vm1127, %v2141, 0
        %v2176 = vsel %vm1127, %v2142, 0
        %v2179 = vsel %vm1127, %v2143, 0
        %v2182 = vsel %vm1127, %v2144, 0
        %2184 = vmatprep.subr.bf16.mxu0 0
        %2185 = vmatpush1.bf16.msra.mxu0 0
        %2186 = vmatprep.subr.bf16.mxu0 0
        %2187 = vmatpush1.bf16.msra.mxu0 0
        %2188 = vmatprep.subr.bf16.mxu0 0
        %2189 = vmatpush1.bf16.msra.mxu0 0
        %2190 = vmatprep.subr.bf16.mxu0 0
        %2191 = vmatpush1.bf16.msra.mxu0 0
        %2192 = vmatprep.subr.bf16.mxu0 0
        %2193 = vmatpush1.bf16.msra.mxu0 0
        %2194 = vmatprep.subr.bf16.mxu0 0
        %2195 = vmatpush1.bf16.msra.mxu0 0
        %2196 = vmatprep.subr.bf16.mxu0 0
        %2197 = vmatpush1.bf16.msra.mxu0 0
        %2198 = vmatprep.subr.bf16.mxu0 0
        %2199 = vmatpush1.bf16.msra.mxu0 %v2149
        %2200 = vmatprep.subr.bf16.mxu0 0
        %2201 = vmatpush2.bf16.msra.mxu0 0
        %2202 = vmatprep.subr.bf16.mxu0 0
        %2203 = vmatpush2.bf16.msra.mxu0 0
        %2204 = vmatprep.subr.bf16.mxu0 0
        %2205 = vmatpush2.bf16.msra.mxu0 0
        %2206 = vmatprep.subr.bf16.mxu0 0
        %2207 = vmatpush2.bf16.msra.mxu0 0
        %2208 = vmatprep.subr.bf16.mxu0 0
        %2209 = vmatpush2.bf16.msra.mxu0 0
        %2210 = vmatprep.subr.bf16.mxu0 0
        %2211 = vmatpush2.bf16.msra.mxu0 0
        %2212 = vmatprep.subr.bf16.mxu0 0
        %2213 = vmatpush2.bf16.msra.mxu0 0
        %2214 = vmatprep.subr.bf16.mxu0 0
        %2215 = vmatpush2.bf16.msra.mxu0 0
        %2216 = vmatprep.mubr.bf16.mxu0 0
        %2217 = vmatmul.mubr.bf16.gmra.mxu0 %v2152
        %v2218 = vpop.f32.mrf.mxu0
        %v2219 = vadd.f32 0.0, %v2218
        %v2220 = vpop.f32.mrf.mxu0
        %v2221 = vpop.f32.mrf.mxu0
        %v2222 = vadd.f32 0.0, %v2221
        %v2223 = vpop.f32.mrf.mxu0
        %2224 = vmatprep.mubr.bf16.mxu0 0
        %2225 = vmatmul.mubr.bf16.gmra.mxu0 %v2155
        %v2226 = vpop.f32.mrf.mxu0
        %v2227 = vadd.f32 0.0, %v2226
        %v2228 = vpop.f32.mrf.mxu0
        %v2229 = vpop.f32.mrf.mxu0
        %v2230 = vadd.f32 0.0, %v2229
        %v2231 = vpop.f32.mrf.mxu0
        %2232 = vmatprep.mubr.bf16.mxu0 0
        %2233 = vmatmul.mubr.bf16.gmra.mxu0 %v2158
        %v2234 = vpop.f32.mrf.mxu0
        %v2235 = vadd.f32 0.0, %v2234
        %v2236 = vpop.f32.mrf.mxu0
        %v2237 = vpop.f32.mrf.mxu0
        %v2238 = vadd.f32 0.0, %v2237
        %v2239 = vpop.f32.mrf.mxu0
        %2240 = vmatprep.mubr.bf16.mxu0 0
        %2241 = vmatmul.mubr.bf16.gmra.mxu0 %v2161
        %v2242 = vpop.f32.mrf.mxu0
        %v2243 = vadd.f32 0.0, %v2242
        %v2244 = vpop.f32.mrf.mxu0
        %v2245 = vpop.f32.mrf.mxu0
        %v2246 = vadd.f32 0.0, %v2245
        %v2247 = vpop.f32.mrf.mxu0
        %2248 = vmatprep.mubr.bf16.mxu0 0
        %2249 = vmatmul.mubr.bf16.gmra.mxu0 %v2164
        %v2250 = vpop.f32.mrf.mxu0
        %v2251 = vadd.f32 0.0, %v2250
        %v2252 = vpop.f32.mrf.mxu0
        %v2253 = vpop.f32.mrf.mxu0
        %v2254 = vadd.f32 0.0, %v2253
        %v2255 = vpop.f32.mrf.mxu0
        %2256 = vmatprep.mubr.bf16.mxu0 0
        %2257 = vmatmul.mubr.bf16.gmra.mxu0 %v2167
        %v2258 = vpop.f32.mrf.mxu0
        %v2259 = vadd.f32 0.0, %v2258
        %v2260 = vpop.f32.mrf.mxu0
        %v2261 = vpop.f32.mrf.mxu0
        %v2262 = vadd.f32 0.0, %v2261
        %v2263 = vpop.f32.mrf.mxu0
        %2264 = vmatprep.mubr.bf16.mxu0 0
        %2265 = vmatmul.mubr.bf16.gmra.mxu0 %v2170
        %v2266 = vpop.f32.mrf.mxu0
        %v2267 = vadd.f32 0.0, %v2266
        %v2268 = vpop.f32.mrf.mxu0
        %v2269 = vpop.f32.mrf.mxu0
        %v2270 = vadd.f32 0.0, %v2269
        %v2271 = vpop.f32.mrf.mxu0
        %2272 = vmatprep.mubr.bf16.mxu0 0
        %2273 = vmatmul.mubr.bf16.gmra.mxu0 %v2173
        %v2274 = vpop.f32.mrf.mxu0
        %v2275 = vadd.f32 0.0, %v2274
        %v2276 = vpop.f32.mrf.mxu0
        %v2277 = vpop.f32.mrf.mxu0
        %v2278 = vadd.f32 0.0, %v2277
        %v2279 = vpop.f32.mrf.mxu0
        %2280 = vmatprep.mubr.bf16.mxu0 0
        %2281 = vmatmul.mubr.bf16.gmra.mxu0 %v2176
        %v2282 = vpop.f32.mrf.mxu0
        %v2283 = vadd.f32 0.0, %v2282
        %v2284 = vpop.f32.mrf.mxu0
        %v2285 = vpop.f32.mrf.mxu0
        %v2286 = vadd.f32 0.0, %v2285
        %v2287 = vpop.f32.mrf.mxu0
        %2288 = vmatprep.mubr.bf16.mxu0 0
        %2289 = vmatmul.mubr.bf16.gmra.mxu0 %v2179
        %v2290 = vpop.f32.mrf.mxu0
        %v2291 = vadd.f32 0.0, %v2290
        %v2292 = vpop.f32.mrf.mxu0
        %v2293 = vpop.f32.mrf.mxu0
        %v2294 = vadd.f32 0.0, %v2293
        %v2295 = vpop.f32.mrf.mxu0
        %2296 = vmatprep.mubr.bf16.mxu0 0
        %2297 = vmatmul.mubr.bf16.gmra.mxu0 %v2182
        %v2298 = vpop.f32.mrf.mxu0
        %v2299 = vadd.f32 0.0, %v2298
        %v2300 = vpop.f32.mrf.mxu0
        %v2301 = vpop.f32.mrf.mxu0
        %v2302 = vpop.f32.mrf.mxu0
        %2303 = vdwg.mxu0
        %v2304 = vadd.f32 %v2110, %v2219
        %v2305 = vadd.f32 %v2111, %v2222
        %v2306 = vadd.f32 %v2112, %v2227
        %v2307 = vadd.f32 %v2113, %v2230
        %v2308 = vadd.f32 %v2114, %v2235
        %v2309 = vadd.f32 %v2115, %v2238
        %v2310 = vadd.f32 %v2116, %v2243
        %v2311 = vadd.f32 %v2117, %v2246
        %v2312 = vadd.f32 %v2118, %v2251
        %v2313 = vadd.f32 %v2119, %v2254
        %v2314 = vadd.f32 %v2120, %v2259
        %v2315 = vadd.f32 %v2121, %v2262
        %v2316 = vadd.f32 %v2122, %v2267
        %v2317 = vadd.f32 %v2123, %v2270
        %v2318 = vadd.f32 %v2124, %v2275
        %v2319 = vadd.f32 %v2125, %v2278
        %v2320 = vadd.f32 %v2126, %v2283
        %v2321 = vadd.f32 %v2127, %v2286
        %v2322 = vadd.f32 %v2128, %v2291
        %v2323 = vadd.f32 %v2129, %v2294
        %v2324 = vadd.f32 %v2130, %v2299
        %v2325 = vld [vmem:[#allocation2 + $0x8] sm:$0xf]
        %v2326 = vld [vmem:[#allocation2 + $0xc] sm:$0xf]
        %v2327 = vld [vmem:[#allocation2 + $0x10] sm:$0xf]
        %v2328 = vld [vmem:[#allocation2 + $0x14] sm:$0xf]
        %v2329 = vld [vmem:[#allocation2 + $0x18] sm:$0xf]
        %v2330 = vld [vmem:[#allocation2 + $0x1c] sm:$0xf]
        %v2331 = vld [vmem:[#allocation2 + $0x20] sm:$0xf]
        %v2332 = vld [vmem:[#allocation2 + $0x24] sm:$0xf]
        %v2333 = vld [vmem:[#allocation2 + $0x28] sm:$0xf]
        %v2334 = vld [vmem:[#allocation2 + $0x2c] sm:$0xf]
        %v2335 = vld [vmem:[#allocation2 + $0x30] sm:$0xf]
        %v2336 = vld [vmem:[#allocation2 + $0x34] sm:$0xf]
        %v2337 = vld [vmem:[#allocation2 + $0x38] sm:$0xf]
        %v2338 = vld [vmem:[#allocation2 + $0x3c] sm:$0xf]
        %v2339 = vld [vmem:[#allocation2 + $0x40] sm:$0xf]
        %v2340 = vld [vmem:[#allocation2 + $0x44] sm:$0xf]
        %v2341 = vld [vmem:[#allocation2 + $0x48] sm:$0xf]
        %v2342 = vld [vmem:[#allocation2 + $0x4c] sm:$0xf]
        %v2343 = vld [vmem:[#allocation2 + $0x50] sm:$0xf]
        %v2344 = vld [vmem:[#allocation2 + $0x54] sm:$0xf]
        %v2345 = vld [vmem:[#allocation2 + $0x58] sm:$0xf]
        %v2346 = vld [vmem:[#allocation2 + $0x5c] sm:$0x1]
        %s2347 = scalar_lea.vmem %s3, 40
        %v2348 = vld [vmem:[%s2347] sm:$0xf]
        %v2349 = vld [vmem:[%s2347 + $0x4] sm:$0xf]
        %v2372 = vunpack.c.l.b16 %v2325
        %v2373 = vunpack.c.l.b16 %v2326
        %v2374 = vunpack.c.l.b16 %v2327
        %v2375 = vunpack.c.l.b16 %v2328
        %v2376 = vunpack.c.l.b16 %v2329
        %v2377 = vunpack.c.l.b16 %v2330
        %v2378 = vunpack.c.l.b16 %v2331
        %v2379 = vunpack.c.l.b16 %v2332
        %v2380 = vunpack.c.l.b16 %v2333
        %v2381 = vunpack.c.l.b16 %v2334
        %v2382 = vunpack.c.l.b16 %v2335
        %v2383 = vunpack.c.l.b16 %v2336
        %v2384 = vunpack.c.l.b16 %v2337
        %v2385 = vunpack.c.l.b16 %v2338
        %v2386 = vunpack.c.l.b16 %v2339
        %v2387 = vunpack.c.l.b16 %v2340
        %v2388 = vunpack.c.l.b16 %v2341
        %v2389 = vunpack.c.l.b16 %v2342
        %v2390 = vunpack.c.l.b16 %v2343
        %v2391 = vunpack.c.l.b16 %v2344
        %v2392 = vunpack.c.l.b16 %v2345
        %v2393 = vunpack.c.l.b16 %v2346
        %v2394 = vpack.c.b16 %v2373, %v2372
        %v2395 = vpack.c.b16 %v2375, %v2374
        %v2396 = vpack.c.b16 %v2377, %v2376
        %v2397 = vpack.c.b16 %v2379, %v2378
        %v2398 = vpack.c.b16 %v2381, %v2380
        %v2399 = vpack.c.b16 %v2383, %v2382
        %v2400 = vpack.c.b16 %v2385, %v2384
        %v2401 = vpack.c.b16 %v2387, %v2386
        %v2402 = vpack.c.b16 %v2389, %v2388
        %v2403 = vpack.c.b16 %v2391, %v2390
        %v2404 = vpack.c.b16 %v2393, %v2392
        %v2406 = vshrl.u32 %v2394, 16
        %v2408 = vshll.u32 %v2394, 16
        %v2410 = vrot.slane %v2408, 1
        %v2411 = vor.u32 %v2406, %v2410
        %v2413 = vshll.u32 %v2395, 16
        %v2415 = vrot.slane %v2413, 1
        %v2416 = vsel %vm1284, %v2411, %v2415
        %v2417 = vshrl.u32 %v2395, 16
        %v2419 = vor.u32 %v2417, %v2415
        %v2421 = vshll.u32 %v2396, 16
        %v2423 = vrot.slane %v2421, 1
        %v2424 = vsel %vm1284, %v2419, %v2423
        %v2425 = vshrl.u32 %v2396, 16
        %v2427 = vor.u32 %v2425, %v2423
        %v2429 = vshll.u32 %v2397, 16
        %v2431 = vrot.slane %v2429, 1
        %v2432 = vsel %vm1284, %v2427, %v2431
        %v2433 = vshrl.u32 %v2397, 16
        %v2435 = vor.u32 %v2433, %v2431
        %v2437 = vshll.u32 %v2398, 16
        %v2439 = vrot.slane %v2437, 1
        %v2440 = vsel %vm1284, %v2435, %v2439
        %v2441 = vshrl.u32 %v2398, 16
        %v2443 = vor.u32 %v2441, %v2439
        %v2445 = vshll.u32 %v2399, 16
        %v2447 = vrot.slane %v2445, 1
        %v2448 = vsel %vm1284, %v2443, %v2447
        %v2449 = vshrl.u32 %v2399, 16
        %v2451 = vor.u32 %v2449, %v2447
        %v2453 = vshll.u32 %v2400, 16
        %v2455 = vrot.slane %v2453, 1
        %v2456 = vsel %vm1284, %v2451, %v2455
        %v2457 = vshrl.u32 %v2400, 16
        %v2459 = vor.u32 %v2457, %v2455
        %v2461 = vshll.u32 %v2401, 16
        %v2463 = vrot.slane %v2461, 1
        %v2464 = vsel %vm1284, %v2459, %v2463
        %v2465 = vshrl.u32 %v2401, 16
        %v2467 = vor.u32 %v2465, %v2463
        %v2469 = vshll.u32 %v2402, 16
        %v2471 = vrot.slane %v2469, 1
        %v2472 = vsel %vm1284, %v2467, %v2471
        %v2473 = vshrl.u32 %v2402, 16
        %v2475 = vor.u32 %v2473, %v2471
        %v2477 = vshll.u32 %v2403, 16
        %v2479 = vrot.slane %v2477, 1
        %v2480 = vsel %vm1284, %v2475, %v2479
        %v2481 = vshrl.u32 %v2403, 16
        %v2483 = vor.u32 %v2481, %v2479
        %v2485 = vshll.u32 %v2404, 16
        %v2487 = vrot.slane %v2485, 1
        %v2488 = vsel %vm1284, %v2483, %v2487
        %v2489 = vshrl.u32 %v2404, 16
        %v2491 = vor.u32 %v2489, %v2487
        %v2494 = vunpack.c.l.b16 %v2348
        %v2495 = vunpack.c.l.b16 %v2349
        %v2496 = vpack.c.b16 %v2495, %v2494
        %v2499 = vsel %vm1127, %v2416, 0
        %v2502 = vsel %vm1127, %v2424, 0
        %v2505 = vsel %vm1127, %v2432, 0
        %v2508 = vsel %vm1127, %v2440, 0
        %v2511 = vsel %vm1127, %v2448, 0
        %v2514 = vsel %vm1127, %v2456, 0
        %v2517 = vsel %vm1127, %v2464, 0
        %v2520 = vsel %vm1127, %v2472, 0
        %v2523 = vsel %vm1127, %v2480, 0
        %v2526 = vsel %vm1127, %v2488, 0
        %v2529 = vsel %vm1127, %v2491, 0
        %2531 = vmatprep.subr.bf16.mxu0 0
        %2532 = vmatpush1.bf16.msra.mxu0 0
        %2533 = vmatprep.subr.bf16.mxu0 0
        %2534 = vmatpush1.bf16.msra.mxu0 0
        %2535 = vmatprep.subr.bf16.mxu0 0
        %2536 = vmatpush1.bf16.msra.mxu0 0
        %2537 = vmatprep.subr.bf16.mxu0 0
        %2538 = vmatpush1.bf16.msra.mxu0 0
        %2539 = vmatprep.subr.bf16.mxu0 0
        %2540 = vmatpush1.bf16.msra.mxu0 0
        %2541 = vmatprep.subr.bf16.mxu0 0
        %2542 = vmatpush1.bf16.msra.mxu0 0
        %2543 = vmatprep.subr.bf16.mxu0 0
        %2544 = vmatpush1.bf16.msra.mxu0 0
        %2545 = vmatprep.subr.bf16.mxu0 0
        %2546 = vmatpush1.bf16.msra.mxu0 %v2496
        %2547 = vmatprep.subr.bf16.mxu0 0
        %2548 = vmatpush2.bf16.msra.mxu0 0
        %2549 = vmatprep.subr.bf16.mxu0 0
        %2550 = vmatpush2.bf16.msra.mxu0 0
        %2551 = vmatprep.subr.bf16.mxu0 0
        %2552 = vmatpush2.bf16.msra.mxu0 0
        %2553 = vmatprep.subr.bf16.mxu0 0
        %2554 = vmatpush2.bf16.msra.mxu0 0
        %2555 = vmatprep.subr.bf16.mxu0 0
        %2556 = vmatpush2.bf16.msra.mxu0 0
        %2557 = vmatprep.subr.bf16.mxu0 0
        %2558 = vmatpush2.bf16.msra.mxu0 0
        %2559 = vmatprep.subr.bf16.mxu0 0
        %2560 = vmatpush2.bf16.msra.mxu0 0
        %2561 = vmatprep.subr.bf16.mxu0 0
        %2562 = vmatpush2.bf16.msra.mxu0 0
        %2563 = vmatprep.mubr.bf16.mxu0 0
        %2564 = vmatmul.mubr.bf16.gmra.mxu0 %v2499
        %v2565 = vpop.f32.mrf.mxu0
        %v2566 = vadd.f32 0.0, %v2565
        %v2567 = vpop.f32.mrf.mxu0
        %v2568 = vpop.f32.mrf.mxu0
        %v2569 = vadd.f32 0.0, %v2568
        %v2570 = vpop.f32.mrf.mxu0
        %2571 = vmatprep.mubr.bf16.mxu0 0
        %2572 = vmatmul.mubr.bf16.gmra.mxu0 %v2502
        %v2573 = vpop.f32.mrf.mxu0
        %v2574 = vadd.f32 0.0, %v2573
        %v2575 = vpop.f32.mrf.mxu0
        %v2576 = vpop.f32.mrf.mxu0
        %v2577 = vadd.f32 0.0, %v2576
        %v2578 = vpop.f32.mrf.mxu0
        %2579 = vmatprep.mubr.bf16.mxu0 0
        %2580 = vmatmul.mubr.bf16.gmra.mxu0 %v2505
        %v2581 = vpop.f32.mrf.mxu0
        %v2582 = vadd.f32 0.0, %v2581
        %v2583 = vpop.f32.mrf.mxu0
        %v2584 = vpop.f32.mrf.mxu0
        %v2585 = vadd.f32 0.0, %v2584
        %v2586 = vpop.f32.mrf.mxu0
        %2587 = vmatprep.mubr.bf16.mxu0 0
        %2588 = vmatmul.mubr.bf16.gmra.mxu0 %v2508
        %v2589 = vpop.f32.mrf.mxu0
        %v2590 = vadd.f32 0.0, %v2589
        %v2591 = vpop.f32.mrf.mxu0
        %v2592 = vpop.f32.mrf.mxu0
        %v2593 = vadd.f32 0.0, %v2592
        %v2594 = vpop.f32.mrf.mxu0
        %2595 = vmatprep.mubr.bf16.mxu0 0
        %2596 = vmatmul.mubr.bf16.gmra.mxu0 %v2511
        %v2597 = vpop.f32.mrf.mxu0
        %v2598 = vadd.f32 0.0, %v2597
        %v2599 = vpop.f32.mrf.mxu0
        %v2600 = vpop.f32.mrf.mxu0
        %v2601 = vadd.f32 0.0, %v2600
        %v2602 = vpop.f32.mrf.mxu0
        %2603 = vmatprep.mubr.bf16.mxu0 0
        %2604 = vmatmul.mubr.bf16.gmra.mxu0 %v2514
        %v2605 = vpop.f32.mrf.mxu0
        %v2606 = vadd.f32 0.0, %v2605
        %v2607 = vpop.f32.mrf.mxu0
        %v2608 = vpop.f32.mrf.mxu0
        %v2609 = vadd.f32 0.0, %v2608
        %v2610 = vpop.f32.mrf.mxu0
        %2611 = vmatprep.mubr.bf16.mxu0 0
        %2612 = vmatmul.mubr.bf16.gmra.mxu0 %v2517
        %v2613 = vpop.f32.mrf.mxu0
        %v2614 = vadd.f32 0.0, %v2613
        %v2615 = vpop.f32.mrf.mxu0
        %v2616 = vpop.f32.mrf.mxu0
        %v2617 = vadd.f32 0.0, %v2616
        %v2618 = vpop.f32.mrf.mxu0
        %2619 = vmatprep.mubr.bf16.mxu0 0
        %2620 = vmatmul.mubr.bf16.gmra.mxu0 %v2520
        %v2621 = vpop.f32.mrf.mxu0
        %v2622 = vadd.f32 0.0, %v2621
        %v2623 = vpop.f32.mrf.mxu0
        %v2624 = vpop.f32.mrf.mxu0
        %v2625 = vadd.f32 0.0, %v2624
        %v2626 = vpop.f32.mrf.mxu0
        %2627 = vmatprep.mubr.bf16.mxu0 0
        %2628 = vmatmul.mubr.bf16.gmra.mxu0 %v2523
        %v2629 = vpop.f32.mrf.mxu0
        %v2630 = vadd.f32 0.0, %v2629
        %v2631 = vpop.f32.mrf.mxu0
        %v2632 = vpop.f32.mrf.mxu0
        %v2633 = vadd.f32 0.0, %v2632
        %v2634 = vpop.f32.mrf.mxu0
        %2635 = vmatprep.mubr.bf16.mxu0 0
        %2636 = vmatmul.mubr.bf16.gmra.mxu0 %v2526
        %v2637 = vpop.f32.mrf.mxu0
        %v2638 = vadd.f32 0.0, %v2637
        %v2639 = vpop.f32.mrf.mxu0
        %v2640 = vpop.f32.mrf.mxu0
        %v2641 = vadd.f32 0.0, %v2640
        %v2642 = vpop.f32.mrf.mxu0
        %2643 = vmatprep.mubr.bf16.mxu0 0
        %2644 = vmatmul.mubr.bf16.gmra.mxu0 %v2529
        %v2645 = vpop.f32.mrf.mxu0
        %v2646 = vadd.f32 0.0, %v2645
        %v2647 = vpop.f32.mrf.mxu0
        %v2648 = vpop.f32.mrf.mxu0
        %v2649 = vpop.f32.mrf.mxu0
        %2650 = vdwg.mxu0
        %v2651 = vadd.f32 %v2304, %v2566
        %v2652 = vadd.f32 %v2305, %v2569
        %v2653 = vadd.f32 %v2306, %v2574
        %v2654 = vadd.f32 %v2307, %v2577
        %v2655 = vadd.f32 %v2308, %v2582
        %v2656 = vadd.f32 %v2309, %v2585
        %v2657 = vadd.f32 %v2310, %v2590
        %v2658 = vadd.f32 %v2311, %v2593
        %v2659 = vadd.f32 %v2312, %v2598
        %v2660 = vadd.f32 %v2313, %v2601
        %v2661 = vadd.f32 %v2314, %v2606
        %v2662 = vadd.f32 %v2315, %v2609
        %v2663 = vadd.f32 %v2316, %v2614
        %v2664 = vadd.f32 %v2317, %v2617
        %v2665 = vadd.f32 %v2318, %v2622
        %v2666 = vadd.f32 %v2319, %v2625
        %v2667 = vadd.f32 %v2320, %v2630
        %v2668 = vadd.f32 %v2321, %v2633
        %v2669 = vadd.f32 %v2322, %v2638
        %v2670 = vadd.f32 %v2323, %v2641
        %v2671 = vadd.f32 %v2324, %v2646
        %v2672 = vld [vmem:[#allocation2 + $0xc] sm:$0xc]
        %v2673 = vld [vmem:[#allocation2 + $0x10] sm:$0xf]
        %v2674 = vld [vmem:[#allocation2 + $0x14] sm:$0xf]
        %v2675 = vld [vmem:[#allocation2 + $0x18] sm:$0xf]
        %v2676 = vld [vmem:[#allocation2 + $0x1c] sm:$0xf]
        %v2677 = vld [vmem:[#allocation2 + $0x20] sm:$0xf]
        %v2678 = vld [vmem:[#allocation2 + $0x24] sm:$0xf]
        %v2679 = vld [vmem:[#allocation2 + $0x28] sm:$0xf]
        %v2680 = vld [vmem:[#allocation2 + $0x2c] sm:$0xf]
        %v2681 = vld [vmem:[#allocation2 + $0x30] sm:$0xf]
        %v2682 = vld [vmem:[#allocation2 + $0x34] sm:$0xf]
        %v2683 = vld [vmem:[#allocation2 + $0x38] sm:$0xf]
        %v2684 = vld [vmem:[#allocation2 + $0x3c] sm:$0xf]
        %v2685 = vld [vmem:[#allocation2 + $0x40] sm:$0xf]
        %v2686 = vld [vmem:[#allocation2 + $0x44] sm:$0xf]
        %v2687 = vld [vmem:[#allocation2 + $0x48] sm:$0xf]
        %v2688 = vld [vmem:[#allocation2 + $0x4c] sm:$0xf]
        %v2689 = vld [vmem:[#allocation2 + $0x50] sm:$0xf]
        %v2690 = vld [vmem:[#allocation2 + $0x54] sm:$0xf]
        %v2691 = vld [vmem:[#allocation2 + $0x58] sm:$0xf]
        %v2692 = vld [vmem:[#allocation2 + $0x5c] sm:$0xf]
        %v2693 = vld [vmem:[#allocation2 + $0x60] sm:$0x7]
        %s2694 = scalar_lea.vmem %s3, 48
        %v2695 = vld [vmem:[%s2694] sm:$0xf]
        %v2696 = vld [vmem:[%s2694 + $0x4] sm:$0xf]
        %v2719 = vunpack.c.l.b16 %v2672
        %v2720 = vunpack.c.l.b16 %v2673
        %v2721 = vunpack.c.l.b16 %v2674
        %v2722 = vunpack.c.l.b16 %v2675
        %v2723 = vunpack.c.l.b16 %v2676
        %v2724 = vunpack.c.l.b16 %v2677
        %v2725 = vunpack.c.l.b16 %v2678
        %v2726 = vunpack.c.l.b16 %v2679
        %v2727 = vunpack.c.l.b16 %v2680
        %v2728 = vunpack.c.l.b16 %v2681
        %v2729 = vunpack.c.l.b16 %v2682
        %v2730 = vunpack.c.l.b16 %v2683
        %v2731 = vunpack.c.l.b16 %v2684
        %v2732 = vunpack.c.l.b16 %v2685
        %v2733 = vunpack.c.l.b16 %v2686
        %v2734 = vunpack.c.l.b16 %v2687
        %v2735 = vunpack.c.l.b16 %v2688
        %v2736 = vunpack.c.l.b16 %v2689
        %v2737 = vunpack.c.l.b16 %v2690
        %v2738 = vunpack.c.l.b16 %v2691
        %v2739 = vunpack.c.l.b16 %v2692
        %v2740 = vunpack.c.l.b16 %v2693
        %v2741 = vpack.c.b16 %v2720, %v2719
        %v2742 = vpack.c.b16 %v2722, %v2721
        %v2743 = vpack.c.b16 %v2724, %v2723
        %v2744 = vpack.c.b16 %v2726, %v2725
        %v2745 = vpack.c.b16 %v2728, %v2727
        %v2746 = vpack.c.b16 %v2730, %v2729
        %v2747 = vpack.c.b16 %v2732, %v2731
        %v2748 = vpack.c.b16 %v2734, %v2733
        %v2749 = vpack.c.b16 %v2736, %v2735
        %v2750 = vpack.c.b16 %v2738, %v2737
        %v2751 = vpack.c.b16 %v2740, %v2739
        %vm2752 = vsmask.f32 5376
        %v2754 = vshrl.u32 %v2741, 16
        %v2756 = vrot.slane %v2754, 2
        %v2757 = vshll.u32 %v2741, 16
        %v2759 = vrot.slane %v2757, 3
        %v2760 = vor.u32 %v2756, %v2759
        %v2762 = vshrl.u32 %v2742, 16
        %v2764 = vrot.slane %v2762, 2
        %v2765 = vshll.u32 %v2742, 16
        %v2767 = vrot.slane %v2765, 3
        %v2768 = vor.u32 %v2764, %v2767
        %v2769 = vsel %vm2752, %v2760, %v2768
        %v2771 = vshrl.u32 %v2743, 16
        %v2773 = vrot.slane %v2771, 2
        %v2774 = vshll.u32 %v2743, 16
        %v2776 = vrot.slane %v2774, 3
        %v2777 = vor.u32 %v2773, %v2776
        %v2778 = vsel %vm2752, %v2768, %v2777
        %v2780 = vshrl.u32 %v2744, 16
        %v2782 = vrot.slane %v2780, 2
        %v2783 = vshll.u32 %v2744, 16
        %v2785 = vrot.slane %v2783, 3
        %v2786 = vor.u32 %v2782, %v2785
        %v2787 = vsel %vm2752, %v2777, %v2786
        %v2789 = vshrl.u32 %v2745, 16
        %v2791 = vrot.slane %v2789, 2
        %v2792 = vshll.u32 %v2745, 16
        %v2794 = vrot.slane %v2792, 3
        %v2795 = vor.u32 %v2791, %v2794
        %v2796 = vsel %vm2752, %v2786, %v2795
        %v2798 = vshrl.u32 %v2746, 16
        %v2800 = vrot.slane %v2798, 2
        %v2801 = vshll.u32 %v2746, 16
        %v2803 = vrot.slane %v2801, 3
        %v2804 = vor.u32 %v2800, %v2803
        %v2805 = vsel %vm2752, %v2795, %v2804
        %v2807 = vshrl.u32 %v2747, 16
        %v2809 = vrot.slane %v2807, 2
        %v2810 = vshll.u32 %v2747, 16
        %v2812 = vrot.slane %v2810, 3
        %v2813 = vor.u32 %v2809, %v2812
        %v2814 = vsel %vm2752, %v2804, %v2813
        %v2816 = vshrl.u32 %v2748, 16
        %v2818 = vrot.slane %v2816, 2
        %v2819 = vshll.u32 %v2748, 16
        %v2821 = vrot.slane %v2819, 3
        %v2822 = vor.u32 %v2818, %v2821
        %v2823 = vsel %vm2752, %v2813, %v2822
        %v2825 = vshrl.u32 %v2749, 16
        %v2827 = vrot.slane %v2825, 2
        %v2828 = vshll.u32 %v2749, 16
        %v2830 = vrot.slane %v2828, 3
        %v2831 = vor.u32 %v2827, %v2830
        %v2832 = vsel %vm2752, %v2822, %v2831
        %v2834 = vshrl.u32 %v2750, 16
        %v2836 = vrot.slane %v2834, 2
        %v2837 = vshll.u32 %v2750, 16
        %v2839 = vrot.slane %v2837, 3
        %v2840 = vor.u32 %v2836, %v2839
        %v2841 = vsel %vm2752, %v2831, %v2840
        %v2843 = vshrl.u32 %v2751, 16
        %v2845 = vrot.slane %v2843, 2
        %v2846 = vshll.u32 %v2751, 16
        %v2848 = vrot.slane %v2846, 3
        %v2849 = vor.u32 %v2845, %v2848
        %v2850 = vsel %vm2752, %v2840, %v2849
        %v2853 = vunpack.c.l.b16 %v2695
        %v2854 = vunpack.c.l.b16 %v2696
        %v2855 = vpack.c.b16 %v2854, %v2853
        %v2858 = vsel %vm1127, %v2769, 0
        %v2861 = vsel %vm1127, %v2778, 0
        %v2864 = vsel %vm1127, %v2787, 0
        %v2867 = vsel %vm1127, %v2796, 0
        %v2870 = vsel %vm1127, %v2805, 0
        %v2873 = vsel %vm1127, %v2814, 0
        %v2876 = vsel %vm1127, %v2823, 0
        %v2879 = vsel %vm1127, %v2832, 0
        %v2882 = vsel %vm1127, %v2841, 0
        %v2885 = vsel %vm1127, %v2850, 0
        %v2888 = vsel %vm1127, %v2849, 0
        %2890 = vmatprep.subr.bf16.mxu0 0
        %2891 = vmatpush1.bf16.msra.mxu0 0
        %2892 = vmatprep.subr.bf16.mxu0 0
        %2893 = vmatpush1.bf16.msra.mxu0 0
        %2894 = vmatprep.subr.bf16.mxu0 0
        %2895 = vmatpush1.bf16.msra.mxu0 0
        %2896 = vmatprep.subr.bf16.mxu0 0
        %2897 = vmatpush1.bf16.msra.mxu0 0
        %2898 = vmatprep.subr.bf16.mxu0 0
        %2899 = vmatpush1.bf16.msra.mxu0 0
        %2900 = vmatprep.subr.bf16.mxu0 0
        %2901 = vmatpush1.bf16.msra.mxu0 0
        %2902 = vmatprep.subr.bf16.mxu0 0
        %2903 = vmatpush1.bf16.msra.mxu0 0
        %2904 = vmatprep.subr.bf16.mxu0 0
        %2905 = vmatpush1.bf16.msra.mxu0 %v2855
        %2906 = vmatprep.subr.bf16.mxu0 0
        %2907 = vmatpush2.bf16.msra.mxu0 0
        %2908 = vmatprep.subr.bf16.mxu0 0
        %2909 = vmatpush2.bf16.msra.mxu0 0
        %2910 = vmatprep.subr.bf16.mxu0 0
        %2911 = vmatpush2.bf16.msra.mxu0 0
        %2912 = vmatprep.subr.bf16.mxu0 0
        %2913 = vmatpush2.bf16.msra.mxu0 0
        %2914 = vmatprep.subr.bf16.mxu0 0
        %2915 = vmatpush2.bf16.msra.mxu0 0
        %2916 = vmatprep.subr.bf16.mxu0 0
        %2917 = vmatpush2.bf16.msra.mxu0 0
        %2918 = vmatprep.subr.bf16.mxu0 0
        %2919 = vmatpush2.bf16.msra.mxu0 0
        %2920 = vmatprep.subr.bf16.mxu0 0
        %2921 = vmatpush2.bf16.msra.mxu0 0
        %2922 = vmatprep.mubr.bf16.mxu0 0
        %2923 = vmatmul.mubr.bf16.gmra.mxu0 %v2858
        %v2924 = vpop.f32.mrf.mxu0
        %v2925 = vadd.f32 0.0, %v2924
        %v2926 = vpop.f32.mrf.mxu0
        %v2927 = vpop.f32.mrf.mxu0
        %v2928 = vadd.f32 0.0, %v2927
        %v2929 = vpop.f32.mrf.mxu0
        %2930 = vmatprep.mubr.bf16.mxu0 0
        %2931 = vmatmul.mubr.bf16.gmra.mxu0 %v2861
        %v2932 = vpop.f32.mrf.mxu0
        %v2933 = vadd.f32 0.0, %v2932
        %v2934 = vpop.f32.mrf.mxu0
        %v2935 = vpop.f32.mrf.mxu0
        %v2936 = vadd.f32 0.0, %v2935
        %v2937 = vpop.f32.mrf.mxu0
        %2938 = vmatprep.mubr.bf16.mxu0 0
        %2939 = vmatmul.mubr.bf16.gmra.mxu0 %v2864
        %v2940 = vpop.f32.mrf.mxu0
        %v2941 = vadd.f32 0.0, %v2940
        %v2942 = vpop.f32.mrf.mxu0
        %v2943 = vpop.f32.mrf.mxu0
        %v2944 = vadd.f32 0.0, %v2943
        %v2945 = vpop.f32.mrf.mxu0
        %2946 = vmatprep.mubr.bf16.mxu0 0
        %2947 = vmatmul.mubr.bf16.gmra.mxu0 %v2867
        %v2948 = vpop.f32.mrf.mxu0
        %v2949 = vadd.f32 0.0, %v2948
        %v2950 = vpop.f32.mrf.mxu0
        %v2951 = vpop.f32.mrf.mxu0
        %v2952 = vadd.f32 0.0, %v2951
        %v2953 = vpop.f32.mrf.mxu0
        %2954 = vmatprep.mubr.bf16.mxu0 0
        %2955 = vmatmul.mubr.bf16.gmra.mxu0 %v2870
        %v2956 = vpop.f32.mrf.mxu0
        %v2957 = vadd.f32 0.0, %v2956
        %v2958 = vpop.f32.mrf.mxu0
        %v2959 = vpop.f32.mrf.mxu0
        %v2960 = vadd.f32 0.0, %v2959
        %v2961 = vpop.f32.mrf.mxu0
        %2962 = vmatprep.mubr.bf16.mxu0 0
        %2963 = vmatmul.mubr.bf16.gmra.mxu0 %v2873
        %v2964 = vpop.f32.mrf.mxu0
        %v2965 = vadd.f32 0.0, %v2964
        %v2966 = vpop.f32.mrf.mxu0
        %v2967 = vpop.f32.mrf.mxu0
        %v2968 = vadd.f32 0.0, %v2967
        %v2969 = vpop.f32.mrf.mxu0
        %2970 = vmatprep.mubr.bf16.mxu0 0
        %2971 = vmatmul.mubr.bf16.gmra.mxu0 %v2876
        %v2972 = vpop.f32.mrf.mxu0
        %v2973 = vadd.f32 0.0, %v2972
        %v2974 = vpop.f32.mrf.mxu0
        %v2975 = vpop.f32.mrf.mxu0
        %v2976 = vadd.f32 0.0, %v2975
        %v2977 = vpop.f32.mrf.mxu0
        %2978 = vmatprep.mubr.bf16.mxu0 0
        %2979 = vmatmul.mubr.bf16.gmra.mxu0 %v2879
        %v2980 = vpop.f32.mrf.mxu0
        %v2981 = vadd.f32 0.0, %v2980
        %v2982 = vpop.f32.mrf.mxu0
        %v2983 = vpop.f32.mrf.mxu0
        %v2984 = vadd.f32 0.0, %v2983
        %v2985 = vpop.f32.mrf.mxu0
        %2986 = vmatprep.mubr.bf16.mxu0 0
        %2987 = vmatmul.mubr.bf16.gmra.mxu0 %v2882
        %v2988 = vpop.f32.mrf.mxu0
        %v2989 = vadd.f32 0.0, %v2988
        %v2990 = vpop.f32.mrf.mxu0
        %v2991 = vpop.f32.mrf.mxu0
        %v2992 = vadd.f32 0.0, %v2991
        %v2993 = vpop.f32.mrf.mxu0
        %2994 = vmatprep.mubr.bf16.mxu0 0
        %2995 = vmatmul.mubr.bf16.gmra.mxu0 %v2885
        %v2996 = vpop.f32.mrf.mxu0
        %v2997 = vadd.f32 0.0, %v2996
        %v2998 = vpop.f32.mrf.mxu0
        %v2999 = vpop.f32.mrf.mxu0
        %v3000 = vadd.f32 0.0, %v2999
        %v3001 = vpop.f32.mrf.mxu0
        %3002 = vmatprep.mubr.bf16.mxu0 0
        %3003 = vmatmul.mubr.bf16.gmra.mxu0 %v2888
        %v3004 = vpop.f32.mrf.mxu0
        %v3005 = vadd.f32 0.0, %v3004
        %v3006 = vpop.f32.mrf.mxu0
        %v3007 = vpop.f32.mrf.mxu0
        %v3008 = vpop.f32.mrf.mxu0
        %3009 = vdwg.mxu0
        %v3010 = vadd.f32 %v2651, %v2925
        %v3011 = vadd.f32 %v2652, %v2928
        %v3012 = vadd.f32 %v2653, %v2933
        %v3013 = vadd.f32 %v2654, %v2936
        %v3014 = vadd.f32 %v2655, %v2941
        %v3015 = vadd.f32 %v2656, %v2944
        %v3016 = vadd.f32 %v2657, %v2949
        %v3017 = vadd.f32 %v2658, %v2952
        %v3018 = vadd.f32 %v2659, %v2957
        %v3019 = vadd.f32 %v2660, %v2960
        %v3020 = vadd.f32 %v2661, %v2965
        %v3021 = vadd.f32 %v2662, %v2968
        %v3022 = vadd.f32 %v2663, %v2973
        %v3023 = vadd.f32 %v2664, %v2976
        %v3024 = vadd.f32 %v2665, %v2981
        %v3025 = vadd.f32 %v2666, %v2984
        %v3026 = vadd.f32 %v2667, %v2989
        %v3027 = vadd.f32 %v2668, %v2992
        %v3028 = vadd.f32 %v2669, %v2997
        %v3029 = vadd.f32 %v2670, %v3000
        %v3030 = vadd.f32 %v2671, %v3005
        %v3031 = vld [vmem:[#allocation2 + $0xc] sm:$0x8]
        %s3032 = scalar_lea.vmem %s3, 56
        %v3033 = vld [vmem:[%s3032] sm:$0xf]
        %v3034 = vld [vmem:[%s3032 + $0x4] sm:$0xf]
        %v3036 = vunpack.c.l.b16 %v3031
        %v3037 = vpack.c.b16 %v2720, %v3036
        %vm3038 = vcmask 1044480
        %v3039 = vrot.slane %v3037, 3
        %v3040 = vrot.slane %v2742, 3
        %v3041 = vsel %vm3038, %v3039, %v3040
        %v3042 = vrot.slane %v2743, 3
        %v3043 = vsel %vm3038, %v3040, %v3042
        %v3044 = vrot.slane %v2744, 3
        %v3045 = vsel %vm3038, %v3042, %v3044
        %v3046 = vrot.slane %v2745, 3
        %v3047 = vsel %vm3038, %v3044, %v3046
        %v3048 = vrot.slane %v2746, 3
        %v3049 = vsel %vm3038, %v3046, %v3048
        %v3050 = vrot.slane %v2747, 3
        %v3051 = vsel %vm3038, %v3048, %v3050
        %v3052 = vrot.slane %v2748, 3
        %v3053 = vsel %vm3038, %v3050, %v3052
        %v3054 = vrot.slane %v2749, 3
        %v3055 = vsel %vm3038, %v3052, %v3054
        %v3056 = vrot.slane %v2750, 3
        %v3057 = vsel %vm3038, %v3054, %v3056
        %v3058 = vrot.slane %v2751, 3
        %v3059 = vsel %vm3038, %v3056, %v3058
        %v3062 = vunpack.c.l.b16 %v3033
        %v3063 = vunpack.c.l.b16 %v3034
        %v3064 = vpack.c.b16 %v3063, %v3062
        %v3067 = vsel %vm1127, %v3041, 0
        %v3070 = vsel %vm1127, %v3043, 0
        %v3073 = vsel %vm1127, %v3045, 0
        %v3076 = vsel %vm1127, %v3047, 0
        %v3079 = vsel %vm1127, %v3049, 0
        %v3082 = vsel %vm1127, %v3051, 0
        %v3085 = vsel %vm1127, %v3053, 0
        %v3088 = vsel %vm1127, %v3055, 0
        %v3091 = vsel %vm1127, %v3057, 0
        %v3094 = vsel %vm1127, %v3059, 0
        %v3097 = vsel %vm1127, %v3058, 0
        %3099 = vmatprep.subr.bf16.mxu0 0
        %3100 = vmatpush1.bf16.msra.mxu0 0
        %3101 = vmatprep.subr.bf16.mxu0 0
        %3102 = vmatpush1.bf16.msra.mxu0 0
        %3103 = vmatprep.subr.bf16.mxu0 0
        %3104 = vmatpush1.bf16.msra.mxu0 0
        %3105 = vmatprep.subr.bf16.mxu0 0
        %3106 = vmatpush1.bf16.msra.mxu0 0
        %3107 = vmatprep.subr.bf16.mxu0 0
        %3108 = vmatpush1.bf16.msra.mxu0 0
        %3109 = vmatprep.subr.bf16.mxu0 0
        %3110 = vmatpush1.bf16.msra.mxu0 0
        %3111 = vmatprep.subr.bf16.mxu0 0
        %3112 = vmatpush1.bf16.msra.mxu0 0
        %3113 = vmatprep.subr.bf16.mxu0 0
        %3114 = vmatpush1.bf16.msra.mxu0 %v3064
        %3115 = vmatprep.subr.bf16.mxu0 0
        %3116 = vmatpush2.bf16.msra.mxu0 0
        %3117 = vmatprep.subr.bf16.mxu0 0
        %3118 = vmatpush2.bf16.msra.mxu0 0
        %3119 = vmatprep.subr.bf16.mxu0 0
        %3120 = vmatpush2.bf16.msra.mxu0 0
        %3121 = vmatprep.subr.bf16.mxu0 0
        %3122 = vmatpush2.bf16.msra.mxu0 0
        %3123 = vmatprep.subr.bf16.mxu0 0
        %3124 = vmatpush2.bf16.msra.mxu0 0
        %3125 = vmatprep.subr.bf16.mxu0 0
        %3126 = vmatpush2.bf16.msra.mxu0 0
        %3127 = vmatprep.subr.bf16.mxu0 0
        %3128 = vmatpush2.bf16.msra.mxu0 0
        %3129 = vmatprep.subr.bf16.mxu0 0
        %3130 = vmatpush2.bf16.msra.mxu0 0
        %3131 = vmatprep.mubr.bf16.mxu0 0
        %3132 = vmatmul.mubr.bf16.gmra.mxu0 %v3067
        %v3133 = vpop.f32.mrf.mxu0
        %v3134 = vadd.f32 0.0, %v3133
        %v3135 = vpop.f32.mrf.mxu0
        %v3136 = vpop.f32.mrf.mxu0
        %v3137 = vadd.f32 0.0, %v3136
        %v3138 = vpop.f32.mrf.mxu0
        %3139 = vmatprep.mubr.bf16.mxu0 0
        %3140 = vmatmul.mubr.bf16.gmra.mxu0 %v3070
        %v3141 = vpop.f32.mrf.mxu0
        %v3142 = vadd.f32 0.0, %v3141
        %v3143 = vpop.f32.mrf.mxu0
        %v3144 = vpop.f32.mrf.mxu0
        %v3145 = vadd.f32 0.0, %v3144
        %v3146 = vpop.f32.mrf.mxu0
        %3147 = vmatprep.mubr.bf16.mxu0 0
        %3148 = vmatmul.mubr.bf16.gmra.mxu0 %v3073
        %v3149 = vpop.f32.mrf.mxu0
        %v3150 = vadd.f32 0.0, %v3149
        %v3151 = vpop.f32.mrf.mxu0
        %v3152 = vpop.f32.mrf.mxu0
        %v3153 = vadd.f32 0.0, %v3152
        %v3154 = vpop.f32.mrf.mxu0
        %3155 = vmatprep.mubr.bf16.mxu0 0
        %3156 = vmatmul.mubr.bf16.gmra.mxu0 %v3076
        %v3157 = vpop.f32.mrf.mxu0
        %v3158 = vadd.f32 0.0, %v3157
        %v3159 = vpop.f32.mrf.mxu0
        %v3160 = vpop.f32.mrf.mxu0
        %v3161 = vadd.f32 0.0, %v3160
        %v3162 = vpop.f32.mrf.mxu0
        %3163 = vmatprep.mubr.bf16.mxu0 0
        %3164 = vmatmul.mubr.bf16.gmra.mxu0 %v3079
        %v3165 = vpop.f32.mrf.mxu0
        %v3166 = vadd.f32 0.0, %v3165
        %v3167 = vpop.f32.mrf.mxu0
        %v3168 = vpop.f32.mrf.mxu0
        %v3169 = vadd.f32 0.0, %v3168
        %v3170 = vpop.f32.mrf.mxu0
        %3171 = vmatprep.mubr.bf16.mxu0 0
        %3172 = vmatmul.mubr.bf16.gmra.mxu0 %v3082
        %v3173 = vpop.f32.mrf.mxu0
        %v3174 = vadd.f32 0.0, %v3173
        %v3175 = vpop.f32.mrf.mxu0
        %v3176 = vpop.f32.mrf.mxu0
        %v3177 = vadd.f32 0.0, %v3176
        %v3178 = vpop.f32.mrf.mxu0
        %3179 = vmatprep.mubr.bf16.mxu0 0
        %3180 = vmatmul.mubr.bf16.gmra.mxu0 %v3085
        %v3181 = vpop.f32.mrf.mxu0
        %v3182 = vadd.f32 0.0, %v3181
        %v3183 = vpop.f32.mrf.mxu0
        %v3184 = vpop.f32.mrf.mxu0
        %v3185 = vadd.f32 0.0, %v3184
        %v3186 = vpop.f32.mrf.mxu0
        %3187 = vmatprep.mubr.bf16.mxu0 0
        %3188 = vmatmul.mubr.bf16.gmra.mxu0 %v3088
        %v3189 = vpop.f32.mrf.mxu0
        %v3190 = vadd.f32 0.0, %v3189
        %v3191 = vpop.f32.mrf.mxu0
        %v3192 = vpop.f32.mrf.mxu0
        %v3193 = vadd.f32 0.0, %v3192
        %v3194 = vpop.f32.mrf.mxu0
        %3195 = vmatprep.mubr.bf16.mxu0 0
        %3196 = vmatmul.mubr.bf16.gmra.mxu0 %v3091
        %v3197 = vpop.f32.mrf.mxu0
        %v3198 = vadd.f32 0.0, %v3197
        %v3199 = vpop.f32.mrf.mxu0
        %v3200 = vpop.f32.mrf.mxu0
        %v3201 = vadd.f32 0.0, %v3200
        %v3202 = vpop.f32.mrf.mxu0
        %3203 = vmatprep.mubr.bf16.mxu0 0
        %3204 = vmatmul.mubr.bf16.gmra.mxu0 %v3094
        %v3205 = vpop.f32.mrf.mxu0
        %v3206 = vadd.f32 0.0, %v3205
        %v3207 = vpop.f32.mrf.mxu0
        %v3208 = vpop.f32.mrf.mxu0
        %v3209 = vadd.f32 0.0, %v3208
        %v3210 = vpop.f32.mrf.mxu0
        %3211 = vmatprep.mubr.bf16.mxu0 0
        %3212 = vmatmul.mubr.bf16.gmra.mxu0 %v3097
        %v3213 = vpop.f32.mrf.mxu0
        %v3214 = vadd.f32 0.0, %v3213
        %v3215 = vpop.f32.mrf.mxu0
        %v3216 = vpop.f32.mrf.mxu0
        %v3217 = vpop.f32.mrf.mxu0
        %3218 = vdwg.mxu0
        %v3219 = vadd.f32 %v3010, %v3134
        %v3220 = vadd.f32 %v3011, %v3137
        %v3221 = vadd.f32 %v3012, %v3142
        %v3222 = vadd.f32 %v3013, %v3145
        %v3223 = vadd.f32 %v3014, %v3150
        %v3224 = vadd.f32 %v3015, %v3153
        %v3225 = vadd.f32 %v3016, %v3158
        %v3226 = vadd.f32 %v3017, %v3161
        %v3227 = vadd.f32 %v3018, %v3166
        %v3228 = vadd.f32 %v3019, %v3169
        %v3229 = vadd.f32 %v3020, %v3174
        %v3230 = vadd.f32 %v3021, %v3177
        %v3231 = vadd.f32 %v3022, %v3182
        %v3232 = vadd.f32 %v3023, %v3185
        %v3233 = vadd.f32 %v3024, %v3190
        %v3234 = vadd.f32 %v3025, %v3193
        %v3235 = vadd.f32 %v3026, %v3198
        %v3236 = vadd.f32 %v3027, %v3201
        %v3237 = vadd.f32 %v3028, %v3206
        %v3238 = vadd.f32 %v3029, %v3209
        %v3239 = vadd.f32 %v3030, %v3214
        %v3240 = vld [vmem:[#allocation2 + $0x60] sm:$0xf]
        %s3241 = scalar_lea.vmem %s3, 64
        %v3242 = vld [vmem:[%s3241] sm:$0xf]
        %v3243 = vld [vmem:[%s3241 + $0x4] sm:$0xf]
        %v3245 = vunpack.c.l.b16 %v3240
        %v3246 = vpack.c.b16 %v3245, %v2739
        %v3248 = vshrl.u32 %v3037, 16
        %v3250 = vrot.slane %v3248, 3
        %v3251 = vshll.u32 %v3037, 16
        %v3253 = vrot.slane %v3251, 4
        %v3254 = vor.u32 %v3250, %v3253
        %v3255 = vrot.slane %v2762, 3
        %v3256 = vrot.slane %v2765, 4
        %v3257 = vor.u32 %v3255, %v3256
        %v3258 = vsel %vm1852, %v3254, %v3257
        %v3259 = vrot.slane %v2771, 3
        %v3260 = vrot.slane %v2774, 4
        %v3261 = vor.u32 %v3259, %v3260
        %v3262 = vsel %vm1852, %v3257, %v3261
        %v3263 = vrot.slane %v2780, 3
        %v3264 = vrot.slane %v2783, 4
        %v3265 = vor.u32 %v3263, %v3264
        %v3266 = vsel %vm1852, %v3261, %v3265
        %v3267 = vrot.slane %v2789, 3
        %v3268 = vrot.slane %v2792, 4
        %v3269 = vor.u32 %v3267, %v3268
        %v3270 = vsel %vm1852, %v3265, %v3269
        %v3271 = vrot.slane %v2798, 3
        %v3272 = vrot.slane %v2801, 4
        %v3273 = vor.u32 %v3271, %v3272
        %v3274 = vsel %vm1852, %v3269, %v3273
        %v3275 = vrot.slane %v2807, 3
        %v3276 = vrot.slane %v2810, 4
        %v3277 = vor.u32 %v3275, %v3276
        %v3278 = vsel %vm1852, %v3273, %v3277
        %v3279 = vrot.slane %v2816, 3
        %v3280 = vrot.slane %v2819, 4
        %v3281 = vor.u32 %v3279, %v3280
        %v3282 = vsel %vm1852, %v3277, %v3281
        %v3283 = vrot.slane %v2825, 3
        %v3284 = vrot.slane %v2828, 4
        %v3285 = vor.u32 %v3283, %v3284
        %v3286 = vsel %vm1852, %v3281, %v3285
        %v3287 = vrot.slane %v2834, 3
        %v3288 = vrot.slane %v2837, 4
        %v3289 = vor.u32 %v3287, %v3288
        %v3290 = vsel %vm1852, %v3285, %v3289
        %v3292 = vshrl.u32 %v3246, 16
        %v3294 = vrot.slane %v3292, 3
        %v3295 = vshll.u32 %v3246, 16
        %v3297 = vrot.slane %v3295, 4
        %v3298 = vor.u32 %v3294, %v3297
        %v3299 = vsel %vm1852, %v3289, %v3298
        %v3302 = vunpack.c.l.b16 %v3242
        %v3303 = vunpack.c.l.b16 %v3243
        %v3304 = vpack.c.b16 %v3303, %v3302
        %v3307 = vsel %vm1127, %v3258, 0
        %v3310 = vsel %vm1127, %v3262, 0
        %v3313 = vsel %vm1127, %v3266, 0
        %v3316 = vsel %vm1127, %v3270, 0
        %v3319 = vsel %vm1127, %v3274, 0
        %v3322 = vsel %vm1127, %v3278, 0
        %v3325 = vsel %vm1127, %v3282, 0
        %v3328 = vsel %vm1127, %v3286, 0
        %v3331 = vsel %vm1127, %v3290, 0
        %v3334 = vsel %vm1127, %v3299, 0
        %v3337 = vsel %vm1127, %v3298, 0
        %3339 = vmatprep.subr.bf16.mxu0 0
        %3340 = vmatpush1.bf16.msra.mxu0 0
        %3341 = vmatprep.subr.bf16.mxu0 0
        %3342 = vmatpush1.bf16.msra.mxu0 0
        %3343 = vmatprep.subr.bf16.mxu0 0
        %3344 = vmatpush1.bf16.msra.mxu0 0
        %3345 = vmatprep.subr.bf16.mxu0 0
        %3346 = vmatpush1.bf16.msra.mxu0 0
        %3347 = vmatprep.subr.bf16.mxu0 0
        %3348 = vmatpush1.bf16.msra.mxu0 0
        %3349 = vmatprep.subr.bf16.mxu0 0
        %3350 = vmatpush1.bf16.msra.mxu0 0
        %3351 = vmatprep.subr.bf16.mxu0 0
        %3352 = vmatpush1.bf16.msra.mxu0 0
        %3353 = vmatprep.subr.bf16.mxu0 0
        %3354 = vmatpush1.bf16.msra.mxu0 %v3304
        %3355 = vmatprep.subr.bf16.mxu0 0
        %3356 = vmatpush2.bf16.msra.mxu0 0
        %3357 = vmatprep.subr.bf16.mxu0 0
        %3358 = vmatpush2.bf16.msra.mxu0 0
        %3359 = vmatprep.subr.bf16.mxu0 0
        %3360 = vmatpush2.bf16.msra.mxu0 0
        %3361 = vmatprep.subr.bf16.mxu0 0
        %3362 = vmatpush2.bf16.msra.mxu0 0
        %3363 = vmatprep.subr.bf16.mxu0 0
        %3364 = vmatpush2.bf16.msra.mxu0 0
        %3365 = vmatprep.subr.bf16.mxu0 0
        %3366 = vmatpush2.bf16.msra.mxu0 0
        %3367 = vmatprep.subr.bf16.mxu0 0
        %3368 = vmatpush2.bf16.msra.mxu0 0
        %3369 = vmatprep.subr.bf16.mxu0 0
        %3370 = vmatpush2.bf16.msra.mxu0 0
        %3371 = vmatprep.mubr.bf16.mxu0 0
        %3372 = vmatmul.mubr.bf16.gmra.mxu0 %v3307
        %v3373 = vpop.f32.mrf.mxu0
        %v3374 = vadd.f32 0.0, %v3373
        %v3375 = vpop.f32.mrf.mxu0
        %v3376 = vpop.f32.mrf.mxu0
        %v3377 = vadd.f32 0.0, %v3376
        %v3378 = vpop.f32.mrf.mxu0
        %3379 = vmatprep.mubr.bf16.mxu0 0
        %3380 = vmatmul.mubr.bf16.gmra.mxu0 %v3310
        %v3381 = vpop.f32.mrf.mxu0
        %v3382 = vadd.f32 0.0, %v3381
        %v3383 = vpop.f32.mrf.mxu0
        %v3384 = vpop.f32.mrf.mxu0
        %v3385 = vadd.f32 0.0, %v3384
        %v3386 = vpop.f32.mrf.mxu0
        %3387 = vmatprep.mubr.bf16.mxu0 0
        %3388 = vmatmul.mubr.bf16.gmra.mxu0 %v3313
        %v3389 = vpop.f32.mrf.mxu0
        %v3390 = vadd.f32 0.0, %v3389
        %v3391 = vpop.f32.mrf.mxu0
        %v3392 = vpop.f32.mrf.mxu0
        %v3393 = vadd.f32 0.0, %v3392
        %v3394 = vpop.f32.mrf.mxu0
        %3395 = vmatprep.mubr.bf16.mxu0 0
        %3396 = vmatmul.mubr.bf16.gmra.mxu0 %v3316
        %v3397 = vpop.f32.mrf.mxu0
        %v3398 = vadd.f32 0.0, %v3397
        %v3399 = vpop.f32.mrf.mxu0
        %v3400 = vpop.f32.mrf.mxu0
        %v3401 = vadd.f32 0.0, %v3400
        %v3402 = vpop.f32.mrf.mxu0
        %3403 = vmatprep.mubr.bf16.mxu0 0
        %3404 = vmatmul.mubr.bf16.gmra.mxu0 %v3319
        %v3405 = vpop.f32.mrf.mxu0
        %v3406 = vadd.f32 0.0, %v3405
        %v3407 = vpop.f32.mrf.mxu0
        %v3408 = vpop.f32.mrf.mxu0
        %v3409 = vadd.f32 0.0, %v3408
        %v3410 = vpop.f32.mrf.mxu0
        %3411 = vmatprep.mubr.bf16.mxu0 0
        %3412 = vmatmul.mubr.bf16.gmra.mxu0 %v3322
        %v3413 = vpop.f32.mrf.mxu0
        %v3414 = vadd.f32 0.0, %v3413
        %v3415 = vpop.f32.mrf.mxu0
        %v3416 = vpop.f32.mrf.mxu0
        %v3417 = vadd.f32 0.0, %v3416
        %v3418 = vpop.f32.mrf.mxu0
        %3419 = vmatprep.mubr.bf16.mxu0 0
        %3420 = vmatmul.mubr.bf16.gmra.mxu0 %v3325
        %v3421 = vpop.f32.mrf.mxu0
        %v3422 = vadd.f32 0.0, %v3421
        %v3423 = vpop.f32.mrf.mxu0
        %v3424 = vpop.f32.mrf.mxu0
        %v3425 = vadd.f32 0.0, %v3424
        %v3426 = vpop.f32.mrf.mxu0
        %3427 = vmatprep.mubr.bf16.mxu0 0
        %3428 = vmatmul.mubr.bf16.gmra.mxu0 %v3328
        %v3429 = vpop.f32.mrf.mxu0
        %v3430 = vadd.f32 0.0, %v3429
        %v3431 = vpop.f32.mrf.mxu0
        %v3432 = vpop.f32.mrf.mxu0
        %v3433 = vadd.f32 0.0, %v3432
        %v3434 = vpop.f32.mrf.mxu0
        %3435 = vmatprep.mubr.bf16.mxu0 0
        %3436 = vmatmul.mubr.bf16.gmra.mxu0 %v3331
        %v3437 = vpop.f32.mrf.mxu0
        %v3438 = vadd.f32 0.0, %v3437
        %v3439 = vpop.f32.mrf.mxu0
        %v3440 = vpop.f32.mrf.mxu0
        %v3441 = vadd.f32 0.0, %v3440
        %v3442 = vpop.f32.mrf.mxu0
        %3443 = vmatprep.mubr.bf16.mxu0 0
        %3444 = vmatmul.mubr.bf16.gmra.mxu0 %v3334
        %v3445 = vpop.f32.mrf.mxu0
        %v3446 = vadd.f32 0.0, %v3445
        %v3447 = vpop.f32.mrf.mxu0
        %v3448 = vpop.f32.mrf.mxu0
        %v3449 = vadd.f32 0.0, %v3448
        %v3450 = vpop.f32.mrf.mxu0
        %3451 = vmatprep.mubr.bf16.mxu0 0
        %3452 = vmatmul.mubr.bf16.gmra.mxu0 %v3337
        %v3453 = vpop.f32.mrf.mxu0
        %v3454 = vadd.f32 0.0, %v3453
        %v3455 = vpop.f32.mrf.mxu0
        %v3456 = vpop.f32.mrf.mxu0
        %v3457 = vpop.f32.mrf.mxu0
        %3458 = vdwg.mxu0
        %v3459 = vadd.f32 %v3219, %v3374
        %v3460 = vadd.f32 %v3220, %v3377
        %v3461 = vadd.f32 %v3221, %v3382
        %v3462 = vadd.f32 %v3222, %v3385
        %v3463 = vadd.f32 %v3223, %v3390
        %v3464 = vadd.f32 %v3224, %v3393
        %v3465 = vadd.f32 %v3225, %v3398
        %v3466 = vadd.f32 %v3226, %v3401
        %v3467 = vadd.f32 %v3227, %v3406
        %v3468 = vadd.f32 %v3228, %v3409
        %v3469 = vadd.f32 %v3229, %v3414
        %v3470 = vadd.f32 %v3230, %v3417
        %v3471 = vadd.f32 %v3231, %v3422
        %v3472 = vadd.f32 %v3232, %v3425
        %v3473 = vadd.f32 %v3233, %v3430
        %v3474 = vadd.f32 %v3234, %v3433
        %v3475 = vadd.f32 %v3235, %v3438
        %v3476 = vadd.f32 %v3236, %v3441
        %v3477 = vadd.f32 %v3237, %v3446
        %v3478 = vadd.f32 %v3238, %v3449
        %v3479 = vadd.f32 %v3239, %v3454
        %v3480 = vld [vmem:[%s4] sm:$0x1]
        %v3482 = vlaneseq
        %v3483 = vshrl.u32 %v3482, 7
        %v3484 = vsub.s32 0, %v3483
        %v3485 = vrot.slane %v3480, %v3484
        %v3487 = vadd.f32 %v3459, %v3485
        %v3488 = vadd.f32 %v3460, %v3485
        %v3489 = vadd.f32 %v3461, %v3485
        %v3490 = vadd.f32 %v3462, %v3485
        %v3491 = vadd.f32 %v3463, %v3485
        %v3492 = vadd.f32 %v3464, %v3485
        %v3493 = vadd.f32 %v3465, %v3485
        %v3494 = vadd.f32 %v3466, %v3485
        %v3495 = vadd.f32 %v3467, %v3485
        %v3496 = vadd.f32 %v3468, %v3485
        %v3497 = vadd.f32 %v3469, %v3485
        %v3498 = vadd.f32 %v3470, %v3485
        %v3499 = vadd.f32 %v3471, %v3485
        %v3500 = vadd.f32 %v3472, %v3485
        %v3501 = vadd.f32 %v3473, %v3485
        %v3502 = vadd.f32 %v3474, %v3485
        %v3503 = vadd.f32 %v3475, %v3485
        %v3504 = vadd.f32 %v3476, %v3485
        %v3505 = vadd.f32 %v3477, %v3485
        %v3506 = vadd.f32 %v3478, %v3485
        %v3507 = vadd.f32 %v3479, %v3485
        %v3508 = vmax.f32 %v3487, 0.0
        %v3509 = vmax.f32 %v3488, 0.0
        %v3510 = vmax.f32 %v3489, 0.0
        %v3511 = vmax.f32 %v3490, 0.0
        %v3512 = vmax.f32 %v3491, 0.0
        %v3513 = vmax.f32 %v3492, 0.0
        %v3514 = vmax.f32 %v3493, 0.0
        %v3515 = vmax.f32 %v3494, 0.0
        %v3516 = vmax.f32 %v3495, 0.0
        %v3517 = vmax.f32 %v3496, 0.0
        %v3518 = vmax.f32 %v3497, 0.0
        %v3519 = vmax.f32 %v3498, 0.0
        %v3520 = vmax.f32 %v3499, 0.0
        %v3521 = vmax.f32 %v3500, 0.0
        %v3522 = vmax.f32 %v3501, 0.0
        %v3523 = vmax.f32 %v3502, 0.0
        %v3524 = vmax.f32 %v3503, 0.0
        %v3525 = vmax.f32 %v3504, 0.0
        %v3526 = vmax.f32 %v3505, 0.0
        %v3527 = vmax.f32 %v3506, 0.0
        %v3528 = vmax.f32 %v3507, 0.0
        %vm3549 = vcmask 1041408
        %v3550 = vrot.slane %v3509, 6
        %v3551 = vrot.slane %v3510, 6
        %v3552 = vsel %vm3549, %v3550, %v3551
        %v3553 = vrot.slane %v3511, 6
        %v3554 = vsel %vm3549, %v3551, %v3553
        %v3555 = vrot.slane %v3512, 6
        %v3556 = vsel %vm3549, %v3553, %v3555
        %v3557 = vrot.slane %v3513, 6
        %v3558 = vsel %vm3549, %v3555, %v3557
        %v3559 = vrot.slane %v3514, 6
        %v3560 = vsel %vm3549, %v3557, %v3559
        %v3561 = vrot.slane %v3515, 6
        %v3562 = vsel %vm3549, %v3559, %v3561
        %v3563 = vrot.slane %v3516, 6
        %v3564 = vsel %vm3549, %v3561, %v3563
        %v3565 = vrot.slane %v3517, 6
        %v3566 = vsel %vm3549, %v3563, %v3565
        %v3567 = vrot.slane %v3518, 6
        %v3568 = vsel %vm3549, %v3565, %v3567
        %v3569 = vrot.slane %v3519, 6
        %v3570 = vsel %vm3549, %v3567, %v3569
        %v3571 = vrot.slane %v3520, 6
        %v3572 = vsel %vm3549, %v3569, %v3571
        %v3573 = vrot.slane %v3521, 6
        %v3574 = vsel %vm3549, %v3571, %v3573
        %v3575 = vrot.slane %v3522, 6
        %v3576 = vsel %vm3549, %v3573, %v3575
        %v3577 = vrot.slane %v3523, 6
        %v3578 = vsel %vm3549, %v3575, %v3577
        %v3579 = vrot.slane %v3524, 6
        %v3580 = vsel %vm3549, %v3577, %v3579
        %v3581 = vrot.slane %v3525, 6
        %v3582 = vsel %vm3549, %v3579, %v3581
        %v3583 = vrot.slane %v3526, 6
        %v3584 = vsel %vm3549, %v3581, %v3583
        %v3585 = vrot.slane %v3527, 6
        %v3586 = vsel %vm3549, %v3583, %v3585
        %v3587 = vrot.slane %v3528, 6
        %v3588 = vsel %vm3549, %v3585, %v3587
        %v3609 = vmax.f32 %v3508, %v3552
        %v3610 = vmax.f32 %v3509, %v3554
        %v3611 = vmax.f32 %v3510, %v3556
        %v3612 = vmax.f32 %v3511, %v3558
        %v3613 = vmax.f32 %v3512, %v3560
        %v3614 = vmax.f32 %v3513, %v3562
        %v3615 = vmax.f32 %v3514, %v3564
        %v3616 = vmax.f32 %v3515, %v3566
        %v3617 = vmax.f32 %v3516, %v3568
        %v3618 = vmax.f32 %v3517, %v3570
        %v3619 = vmax.f32 %v3518, %v3572
        %v3620 = vmax.f32 %v3519, %v3574
        %v3621 = vmax.f32 %v3520, %v3576
        %v3622 = vmax.f32 %v3521, %v3578
        %v3623 = vmax.f32 %v3522, %v3580
        %v3624 = vmax.f32 %v3523, %v3582
        %v3625 = vmax.f32 %v3524, %v3584
        %v3626 = vmax.f32 %v3525, %v3586
        %v3627 = vmax.f32 %v3526, %v3588
        %v3628 = vmax.f32 %v3527, %v3587
        %vm3649 = vcmask 1046528
        %v3650 = vrot.slane %v3609, 1
        %v3651 = vrot.slane %v3610, 1
        %v3652 = vsel %vm3649, %v3650, %v3651
        %v3653 = vrot.slane %v3611, 1
        %v3654 = vsel %vm3649, %v3651, %v3653
        %v3655 = vrot.slane %v3612, 1
        %v3656 = vsel %vm3649, %v3653, %v3655
        %v3657 = vrot.slane %v3613, 1
        %v3658 = vsel %vm3649, %v3655, %v3657
        %v3659 = vrot.slane %v3614, 1
        %v3660 = vsel %vm3649, %v3657, %v3659
        %v3661 = vrot.slane %v3615, 1
        %v3662 = vsel %vm3649, %v3659, %v3661
        %v3663 = vrot.slane %v3616, 1
        %v3664 = vsel %vm3649, %v3661, %v3663
        %v3665 = vrot.slane %v3617, 1
        %v3666 = vsel %vm3649, %v3663, %v3665
        %v3667 = vrot.slane %v3618, 1
        %v3668 = vsel %vm3649, %v3665, %v3667
        %v3669 = vrot.slane %v3619, 1
        %v3670 = vsel %vm3649, %v3667, %v3669
        %v3671 = vrot.slane %v3620, 1
        %v3672 = vsel %vm3649, %v3669, %v3671
        %v3673 = vrot.slane %v3621, 1
        %v3674 = vsel %vm3649, %v3671, %v3673
        %v3675 = vrot.slane %v3622, 1
        %v3676 = vsel %vm3649, %v3673, %v3675
        %v3677 = vrot.slane %v3623, 1
        %v3678 = vsel %vm3649, %v3675, %v3677
        %v3679 = vrot.slane %v3624, 1
        %v3680 = vsel %vm3649, %v3677, %v3679
        %v3681 = vrot.slane %v3625, 1
        %v3682 = vsel %vm3649, %v3679, %v3681
        %v3683 = vrot.slane %v3626, 1
        %v3684 = vsel %vm3649, %v3681, %v3683
        %v3685 = vrot.slane %v3627, 1
        %v3686 = vsel %vm3649, %v3683, %v3685
        %v3687 = vrot.slane %v3628, 1
        %v3688 = vsel %vm3649, %v3685, %v3687
        %v3709 = vmax.f32 %v3609, %v3652
        %v3710 = vmax.f32 %v3610, %v3654
        %v3711 = vmax.f32 %v3611, %v3656
        %v3712 = vmax.f32 %v3612, %v3658
        %v3713 = vmax.f32 %v3613, %v3660
        %v3714 = vmax.f32 %v3614, %v3662
        %v3715 = vmax.f32 %v3615, %v3664
        %v3716 = vmax.f32 %v3616, %v3666
        %v3717 = vmax.f32 %v3617, %v3668
        %v3718 = vmax.f32 %v3618, %v3670
        %v3719 = vmax.f32 %v3619, %v3672
        %v3720 = vmax.f32 %v3620, %v3674
        %v3721 = vmax.f32 %v3621, %v3676
        %v3722 = vmax.f32 %v3622, %v3678
        %v3723 = vmax.f32 %v3623, %v3680
        %v3724 = vmax.f32 %v3624, %v3682
        %v3725 = vmax.f32 %v3625, %v3684
        %v3726 = vmax.f32 %v3626, %v3686
        %v3727 = vmax.f32 %v3627, %v3688
        %v3728 = vmax.f32 %v3628, %v3687
        %v3729 = vpack.c.bf16 %v3710, %v3709
        %v3730 = vpack.c.bf16 %v3712, %v3711
        %v3731 = vpack.c.bf16 %v3714, %v3713
        %v3732 = vpack.c.bf16 %v3716, %v3715
        %v3733 = vpack.c.bf16 %v3718, %v3717
        %v3734 = vpack.c.bf16 %v3720, %v3719
        %v3735 = vpack.c.bf16 %v3722, %v3721
        %v3736 = vpack.c.bf16 %v3724, %v3723
        %v3737 = vpack.c.bf16 %v3726, %v3725
        %v3738 = vpack.c.bf16 %v3728, %v3727
        %v3739 = vld [vmem:[%s11] sm:$0xff]
        %v3740 = vld [vmem:[%s11 + $0x8] sm:$0xff]
        %v3741 = vld [vmem:[%s11 + $0x10] sm:$0xff]
        %v3742 = vld [vmem:[%s11 + $0x18] sm:$0xff]
        %v3743 = vld [vmem:[%s11 + $0x20] sm:$0xff]
        %v3744 = vld [vmem:[%s11 + $0x28] sm:$0xff]
        %v3745 = vld [vmem:[%s11 + $0x30] sm:$0xff]
        %v3746 = vld [vmem:[%s11 + $0x38] sm:$0xff]
        %v3747 = vld [vmem:[%s11 + $0x40] sm:$0xff]
        %v3748 = vld [vmem:[%s11 + $0x48] sm:$0xff]
        %v3759 = vunpack.c.l.b16 %v3739
        %v3760 = vunpack.c.h.b16 %v3739
        %v3761 = vunpack.c.l.b16 %v3740
        %v3762 = vunpack.c.h.b16 %v3740
        %v3763 = vunpack.c.l.b16 %v3741
        %v3764 = vunpack.c.h.b16 %v3741
        %v3765 = vunpack.c.l.b16 %v3742
        %v3766 = vunpack.c.h.b16 %v3742
        %v3767 = vunpack.c.l.b16 %v3743
        %v3768 = vunpack.c.h.b16 %v3743
        %v3769 = vunpack.c.l.b16 %v3744
        %v3770 = vunpack.c.h.b16 %v3744
        %v3771 = vunpack.c.l.b16 %v3745
        %v3772 = vunpack.c.h.b16 %v3745
        %v3773 = vunpack.c.l.b16 %v3746
        %v3774 = vunpack.c.h.b16 %v3746
        %v3775 = vunpack.c.l.b16 %v3747
        %v3776 = vunpack.c.h.b16 %v3747
        %v3777 = vunpack.c.l.b16 %v3748
        %v3778 = vunpack.c.h.b16 %v3748
        %v3779 = vpack.c.b16 %v3761, %v3759
        %v3780 = vpack.c.b16 %v3762, %v3760
        %v3781 = vpack.c.b16 %v3765, %v3763
        %v3782 = vpack.c.b16 %v3766, %v3764
        %v3783 = vpack.c.b16 %v3769, %v3767
        %v3784 = vpack.c.b16 %v3770, %v3768
        %v3785 = vpack.c.b16 %v3773, %v3771
        %v3786 = vpack.c.b16 %v3774, %v3772
        %v3787 = vpack.c.b16 %v3777, %v3775
        %v3788 = vpack.c.b16 %v3778, %v3776
        %vm3794 = vcmask 195584
        %v3796 = vsel %vm3794, %v3780, 0
        %v3799 = vsel %vm3794, %v3782, 0
        %v3802 = vsel %vm3794, %v3784, 0
        %v3805 = vsel %vm3794, %v3786, 0
        %v3808 = vsel %vm3794, %v3788, 0
        %vm3810 = vcmask 1043456
        %v3812 = vsel %vm3810, %v3738, 0
        %3814 = vmatprep.subr.bf16.mxu0 0
        %3815 = vmatpush1.bf16.msra.mxu0 %v3736
        %3816 = vmatprep.subr.bf16.mxu0 0
        %3817 = vmatpush1.bf16.msra.mxu0 %v3735
        %3818 = vmatprep.subr.bf16.mxu0 0
        %3819 = vmatpush1.bf16.msra.mxu0 %v3734
        %3820 = vmatprep.subr.bf16.mxu0 0
        %3821 = vmatpush1.bf16.msra.mxu0 %v3733
        %3822 = vmatprep.subr.bf16.mxu0 0
        %3823 = vmatpush1.bf16.msra.mxu0 %v3732
        %3824 = vmatprep.subr.bf16.mxu0 0
        %3825 = vmatpush1.bf16.msra.mxu0 %v3731
        %3826 = vmatprep.subr.bf16.mxu0 0
        %3827 = vmatpush1.bf16.msra.mxu0 %v3730
        %3828 = vmatprep.subr.bf16.mxu0 0
        %3829 = vmatpush1.bf16.msra.mxu0 %v3729
        %3830 = vmatprep.subr.bf16.mxu0 0
        %3831 = vmatpush2.bf16.msra.mxu0 0
        %3832 = vmatprep.subr.bf16.mxu0 0
        %3833 = vmatpush2.bf16.msra.mxu0 0
        %3834 = vmatprep.subr.bf16.mxu0 0
        %3835 = vmatpush2.bf16.msra.mxu0 0
        %3836 = vmatprep.subr.bf16.mxu0 0
        %3837 = vmatpush2.bf16.msra.mxu0 0
        %3838 = vmatprep.subr.bf16.mxu0 0
        %3839 = vmatpush2.bf16.msra.mxu0 0
        %3840 = vmatprep.subr.bf16.mxu0 0
        %3841 = vmatpush2.bf16.msra.mxu0 0
        %3842 = vmatprep.subr.bf16.mxu0 0
        %3843 = vmatpush2.bf16.msra.mxu0 %v3812
        %3844 = vmatprep.subr.bf16.mxu0 0
        %3845 = vmatpush2.bf16.msra.mxu0 %v3737
        %3846 = vmatprep.mubr.bf16.mxu0 %v3796
        %3847 = vmatmul.mubr.bf16.gmra.mxu0 %v3779
        %v3848 = vpop.f32.mrf.mxu0
        %v3849 = vadd.f32 0.0, %v3848
        %v3850 = vpop.f32.mrf.mxu0
        %v3851 = vpop.f32.mrf.mxu0
        %v3852 = vadd.f32 0.0, %v3851
        %v3853 = vpop.f32.mrf.mxu0
        %3854 = vmatprep.mubr.bf16.mxu0 %v3799
        %3855 = vmatmul.mubr.bf16.gmra.mxu0 %v3781
        %v3856 = vpop.f32.mrf.mxu0
        %v3857 = vadd.f32 0.0, %v3856
        %v3858 = vpop.f32.mrf.mxu0
        %v3859 = vpop.f32.mrf.mxu0
        %v3860 = vadd.f32 0.0, %v3859
        %v3861 = vpop.f32.mrf.mxu0
        %3862 = vmatprep.mubr.bf16.mxu0 %v3802
        %3863 = vmatmul.mubr.bf16.gmra.mxu0 %v3783
        %v3864 = vpop.f32.mrf.mxu0
        %v3865 = vadd.f32 0.0, %v3864
        %v3866 = vpop.f32.mrf.mxu0
        %v3867 = vpop.f32.mrf.mxu0
        %v3868 = vadd.f32 0.0, %v3867
        %v3869 = vpop.f32.mrf.mxu0
        %3870 = vmatprep.mubr.bf16.mxu0 %v3805
        %3871 = vmatmul.mubr.bf16.gmra.mxu0 %v3785
        %v3872 = vpop.f32.mrf.mxu0
        %v3873 = vadd.f32 0.0, %v3872
        %v3874 = vpop.f32.mrf.mxu0
        %v3875 = vpop.f32.mrf.mxu0
        %v3876 = vadd.f32 0.0, %v3875
        %v3877 = vpop.f32.mrf.mxu0
        %3878 = vmatprep.mubr.bf16.mxu0 %v3808
        %3879 = vmatmul.mubr.bf16.gmra.mxu0 %v3787
        %v3880 = vpop.f32.mrf.mxu0
        %v3881 = vadd.f32 0.0, %v3880
        %v3882 = vpop.f32.mrf.mxu0
        %v3883 = vpop.f32.mrf.mxu0
        %v3884 = vadd.f32 0.0, %v3883
        %v3885 = vpop.f32.mrf.mxu0
        %3886 = vdwg.mxu0
        %v3887 = vpack.c.bf16 %v3852, %v3849
        %v3888 = vpack.c.bf16 %v3860, %v3857
        %v3889 = vpack.c.bf16 %v3868, %v3865
        %v3890 = vpack.c.bf16 %v3876, %v3873
        %v3891 = vpack.c.bf16 %v3884, %v3881
        %v3897 = vunpack.c.l.b16 %v3887
        %v3898 = vunpack.c.h.b16 %v3887
        %v3899 = vunpack.c.l.b16 %v3888
        %v3900 = vunpack.c.h.b16 %v3888
        %v3901 = vunpack.c.l.b16 %v3889
        %v3902 = vunpack.c.h.b16 %v3889
        %v3903 = vunpack.c.l.b16 %v3890
        %v3904 = vunpack.c.h.b16 %v3890
        %v3905 = vunpack.c.l.b16 %v3891
        %v3906 = vunpack.c.h.b16 %v3891
        %v3907 = vpack.c.b16 %v3897, %v3897
        %v3908 = vpack.c.b16 %v3898, %v3898
        %v3909 = vpack.c.b16 %v3899, %v3899
        %v3910 = vpack.c.b16 %v3900, %v3900
        %v3911 = vpack.c.b16 %v3901, %v3901
        %v3912 = vpack.c.b16 %v3902, %v3902
        %v3913 = vpack.c.b16 %v3903, %v3903
        %v3914 = vpack.c.b16 %v3904, %v3904
        %v3915 = vpack.c.b16 %v3905, %v3905
        %v3916 = vpack.c.b16 %v3906, %v3906
        %3927 = vst.msk [vmem:[#allocation3] sm:$0xf] %vm883, %v3907
        %3928 = vst.msk [vmem:[#allocation3 + $0x4] sm:$0xf] %vm883, %v3908
        %3929 = vst.msk [vmem:[#allocation3 + $0x8] sm:$0xf] %vm883, %v3909
        %3930 = vst.msk [vmem:[#allocation3 + $0xc] sm:$0xf] %vm883, %v3910
        %3931 = vst.msk [vmem:[#allocation3 + $0x10] sm:$0xf] %vm883, %v3911
        %3932 = vst.msk [vmem:[#allocation3 + $0x14] sm:$0xf] %vm883, %v3912
        %3933 = vst.msk [vmem:[#allocation3 + $0x18] sm:$0xf] %vm883, %v3913
        %3934 = vst.msk [vmem:[#allocation3 + $0x1c] sm:$0xf] %vm883, %v3914
        %3935 = vst.msk [vmem:[#allocation3 + $0x20] sm:$0xf] %vm883, %v3915
        %3936 = vst.msk [vmem:[#allocation3 + $0x24] sm:$0xf] %vm883, %v3916
        %v3937 = vld [vmem:[#allocation3] sm:$0x8]
        %v3938 = vld [vmem:[#allocation3 + $0x4] sm:$0xf]
        %v3939 = vld [vmem:[#allocation3 + $0x8] sm:$0xf]
        %v3940 = vld [vmem:[#allocation3 + $0xc] sm:$0xf]
        %v3941 = vld [vmem:[#allocation3 + $0x10] sm:$0xf]
        %v3942 = vld [vmem:[#allocation3 + $0x14] sm:$0xf]
        %v3943 = vld [vmem:[#allocation3 + $0x18] sm:$0xf]
        %v3944 = vld [vmem:[%s5] sm:$0xf]
        %v3945 = vld [vmem:[%s5 + $0x4] sm:$0xf]
        %s3946 = scalar_lea.vmem %s5, 8
        %v3947 = vld [vmem:[%s3946] sm:$0xf]
        %v3948 = vld [vmem:[%s3946 + $0x4] sm:$0xf]
        %v3955 = vunpack.c.l.b16 %v3938
        %v3956 = vunpack.c.l.b16 %v3939
        %v3957 = vunpack.c.l.b16 %v3940
        %v3958 = vunpack.c.l.b16 %v3941
        %v3959 = vunpack.c.l.b16 %v3942
        %v3960 = vunpack.c.l.b16 %v3943
        %v3961 = vpack.c.b16 %v3956, %v3955
        %v3962 = vpack.c.b16 %v3958, %v3957
        %v3963 = vpack.c.b16 %v3960, %v3959
        %v3966 = vunpack.c.l.b16 %v3947
        %v3967 = vunpack.c.l.b16 %v3948
        %v3968 = vpack.c.b16 %v3967, %v3966
        %v3971 = vsel %vm1127, %v3961, 0
        %v3974 = vsel %vm1127, %v3962, 0
        %v3977 = vsel %vm1127, %v3963, 0
        %3979 = vmatprep.subr.bf16.mxu0 0
        %3980 = vmatpush1.bf16.msra.mxu0 0
        %3981 = vmatprep.subr.bf16.mxu0 0
        %3982 = vmatpush1.bf16.msra.mxu0 0
        %3983 = vmatprep.subr.bf16.mxu0 0
        %3984 = vmatpush1.bf16.msra.mxu0 0
        %3985 = vmatprep.subr.bf16.mxu0 0
        %3986 = vmatpush1.bf16.msra.mxu0 0
        %3987 = vmatprep.subr.bf16.mxu0 0
        %3988 = vmatpush1.bf16.msra.mxu0 0
        %3989 = vmatprep.subr.bf16.mxu0 0
        %3990 = vmatpush1.bf16.msra.mxu0 0
        %3991 = vmatprep.subr.bf16.mxu0 0
        %3992 = vmatpush1.bf16.msra.mxu0 0
        %3993 = vmatprep.subr.bf16.mxu0 0
        %3994 = vmatpush1.bf16.msra.mxu0 %v3968
        %3995 = vmatprep.subr.bf16.mxu0 0
        %3996 = vmatpush2.bf16.msra.mxu0 0
        %3997 = vmatprep.subr.bf16.mxu0 0
        %3998 = vmatpush2.bf16.msra.mxu0 0
        %3999 = vmatprep.subr.bf16.mxu0 0
        %4000 = vmatpush2.bf16.msra.mxu0 0
        %4001 = vmatprep.subr.bf16.mxu0 0
        %4002 = vmatpush2.bf16.msra.mxu0 0
        %4003 = vmatprep.subr.bf16.mxu0 0
        %4004 = vmatpush2.bf16.msra.mxu0 0
        %4005 = vmatprep.subr.bf16.mxu0 0
        %4006 = vmatpush2.bf16.msra.mxu0 0
        %4007 = vmatprep.subr.bf16.mxu0 0
        %4008 = vmatpush2.bf16.msra.mxu0 0
        %4009 = vmatprep.subr.bf16.mxu0 0
        %4010 = vmatpush2.bf16.msra.mxu0 0
        %4011 = vmatprep.mubr.bf16.mxu0 0
        %4012 = vmatmul.mubr.bf16.gmra.mxu0 %v3971
        %v4013 = vpop.f32.mrf.mxu0
        %v4014 = vadd.f32 0.0, %v4013
        %v4015 = vpop.f32.mrf.mxu0
        %v4016 = vpop.f32.mrf.mxu0
        %v4017 = vadd.f32 0.0, %v4016
        %v4018 = vpop.f32.mrf.mxu0
        %4019 = vmatprep.mubr.bf16.mxu0 0
        %4020 = vmatmul.mubr.bf16.gmra.mxu0 %v3974
        %v4021 = vpop.f32.mrf.mxu0
        %v4022 = vadd.f32 0.0, %v4021
        %v4023 = vpop.f32.mrf.mxu0
        %v4024 = vpop.f32.mrf.mxu0
        %v4025 = vadd.f32 0.0, %v4024
        %v4026 = vpop.f32.mrf.mxu0
        %4027 = vmatprep.mubr.bf16.mxu0 0
        %4028 = vmatmul.mubr.bf16.gmra.mxu0 %v3977
        %v4029 = vpop.f32.mrf.mxu0
        %v4030 = vadd.f32 0.0, %v4029
        %v4031 = vpop.f32.mrf.mxu0
        %v4032 = vpop.f32.mrf.mxu0
        %v4033 = vadd.f32 0.0, %v4032
        %v4034 = vpop.f32.mrf.mxu0
        %4035 = vdwg.mxu0
        %v4037 = vunpack.c.l.b16 %v3937
        %v4038 = vpack.c.b16 %v3955, %v4037
        %v4039 = vpack.c.b16 %v3957, %v3956
        %v4040 = vpack.c.b16 %v3959, %v3958
        %v4041 = vpack.c.b16 %v3960, %v3960
        %v4043 = vshrl.u32 %v4038, 16
        %v4045 = vrot.slane %v4043, 3
        %v4046 = vshll.u32 %v4038, 16
        %v4048 = vrot.slane %v4046, 4
        %v4049 = vor.u32 %v4045, %v4048
        %v4051 = vshrl.u32 %v4039, 16
        %v4053 = vrot.slane %v4051, 3
        %v4054 = vshll.u32 %v4039, 16
        %v4056 = vrot.slane %v4054, 4
        %v4057 = vor.u32 %v4053, %v4056
        %v4058 = vsel %vm1852, %v4049, %v4057
        %v4060 = vshrl.u32 %v4040, 16
        %v4062 = vrot.slane %v4060, 3
        %v4063 = vshll.u32 %v4040, 16
        %v4065 = vrot.slane %v4063, 4
        %v4066 = vor.u32 %v4062, %v4065
        %v4067 = vsel %vm1852, %v4057, %v4066
        %v4069 = vshrl.u32 %v4041, 16
        %v4071 = vrot.slane %v4069, 3
        %v4072 = vshll.u32 %v4041, 16
        %v4074 = vrot.slane %v4072, 4
        %v4075 = vor.u32 %v4071, %v4074
        %v4076 = vsel %vm1852, %v4066, %v4075
        %v4079 = vunpack.c.l.b16 %v3944
        %v4080 = vunpack.c.l.b16 %v3945
        %v4081 = vpack.c.b16 %v4080, %v4079
        %v4084 = vsel %vm1127, %v4058, 0
        %v4087 = vsel %vm1127, %v4067, 0
        %v4090 = vsel %vm1127, %v4076, 0
        %4092 = vmatprep.subr.bf16.mxu0 0
        %4093 = vmatpush1.bf16.msra.mxu0 0
        %4094 = vmatprep.subr.bf16.mxu0 0
        %4095 = vmatpush1.bf16.msra.mxu0 0
        %4096 = vmatprep.subr.bf16.mxu0 0
        %4097 = vmatpush1.bf16.msra.mxu0 0
        %4098 = vmatprep.subr.bf16.mxu0 0
        %4099 = vmatpush1.bf16.msra.mxu0 0
        %4100 = vmatprep.subr.bf16.mxu0 0
        %4101 = vmatpush1.bf16.msra.mxu0 0
        %4102 = vmatprep.subr.bf16.mxu0 0
        %4103 = vmatpush1.bf16.msra.mxu0 0
        %4104 = vmatprep.subr.bf16.mxu0 0
        %4105 = vmatpush1.bf16.msra.mxu0 0
        %4106 = vmatprep.subr.bf16.mxu0 0
        %4107 = vmatpush1.bf16.msra.mxu0 %v4081
        %4108 = vmatprep.subr.bf16.mxu0 0
        %4109 = vmatpush2.bf16.msra.mxu0 0
        %4110 = vmatprep.subr.bf16.mxu0 0
        %4111 = vmatpush2.bf16.msra.mxu0 0
        %4112 = vmatprep.subr.bf16.mxu0 0
        %4113 = vmatpush2.bf16.msra.mxu0 0
        %4114 = vmatprep.subr.bf16.mxu0 0
        %4115 = vmatpush2.bf16.msra.mxu0 0
        %4116 = vmatprep.subr.bf16.mxu0 0
        %4117 = vmatpush2.bf16.msra.mxu0 0
        %4118 = vmatprep.subr.bf16.mxu0 0
        %4119 = vmatpush2.bf16.msra.mxu0 0
        %4120 = vmatprep.subr.bf16.mxu0 0
        %4121 = vmatpush2.bf16.msra.mxu0 0
        %4122 = vmatprep.subr.bf16.mxu0 0
        %4123 = vmatpush2.bf16.msra.mxu0 0
        %4124 = vmatprep.mubr.bf16.mxu0 0
        %4125 = vmatmul.mubr.bf16.gmra.mxu0 %v4084
        %v4126 = vpop.f32.mrf.mxu0
        %v4127 = vadd.f32 %v4014, %v4126
        %v4128 = vpop.f32.mrf.mxu0
        %v4129 = vpop.f32.mrf.mxu0
        %v4130 = vadd.f32 %v4017, %v4129
        %v4131 = vpop.f32.mrf.mxu0
        %4132 = vmatprep.mubr.bf16.mxu0 0
        %4133 = vmatmul.mubr.bf16.gmra.mxu0 %v4087
        %v4134 = vpop.f32.mrf.mxu0
        %v4135 = vadd.f32 %v4022, %v4134
        %v4136 = vpop.f32.mrf.mxu0
        %v4137 = vpop.f32.mrf.mxu0
        %v4138 = vadd.f32 %v4025, %v4137
        %v4139 = vpop.f32.mrf.mxu0
        %4140 = vmatprep.mubr.bf16.mxu0 0
        %4141 = vmatmul.mubr.bf16.gmra.mxu0 %v4090
        %v4142 = vpop.f32.mrf.mxu0
        %v4143 = vadd.f32 %v4030, %v4142
        %v4144 = vpop.f32.mrf.mxu0
        %v4145 = vpop.f32.mrf.mxu0
        %v4146 = vadd.f32 %v4033, %v4145
        %v4147 = vpop.f32.mrf.mxu0
        %4148 = vdwg.mxu0
        %v4149 = vld [vmem:[#allocation3 + $0x4] sm:$0xf]
        %v4150 = vld [vmem:[#allocation3 + $0x8] sm:$0xf]
        %v4151 = vld [vmem:[#allocation3 + $0xc] sm:$0xf]
        %v4152 = vld [vmem:[#allocation3 + $0x10] sm:$0xf]
        %v4153 = vld [vmem:[#allocation3 + $0x14] sm:$0xf]
        %v4154 = vld [vmem:[#allocation3 + $0x18] sm:$0xf]
        %v4155 = vld [vmem:[#allocation3 + $0x1c] sm:$0x1]
        %s4156 = scalar_lea.vmem %s5, 16
        %v4157 = vld [vmem:[%s4156] sm:$0xf]
        %v4158 = vld [vmem:[%s4156 + $0x4] sm:$0xf]
        %v4166 = vunpack.c.l.b16 %v4149
        %v4167 = vunpack.c.l.b16 %v4150
        %v4168 = vunpack.c.l.b16 %v4151
        %v4169 = vunpack.c.l.b16 %v4152
        %v4170 = vunpack.c.l.b16 %v4153
        %v4171 = vunpack.c.l.b16 %v4154
        %v4172 = vunpack.c.l.b16 %v4155
        %v4173 = vpack.c.b16 %v4167, %v4166
        %v4174 = vpack.c.b16 %v4169, %v4168
        %v4175 = vpack.c.b16 %v4171, %v4170
        %v4176 = vpack.c.b16 %v4172, %v4172
        %v4178 = vshrl.u32 %v4173, 16
        %v4180 = vshll.u32 %v4173, 16
        %v4182 = vrot.slane %v4180, 1
        %v4183 = vor.u32 %v4178, %v4182
        %v4185 = vshll.u32 %v4174, 16
        %v4187 = vrot.slane %v4185, 1
        %v4188 = vsel %vm1284, %v4183, %v4187
        %v4189 = vshrl.u32 %v4174, 16
        %v4191 = vor.u32 %v4189, %v4187
        %v4193 = vshll.u32 %v4175, 16
        %v4195 = vrot.slane %v4193, 1
        %v4196 = vsel %vm1284, %v4191, %v4195
        %v4197 = vshrl.u32 %v4175, 16
        %v4199 = vor.u32 %v4197, %v4195
        %v4201 = vshll.u32 %v4176, 16
        %v4203 = vrot.slane %v4201, 1
        %v4204 = vsel %vm1284, %v4199, %v4203
        %v4207 = vunpack.c.l.b16 %v4157
        %v4208 = vunpack.c.l.b16 %v4158
        %v4209 = vpack.c.b16 %v4208, %v4207
        %v4212 = vsel %vm1127, %v4188, 0
        %v4215 = vsel %vm1127, %v4196, 0
        %v4218 = vsel %vm1127, %v4204, 0
        %4220 = vmatprep.subr.bf16.mxu0 0
        %4221 = vmatpush1.bf16.msra.mxu0 0
        %4222 = vmatprep.subr.bf16.mxu0 0
        %4223 = vmatpush1.bf16.msra.mxu0 0
        %4224 = vmatprep.subr.bf16.mxu0 0
        %4225 = vmatpush1.bf16.msra.mxu0 0
        %4226 = vmatprep.subr.bf16.mxu0 0
        %4227 = vmatpush1.bf16.msra.mxu0 0
        %4228 = vmatprep.subr.bf16.mxu0 0
        %4229 = vmatpush1.bf16.msra.mxu0 0
        %4230 = vmatprep.subr.bf16.mxu0 0
        %4231 = vmatpush1.bf16.msra.mxu0 0
        %4232 = vmatprep.subr.bf16.mxu0 0
        %4233 = vmatpush1.bf16.msra.mxu0 0
        %4234 = vmatprep.subr.bf16.mxu0 0
        %4235 = vmatpush1.bf16.msra.mxu0 %v4209
        %4236 = vmatprep.subr.bf16.mxu0 0
        %4237 = vmatpush2.bf16.msra.mxu0 0
        %4238 = vmatprep.subr.bf16.mxu0 0
        %4239 = vmatpush2.bf16.msra.mxu0 0
        %4240 = vmatprep.subr.bf16.mxu0 0
        %4241 = vmatpush2.bf16.msra.mxu0 0
        %4242 = vmatprep.subr.bf16.mxu0 0
        %4243 = vmatpush2.bf16.msra.mxu0 0
        %4244 = vmatprep.subr.bf16.mxu0 0
        %4245 = vmatpush2.bf16.msra.mxu0 0
        %4246 = vmatprep.subr.bf16.mxu0 0
        %4247 = vmatpush2.bf16.msra.mxu0 0
        %4248 = vmatprep.subr.bf16.mxu0 0
        %4249 = vmatpush2.bf16.msra.mxu0 0
        %4250 = vmatprep.subr.bf16.mxu0 0
        %4251 = vmatpush2.bf16.msra.mxu0 0
        %4252 = vmatprep.mubr.bf16.mxu0 0
        %4253 = vmatmul.mubr.bf16.gmra.mxu0 %v4212
        %v4254 = vpop.f32.mrf.mxu0
        %v4255 = vadd.f32 0.0, %v4254
        %v4256 = vpop.f32.mrf.mxu0
        %v4257 = vpop.f32.mrf.mxu0
        %v4258 = vadd.f32 0.0, %v4257
        %v4259 = vpop.f32.mrf.mxu0
        %4260 = vmatprep.mubr.bf16.mxu0 0
        %4261 = vmatmul.mubr.bf16.gmra.mxu0 %v4215
        %v4262 = vpop.f32.mrf.mxu0
        %v4263 = vadd.f32 0.0, %v4262
        %v4264 = vpop.f32.mrf.mxu0
        %v4265 = vpop.f32.mrf.mxu0
        %v4266 = vadd.f32 0.0, %v4265
        %v4267 = vpop.f32.mrf.mxu0
        %4268 = vmatprep.mubr.bf16.mxu0 0
        %4269 = vmatmul.mubr.bf16.gmra.mxu0 %v4218
        %v4270 = vpop.f32.mrf.mxu0
        %v4271 = vadd.f32 0.0, %v4270
        %v4272 = vpop.f32.mrf.mxu0
        %v4273 = vpop.f32.mrf.mxu0
        %v4274 = vadd.f32 0.0, %v4273
        %v4275 = vpop.f32.mrf.mxu0
        %4276 = vdwg.mxu0
        %v4277 = vadd.f32 %v4127, %v4255
        %v4278 = vadd.f32 %v4130, %v4258
        %v4279 = vadd.f32 %v4135, %v4263
        %v4280 = vadd.f32 %v4138, %v4266
        %v4281 = vadd.f32 %v4143, %v4271
        %v4282 = vadd.f32 %v4146, %v4274
        %v4283 = vld [vmem:[#allocation3 + $0x4] sm:$0x8]
        %v4284 = vld [vmem:[#allocation3 + $0x1c] sm:$0xf]
        %s4285 = scalar_lea.vmem %s5, 24
        %v4286 = vld [vmem:[%s4285] sm:$0xf]
        %v4287 = vld [vmem:[%s4285 + $0x4] sm:$0xf]
        %v4290 = vunpack.c.l.b16 %v4283
        %v4291 = vunpack.c.l.b16 %v4284
        %v4292 = vpack.c.b16 %v4167, %v4290
        %v4293 = vpack.c.b16 %v4291, %v4291
        %v4295 = vshrl.u32 %v4292, 16
        %v4297 = vrot.slane %v4295, 3
        %v4298 = vshll.u32 %v4292, 16
        %v4300 = vrot.slane %v4298, 4
        %v4301 = vor.u32 %v4297, %v4300
        %v4302 = vrot.slane %v4189, 3
        %v4303 = vrot.slane %v4185, 4
        %v4304 = vor.u32 %v4302, %v4303
        %v4305 = vsel %vm1852, %v4301, %v4304
        %v4306 = vrot.slane %v4197, 3
        %v4307 = vrot.slane %v4193, 4
        %v4308 = vor.u32 %v4306, %v4307
        %v4309 = vsel %vm1852, %v4304, %v4308
        %v4311 = vshrl.u32 %v4293, 16
        %v4313 = vrot.slane %v4311, 3
        %v4314 = vshll.u32 %v4293, 16
        %v4316 = vrot.slane %v4314, 4
        %v4317 = vor.u32 %v4313, %v4316
        %v4318 = vsel %vm1852, %v4308, %v4317
        %v4321 = vunpack.c.l.b16 %v4286
        %v4322 = vunpack.c.l.b16 %v4287
        %v4323 = vpack.c.b16 %v4322, %v4321
        %v4326 = vsel %vm1127, %v4305, 0
        %v4329 = vsel %vm1127, %v4309, 0
        %v4332 = vsel %vm1127, %v4318, 0
        %4334 = vmatprep.subr.bf16.mxu0 0
        %4335 = vmatpush1.bf16.msra.mxu0 0
        %4336 = vmatprep.subr.bf16.mxu0 0
        %4337 = vmatpush1.bf16.msra.mxu0 0
        %4338 = vmatprep.subr.bf16.mxu0 0
        %4339 = vmatpush1.bf16.msra.mxu0 0
        %4340 = vmatprep.subr.bf16.mxu0 0
        %4341 = vmatpush1.bf16.msra.mxu0 0
        %4342 = vmatprep.subr.bf16.mxu0 0
        %4343 = vmatpush1.bf16.msra.mxu0 0
        %4344 = vmatprep.subr.bf16.mxu0 0
        %4345 = vmatpush1.bf16.msra.mxu0 0
        %4346 = vmatprep.subr.bf16.mxu0 0
        %4347 = vmatpush1.bf16.msra.mxu0 0
        %4348 = vmatprep.subr.bf16.mxu0 0
        %4349 = vmatpush1.bf16.msra.mxu0 %v4323
        %4350 = vmatprep.subr.bf16.mxu0 0
        %4351 = vmatpush2.bf16.msra.mxu0 0
        %4352 = vmatprep.subr.bf16.mxu0 0
        %4353 = vmatpush2.bf16.msra.mxu0 0
        %4354 = vmatprep.subr.bf16.mxu0 0
        %4355 = vmatpush2.bf16.msra.mxu0 0
        %4356 = vmatprep.subr.bf16.mxu0 0
        %4357 = vmatpush2.bf16.msra.mxu0 0
        %4358 = vmatprep.subr.bf16.mxu0 0
        %4359 = vmatpush2.bf16.msra.mxu0 0
        %4360 = vmatprep.subr.bf16.mxu0 0
        %4361 = vmatpush2.bf16.msra.mxu0 0
        %4362 = vmatprep.subr.bf16.mxu0 0
        %4363 = vmatpush2.bf16.msra.mxu0 0
        %4364 = vmatprep.subr.bf16.mxu0 0
        %4365 = vmatpush2.bf16.msra.mxu0 0
        %4366 = vmatprep.mubr.bf16.mxu0 0
        %4367 = vmatmul.mubr.bf16.gmra.mxu0 %v4326
        %v4368 = vpop.f32.mrf.mxu0
        %v4369 = vadd.f32 0.0, %v4368
        %v4370 = vpop.f32.mrf.mxu0
        %v4371 = vpop.f32.mrf.mxu0
        %v4372 = vadd.f32 0.0, %v4371
        %v4373 = vpop.f32.mrf.mxu0
        %4374 = vmatprep.mubr.bf16.mxu0 0
        %4375 = vmatmul.mubr.bf16.gmra.mxu0 %v4329
        %v4376 = vpop.f32.mrf.mxu0
        %v4377 = vadd.f32 0.0, %v4376
        %v4378 = vpop.f32.mrf.mxu0
        %v4379 = vpop.f32.mrf.mxu0
        %v4380 = vadd.f32 0.0, %v4379
        %v4381 = vpop.f32.mrf.mxu0
        %4382 = vmatprep.mubr.bf16.mxu0 0
        %4383 = vmatmul.mubr.bf16.gmra.mxu0 %v4332
        %v4384 = vpop.f32.mrf.mxu0
        %v4385 = vadd.f32 0.0, %v4384
        %v4386 = vpop.f32.mrf.mxu0
        %v4387 = vpop.f32.mrf.mxu0
        %v4388 = vadd.f32 0.0, %v4387
        %v4389 = vpop.f32.mrf.mxu0
        %4390 = vdwg.mxu0
        %v4391 = vadd.f32 %v4277, %v4369
        %v4392 = vadd.f32 %v4278, %v4372
        %v4393 = vadd.f32 %v4279, %v4377
        %v4394 = vadd.f32 %v4280, %v4380
        %v4395 = vadd.f32 %v4281, %v4385
        %v4396 = vadd.f32 %v4282, %v4388
        %s4397 = scalar_lea.vmem %s5, 32
        %v4398 = vld [vmem:[%s4397] sm:$0xf]
        %v4399 = vld [vmem:[%s4397 + $0x4] sm:$0xf]
        %v4400 = vpack.c.b16 %v4168, %v4167
        %v4401 = vpack.c.b16 %v4170, %v4169
        %v4402 = vpack.c.b16 %v4291, %v4171
        %v4405 = vunpack.c.l.b16 %v4398
        %v4406 = vunpack.c.l.b16 %v4399
        %v4407 = vpack.c.b16 %v4406, %v4405
        %v4410 = vsel %vm1127, %v4400, 0
        %v4413 = vsel %vm1127, %v4401, 0
        %v4416 = vsel %vm1127, %v4402, 0
        %4418 = vmatprep.subr.bf16.mxu0 0
        %4419 = vmatpush1.bf16.msra.mxu0 0
        %4420 = vmatprep.subr.bf16.mxu0 0
        %4421 = vmatpush1.bf16.msra.mxu0 0
        %4422 = vmatprep.subr.bf16.mxu0 0
        %4423 = vmatpush1.bf16.msra.mxu0 0
        %4424 = vmatprep.subr.bf16.mxu0 0
        %4425 = vmatpush1.bf16.msra.mxu0 0
        %4426 = vmatprep.subr.bf16.mxu0 0
        %4427 = vmatpush1.bf16.msra.mxu0 0
        %4428 = vmatprep.subr.bf16.mxu0 0
        %4429 = vmatpush1.bf16.msra.mxu0 0
        %4430 = vmatprep.subr.bf16.mxu0 0
        %4431 = vmatpush1.bf16.msra.mxu0 0
        %4432 = vmatprep.subr.bf16.mxu0 0
        %4433 = vmatpush1.bf16.msra.mxu0 %v4407
        %4434 = vmatprep.subr.bf16.mxu0 0
        %4435 = vmatpush2.bf16.msra.mxu0 0
        %4436 = vmatprep.subr.bf16.mxu0 0
        %4437 = vmatpush2.bf16.msra.mxu0 0
        %4438 = vmatprep.subr.bf16.mxu0 0
        %4439 = vmatpush2.bf16.msra.mxu0 0
        %4440 = vmatprep.subr.bf16.mxu0 0
        %4441 = vmatpush2.bf16.msra.mxu0 0
        %4442 = vmatprep.subr.bf16.mxu0 0
        %4443 = vmatpush2.bf16.msra.mxu0 0
        %4444 = vmatprep.subr.bf16.mxu0 0
        %4445 = vmatpush2.bf16.msra.mxu0 0
        %4446 = vmatprep.subr.bf16.mxu0 0
        %4447 = vmatpush2.bf16.msra.mxu0 0
        %4448 = vmatprep.subr.bf16.mxu0 0
        %4449 = vmatpush2.bf16.msra.mxu0 0
        %4450 = vmatprep.mubr.bf16.mxu0 0
        %4451 = vmatmul.mubr.bf16.gmra.mxu0 %v4410
        %v4452 = vpop.f32.mrf.mxu0
        %v4453 = vadd.f32 0.0, %v4452
        %v4454 = vpop.f32.mrf.mxu0
        %v4455 = vpop.f32.mrf.mxu0
        %v4456 = vadd.f32 0.0, %v4455
        %v4457 = vpop.f32.mrf.mxu0
        %4458 = vmatprep.mubr.bf16.mxu0 0
        %4459 = vmatmul.mubr.bf16.gmra.mxu0 %v4413
        %v4460 = vpop.f32.mrf.mxu0
        %v4461 = vadd.f32 0.0, %v4460
        %v4462 = vpop.f32.mrf.mxu0
        %v4463 = vpop.f32.mrf.mxu0
        %v4464 = vadd.f32 0.0, %v4463
        %v4465 = vpop.f32.mrf.mxu0
        %4466 = vmatprep.mubr.bf16.mxu0 0
        %4467 = vmatmul.mubr.bf16.gmra.mxu0 %v4416
        %v4468 = vpop.f32.mrf.mxu0
        %v4469 = vadd.f32 0.0, %v4468
        %v4470 = vpop.f32.mrf.mxu0
        %v4471 = vpop.f32.mrf.mxu0
        %v4472 = vadd.f32 0.0, %v4471
        %v4473 = vpop.f32.mrf.mxu0
        %4474 = vdwg.mxu0
        %v4475 = vadd.f32 %v4391, %v4453
        %v4476 = vadd.f32 %v4392, %v4456
        %v4477 = vadd.f32 %v4393, %v4461
        %v4478 = vadd.f32 %v4394, %v4464
        %v4479 = vadd.f32 %v4395, %v4469
        %v4480 = vadd.f32 %v4396, %v4472
        %v4481 = vld [vmem:[#allocation3 + $0x8] sm:$0xf]
        %v4482 = vld [vmem:[#allocation3 + $0xc] sm:$0xf]
        %v4483 = vld [vmem:[#allocation3 + $0x10] sm:$0xf]
        %v4484 = vld [vmem:[#allocation3 + $0x14] sm:$0xf]
        %v4485 = vld [vmem:[#allocation3 + $0x18] sm:$0xf]
        %v4486 = vld [vmem:[#allocation3 + $0x1c] sm:$0xf]
        %v4487 = vld [vmem:[#allocation3 + $0x20] sm:$0x1]
        %s4488 = scalar_lea.vmem %s5, 40
        %v4489 = vld [vmem:[%s4488] sm:$0xf]
        %v4490 = vld [vmem:[%s4488 + $0x4] sm:$0xf]
        %v4498 = vunpack.c.l.b16 %v4481
        %v4499 = vunpack.c.l.b16 %v4482
        %v4500 = vunpack.c.l.b16 %v4483
        %v4501 = vunpack.c.l.b16 %v4484
        %v4502 = vunpack.c.l.b16 %v4485
        %v4503 = vunpack.c.l.b16 %v4486
        %v4504 = vunpack.c.l.b16 %v4487
        %v4505 = vpack.c.b16 %v4499, %v4498
        %v4506 = vpack.c.b16 %v4501, %v4500
        %v4507 = vpack.c.b16 %v4503, %v4502
        %v4508 = vpack.c.b16 %v4504, %v4504
        %v4510 = vshrl.u32 %v4505, 16
        %v4512 = vshll.u32 %v4505, 16
        %v4514 = vrot.slane %v4512, 1
        %v4515 = vor.u32 %v4510, %v4514
        %v4517 = vshll.u32 %v4506, 16
        %v4519 = vrot.slane %v4517, 1
        %v4520 = vsel %vm1284, %v4515, %v4519
        %v4521 = vshrl.u32 %v4506, 16
        %v4523 = vor.u32 %v4521, %v4519
        %v4525 = vshll.u32 %v4507, 16
        %v4527 = vrot.slane %v4525, 1
        %v4528 = vsel %vm1284, %v4523, %v4527
        %v4529 = vshrl.u32 %v4507, 16
        %v4531 = vor.u32 %v4529, %v4527
        %v4533 = vshll.u32 %v4508, 16
        %v4535 = vrot.slane %v4533, 1
        %v4536 = vsel %vm1284, %v4531, %v4535
        %v4539 = vunpack.c.l.b16 %v4489
        %v4540 = vunpack.c.l.b16 %v4490
        %v4541 = vpack.c.b16 %v4540, %v4539
        %v4544 = vsel %vm1127, %v4520, 0
        %v4547 = vsel %vm1127, %v4528, 0
        %v4550 = vsel %vm1127, %v4536, 0
        %4552 = vmatprep.subr.bf16.mxu0 0
        %4553 = vmatpush1.bf16.msra.mxu0 0
        %4554 = vmatprep.subr.bf16.mxu0 0
        %4555 = vmatpush1.bf16.msra.mxu0 0
        %4556 = vmatprep.subr.bf16.mxu0 0
        %4557 = vmatpush1.bf16.msra.mxu0 0
        %4558 = vmatprep.subr.bf16.mxu0 0
        %4559 = vmatpush1.bf16.msra.mxu0 0
        %4560 = vmatprep.subr.bf16.mxu0 0
        %4561 = vmatpush1.bf16.msra.mxu0 0
        %4562 = vmatprep.subr.bf16.mxu0 0
        %4563 = vmatpush1.bf16.msra.mxu0 0
        %4564 = vmatprep.subr.bf16.mxu0 0
        %4565 = vmatpush1.bf16.msra.mxu0 0
        %4566 = vmatprep.subr.bf16.mxu0 0
        %4567 = vmatpush1.bf16.msra.mxu0 %v4541
        %4568 = vmatprep.subr.bf16.mxu0 0
        %4569 = vmatpush2.bf16.msra.mxu0 0
        %4570 = vmatprep.subr.bf16.mxu0 0
        %4571 = vmatpush2.bf16.msra.mxu0 0
        %4572 = vmatprep.subr.bf16.mxu0 0
        %4573 = vmatpush2.bf16.msra.mxu0 0
        %4574 = vmatprep.subr.bf16.mxu0 0
        %4575 = vmatpush2.bf16.msra.mxu0 0
        %4576 = vmatprep.subr.bf16.mxu0 0
        %4577 = vmatpush2.bf16.msra.mxu0 0
        %4578 = vmatprep.subr.bf16.mxu0 0
        %4579 = vmatpush2.bf16.msra.mxu0 0
        %4580 = vmatprep.subr.bf16.mxu0 0
        %4581 = vmatpush2.bf16.msra.mxu0 0
        %4582 = vmatprep.subr.bf16.mxu0 0
        %4583 = vmatpush2.bf16.msra.mxu0 0
        %4584 = vmatprep.mubr.bf16.mxu0 0
        %4585 = vmatmul.mubr.bf16.gmra.mxu0 %v4544
        %v4586 = vpop.f32.mrf.mxu0
        %v4587 = vadd.f32 0.0, %v4586
        %v4588 = vpop.f32.mrf.mxu0
        %v4589 = vpop.f32.mrf.mxu0
        %v4590 = vadd.f32 0.0, %v4589
        %v4591 = vpop.f32.mrf.mxu0
        %4592 = vmatprep.mubr.bf16.mxu0 0
        %4593 = vmatmul.mubr.bf16.gmra.mxu0 %v4547
        %v4594 = vpop.f32.mrf.mxu0
        %v4595 = vadd.f32 0.0, %v4594
        %v4596 = vpop.f32.mrf.mxu0
        %v4597 = vpop.f32.mrf.mxu0
        %v4598 = vadd.f32 0.0, %v4597
        %v4599 = vpop.f32.mrf.mxu0
        %4600 = vmatprep.mubr.bf16.mxu0 0
        %4601 = vmatmul.mubr.bf16.gmra.mxu0 %v4550
        %v4602 = vpop.f32.mrf.mxu0
        %v4603 = vadd.f32 0.0, %v4602
        %v4604 = vpop.f32.mrf.mxu0
        %v4605 = vpop.f32.mrf.mxu0
        %v4606 = vadd.f32 0.0, %v4605
        %v4607 = vpop.f32.mrf.mxu0
        %4608 = vdwg.mxu0
        %v4609 = vadd.f32 %v4475, %v4587
        %v4610 = vadd.f32 %v4476, %v4590
        %v4611 = vadd.f32 %v4477, %v4595
        %v4612 = vadd.f32 %v4478, %v4598
        %v4613 = vadd.f32 %v4479, %v4603
        %v4614 = vadd.f32 %v4480, %v4606
        %v4615 = vld [vmem:[#allocation3 + $0x8] sm:$0x8]
        %v4616 = vld [vmem:[#allocation3 + $0x20] sm:$0xf]
        %s4617 = scalar_lea.vmem %s5, 48
        %v4618 = vld [vmem:[%s4617] sm:$0xf]
        %v4619 = vld [vmem:[%s4617 + $0x4] sm:$0xf]
        %v4622 = vunpack.c.l.b16 %v4615
        %v4623 = vunpack.c.l.b16 %v4616
        %v4624 = vpack.c.b16 %v4499, %v4622
        %v4625 = vpack.c.b16 %v4623, %v4623
        %v4627 = vshrl.u32 %v4624, 16
        %v4629 = vrot.slane %v4627, 3
        %v4630 = vshll.u32 %v4624, 16
        %v4632 = vrot.slane %v4630, 4
        %v4633 = vor.u32 %v4629, %v4632
        %v4634 = vrot.slane %v4521, 3
        %v4635 = vrot.slane %v4517, 4
        %v4636 = vor.u32 %v4634, %v4635
        %v4637 = vsel %vm1852, %v4633, %v4636
        %v4638 = vrot.slane %v4529, 3
        %v4639 = vrot.slane %v4525, 4
        %v4640 = vor.u32 %v4638, %v4639
        %v4641 = vsel %vm1852, %v4636, %v4640
        %v4643 = vshrl.u32 %v4625, 16
        %v4645 = vrot.slane %v4643, 3
        %v4646 = vshll.u32 %v4625, 16
        %v4648 = vrot.slane %v4646, 4
        %v4649 = vor.u32 %v4645, %v4648
        %v4650 = vsel %vm1852, %v4640, %v4649
        %v4653 = vunpack.c.l.b16 %v4618
        %v4654 = vunpack.c.l.b16 %v4619
        %v4655 = vpack.c.b16 %v4654, %v4653
        %v4658 = vsel %vm1127, %v4637, 0
        %v4661 = vsel %vm1127, %v4641, 0
        %v4664 = vsel %vm1127, %v4650, 0
        %4666 = vmatprep.subr.bf16.mxu0 0
        %4667 = vmatpush1.bf16.msra.mxu0 0
        %4668 = vmatprep.subr.bf16.mxu0 0
        %4669 = vmatpush1.bf16.msra.mxu0 0
        %4670 = vmatprep.subr.bf16.mxu0 0
        %4671 = vmatpush1.bf16.msra.mxu0 0
        %4672 = vmatprep.subr.bf16.mxu0 0
        %4673 = vmatpush1.bf16.msra.mxu0 0
        %4674 = vmatprep.subr.bf16.mxu0 0
        %4675 = vmatpush1.bf16.msra.mxu0 0
        %4676 = vmatprep.subr.bf16.mxu0 0
        %4677 = vmatpush1.bf16.msra.mxu0 0
        %4678 = vmatprep.subr.bf16.mxu0 0
        %4679 = vmatpush1.bf16.msra.mxu0 0
        %4680 = vmatprep.subr.bf16.mxu0 0
        %4681 = vmatpush1.bf16.msra.mxu0 %v4655
        %4682 = vmatprep.subr.bf16.mxu0 0
        %4683 = vmatpush2.bf16.msra.mxu0 0
        %4684 = vmatprep.subr.bf16.mxu0 0
        %4685 = vmatpush2.bf16.msra.mxu0 0
        %4686 = vmatprep.subr.bf16.mxu0 0
        %4687 = vmatpush2.bf16.msra.mxu0 0
        %4688 = vmatprep.subr.bf16.mxu0 0
        %4689 = vmatpush2.bf16.msra.mxu0 0
        %4690 = vmatprep.subr.bf16.mxu0 0
        %4691 = vmatpush2.bf16.msra.mxu0 0
        %4692 = vmatprep.subr.bf16.mxu0 0
        %4693 = vmatpush2.bf16.msra.mxu0 0
        %4694 = vmatprep.subr.bf16.mxu0 0
        %4695 = vmatpush2.bf16.msra.mxu0 0
        %4696 = vmatprep.subr.bf16.mxu0 0
        %4697 = vmatpush2.bf16.msra.mxu0 0
        %4698 = vmatprep.mubr.bf16.mxu0 0
        %4699 = vmatmul.mubr.bf16.gmra.mxu0 %v4658
        %v4700 = vpop.f32.mrf.mxu0
        %v4701 = vadd.f32 0.0, %v4700
        %v4702 = vpop.f32.mrf.mxu0
        %v4703 = vpop.f32.mrf.mxu0
        %v4704 = vadd.f32 0.0, %v4703
        %v4705 = vpop.f32.mrf.mxu0
        %4706 = vmatprep.mubr.bf16.mxu0 0
        %4707 = vmatmul.mubr.bf16.gmra.mxu0 %v4661
        %v4708 = vpop.f32.mrf.mxu0
        %v4709 = vadd.f32 0.0, %v4708
        %v4710 = vpop.f32.mrf.mxu0
        %v4711 = vpop.f32.mrf.mxu0
        %v4712 = vadd.f32 0.0, %v4711
        %v4713 = vpop.f32.mrf.mxu0
        %4714 = vmatprep.mubr.bf16.mxu0 0
        %4715 = vmatmul.mubr.bf16.gmra.mxu0 %v4664
        %v4716 = vpop.f32.mrf.mxu0
        %v4717 = vadd.f32 0.0, %v4716
        %v4718 = vpop.f32.mrf.mxu0
        %v4719 = vpop.f32.mrf.mxu0
        %v4720 = vadd.f32 0.0, %v4719
        %v4721 = vpop.f32.mrf.mxu0
        %4722 = vdwg.mxu0
        %v4723 = vadd.f32 %v4609, %v4701
        %v4724 = vadd.f32 %v4610, %v4704
        %v4725 = vadd.f32 %v4611, %v4709
        %v4726 = vadd.f32 %v4612, %v4712
        %v4727 = vadd.f32 %v4613, %v4717
        %v4728 = vadd.f32 %v4614, %v4720
        %s4729 = scalar_lea.vmem %s5, 56
        %v4730 = vld [vmem:[%s4729] sm:$0xf]
        %v4731 = vld [vmem:[%s4729 + $0x4] sm:$0xf]
        %v4732 = vpack.c.b16 %v4500, %v4499
        %v4733 = vpack.c.b16 %v4502, %v4501
        %v4734 = vpack.c.b16 %v4623, %v4503
        %v4737 = vunpack.c.l.b16 %v4730
        %v4738 = vunpack.c.l.b16 %v4731
        %v4739 = vpack.c.b16 %v4738, %v4737
        %v4742 = vsel %vm1127, %v4732, 0
        %v4745 = vsel %vm1127, %v4733, 0
        %v4748 = vsel %vm1127, %v4734, 0
        %4750 = vmatprep.subr.bf16.mxu0 0
        %4751 = vmatpush1.bf16.msra.mxu0 0
        %4752 = vmatprep.subr.bf16.mxu0 0
        %4753 = vmatpush1.bf16.msra.mxu0 0
        %4754 = vmatprep.subr.bf16.mxu0 0
        %4755 = vmatpush1.bf16.msra.mxu0 0
        %4756 = vmatprep.subr.bf16.mxu0 0
        %4757 = vmatpush1.bf16.msra.mxu0 0
        %4758 = vmatprep.subr.bf16.mxu0 0
        %4759 = vmatpush1.bf16.msra.mxu0 0
        %4760 = vmatprep.subr.bf16.mxu0 0
        %4761 = vmatpush1.bf16.msra.mxu0 0
        %4762 = vmatprep.subr.bf16.mxu0 0
        %4763 = vmatpush1.bf16.msra.mxu0 0
        %4764 = vmatprep.subr.bf16.mxu0 0
        %4765 = vmatpush1.bf16.msra.mxu0 %v4739
        %4766 = vmatprep.subr.bf16.mxu0 0
        %4767 = vmatpush2.bf16.msra.mxu0 0
        %4768 = vmatprep.subr.bf16.mxu0 0
        %4769 = vmatpush2.bf16.msra.mxu0 0
        %4770 = vmatprep.subr.bf16.mxu0 0
        %4771 = vmatpush2.bf16.msra.mxu0 0
        %4772 = vmatprep.subr.bf16.mxu0 0
        %4773 = vmatpush2.bf16.msra.mxu0 0
        %4774 = vmatprep.subr.bf16.mxu0 0
        %4775 = vmatpush2.bf16.msra.mxu0 0
        %4776 = vmatprep.subr.bf16.mxu0 0
        %4777 = vmatpush2.bf16.msra.mxu0 0
        %4778 = vmatprep.subr.bf16.mxu0 0
        %4779 = vmatpush2.bf16.msra.mxu0 0
        %4780 = vmatprep.subr.bf16.mxu0 0
        %4781 = vmatpush2.bf16.msra.mxu0 0
        %4782 = vmatprep.mubr.bf16.mxu0 0
        %4783 = vmatmul.mubr.bf16.gmra.mxu0 %v4742
        %v4784 = vpop.f32.mrf.mxu0
        %v4785 = vadd.f32 0.0, %v4784
        %v4786 = vpop.f32.mrf.mxu0
        %v4787 = vpop.f32.mrf.mxu0
        %v4788 = vadd.f32 0.0, %v4787
        %v4789 = vpop.f32.mrf.mxu0
        %4790 = vmatprep.mubr.bf16.mxu0 0
        %4791 = vmatmul.mubr.bf16.gmra.mxu0 %v4745
        %v4792 = vpop.f32.mrf.mxu0
        %v4793 = vadd.f32 0.0, %v4792
        %v4794 = vpop.f32.mrf.mxu0
        %v4795 = vpop.f32.mrf.mxu0
        %v4796 = vadd.f32 0.0, %v4795
        %v4797 = vpop.f32.mrf.mxu0
        %4798 = vmatprep.mubr.bf16.mxu0 0
        %4799 = vmatmul.mubr.bf16.gmra.mxu0 %v4748
        %v4800 = vpop.f32.mrf.mxu0
        %v4801 = vadd.f32 0.0, %v4800
        %v4802 = vpop.f32.mrf.mxu0
        %v4803 = vpop.f32.mrf.mxu0
        %v4804 = vadd.f32 0.0, %v4803
        %v4805 = vpop.f32.mrf.mxu0
        %4806 = vdwg.mxu0
        %v4807 = vadd.f32 %v4723, %v4785
        %v4808 = vadd.f32 %v4724, %v4788
        %v4809 = vadd.f32 %v4725, %v4793
        %v4810 = vadd.f32 %v4726, %v4796
        %v4811 = vadd.f32 %v4727, %v4801
        %v4812 = vadd.f32 %v4728, %v4804
        %v4813 = vld [vmem:[#allocation3 + $0xc] sm:$0xf]
        %v4814 = vld [vmem:[#allocation3 + $0x10] sm:$0xf]
        %v4815 = vld [vmem:[#allocation3 + $0x14] sm:$0xf]
        %v4816 = vld [vmem:[#allocation3 + $0x18] sm:$0xf]
        %v4817 = vld [vmem:[#allocation3 + $0x1c] sm:$0xf]
        %v4818 = vld [vmem:[#allocation3 + $0x20] sm:$0xf]
        %v4819 = vld [vmem:[#allocation3 + $0x24] sm:$0x1]
        %s4820 = scalar_lea.vmem %s5, 64
        %v4821 = vld [vmem:[%s4820] sm:$0xf]
        %v4822 = vld [vmem:[%s4820 + $0x4] sm:$0xf]
        %v4830 = vunpack.c.l.b16 %v4813
        %v4831 = vunpack.c.l.b16 %v4814
        %v4832 = vunpack.c.l.b16 %v4815
        %v4833 = vunpack.c.l.b16 %v4816
        %v4834 = vunpack.c.l.b16 %v4817
        %v4835 = vunpack.c.l.b16 %v4818
        %v4836 = vunpack.c.l.b16 %v4819
        %v4837 = vpack.c.b16 %v4831, %v4830
        %v4838 = vpack.c.b16 %v4833, %v4832
        %v4839 = vpack.c.b16 %v4835, %v4834
        %v4840 = vpack.c.b16 %v4836, %v4836
        %v4842 = vshrl.u32 %v4837, 16
        %v4844 = vshll.u32 %v4837, 16
        %v4846 = vrot.slane %v4844, 1
        %v4847 = vor.u32 %v4842, %v4846
        %v4849 = vshll.u32 %v4838, 16
        %v4851 = vrot.slane %v4849, 1
        %v4852 = vsel %vm1284, %v4847, %v4851
        %v4853 = vshrl.u32 %v4838, 16
        %v4855 = vor.u32 %v4853, %v4851
        %v4857 = vshll.u32 %v4839, 16
        %v4859 = vrot.slane %v4857, 1
        %v4860 = vsel %vm1284, %v4855, %v4859
        %v4861 = vshrl.u32 %v4839, 16
        %v4863 = vor.u32 %v4861, %v4859
        %v4865 = vshll.u32 %v4840, 16
        %v4867 = vrot.slane %v4865, 1
        %v4868 = vsel %vm1284, %v4863, %v4867
        %v4871 = vunpack.c.l.b16 %v4821
        %v4872 = vunpack.c.l.b16 %v4822
        %v4873 = vpack.c.b16 %v4872, %v4871
        %v4876 = vsel %vm1127, %v4852, 0
        %v4879 = vsel %vm1127, %v4860, 0
        %v4882 = vsel %vm1127, %v4868, 0
        %4884 = vmatprep.subr.bf16.mxu0 0
        %4885 = vmatpush1.bf16.msra.mxu0 0
        %4886 = vmatprep.subr.bf16.mxu0 0
        %4887 = vmatpush1.bf16.msra.mxu0 0
        %4888 = vmatprep.subr.bf16.mxu0 0
        %4889 = vmatpush1.bf16.msra.mxu0 0
        %4890 = vmatprep.subr.bf16.mxu0 0
        %4891 = vmatpush1.bf16.msra.mxu0 0
        %4892 = vmatprep.subr.bf16.mxu0 0
        %4893 = vmatpush1.bf16.msra.mxu0 0
        %4894 = vmatprep.subr.bf16.mxu0 0
        %4895 = vmatpush1.bf16.msra.mxu0 0
        %4896 = vmatprep.subr.bf16.mxu0 0
        %4897 = vmatpush1.bf16.msra.mxu0 0
        %4898 = vmatprep.subr.bf16.mxu0 0
        %4899 = vmatpush1.bf16.msra.mxu0 %v4873
        %4900 = vmatprep.subr.bf16.mxu0 0
        %4901 = vmatpush2.bf16.msra.mxu0 0
        %4902 = vmatprep.subr.bf16.mxu0 0
        %4903 = vmatpush2.bf16.msra.mxu0 0
        %4904 = vmatprep.subr.bf16.mxu0 0
        %4905 = vmatpush2.bf16.msra.mxu0 0
        %4906 = vmatprep.subr.bf16.mxu0 0
        %4907 = vmatpush2.bf16.msra.mxu0 0
        %4908 = vmatprep.subr.bf16.mxu0 0
        %4909 = vmatpush2.bf16.msra.mxu0 0
        %4910 = vmatprep.subr.bf16.mxu0 0
        %4911 = vmatpush2.bf16.msra.mxu0 0
        %4912 = vmatprep.subr.bf16.mxu0 0
        %4913 = vmatpush2.bf16.msra.mxu0 0
        %4914 = vmatprep.subr.bf16.mxu0 0
        %4915 = vmatpush2.bf16.msra.mxu0 0
        %4916 = vmatprep.mubr.bf16.mxu0 0
        %4917 = vmatmul.mubr.bf16.gmra.mxu0 %v4876
        %v4918 = vpop.f32.mrf.mxu0
        %v4919 = vadd.f32 0.0, %v4918
        %v4920 = vpop.f32.mrf.mxu0
        %v4921 = vpop.f32.mrf.mxu0
        %v4922 = vadd.f32 0.0, %v4921
        %v4923 = vpop.f32.mrf.mxu0
        %4924 = vmatprep.mubr.bf16.mxu0 0
        %4925 = vmatmul.mubr.bf16.gmra.mxu0 %v4879
        %v4926 = vpop.f32.mrf.mxu0
        %v4927 = vadd.f32 0.0, %v4926
        %v4928 = vpop.f32.mrf.mxu0
        %v4929 = vpop.f32.mrf.mxu0
        %v4930 = vadd.f32 0.0, %v4929
        %v4931 = vpop.f32.mrf.mxu0
        %4932 = vmatprep.mubr.bf16.mxu0 0
        %4933 = vmatmul.mubr.bf16.gmra.mxu0 %v4882
        %v4934 = vpop.f32.mrf.mxu0
        %v4935 = vadd.f32 0.0, %v4934
        %v4936 = vpop.f32.mrf.mxu0
        %v4937 = vpop.f32.mrf.mxu0
        %v4938 = vadd.f32 0.0, %v4937
        %v4939 = vpop.f32.mrf.mxu0
        %4940 = vdwg.mxu0
        %v4941 = vadd.f32 %v4807, %v4919
        %v4942 = vadd.f32 %v4808, %v4922
        %v4943 = vadd.f32 %v4809, %v4927
        %v4944 = vadd.f32 %v4810, %v4930
        %v4945 = vadd.f32 %v4811, %v4935
        %v4946 = vadd.f32 %v4812, %v4938
        %v4947 = vld [vmem:[%s6] sm:$0x1]
        %v4949 = vlaneseq
        %v4950 = vshrl.u32 %v4949, 7
        %v4951 = vsub.s32 0, %v4950
        %v4952 = vrot.slane %v4947, %v4951
        %v4954 = vadd.f32 %v4941, %v4952
        %v4955 = vadd.f32 %v4942, %v4952
        %v4956 = vadd.f32 %v4943, %v4952
        %v4957 = vadd.f32 %v4944, %v4952
        %v4958 = vadd.f32 %v4945, %v4952
        %v4959 = vadd.f32 %v4946, %v4952
        %v4960 = vmax.f32 %v4954, 0.0
        %v4961 = vmax.f32 %v4955, 0.0
        %v4962 = vmax.f32 %v4956, 0.0
        %v4963 = vmax.f32 %v4957, 0.0
        %v4964 = vmax.f32 %v4958, 0.0
        %v4965 = vmax.f32 %v4959, 0.0
        %v4966 = vld [vmem:[%s10] sm:$0xff]
        %v4967 = vld [vmem:[%s10 + $0x8] sm:$0xff]
        %v4968 = vld [vmem:[%s10 + $0x10] sm:$0xff]
        %v4969 = vld [vmem:[%s10 + $0x18] sm:$0xff]
        %v4970 = vld [vmem:[%s10 + $0x20] sm:$0xff]
        %v4971 = vld [vmem:[%s10 + $0x28] sm:$0xff]
        %vm4972 = vcmask 257024
        %4973 = vst.msk [vmem:[#allocation4] sm:$0xf] %vm4972, 0
        %4974 = vst.msk [vmem:[#allocation4 + $0x4] sm:$0xf] %vm4972, 0
        %4975 = vst.msk [vmem:[#allocation4 + $0x20] sm:$0xf] %vm4972, 0
        %4976 = vst.msk [vmem:[#allocation4 + $0x24] sm:$0xf] %vm4972, 0
        %v4977 = vmul.f32 %v4960, %v4966
        %v4978 = vmul.f32 %v4961, %v4967
        %v4979 = vmul.f32 %v4962, %v4968
        %v4980 = vmul.f32 %v4963, %v4969
        %v4981 = vmul.f32 %v4964, %v4970
        %v4982 = vmul.f32 %v4965, %v4971
        %v4983 = vpack.c.bf16 %v4978, %v4977
        %v4984 = vpack.c.bf16 %v4980, %v4979
        %v4985 = vpack.c.bf16 %v4982, %v4981
        %v4989 = vunpack.c.l.b16 %v4983
        %v4990 = vunpack.c.h.b16 %v4983
        %v4991 = vunpack.c.l.b16 %v4984
        %v4992 = vunpack.c.h.b16 %v4984
        %v4993 = vunpack.c.l.b16 %v4985
        %v4994 = vunpack.c.h.b16 %v4985
        %v4995 = vpack.c.b16 %v4989, %v4989
        %v4996 = vpack.c.b16 %v4990, %v4990
        %v4997 = vpack.c.b16 %v4991, %v4991
        %v4998 = vpack.c.b16 %v4992, %v4992
        %v4999 = vpack.c.b16 %v4993, %v4993
        %v5000 = vpack.c.b16 %v4994, %v4994
        %5007 = vst.msk [vmem:[#allocation4 + $0x8] sm:$0xf] %vm4972, %v4995
        %5008 = vst.msk [vmem:[#allocation4 + $0xc] sm:$0xf] %vm4972, %v4996
        %5009 = vst.msk [vmem:[#allocation4 + $0x10] sm:$0xf] %vm4972, %v4997
        %5010 = vst.msk [vmem:[#allocation4 + $0x14] sm:$0xf] %vm4972, %v4998
        %5011 = vst.msk [vmem:[#allocation4 + $0x18] sm:$0xf] %vm4972, %v4999
        %5012 = vst.msk [vmem:[#allocation4 + $0x1c] sm:$0xf] %vm4972, %v5000
        %v5013 = vld [vmem:[#allocation4] sm:$0x8]
        %v5014 = vld [vmem:[#allocation4 + $0x4] sm:$0xf]
        %v5015 = vld [vmem:[#allocation4 + $0x8] sm:$0xf]
        %v5016 = vld [vmem:[#allocation4 + $0xc] sm:$0xf]
        %v5017 = vld [vmem:[#allocation4 + $0x10] sm:$0xf]
        %v5018 = vld [vmem:[#allocation4 + $0x14] sm:$0xf]
        %v5019 = vld [vmem:[#allocation4 + $0x18] sm:$0xf]
        %v5020 = vld [vmem:[%s7] sm:$0xf]
        %v5021 = vld [vmem:[%s7 + $0x4] sm:$0xf]
        %v5022 = vld [vmem:[%s7 + $0x8] sm:$0xf]
        %v5023 = vld [vmem:[%s7 + $0xc] sm:$0xf]
        %s5024 = scalar_lea.vmem %s7, 16
        %v5025 = vld [vmem:[%s5024] sm:$0xf]
        %v5026 = vld [vmem:[%s5024 + $0x4] sm:$0xf]
        %v5027 = vld [vmem:[%s5024 + $0x8] sm:$0xf]
        %v5028 = vld [vmem:[%s5024 + $0xc] sm:$0xf]
        %v5035 = vunpack.c.l.b16 %v5014
        %v5036 = vunpack.c.l.b16 %v5015
        %v5037 = vunpack.c.l.b16 %v5016
        %v5038 = vunpack.c.l.b16 %v5017
        %v5039 = vunpack.c.l.b16 %v5018
        %v5040 = vunpack.c.l.b16 %v5019
        %v5041 = vpack.c.b16 %v5036, %v5035
        %v5042 = vpack.c.b16 %v5038, %v5037
        %v5043 = vpack.c.b16 %v5040, %v5039
        %v5048 = vunpack.c.l.b16 %v5025
        %v5049 = vunpack.c.l.b16 %v5026
        %v5050 = vunpack.c.l.b16 %v5027
        %v5051 = vunpack.c.l.b16 %v5028
        %v5052 = vpack.c.b16 %v5049, %v5048
        %v5053 = vpack.c.b16 %v5051, %v5050
        %vm5056 = vcmask 261120
        %v5058 = vsel %vm5056, %v5041, 0
        %v5061 = vsel %vm5056, %v5042, 0
        %v5064 = vsel %vm5056, %v5043, 0
        %5066 = vmatprep.subr.bf16.mxu0 0
        %5067 = vmatpush1.bf16.msra.mxu0 0
        %5068 = vmatprep.subr.bf16.mxu0 0
        %5069 = vmatpush1.bf16.msra.mxu0 0
        %5070 = vmatprep.subr.bf16.mxu0 0
        %5071 = vmatpush1.bf16.msra.mxu0 0
        %5072 = vmatprep.subr.bf16.mxu0 0
        %5073 = vmatpush1.bf16.msra.mxu0 0
        %5074 = vmatprep.subr.bf16.mxu0 0
        %5075 = vmatpush1.bf16.msra.mxu0 0
        %5076 = vmatprep.subr.bf16.mxu0 0
        %5077 = vmatpush1.bf16.msra.mxu0 0
        %5078 = vmatprep.subr.bf16.mxu0 0
        %5079 = vmatpush1.bf16.msra.mxu0 %v5053
        %5080 = vmatprep.subr.bf16.mxu0 0
        %5081 = vmatpush1.bf16.msra.mxu0 %v5052
        %5082 = vmatprep.subr.bf16.mxu0 0
        %5083 = vmatpush2.bf16.msra.mxu0 0
        %5084 = vmatprep.subr.bf16.mxu0 0
        %5085 = vmatpush2.bf16.msra.mxu0 0
        %5086 = vmatprep.subr.bf16.mxu0 0
        %5087 = vmatpush2.bf16.msra.mxu0 0
        %5088 = vmatprep.subr.bf16.mxu0 0
        %5089 = vmatpush2.bf16.msra.mxu0 0
        %5090 = vmatprep.subr.bf16.mxu0 0
        %5091 = vmatpush2.bf16.msra.mxu0 0
        %5092 = vmatprep.subr.bf16.mxu0 0
        %5093 = vmatpush2.bf16.msra.mxu0 0
        %5094 = vmatprep.subr.bf16.mxu0 0
        %5095 = vmatpush2.bf16.msra.mxu0 0
        %5096 = vmatprep.subr.bf16.mxu0 0
        %5097 = vmatpush2.bf16.msra.mxu0 0
        %5098 = vmatprep.mubr.bf16.mxu0 0
        %5099 = vmatmul.mubr.bf16.gmra.mxu0 %v5058
        %v5100 = vpop.f32.mrf.mxu0
        %v5101 = vadd.f32 0.0, %v5100
        %v5102 = vpop.f32.mrf.mxu0
        %v5103 = vpop.f32.mrf.mxu0
        %v5104 = vadd.f32 0.0, %v5103
        %v5105 = vpop.f32.mrf.mxu0
        %5106 = vmatprep.mubr.bf16.mxu0 0
        %5107 = vmatmul.mubr.bf16.gmra.mxu0 %v5061
        %v5108 = vpop.f32.mrf.mxu0
        %v5109 = vadd.f32 0.0, %v5108
        %v5110 = vpop.f32.mrf.mxu0
        %v5111 = vpop.f32.mrf.mxu0
        %v5112 = vadd.f32 0.0, %v5111
        %v5113 = vpop.f32.mrf.mxu0
        %5114 = vmatprep.mubr.bf16.mxu0 0
        %5115 = vmatmul.mubr.bf16.gmra.mxu0 %v5064
        %v5116 = vpop.f32.mrf.mxu0
        %v5117 = vadd.f32 0.0, %v5116
        %v5118 = vpop.f32.mrf.mxu0
        %v5119 = vpop.f32.mrf.mxu0
        %v5120 = vadd.f32 0.0, %v5119
        %v5121 = vpop.f32.mrf.mxu0
        %5122 = vdwg.mxu0
        %v5124 = vunpack.c.l.b16 %v5013
        %v5125 = vpack.c.b16 %v5035, %v5124
        %v5126 = vpack.c.b16 %v5037, %v5036
        %v5127 = vpack.c.b16 %v5039, %v5038
        %v5128 = vpack.c.b16 %v5040, %v5040
        %v5130 = vshrl.u32 %v5125, 16
        %v5132 = vrot.slane %v5130, 3
        %v5133 = vshll.u32 %v5125, 16
        %v5135 = vrot.slane %v5133, 4
        %v5136 = vor.u32 %v5132, %v5135
        %v5138 = vshrl.u32 %v5126, 16
        %v5140 = vrot.slane %v5138, 3
        %v5141 = vshll.u32 %v5126, 16
        %v5143 = vrot.slane %v5141, 4
        %v5144 = vor.u32 %v5140, %v5143
        %v5145 = vsel %vm1852, %v5136, %v5144
        %v5147 = vshrl.u32 %v5127, 16
        %v5149 = vrot.slane %v5147, 3
        %v5150 = vshll.u32 %v5127, 16
        %v5152 = vrot.slane %v5150, 4
        %v5153 = vor.u32 %v5149, %v5152
        %v5154 = vsel %vm1852, %v5144, %v5153
        %v5156 = vshrl.u32 %v5128, 16
        %v5158 = vrot.slane %v5156, 3
        %v5159 = vshll.u32 %v5128, 16
        %v5161 = vrot.slane %v5159, 4
        %v5162 = vor.u32 %v5158, %v5161
        %v5163 = vsel %vm1852, %v5153, %v5162
        %v5168 = vunpack.c.l.b16 %v5020
        %v5169 = vunpack.c.l.b16 %v5021
        %v5170 = vunpack.c.l.b16 %v5022
        %v5171 = vunpack.c.l.b16 %v5023
        %v5172 = vpack.c.b16 %v5169, %v5168
        %v5173 = vpack.c.b16 %v5171, %v5170
        %v5177 = vsel %vm5056, %v5145, 0
        %v5180 = vsel %vm5056, %v5154, 0
        %v5183 = vsel %vm5056, %v5163, 0
        %5185 = vmatprep.subr.bf16.mxu0 0
        %5186 = vmatpush1.bf16.msra.mxu0 0
        %5187 = vmatprep.subr.bf16.mxu0 0
        %5188 = vmatpush1.bf16.msra.mxu0 0
        %5189 = vmatprep.subr.bf16.mxu0 0
        %5190 = vmatpush1.bf16.msra.mxu0 0
        %5191 = vmatprep.subr.bf16.mxu0 0
        %5192 = vmatpush1.bf16.msra.mxu0 0
        %5193 = vmatprep.subr.bf16.mxu0 0
        %5194 = vmatpush1.bf16.msra.mxu0 0
        %5195 = vmatprep.subr.bf16.mxu0 0
        %5196 = vmatpush1.bf16.msra.mxu0 0
        %5197 = vmatprep.subr.bf16.mxu0 0
        %5198 = vmatpush1.bf16.msra.mxu0 %v5173
        %5199 = vmatprep.subr.bf16.mxu0 0
        %5200 = vmatpush1.bf16.msra.mxu0 %v5172
        %5201 = vmatprep.subr.bf16.mxu0 0
        %5202 = vmatpush2.bf16.msra.mxu0 0
        %5203 = vmatprep.subr.bf16.mxu0 0
        %5204 = vmatpush2.bf16.msra.mxu0 0
        %5205 = vmatprep.subr.bf16.mxu0 0
        %5206 = vmatpush2.bf16.msra.mxu0 0
        %5207 = vmatprep.subr.bf16.mxu0 0
        %5208 = vmatpush2.bf16.msra.mxu0 0
        %5209 = vmatprep.subr.bf16.mxu0 0
        %5210 = vmatpush2.bf16.msra.mxu0 0
        %5211 = vmatprep.subr.bf16.mxu0 0
        %5212 = vmatpush2.bf16.msra.mxu0 0
        %5213 = vmatprep.subr.bf16.mxu0 0
        %5214 = vmatpush2.bf16.msra.mxu0 0
        %5215 = vmatprep.subr.bf16.mxu0 0
        %5216 = vmatpush2.bf16.msra.mxu0 0
        %5217 = vmatprep.mubr.bf16.mxu0 0
        %5218 = vmatmul.mubr.bf16.gmra.mxu0 %v5177
        %v5219 = vpop.f32.mrf.mxu0
        %v5220 = vadd.f32 %v5101, %v5219
        %v5221 = vpop.f32.mrf.mxu0
        %v5222 = vpop.f32.mrf.mxu0
        %v5223 = vadd.f32 %v5104, %v5222
        %v5224 = vpop.f32.mrf.mxu0
        %5225 = vmatprep.mubr.bf16.mxu0 0
        %5226 = vmatmul.mubr.bf16.gmra.mxu0 %v5180
        %v5227 = vpop.f32.mrf.mxu0
        %v5228 = vadd.f32 %v5109, %v5227
        %v5229 = vpop.f32.mrf.mxu0
        %v5230 = vpop.f32.mrf.mxu0
        %v5231 = vadd.f32 %v5112, %v5230
        %v5232 = vpop.f32.mrf.mxu0
        %5233 = vmatprep.mubr.bf16.mxu0 0
        %5234 = vmatmul.mubr.bf16.gmra.mxu0 %v5183
        %v5235 = vpop.f32.mrf.mxu0
        %v5236 = vadd.f32 %v5117, %v5235
        %v5237 = vpop.f32.mrf.mxu0
        %v5238 = vpop.f32.mrf.mxu0
        %v5239 = vadd.f32 %v5120, %v5238
        %v5240 = vpop.f32.mrf.mxu0
        %5241 = vdwg.mxu0
        %v5242 = vld [vmem:[#allocation4 + $0x4] sm:$0xf]
        %v5243 = vld [vmem:[#allocation4 + $0x8] sm:$0xf]
        %v5244 = vld [vmem:[#allocation4 + $0xc] sm:$0xf]
        %v5245 = vld [vmem:[#allocation4 + $0x10] sm:$0xf]
        %v5246 = vld [vmem:[#allocation4 + $0x14] sm:$0xf]
        %v5247 = vld [vmem:[#allocation4 + $0x18] sm:$0xf]
        %v5248 = vld [vmem:[#allocation4 + $0x1c] sm:$0x1]
        %s5249 = scalar_lea.vmem %s7, 32
        %v5250 = vld [vmem:[%s5249] sm:$0xf]
        %v5251 = vld [vmem:[%s5249 + $0x4] sm:$0xf]
        %v5252 = vld [vmem:[%s5249 + $0x8] sm:$0xf]
        %v5253 = vld [vmem:[%s5249 + $0xc] sm:$0xf]
        %v5261 = vunpack.c.l.b16 %v5242
        %v5262 = vunpack.c.l.b16 %v5243
        %v5263 = vunpack.c.l.b16 %v5244
        %v5264 = vunpack.c.l.b16 %v5245
        %v5265 = vunpack.c.l.b16 %v5246
        %v5266 = vunpack.c.l.b16 %v5247
        %v5267 = vunpack.c.l.b16 %v5248
        %v5268 = vpack.c.b16 %v5262, %v5261
        %v5269 = vpack.c.b16 %v5264, %v5263
        %v5270 = vpack.c.b16 %v5266, %v5265
        %v5271 = vpack.c.b16 %v5267, %v5267
        %v5273 = vshrl.u32 %v5268, 16
        %v5275 = vshll.u32 %v5268, 16
        %v5277 = vrot.slane %v5275, 1
        %v5278 = vor.u32 %v5273, %v5277
        %v5280 = vshll.u32 %v5269, 16
        %v5282 = vrot.slane %v5280, 1
        %v5283 = vsel %vm1284, %v5278, %v5282
        %v5284 = vshrl.u32 %v5269, 16
        %v5286 = vor.u32 %v5284, %v5282
        %v5288 = vshll.u32 %v5270, 16
        %v5290 = vrot.slane %v5288, 1
        %v5291 = vsel %vm1284, %v5286, %v5290
        %v5292 = vshrl.u32 %v5270, 16
        %v5294 = vor.u32 %v5292, %v5290
        %v5296 = vshll.u32 %v5271, 16
        %v5298 = vrot.slane %v5296, 1
        %v5299 = vsel %vm1284, %v5294, %v5298
        %v5304 = vunpack.c.l.b16 %v5250
        %v5305 = vunpack.c.l.b16 %v5251
        %v5306 = vunpack.c.l.b16 %v5252
        %v5307 = vunpack.c.l.b16 %v5253
        %v5308 = vpack.c.b16 %v5305, %v5304
        %v5309 = vpack.c.b16 %v5307, %v5306
        %v5313 = vsel %vm5056, %v5283, 0
        %v5316 = vsel %vm5056, %v5291, 0
        %v5319 = vsel %vm5056, %v5299, 0
        %5321 = vmatprep.subr.bf16.mxu0 0
        %5322 = vmatpush1.bf16.msra.mxu0 0
        %5323 = vmatprep.subr.bf16.mxu0 0
        %5324 = vmatpush1.bf16.msra.mxu0 0
        %5325 = vmatprep.subr.bf16.mxu0 0
        %5326 = vmatpush1.bf16.msra.mxu0 0
        %5327 = vmatprep.subr.bf16.mxu0 0
        %5328 = vmatpush1.bf16.msra.mxu0 0
        %5329 = vmatprep.subr.bf16.mxu0 0
        %5330 = vmatpush1.bf16.msra.mxu0 0
        %5331 = vmatprep.subr.bf16.mxu0 0
        %5332 = vmatpush1.bf16.msra.mxu0 0
        %5333 = vmatprep.subr.bf16.mxu0 0
        %5334 = vmatpush1.bf16.msra.mxu0 %v5309
        %5335 = vmatprep.subr.bf16.mxu0 0
        %5336 = vmatpush1.bf16.msra.mxu0 %v5308
        %5337 = vmatprep.subr.bf16.mxu0 0
        %5338 = vmatpush2.bf16.msra.mxu0 0
        %5339 = vmatprep.subr.bf16.mxu0 0
        %5340 = vmatpush2.bf16.msra.mxu0 0
        %5341 = vmatprep.subr.bf16.mxu0 0
        %5342 = vmatpush2.bf16.msra.mxu0 0
        %5343 = vmatprep.subr.bf16.mxu0 0
        %5344 = vmatpush2.bf16.msra.mxu0 0
        %5345 = vmatprep.subr.bf16.mxu0 0
        %5346 = vmatpush2.bf16.msra.mxu0 0
        %5347 = vmatprep.subr.bf16.mxu0 0
        %5348 = vmatpush2.bf16.msra.mxu0 0
        %5349 = vmatprep.subr.bf16.mxu0 0
        %5350 = vmatpush2.bf16.msra.mxu0 0
        %5351 = vmatprep.subr.bf16.mxu0 0
        %5352 = vmatpush2.bf16.msra.mxu0 0
        %5353 = vmatprep.mubr.bf16.mxu0 0
        %5354 = vmatmul.mubr.bf16.gmra.mxu0 %v5313
        %v5355 = vpop.f32.mrf.mxu0
        %v5356 = vadd.f32 0.0, %v5355
        %v5357 = vpop.f32.mrf.mxu0
        %v5358 = vpop.f32.mrf.mxu0
        %v5359 = vadd.f32 0.0, %v5358
        %v5360 = vpop.f32.mrf.mxu0
        %5361 = vmatprep.mubr.bf16.mxu0 0
        %5362 = vmatmul.mubr.bf16.gmra.mxu0 %v5316
        %v5363 = vpop.f32.mrf.mxu0
        %v5364 = vadd.f32 0.0, %v5363
        %v5365 = vpop.f32.mrf.mxu0
        %v5366 = vpop.f32.mrf.mxu0
        %v5367 = vadd.f32 0.0, %v5366
        %v5368 = vpop.f32.mrf.mxu0
        %5369 = vmatprep.mubr.bf16.mxu0 0
        %5370 = vmatmul.mubr.bf16.gmra.mxu0 %v5319
        %v5371 = vpop.f32.mrf.mxu0
        %v5372 = vadd.f32 0.0, %v5371
        %v5373 = vpop.f32.mrf.mxu0
        %v5374 = vpop.f32.mrf.mxu0
        %v5375 = vadd.f32 0.0, %v5374
        %v5376 = vpop.f32.mrf.mxu0
        %5377 = vdwg.mxu0
        %v5378 = vadd.f32 %v5220, %v5356
        %v5379 = vadd.f32 %v5223, %v5359
        %v5380 = vadd.f32 %v5228, %v5364
        %v5381 = vadd.f32 %v5231, %v5367
        %v5382 = vadd.f32 %v5236, %v5372
        %v5383 = vadd.f32 %v5239, %v5375
        %v5384 = vld [vmem:[#allocation4 + $0x4] sm:$0x8]
        %v5385 = vld [vmem:[#allocation4 + $0x1c] sm:$0xf]
        %s5386 = scalar_lea.vmem %s7, 48
        %v5387 = vld [vmem:[%s5386] sm:$0xf]
        %v5388 = vld [vmem:[%s5386 + $0x4] sm:$0xf]
        %v5389 = vld [vmem:[%s5386 + $0x8] sm:$0xf]
        %v5390 = vld [vmem:[%s5386 + $0xc] sm:$0xf]
        %v5393 = vunpack.c.l.b16 %v5384
        %v5394 = vunpack.c.l.b16 %v5385
        %v5395 = vpack.c.b16 %v5262, %v5393
        %v5396 = vpack.c.b16 %v5394, %v5394
        %v5398 = vshrl.u32 %v5395, 16
        %v5400 = vrot.slane %v5398, 3
        %v5401 = vshll.u32 %v5395, 16
        %v5403 = vrot.slane %v5401, 4
        %v5404 = vor.u32 %v5400, %v5403
        %v5405 = vrot.slane %v5284, 3
        %v5406 = vrot.slane %v5280, 4
        %v5407 = vor.u32 %v5405, %v5406
        %v5408 = vsel %vm1852, %v5404, %v5407
        %v5409 = vrot.slane %v5292, 3
        %v5410 = vrot.slane %v5288, 4
        %v5411 = vor.u32 %v5409, %v5410
        %v5412 = vsel %vm1852, %v5407, %v5411
        %v5414 = vshrl.u32 %v5396, 16
        %v5416 = vrot.slane %v5414, 3
        %v5417 = vshll.u32 %v5396, 16
        %v5419 = vrot.slane %v5417, 4
        %v5420 = vor.u32 %v5416, %v5419
        %v5421 = vsel %vm1852, %v5411, %v5420
        %v5426 = vunpack.c.l.b16 %v5387
        %v5427 = vunpack.c.l.b16 %v5388
        %v5428 = vunpack.c.l.b16 %v5389
        %v5429 = vunpack.c.l.b16 %v5390
        %v5430 = vpack.c.b16 %v5427, %v5426
        %v5431 = vpack.c.b16 %v5429, %v5428
        %v5435 = vsel %vm5056, %v5408, 0
        %v5438 = vsel %vm5056, %v5412, 0
        %v5441 = vsel %vm5056, %v5421, 0
        %5443 = vmatprep.subr.bf16.mxu0 0
        %5444 = vmatpush1.bf16.msra.mxu0 0
        %5445 = vmatprep.subr.bf16.mxu0 0
        %5446 = vmatpush1.bf16.msra.mxu0 0
        %5447 = vmatprep.subr.bf16.mxu0 0
        %5448 = vmatpush1.bf16.msra.mxu0 0
        %5449 = vmatprep.subr.bf16.mxu0 0
        %5450 = vmatpush1.bf16.msra.mxu0 0
        %5451 = vmatprep.subr.bf16.mxu0 0
        %5452 = vmatpush1.bf16.msra.mxu0 0
        %5453 = vmatprep.subr.bf16.mxu0 0
        %5454 = vmatpush1.bf16.msra.mxu0 0
        %5455 = vmatprep.subr.bf16.mxu0 0
        %5456 = vmatpush1.bf16.msra.mxu0 %v5431
        %5457 = vmatprep.subr.bf16.mxu0 0
        %5458 = vmatpush1.bf16.msra.mxu0 %v5430
        %5459 = vmatprep.subr.bf16.mxu0 0
        %5460 = vmatpush2.bf16.msra.mxu0 0
        %5461 = vmatprep.subr.bf16.mxu0 0
        %5462 = vmatpush2.bf16.msra.mxu0 0
        %5463 = vmatprep.subr.bf16.mxu0 0
        %5464 = vmatpush2.bf16.msra.mxu0 0
        %5465 = vmatprep.subr.bf16.mxu0 0
        %5466 = vmatpush2.bf16.msra.mxu0 0
        %5467 = vmatprep.subr.bf16.mxu0 0
        %5468 = vmatpush2.bf16.msra.mxu0 0
        %5469 = vmatprep.subr.bf16.mxu0 0
        %5470 = vmatpush2.bf16.msra.mxu0 0
        %5471 = vmatprep.subr.bf16.mxu0 0
        %5472 = vmatpush2.bf16.msra.mxu0 0
        %5473 = vmatprep.subr.bf16.mxu0 0
        %5474 = vmatpush2.bf16.msra.mxu0 0
        %5475 = vmatprep.mubr.bf16.mxu0 0
        %5476 = vmatmul.mubr.bf16.gmra.mxu0 %v5435
        %v5477 = vpop.f32.mrf.mxu0
        %v5478 = vadd.f32 0.0, %v5477
        %v5479 = vpop.f32.mrf.mxu0
        %v5480 = vpop.f32.mrf.mxu0
        %v5481 = vadd.f32 0.0, %v5480
        %v5482 = vpop.f32.mrf.mxu0
        %5483 = vmatprep.mubr.bf16.mxu0 0
        %5484 = vmatmul.mubr.bf16.gmra.mxu0 %v5438
        %v5485 = vpop.f32.mrf.mxu0
        %v5486 = vadd.f32 0.0, %v5485
        %v5487 = vpop.f32.mrf.mxu0
        %v5488 = vpop.f32.mrf.mxu0
        %v5489 = vadd.f32 0.0, %v5488
        %v5490 = vpop.f32.mrf.mxu0
        %5491 = vmatprep.mubr.bf16.mxu0 0
        %5492 = vmatmul.mubr.bf16.gmra.mxu0 %v5441
        %v5493 = vpop.f32.mrf.mxu0
        %v5494 = vadd.f32 0.0, %v5493
        %v5495 = vpop.f32.mrf.mxu0
        %v5496 = vpop.f32.mrf.mxu0
        %v5497 = vadd.f32 0.0, %v5496
        %v5498 = vpop.f32.mrf.mxu0
        %5499 = vdwg.mxu0
        %v5500 = vadd.f32 %v5378, %v5478
        %v5501 = vadd.f32 %v5379, %v5481
        %v5502 = vadd.f32 %v5380, %v5486
        %v5503 = vadd.f32 %v5381, %v5489
        %v5504 = vadd.f32 %v5382, %v5494
        %v5505 = vadd.f32 %v5383, %v5497
        %s5506 = scalar_lea.vmem %s7, 64
        %v5507 = vld [vmem:[%s5506] sm:$0xf]
        %v5508 = vld [vmem:[%s5506 + $0x4] sm:$0xf]
        %v5509 = vld [vmem:[%s5506 + $0x8] sm:$0xf]
        %v5510 = vld [vmem:[%s5506 + $0xc] sm:$0xf]
        %v5511 = vpack.c.b16 %v5263, %v5262
        %v5512 = vpack.c.b16 %v5265, %v5264
        %v5513 = vpack.c.b16 %v5394, %v5266
        %v5518 = vunpack.c.l.b16 %v5507
        %v5519 = vunpack.c.l.b16 %v5508
        %v5520 = vunpack.c.l.b16 %v5509
        %v5521 = vunpack.c.l.b16 %v5510
        %v5522 = vpack.c.b16 %v5519, %v5518
        %v5523 = vpack.c.b16 %v5521, %v5520
        %v5527 = vsel %vm5056, %v5511, 0
        %v5530 = vsel %vm5056, %v5512, 0
        %v5533 = vsel %vm5056, %v5513, 0
        %5535 = vmatprep.subr.bf16.mxu0 0
        %5536 = vmatpush1.bf16.msra.mxu0 0
        %5537 = vmatprep.subr.bf16.mxu0 0
        %5538 = vmatpush1.bf16.msra.mxu0 0
        %5539 = vmatprep.subr.bf16.mxu0 0
        %5540 = vmatpush1.bf16.msra.mxu0 0
        %5541 = vmatprep.subr.bf16.mxu0 0
        %5542 = vmatpush1.bf16.msra.mxu0 0
        %5543 = vmatprep.subr.bf16.mxu0 0
        %5544 = vmatpush1.bf16.msra.mxu0 0
        %5545 = vmatprep.subr.bf16.mxu0 0
        %5546 = vmatpush1.bf16.msra.mxu0 0
        %5547 = vmatprep.subr.bf16.mxu0 0
        %5548 = vmatpush1.bf16.msra.mxu0 %v5523
        %5549 = vmatprep.subr.bf16.mxu0 0
        %5550 = vmatpush1.bf16.msra.mxu0 %v5522
        %5551 = vmatprep.subr.bf16.mxu0 0
        %5552 = vmatpush2.bf16.msra.mxu0 0
        %5553 = vmatprep.subr.bf16.mxu0 0
        %5554 = vmatpush2.bf16.msra.mxu0 0
        %5555 = vmatprep.subr.bf16.mxu0 0
        %5556 = vmatpush2.bf16.msra.mxu0 0
        %5557 = vmatprep.subr.bf16.mxu0 0
        %5558 = vmatpush2.bf16.msra.mxu0 0
        %5559 = vmatprep.subr.bf16.mxu0 0
        %5560 = vmatpush2.bf16.msra.mxu0 0
        %5561 = vmatprep.subr.bf16.mxu0 0
        %5562 = vmatpush2.bf16.msra.mxu0 0
        %5563 = vmatprep.subr.bf16.mxu0 0
        %5564 = vmatpush2.bf16.msra.mxu0 0
        %5565 = vmatprep.subr.bf16.mxu0 0
        %5566 = vmatpush2.bf16.msra.mxu0 0
        %5567 = vmatprep.mubr.bf16.mxu0 0
        %5568 = vmatmul.mubr.bf16.gmra.mxu0 %v5527
        %v5569 = vpop.f32.mrf.mxu0
        %v5570 = vadd.f32 0.0, %v5569
        %v5571 = vpop.f32.mrf.mxu0
        %v5572 = vpop.f32.mrf.mxu0
        %v5573 = vadd.f32 0.0, %v5572
        %v5574 = vpop.f32.mrf.mxu0
        %5575 = vmatprep.mubr.bf16.mxu0 0
        %5576 = vmatmul.mubr.bf16.gmra.mxu0 %v5530
        %v5577 = vpop.f32.mrf.mxu0
        %v5578 = vadd.f32 0.0, %v5577
        %v5579 = vpop.f32.mrf.mxu0
        %v5580 = vpop.f32.mrf.mxu0
        %v5581 = vadd.f32 0.0, %v5580
        %v5582 = vpop.f32.mrf.mxu0
        %5583 = vmatprep.mubr.bf16.mxu0 0
        %5584 = vmatmul.mubr.bf16.gmra.mxu0 %v5533
        %v5585 = vpop.f32.mrf.mxu0
        %v5586 = vadd.f32 0.0, %v5585
        %v5587 = vpop.f32.mrf.mxu0
        %v5588 = vpop.f32.mrf.mxu0
        %v5589 = vadd.f32 0.0, %v5588
        %v5590 = vpop.f32.mrf.mxu0
        %5591 = vdwg.mxu0
        %v5592 = vadd.f32 %v5500, %v5570
        %v5593 = vadd.f32 %v5501, %v5573
        %v5594 = vadd.f32 %v5502, %v5578
        %v5595 = vadd.f32 %v5503, %v5581
        %v5596 = vadd.f32 %v5504, %v5586
        %v5597 = vadd.f32 %v5505, %v5589
        %v5598 = vld [vmem:[#allocation4 + $0x8] sm:$0xf]
        %v5599 = vld [vmem:[#allocation4 + $0xc] sm:$0xf]
        %v5600 = vld [vmem:[#allocation4 + $0x10] sm:$0xf]
        %v5601 = vld [vmem:[#allocation4 + $0x14] sm:$0xf]
        %v5602 = vld [vmem:[#allocation4 + $0x18] sm:$0xf]
        %v5603 = vld [vmem:[#allocation4 + $0x1c] sm:$0xf]
        %v5604 = vld [vmem:[#allocation4 + $0x20] sm:$0x1]
        %s5605 = scalar_lea.vmem %s7, 80
        %v5606 = vld [vmem:[%s5605] sm:$0xf]
        %v5607 = vld [vmem:[%s5605 + $0x4] sm:$0xf]
        %v5608 = vld [vmem:[%s5605 + $0x8] sm:$0xf]
        %v5609 = vld [vmem:[%s5605 + $0xc] sm:$0xf]
        %v5617 = vunpack.c.l.b16 %v5598
        %v5618 = vunpack.c.l.b16 %v5599
        %v5619 = vunpack.c.l.b16 %v5600
        %v5620 = vunpack.c.l.b16 %v5601
        %v5621 = vunpack.c.l.b16 %v5602
        %v5622 = vunpack.c.l.b16 %v5603
        %v5623 = vunpack.c.l.b16 %v5604
        %v5624 = vpack.c.b16 %v5618, %v5617
        %v5625 = vpack.c.b16 %v5620, %v5619
        %v5626 = vpack.c.b16 %v5622, %v5621
        %v5627 = vpack.c.b16 %v5623, %v5623
        %v5629 = vshrl.u32 %v5624, 16
        %v5631 = vshll.u32 %v5624, 16
        %v5633 = vrot.slane %v5631, 1
        %v5634 = vor.u32 %v5629, %v5633
        %v5636 = vshll.u32 %v5625, 16
        %v5638 = vrot.slane %v5636, 1
        %v5639 = vsel %vm1284, %v5634, %v5638
        %v5640 = vshrl.u32 %v5625, 16
        %v5642 = vor.u32 %v5640, %v5638
        %v5644 = vshll.u32 %v5626, 16
        %v5646 = vrot.slane %v5644, 1
        %v5647 = vsel %vm1284, %v5642, %v5646
        %v5648 = vshrl.u32 %v5626, 16
        %v5650 = vor.u32 %v5648, %v5646
        %v5652 = vshll.u32 %v5627, 16
        %v5654 = vrot.slane %v5652, 1
        %v5655 = vsel %vm1284, %v5650, %v5654
        %v5660 = vunpack.c.l.b16 %v5606
        %v5661 = vunpack.c.l.b16 %v5607
        %v5662 = vunpack.c.l.b16 %v5608
        %v5663 = vunpack.c.l.b16 %v5609
        %v5664 = vpack.c.b16 %v5661, %v5660
        %v5665 = vpack.c.b16 %v5663, %v5662
        %v5669 = vsel %vm5056, %v5639, 0
        %v5672 = vsel %vm5056, %v5647, 0
        %v5675 = vsel %vm5056, %v5655, 0
        %5677 = vmatprep.subr.bf16.mxu0 0
        %5678 = vmatpush1.bf16.msra.mxu0 0
        %5679 = vmatprep.subr.bf16.mxu0 0
        %5680 = vmatpush1.bf16.msra.mxu0 0
        %5681 = vmatprep.subr.bf16.mxu0 0
        %5682 = vmatpush1.bf16.msra.mxu0 0
        %5683 = vmatprep.subr.bf16.mxu0 0
        %5684 = vmatpush1.bf16.msra.mxu0 0
        %5685 = vmatprep.subr.bf16.mxu0 0
        %5686 = vmatpush1.bf16.msra.mxu0 0
        %5687 = vmatprep.subr.bf16.mxu0 0
        %5688 = vmatpush1.bf16.msra.mxu0 0
        %5689 = vmatprep.subr.bf16.mxu0 0
        %5690 = vmatpush1.bf16.msra.mxu0 %v5665
        %5691 = vmatprep.subr.bf16.mxu0 0
        %5692 = vmatpush1.bf16.msra.mxu0 %v5664
        %5693 = vmatprep.subr.bf16.mxu0 0
        %5694 = vmatpush2.bf16.msra.mxu0 0
        %5695 = vmatprep.subr.bf16.mxu0 0
        %5696 = vmatpush2.bf16.msra.mxu0 0
        %5697 = vmatprep.subr.bf16.mxu0 0
        %5698 = vmatpush2.bf16.msra.mxu0 0
        %5699 = vmatprep.subr.bf16.mxu0 0
        %5700 = vmatpush2.bf16.msra.mxu0 0
        %5701 = vmatprep.subr.bf16.mxu0 0
        %5702 = vmatpush2.bf16.msra.mxu0 0
        %5703 = vmatprep.subr.bf16.mxu0 0
        %5704 = vmatpush2.bf16.msra.mxu0 0
        %5705 = vmatprep.subr.bf16.mxu0 0
        %5706 = vmatpush2.bf16.msra.mxu0 0
        %5707 = vmatprep.subr.bf16.mxu0 0
        %5708 = vmatpush2.bf16.msra.mxu0 0
        %5709 = vmatprep.mubr.bf16.mxu0 0
        %5710 = vmatmul.mubr.bf16.gmra.mxu0 %v5669
        %v5711 = vpop.f32.mrf.mxu0
        %v5712 = vadd.f32 0.0, %v5711
        %v5713 = vpop.f32.mrf.mxu0
        %v5714 = vpop.f32.mrf.mxu0
        %v5715 = vadd.f32 0.0, %v5714
        %v5716 = vpop.f32.mrf.mxu0
        %5717 = vmatprep.mubr.bf16.mxu0 0
        %5718 = vmatmul.mubr.bf16.gmra.mxu0 %v5672
        %v5719 = vpop.f32.mrf.mxu0
        %v5720 = vadd.f32 0.0, %v5719
        %v5721 = vpop.f32.mrf.mxu0
        %v5722 = vpop.f32.mrf.mxu0
        %v5723 = vadd.f32 0.0, %v5722
        %v5724 = vpop.f32.mrf.mxu0
        %5725 = vmatprep.mubr.bf16.mxu0 0
        %5726 = vmatmul.mubr.bf16.gmra.mxu0 %v5675
        %v5727 = vpop.f32.mrf.mxu0
        %v5728 = vadd.f32 0.0, %v5727
        %v5729 = vpop.f32.mrf.mxu0
        %v5730 = vpop.f32.mrf.mxu0
        %v5731 = vadd.f32 0.0, %v5730
        %v5732 = vpop.f32.mrf.mxu0
        %5733 = vdwg.mxu0
        %v5734 = vadd.f32 %v5592, %v5712
        %v5735 = vadd.f32 %v5593, %v5715
        %v5736 = vadd.f32 %v5594, %v5720
        %v5737 = vadd.f32 %v5595, %v5723
        %v5738 = vadd.f32 %v5596, %v5728
        %v5739 = vadd.f32 %v5597, %v5731
        %v5740 = vld [vmem:[#allocation4 + $0x8] sm:$0x8]
        %v5741 = vld [vmem:[#allocation4 + $0x20] sm:$0xf]
        %s5742 = scalar_lea.vmem %s7, 96
        %v5743 = vld [vmem:[%s5742] sm:$0xf]
        %v5744 = vld [vmem:[%s5742 + $0x4] sm:$0xf]
        %v5745 = vld [vmem:[%s5742 + $0x8] sm:$0xf]
        %v5746 = vld [vmem:[%s5742 + $0xc] sm:$0xf]
        %v5749 = vunpack.c.l.b16 %v5740
        %v5750 = vunpack.c.l.b16 %v5741
        %v5751 = vpack.c.b16 %v5618, %v5749
        %v5752 = vpack.c.b16 %v5750, %v5750
        %v5754 = vshrl.u32 %v5751, 16
        %v5756 = vrot.slane %v5754, 3
        %v5757 = vshll.u32 %v5751, 16
        %v5759 = vrot.slane %v5757, 4
        %v5760 = vor.u32 %v5756, %v5759
        %v5761 = vrot.slane %v5640, 3
        %v5762 = vrot.slane %v5636, 4
        %v5763 = vor.u32 %v5761, %v5762
        %v5764 = vsel %vm1852, %v5760, %v5763
        %v5765 = vrot.slane %v5648, 3
        %v5766 = vrot.slane %v5644, 4
        %v5767 = vor.u32 %v5765, %v5766
        %v5768 = vsel %vm1852, %v5763, %v5767
        %v5770 = vshrl.u32 %v5752, 16
        %v5772 = vrot.slane %v5770, 3
        %v5773 = vshll.u32 %v5752, 16
        %v5775 = vrot.slane %v5773, 4
        %v5776 = vor.u32 %v5772, %v5775
        %v5777 = vsel %vm1852, %v5767, %v5776
        %v5782 = vunpack.c.l.b16 %v5743
        %v5783 = vunpack.c.l.b16 %v5744
        %v5784 = vunpack.c.l.b16 %v5745
        %v5785 = vunpack.c.l.b16 %v5746
        %v5786 = vpack.c.b16 %v5783, %v5782
        %v5787 = vpack.c.b16 %v5785, %v5784
        %v5791 = vsel %vm5056, %v5764, 0
        %v5794 = vsel %vm5056, %v5768, 0
        %v5797 = vsel %vm5056, %v5777, 0
        %5799 = vmatprep.subr.bf16.mxu0 0
        %5800 = vmatpush1.bf16.msra.mxu0 0
        %5801 = vmatprep.subr.bf16.mxu0 0
        %5802 = vmatpush1.bf16.msra.mxu0 0
        %5803 = vmatprep.subr.bf16.mxu0 0
        %5804 = vmatpush1.bf16.msra.mxu0 0
        %5805 = vmatprep.subr.bf16.mxu0 0
        %5806 = vmatpush1.bf16.msra.mxu0 0
        %5807 = vmatprep.subr.bf16.mxu0 0
        %5808 = vmatpush1.bf16.msra.mxu0 0
        %5809 = vmatprep.subr.bf16.mxu0 0
        %5810 = vmatpush1.bf16.msra.mxu0 0
        %5811 = vmatprep.subr.bf16.mxu0 0
        %5812 = vmatpush1.bf16.msra.mxu0 %v5787
        %5813 = vmatprep.subr.bf16.mxu0 0
        %5814 = vmatpush1.bf16.msra.mxu0 %v5786
        %5815 = vmatprep.subr.bf16.mxu0 0
        %5816 = vmatpush2.bf16.msra.mxu0 0
        %5817 = vmatprep.subr.bf16.mxu0 0
        %5818 = vmatpush2.bf16.msra.mxu0 0
        %5819 = vmatprep.subr.bf16.mxu0 0
        %5820 = vmatpush2.bf16.msra.mxu0 0
        %5821 = vmatprep.subr.bf16.mxu0 0
        %5822 = vmatpush2.bf16.msra.mxu0 0
        %5823 = vmatprep.subr.bf16.mxu0 0
        %5824 = vmatpush2.bf16.msra.mxu0 0
        %5825 = vmatprep.subr.bf16.mxu0 0
        %5826 = vmatpush2.bf16.msra.mxu0 0
        %5827 = vmatprep.subr.bf16.mxu0 0
        %5828 = vmatpush2.bf16.msra.mxu0 0
        %5829 = vmatprep.subr.bf16.mxu0 0
        %5830 = vmatpush2.bf16.msra.mxu0 0
        %5831 = vmatprep.mubr.bf16.mxu0 0
        %5832 = vmatmul.mubr.bf16.gmra.mxu0 %v5791
        %v5833 = vpop.f32.mrf.mxu0
        %v5834 = vadd.f32 0.0, %v5833
        %v5835 = vpop.f32.mrf.mxu0
        %v5836 = vpop.f32.mrf.mxu0
        %v5837 = vadd.f32 0.0, %v5836
        %v5838 = vpop.f32.mrf.mxu0
        %5839 = vmatprep.mubr.bf16.mxu0 0
        %5840 = vmatmul.mubr.bf16.gmra.mxu0 %v5794
        %v5841 = vpop.f32.mrf.mxu0
        %v5842 = vadd.f32 0.0, %v5841
        %v5843 = vpop.f32.mrf.mxu0
        %v5844 = vpop.f32.mrf.mxu0
        %v5845 = vadd.f32 0.0, %v5844
        %v5846 = vpop.f32.mrf.mxu0
        %5847 = vmatprep.mubr.bf16.mxu0 0
        %5848 = vmatmul.mubr.bf16.gmra.mxu0 %v5797
        %v5849 = vpop.f32.mrf.mxu0
        %v5850 = vadd.f32 0.0, %v5849
        %v5851 = vpop.f32.mrf.mxu0
        %v5852 = vpop.f32.mrf.mxu0
        %v5853 = vadd.f32 0.0, %v5852
        %v5854 = vpop.f32.mrf.mxu0
        %5855 = vdwg.mxu0
        %v5856 = vadd.f32 %v5734, %v5834
        %v5857 = vadd.f32 %v5735, %v5837
        %v5858 = vadd.f32 %v5736, %v5842
        %v5859 = vadd.f32 %v5737, %v5845
        %v5860 = vadd.f32 %v5738, %v5850
        %v5861 = vadd.f32 %v5739, %v5853
        %s5862 = scalar_lea.vmem %s7, 112
        %v5863 = vld [vmem:[%s5862] sm:$0xf]
        %v5864 = vld [vmem:[%s5862 + $0x4] sm:$0xf]
        %v5865 = vld [vmem:[%s5862 + $0x8] sm:$0xf]
        %v5866 = vld [vmem:[%s5862 + $0xc] sm:$0xf]
        %v5867 = vpack.c.b16 %v5619, %v5618
        %v5868 = vpack.c.b16 %v5621, %v5620
        %v5869 = vpack.c.b16 %v5750, %v5622
        %v5874 = vunpack.c.l.b16 %v5863
        %v5875 = vunpack.c.l.b16 %v5864
        %v5876 = vunpack.c.l.b16 %v5865
        %v5877 = vunpack.c.l.b16 %v5866
        %v5878 = vpack.c.b16 %v5875, %v5874
        %v5879 = vpack.c.b16 %v5877, %v5876
        %v5883 = vsel %vm5056, %v5867, 0
        %v5886 = vsel %vm5056, %v5868, 0
        %v5889 = vsel %vm5056, %v5869, 0
        %5891 = vmatprep.subr.bf16.mxu0 0
        %5892 = vmatpush1.bf16.msra.mxu0 0
        %5893 = vmatprep.subr.bf16.mxu0 0
        %5894 = vmatpush1.bf16.msra.mxu0 0
        %5895 = vmatprep.subr.bf16.mxu0 0
        %5896 = vmatpush1.bf16.msra.mxu0 0
        %5897 = vmatprep.subr.bf16.mxu0 0
        %5898 = vmatpush1.bf16.msra.mxu0 0
        %5899 = vmatprep.subr.bf16.mxu0 0
        %5900 = vmatpush1.bf16.msra.mxu0 0
        %5901 = vmatprep.subr.bf16.mxu0 0
        %5902 = vmatpush1.bf16.msra.mxu0 0
        %5903 = vmatprep.subr.bf16.mxu0 0
        %5904 = vmatpush1.bf16.msra.mxu0 %v5879
        %5905 = vmatprep.subr.bf16.mxu0 0
        %5906 = vmatpush1.bf16.msra.mxu0 %v5878
        %5907 = vmatprep.subr.bf16.mxu0 0
        %5908 = vmatpush2.bf16.msra.mxu0 0
        %5909 = vmatprep.subr.bf16.mxu0 0
        %5910 = vmatpush2.bf16.msra.mxu0 0
        %5911 = vmatprep.subr.bf16.mxu0 0
        %5912 = vmatpush2.bf16.msra.mxu0 0
        %5913 = vmatprep.subr.bf16.mxu0 0
        %5914 = vmatpush2.bf16.msra.mxu0 0
        %5915 = vmatprep.subr.bf16.mxu0 0
        %5916 = vmatpush2.bf16.msra.mxu0 0
        %5917 = vmatprep.subr.bf16.mxu0 0
        %5918 = vmatpush2.bf16.msra.mxu0 0
        %5919 = vmatprep.subr.bf16.mxu0 0
        %5920 = vmatpush2.bf16.msra.mxu0 0
        %5921 = vmatprep.subr.bf16.mxu0 0
        %5922 = vmatpush2.bf16.msra.mxu0 0
        %5923 = vmatprep.mubr.bf16.mxu0 0
        %5924 = vmatmul.mubr.bf16.gmra.mxu0 %v5883
        %v5925 = vpop.f32.mrf.mxu0
        %v5926 = vadd.f32 0.0, %v5925
        %v5927 = vpop.f32.mrf.mxu0
        %v5928 = vpop.f32.mrf.mxu0
        %v5929 = vadd.f32 0.0, %v5928
        %v5930 = vpop.f32.mrf.mxu0
        %5931 = vmatprep.mubr.bf16.mxu0 0
        %5932 = vmatmul.mubr.bf16.gmra.mxu0 %v5886
        %v5933 = vpop.f32.mrf.mxu0
        %v5934 = vadd.f32 0.0, %v5933
        %v5935 = vpop.f32.mrf.mxu0
        %v5936 = vpop.f32.mrf.mxu0
        %v5937 = vadd.f32 0.0, %v5936
        %v5938 = vpop.f32.mrf.mxu0
        %5939 = vmatprep.mubr.bf16.mxu0 0
        %5940 = vmatmul.mubr.bf16.gmra.mxu0 %v5889
        %v5941 = vpop.f32.mrf.mxu0
        %v5942 = vadd.f32 0.0, %v5941
        %v5943 = vpop.f32.mrf.mxu0
        %v5944 = vpop.f32.mrf.mxu0
        %v5945 = vadd.f32 0.0, %v5944
        %v5946 = vpop.f32.mrf.mxu0
        %5947 = vdwg.mxu0
        %v5948 = vadd.f32 %v5856, %v5926
        %v5949 = vadd.f32 %v5857, %v5929
        %v5950 = vadd.f32 %v5858, %v5934
        %v5951 = vadd.f32 %v5859, %v5937
        %v5952 = vadd.f32 %v5860, %v5942
        %v5953 = vadd.f32 %v5861, %v5945
        %v5954 = vld [vmem:[#allocation4 + $0xc] sm:$0xf]
        %v5955 = vld [vmem:[#allocation4 + $0x10] sm:$0xf]
        %v5956 = vld [vmem:[#allocation4 + $0x14] sm:$0xf]
        %v5957 = vld [vmem:[#allocation4 + $0x18] sm:$0xf]
        %v5958 = vld [vmem:[#allocation4 + $0x1c] sm:$0xf]
        %v5959 = vld [vmem:[#allocation4 + $0x20] sm:$0xf]
        %v5960 = vld [vmem:[#allocation4 + $0x24] sm:$0x1]
        %s5961 = scalar_lea.vmem %s7, 128
        %v5962 = vld [vmem:[%s5961] sm:$0xf]
        %v5963 = vld [vmem:[%s5961 + $0x4] sm:$0xf]
        %v5964 = vld [vmem:[%s5961 + $0x8] sm:$0xf]
        %v5965 = vld [vmem:[%s5961 + $0xc] sm:$0xf]
        %v5973 = vunpack.c.l.b16 %v5954
        %v5974 = vunpack.c.l.b16 %v5955
        %v5975 = vunpack.c.l.b16 %v5956
        %v5976 = vunpack.c.l.b16 %v5957
        %v5977 = vunpack.c.l.b16 %v5958
        %v5978 = vunpack.c.l.b16 %v5959
        %v5979 = vunpack.c.l.b16 %v5960
        %v5980 = vpack.c.b16 %v5974, %v5973
        %v5981 = vpack.c.b16 %v5976, %v5975
        %v5982 = vpack.c.b16 %v5978, %v5977
        %v5983 = vpack.c.b16 %v5979, %v5979
        %v5985 = vshrl.u32 %v5980, 16
        %v5987 = vshll.u32 %v5980, 16
        %v5989 = vrot.slane %v5987, 1
        %v5990 = vor.u32 %v5985, %v5989
        %v5992 = vshll.u32 %v5981, 16
        %v5994 = vrot.slane %v5992, 1
        %v5995 = vsel %vm1284, %v5990, %v5994
        %v5996 = vshrl.u32 %v5981, 16
        %v5998 = vor.u32 %v5996, %v5994
        %v6000 = vshll.u32 %v5982, 16
        %v6002 = vrot.slane %v6000, 1
        %v6003 = vsel %vm1284, %v5998, %v6002
        %v6004 = vshrl.u32 %v5982, 16
        %v6006 = vor.u32 %v6004, %v6002
        %v6008 = vshll.u32 %v5983, 16
        %v6010 = vrot.slane %v6008, 1
        %v6011 = vsel %vm1284, %v6006, %v6010
        %v6016 = vunpack.c.l.b16 %v5962
        %v6017 = vunpack.c.l.b16 %v5963
        %v6018 = vunpack.c.l.b16 %v5964
        %v6019 = vunpack.c.l.b16 %v5965
        %v6020 = vpack.c.b16 %v6017, %v6016
        %v6021 = vpack.c.b16 %v6019, %v6018
        %v6025 = vsel %vm5056, %v5995, 0
        %v6028 = vsel %vm5056, %v6003, 0
        %v6031 = vsel %vm5056, %v6011, 0
        %6033 = vmatprep.subr.bf16.mxu0 0
        %6034 = vmatpush1.bf16.msra.mxu0 0
        %6035 = vmatprep.subr.bf16.mxu0 0
        %6036 = vmatpush1.bf16.msra.mxu0 0
        %6037 = vmatprep.subr.bf16.mxu0 0
        %6038 = vmatpush1.bf16.msra.mxu0 0
        %6039 = vmatprep.subr.bf16.mxu0 0
        %6040 = vmatpush1.bf16.msra.mxu0 0
        %6041 = vmatprep.subr.bf16.mxu0 0
        %6042 = vmatpush1.bf16.msra.mxu0 0
        %6043 = vmatprep.subr.bf16.mxu0 0
        %6044 = vmatpush1.bf16.msra.mxu0 0
        %6045 = vmatprep.subr.bf16.mxu0 0
        %6046 = vmatpush1.bf16.msra.mxu0 %v6021
        %6047 = vmatprep.subr.bf16.mxu0 0
        %6048 = vmatpush1.bf16.msra.mxu0 %v6020
        %6049 = vmatprep.subr.bf16.mxu0 0
        %6050 = vmatpush2.bf16.msra.mxu0 0
        %6051 = vmatprep.subr.bf16.mxu0 0
        %6052 = vmatpush2.bf16.msra.mxu0 0
        %6053 = vmatprep.subr.bf16.mxu0 0
        %6054 = vmatpush2.bf16.msra.mxu0 0
        %6055 = vmatprep.subr.bf16.mxu0 0
        %6056 = vmatpush2.bf16.msra.mxu0 0
        %6057 = vmatprep.subr.bf16.mxu0 0
        %6058 = vmatpush2.bf16.msra.mxu0 0
        %6059 = vmatprep.subr.bf16.mxu0 0
        %6060 = vmatpush2.bf16.msra.mxu0 0
        %6061 = vmatprep.subr.bf16.mxu0 0
        %6062 = vmatpush2.bf16.msra.mxu0 0
        %6063 = vmatprep.subr.bf16.mxu0 0
        %6064 = vmatpush2.bf16.msra.mxu0 0
        %6065 = vmatprep.mubr.bf16.mxu0 0
        %6066 = vmatmul.mubr.bf16.gmra.mxu0 %v6025
        %v6067 = vpop.f32.mrf.mxu0
        %v6068 = vadd.f32 0.0, %v6067
        %v6069 = vpop.f32.mrf.mxu0
        %v6070 = vpop.f32.mrf.mxu0
        %v6071 = vadd.f32 0.0, %v6070
        %v6072 = vpop.f32.mrf.mxu0
        %6073 = vmatprep.mubr.bf16.mxu0 0
        %6074 = vmatmul.mubr.bf16.gmra.mxu0 %v6028
        %v6075 = vpop.f32.mrf.mxu0
        %v6076 = vadd.f32 0.0, %v6075
        %v6077 = vpop.f32.mrf.mxu0
        %v6078 = vpop.f32.mrf.mxu0
        %v6079 = vadd.f32 0.0, %v6078
        %v6080 = vpop.f32.mrf.mxu0
        %6081 = vmatprep.mubr.bf16.mxu0 0
        %6082 = vmatmul.mubr.bf16.gmra.mxu0 %v6031
        %v6083 = vpop.f32.mrf.mxu0
        %v6084 = vadd.f32 0.0, %v6083
        %v6085 = vpop.f32.mrf.mxu0
        %v6086 = vpop.f32.mrf.mxu0
        %v6087 = vadd.f32 0.0, %v6086
        %v6088 = vpop.f32.mrf.mxu0
        %6089 = vdwg.mxu0
        %v6090 = vadd.f32 %v5948, %v6068
        %v6091 = vadd.f32 %v5949, %v6071
        %v6092 = vadd.f32 %v5950, %v6076
        %v6093 = vadd.f32 %v5951, %v6079
        %v6094 = vadd.f32 %v5952, %v6084
        %v6095 = vadd.f32 %v5953, %v6087
        %v6096 = vld [vmem:[%s8] sm:$0x1]
        %v6098 = vlaneseq
        %v6099 = vshrl.u32 %v6098, 7
        %v6100 = vsub.s32 0, %v6099
        %v6101 = vrot.slane %v6096, %v6100
        %v6103 = vadd.f32 %v6090, %v6101
        %v6104 = vadd.f32 %v6091, %v6101
        %v6105 = vadd.f32 %v6092, %v6101
        %v6106 = vadd.f32 %v6093, %v6101
        %v6107 = vadd.f32 %v6094, %v6101
        %v6108 = vadd.f32 %v6095, %v6101
        %v6109 = vmax.f32 %v6103, 0.0
        %v6110 = vmax.f32 %v6104, 0.0
        %v6111 = vmax.f32 %v6105, 0.0
        %v6112 = vmax.f32 %v6106, 0.0
        %v6113 = vmax.f32 %v6107, 0.0
        %v6114 = vmax.f32 %v6108, 0.0
        %v6115 = vmax.f32 %v6109, %v6110
        %v6116 = vmax.f32 %v6110, %v6111
        %v6117 = vmax.f32 %v6111, %v6112
        %v6118 = vmax.f32 %v6112, %v6113
        %v6119 = vmax.f32 %v6113, %v6114
        %v6125 = vrot.slane %v6115, 1
        %v6126 = vrot.slane %v6116, 1
        %v6127 = vsel %vm3649, %v6125, %v6126
        %v6128 = vrot.slane %v6117, 1
        %v6129 = vsel %vm3649, %v6126, %v6128
        %v6130 = vrot.slane %v6118, 1
        %v6131 = vsel %vm3649, %v6128, %v6130
        %v6132 = vrot.slane %v6119, 1
        %v6133 = vsel %vm3649, %v6130, %v6132
        %v6139 = vmax.f32 %v6115, %v6127
        %v6140 = vmax.f32 %v6116, %v6129
        %v6141 = vmax.f32 %v6117, %v6131
        %v6142 = vmax.f32 %v6118, %v6133
        %v6143 = vmax.f32 %v6119, %v6132
        %v6144 = vpack.c.bf16 %v6140, %v6139
        %v6145 = vpack.c.bf16 %v6142, %v6141
        %v6146 = vpack.c.bf16 %v6143, %v6143
        %v6147 = vld [vmem:[%s12] sm:$0xf]
        %v6148 = vld [vmem:[%s12 + $0x4] sm:$0x1]
        %v6151 = vunpack.c.l.b16 %v6147
        %v6152 = vunpack.c.l.b16 %v6148
        %v6153 = vpack.c.b16 %v6152, %v6151
        %vm6154 = vcmask 318464
        %v6156 = vsel %vm6154, %v6153, 0
        %vm6158 = vcmask 1042432
        %v6159 = vsel %vm6158, 4294967295, 65535
        %v6160 = vsel %vm3810, %v6159, 0
        %v6162 = vand.u32 %v6146, %v6160
        %6164 = vmatprep.subr.bf16.mxu0 0
        %6165 = vmatpush1.bf16.msra.mxu0 0
        %6166 = vmatprep.subr.bf16.mxu0 0
        %6167 = vmatpush1.bf16.msra.mxu0 0
        %6168 = vmatprep.subr.bf16.mxu0 0
        %6169 = vmatpush1.bf16.msra.mxu0 0
        %6170 = vmatprep.subr.bf16.mxu0 0
        %6171 = vmatpush1.bf16.msra.mxu0 0
        %6172 = vmatprep.subr.bf16.mxu0 0
        %6173 = vmatpush1.bf16.msra.mxu0 0
        %6174 = vmatprep.subr.bf16.mxu0 0
        %6175 = vmatpush1.bf16.msra.mxu0 %v6162
        %6176 = vmatprep.subr.bf16.mxu0 0
        %6177 = vmatpush1.bf16.msra.mxu0 %v6145
        %6178 = vmatprep.subr.bf16.mxu0 0
        %6179 = vmatpush1.bf16.msra.mxu0 %v6144
        %6180 = vmatprep.subr.bf16.mxu0 0
        %6181 = vmatpush2.bf16.msra.mxu0 0
        %6182 = vmatprep.subr.bf16.mxu0 0
        %6183 = vmatpush2.bf16.msra.mxu0 0
        %6184 = vmatprep.subr.bf16.mxu0 0
        %6185 = vmatpush2.bf16.msra.mxu0 0
        %6186 = vmatprep.subr.bf16.mxu0 0
        %6187 = vmatpush2.bf16.msra.mxu0 0
        %6188 = vmatprep.subr.bf16.mxu0 0
        %6189 = vmatpush2.bf16.msra.mxu0 0
        %6190 = vmatprep.subr.bf16.mxu0 0
        %6191 = vmatpush2.bf16.msra.mxu0 0
        %6192 = vmatprep.subr.bf16.mxu0 0
        %6193 = vmatpush2.bf16.msra.mxu0 0
        %6194 = vmatprep.subr.bf16.mxu0 0
        %6195 = vmatpush2.bf16.msra.mxu0 0
        %6196 = vmatprep.mubr.bf16.mxu0 0
        %6197 = vmatmul.mubr.bf16.gmra.mxu0 %v6156
        %v6198 = vpop.f32.mrf.mxu0
        %v6199 = vadd.f32 0.0, %v6198
        %v6200 = vpop.f32.mrf.mxu0
        %v6201 = vpop.f32.mrf.mxu0
        %v6202 = vadd.f32 0.0, %v6201
        %v6203 = vpop.f32.mrf.mxu0
        %6204 = vdwg.mxu0
        %v6205 = vpack.c.bf16 %v6202, %v6199
        %v6206 = vld [vmem:[%s13] sm:$0xff]
        %v6207 = vld [vmem:[%s13 + $0x8] sm:$0xff]
        %v6208 = vld [vmem:[%s13 + $0x10] sm:$0xff]
        %v6209 = vld [vmem:[%s13 + $0x18] sm:$0xff]
        %s6210 = scalar_lea.vmem %s13, 32
        %v6211 = vld [vmem:[%s6210] sm:$0xff]
        %v6212 = vld [vmem:[%s6210 + $0x8] sm:$0xff]
        %v6213 = vld [vmem:[%s6210 + $0x10] sm:$0xff]
        %v6214 = vld [vmem:[%s6210 + $0x18] sm:$0xff]
        %v6216 = vshrl.u32 %v6205, 16
        %v6222 = vunpack.c.l.b16 %v6211
        %v6223 = vunpack.c.h.b16 %v6211
        %v6224 = vunpack.c.l.b16 %v6212
        %v6225 = vunpack.c.h.b16 %v6212
        %v6226 = vunpack.c.l.b16 %v6213
        %v6227 = vunpack.c.h.b16 %v6213
        %v6228 = vunpack.c.l.b16 %v6214
        %v6229 = vunpack.c.h.b16 %v6214
        %v6230 = vpack.c.b16 %v6224, %v6222
        %v6231 = vpack.c.b16 %v6225, %v6223
        %v6232 = vpack.c.b16 %v6228, %v6226
        %v6233 = vpack.c.b16 %v6229, %v6227
        %v6239 = vsel %vm5056, %v6216, 0
        %6241 = vmatprep.subr.bf16.mxu0 0
        %6242 = vmatpush1.bf16.msra.mxu0 0
        %6243 = vmatprep.subr.bf16.mxu0 0
        %6244 = vmatpush1.bf16.msra.mxu0 0
        %6245 = vmatprep.subr.bf16.mxu0 0
        %6246 = vmatpush1.bf16.msra.mxu0 0
        %6247 = vmatprep.subr.bf16.mxu0 0
        %6248 = vmatpush1.bf16.msra.mxu0 0
        %6249 = vmatprep.subr.bf16.mxu0 0
        %6250 = vmatpush1.bf16.msra.mxu0 0
        %6251 = vmatprep.subr.bf16.mxu0 0
        %6252 = vmatpush1.bf16.msra.mxu0 0
        %6253 = vmatprep.subr.bf16.mxu0 %v6233
        %6254 = vmatpush1.bf16.msra.mxu0 %v6232
        %6255 = vmatprep.subr.bf16.mxu0 %v6231
        %6256 = vmatpush1.bf16.msra.mxu0 %v6230
        %6257 = vmatprep.subr.bf16.mxu0 0
        %6258 = vmatpush2.bf16.msra.mxu0 0
        %6259 = vmatprep.subr.bf16.mxu0 0
        %6260 = vmatpush2.bf16.msra.mxu0 0
        %6261 = vmatprep.subr.bf16.mxu0 0
        %6262 = vmatpush2.bf16.msra.mxu0 0
        %6263 = vmatprep.subr.bf16.mxu0 0
        %6264 = vmatpush2.bf16.msra.mxu0 0
        %6265 = vmatprep.subr.bf16.mxu0 0
        %6266 = vmatpush2.bf16.msra.mxu0 0
        %6267 = vmatprep.subr.bf16.mxu0 0
        %6268 = vmatpush2.bf16.msra.mxu0 0
        %6269 = vmatprep.subr.bf16.mxu0 0
        %6270 = vmatpush2.bf16.msra.mxu0 0
        %6271 = vmatprep.subr.bf16.mxu0 0
        %6272 = vmatpush2.bf16.msra.mxu0 0
        %6273 = vmatprep.mubr.bf16.mxu0 0
        %6274 = vmatmul.mubr.bf16.gmra.mxu0 %v6239
        %v6275 = vpop.f32.mrf.mxu0
        %v6276 = vadd.f32 0.0, %v6275
        %v6277 = vpop.f32.mrf.mxu0
        %v6278 = vadd.f32 0.0, %v6277
        %v6279 = vpop.f32.mrf.mxu0
        %v6280 = vpop.f32.mrf.mxu0
        %6281 = vdwg.mxu0
        %v6286 = vunpack.c.l.b16 %v6206
        %v6287 = vunpack.c.h.b16 %v6206
        %v6288 = vunpack.c.l.b16 %v6207
        %v6289 = vunpack.c.h.b16 %v6207
        %v6290 = vunpack.c.l.b16 %v6208
        %v6291 = vunpack.c.h.b16 %v6208
        %v6292 = vunpack.c.l.b16 %v6209
        %v6293 = vunpack.c.h.b16 %v6209
        %v6294 = vpack.c.b16 %v6288, %v6286
        %v6295 = vpack.c.b16 %v6289, %v6287
        %v6296 = vpack.c.b16 %v6292, %v6290
        %v6297 = vpack.c.b16 %v6293, %v6291
        %v6302 = vsel %vm5056, %v6205, 0
        %6304 = vmatprep.subr.bf16.mxu0 0
        %6305 = vmatpush1.bf16.msra.mxu0 0
        %6306 = vmatprep.subr.bf16.mxu0 0
        %6307 = vmatpush1.bf16.msra.mxu0 0
        %6308 = vmatprep.subr.bf16.mxu0 0
        %6309 = vmatpush1.bf16.msra.mxu0 0
        %6310 = vmatprep.subr.bf16.mxu0 0
        %6311 = vmatpush1.bf16.msra.mxu0 0
        %6312 = vmatprep.subr.bf16.mxu0 0
        %6313 = vmatpush1.bf16.msra.mxu0 0
        %6314 = vmatprep.subr.bf16.mxu0 0
        %6315 = vmatpush1.bf16.msra.mxu0 0
        %6316 = vmatprep.subr.bf16.mxu0 %v6297
        %6317 = vmatpush1.bf16.msra.mxu0 %v6296
        %6318 = vmatprep.subr.bf16.mxu0 %v6295
        %6319 = vmatpush1.bf16.msra.mxu0 %v6294
        %6320 = vmatprep.subr.bf16.mxu0 0
        %6321 = vmatpush2.bf16.msra.mxu0 0
        %6322 = vmatprep.subr.bf16.mxu0 0
        %6323 = vmatpush2.bf16.msra.mxu0 0
        %6324 = vmatprep.subr.bf16.mxu0 0
        %6325 = vmatpush2.bf16.msra.mxu0 0
        %6326 = vmatprep.subr.bf16.mxu0 0
        %6327 = vmatpush2.bf16.msra.mxu0 0
        %6328 = vmatprep.subr.bf16.mxu0 0
        %6329 = vmatpush2.bf16.msra.mxu0 0
        %6330 = vmatprep.subr.bf16.mxu0 0
        %6331 = vmatpush2.bf16.msra.mxu0 0
        %6332 = vmatprep.subr.bf16.mxu0 0
        %6333 = vmatpush2.bf16.msra.mxu0 0
        %6334 = vmatprep.subr.bf16.mxu0 0
        %6335 = vmatpush2.bf16.msra.mxu0 0
        %6336 = vmatprep.mubr.bf16.mxu0 0
        %6337 = vmatmul.mubr.bf16.gmra.mxu0 %v6302
        %v6338 = vpop.f32.mrf.mxu0
        %v6339 = vadd.f32 %v6276, %v6338
        %v6340 = vpop.f32.mrf.mxu0
        %v6341 = vadd.f32 %v6278, %v6340
        %v6342 = vpop.f32.mrf.mxu0
        %v6343 = vpop.f32.mrf.mxu0
        %6344 = vdwg.mxu0
        %s6345 = scalar_lea.vmem %s13, 64
        %v6346 = vld [vmem:[%s6345] sm:$0xff]
        %v6347 = vld [vmem:[%s6345 + $0x8] sm:$0xff]
        %v6348 = vld [vmem:[%s6345 + $0x10] sm:$0xff]
        %v6349 = vld [vmem:[%s6345 + $0x18] sm:$0xff]
        %v6351 = vrot.slane %v6205, 1
        %v6356 = vunpack.c.l.b16 %v6346
        %v6357 = vunpack.c.h.b16 %v6346
        %v6358 = vunpack.c.l.b16 %v6347
        %v6359 = vunpack.c.h.b16 %v6347
        %v6360 = vunpack.c.l.b16 %v6348
        %v6361 = vunpack.c.h.b16 %v6348
        %v6362 = vunpack.c.l.b16 %v6349
        %v6363 = vunpack.c.h.b16 %v6349
        %v6364 = vpack.c.b16 %v6358, %v6356
        %v6365 = vpack.c.b16 %v6359, %v6357
        %v6366 = vpack.c.b16 %v6362, %v6360
        %v6367 = vpack.c.b16 %v6363, %v6361
        %v6373 = vsel %vm5056, %v6351, 0
        %6375 = vmatprep.subr.bf16.mxu0 0
        %6376 = vmatpush1.bf16.msra.mxu0 0
        %6377 = vmatprep.subr.bf16.mxu0 0
        %6378 = vmatpush1.bf16.msra.mxu0 0
        %6379 = vmatprep.subr.bf16.mxu0 0
        %6380 = vmatpush1.bf16.msra.mxu0 0
        %6381 = vmatprep.subr.bf16.mxu0 0
        %6382 = vmatpush1.bf16.msra.mxu0 0
        %6383 = vmatprep.subr.bf16.mxu0 0
        %6384 = vmatpush1.bf16.msra.mxu0 0
        %6385 = vmatprep.subr.bf16.mxu0 0
        %6386 = vmatpush1.bf16.msra.mxu0 0
        %6387 = vmatprep.subr.bf16.mxu0 %v6367
        %6388 = vmatpush1.bf16.msra.mxu0 %v6366
        %6389 = vmatprep.subr.bf16.mxu0 %v6365
        %6390 = vmatpush1.bf16.msra.mxu0 %v6364
        %6391 = vmatprep.subr.bf16.mxu0 0
        %6392 = vmatpush2.bf16.msra.mxu0 0
        %6393 = vmatprep.subr.bf16.mxu0 0
        %6394 = vmatpush2.bf16.msra.mxu0 0
        %6395 = vmatprep.subr.bf16.mxu0 0
        %6396 = vmatpush2.bf16.msra.mxu0 0
        %6397 = vmatprep.subr.bf16.mxu0 0
        %6398 = vmatpush2.bf16.msra.mxu0 0
        %6399 = vmatprep.subr.bf16.mxu0 0
        %6400 = vmatpush2.bf16.msra.mxu0 0
        %6401 = vmatprep.subr.bf16.mxu0 0
        %6402 = vmatpush2.bf16.msra.mxu0 0
        %6403 = vmatprep.subr.bf16.mxu0 0
        %6404 = vmatpush2.bf16.msra.mxu0 0
        %6405 = vmatprep.subr.bf16.mxu0 0
        %6406 = vmatpush2.bf16.msra.mxu0 0
        %6407 = vmatprep.mubr.bf16.mxu0 0
        %6408 = vmatmul.mubr.bf16.gmra.mxu0 %v6373
        %v6409 = vpop.f32.mrf.mxu0
        %v6410 = vadd.f32 0.0, %v6409
        %v6411 = vpop.f32.mrf.mxu0
        %v6412 = vadd.f32 0.0, %v6411
        %v6413 = vpop.f32.mrf.mxu0
        %v6414 = vpop.f32.mrf.mxu0
        %6415 = vdwg.mxu0
        %v6416 = vadd.f32 %v6339, %v6410
        %v6417 = vadd.f32 %v6341, %v6412
        %s6418 = scalar_lea.vmem %s13, 96
        %v6419 = vld [vmem:[%s6418] sm:$0xff]
        %v6420 = vld [vmem:[%s6418 + $0x8] sm:$0xff]
        %v6421 = vld [vmem:[%s6418 + $0x10] sm:$0xff]
        %v6422 = vld [vmem:[%s6418 + $0x18] sm:$0xff]
        %v6423 = vrot.slane %v6216, 1
        %v6428 = vunpack.c.l.b16 %v6419
        %v6429 = vunpack.c.h.b16 %v6419
        %v6430 = vunpack.c.l.b16 %v6420
        %v6431 = vunpack.c.h.b16 %v6420
        %v6432 = vunpack.c.l.b16 %v6421
        %v6433 = vunpack.c.h.b16 %v6421
        %v6434 = vunpack.c.l.b16 %v6422
        %v6435 = vunpack.c.h.b16 %v6422
        %v6436 = vpack.c.b16 %v6430, %v6428
        %v6437 = vpack.c.b16 %v6431, %v6429
        %v6438 = vpack.c.b16 %v6434, %v6432
        %v6439 = vpack.c.b16 %v6435, %v6433
        %v6445 = vsel %vm5056, %v6423, 0
        %6447 = vmatprep.subr.bf16.mxu0 0
        %6448 = vmatpush1.bf16.msra.mxu0 0
        %6449 = vmatprep.subr.bf16.mxu0 0
        %6450 = vmatpush1.bf16.msra.mxu0 0
        %6451 = vmatprep.subr.bf16.mxu0 0
        %6452 = vmatpush1.bf16.msra.mxu0 0
        %6453 = vmatprep.subr.bf16.mxu0 0
        %6454 = vmatpush1.bf16.msra.mxu0 0
        %6455 = vmatprep.subr.bf16.mxu0 0
        %6456 = vmatpush1.bf16.msra.mxu0 0
        %6457 = vmatprep.subr.bf16.mxu0 0
        %6458 = vmatpush1.bf16.msra.mxu0 0
        %6459 = vmatprep.subr.bf16.mxu0 %v6439
        %6460 = vmatpush1.bf16.msra.mxu0 %v6438
        %6461 = vmatprep.subr.bf16.mxu0 %v6437
        %6462 = vmatpush1.bf16.msra.mxu0 %v6436
        %6463 = vmatprep.subr.bf16.mxu0 0
        %6464 = vmatpush2.bf16.msra.mxu0 0
        %6465 = vmatprep.subr.bf16.mxu0 0
        %6466 = vmatpush2.bf16.msra.mxu0 0
        %6467 = vmatprep.subr.bf16.mxu0 0
        %6468 = vmatpush2.bf16.msra.mxu0 0
        %6469 = vmatprep.subr.bf16.mxu0 0
        %6470 = vmatpush2.bf16.msra.mxu0 0
        %6471 = vmatprep.subr.bf16.mxu0 0
        %6472 = vmatpush2.bf16.msra.mxu0 0
        %6473 = vmatprep.subr.bf16.mxu0 0
        %6474 = vmatpush2.bf16.msra.mxu0 0
        %6475 = vmatprep.subr.bf16.mxu0 0
        %6476 = vmatpush2.bf16.msra.mxu0 0
        %6477 = vmatprep.subr.bf16.mxu0 0
        %6478 = vmatpush2.bf16.msra.mxu0 0
        %6479 = vmatprep.mubr.bf16.mxu0 0
        %6480 = vmatmul.mubr.bf16.gmra.mxu0 %v6445
        %v6481 = vpop.f32.mrf.mxu0
        %v6482 = vadd.f32 0.0, %v6481
        %v6483 = vpop.f32.mrf.mxu0
        %v6484 = vadd.f32 0.0, %v6483
        %v6485 = vpop.f32.mrf.mxu0
        %v6486 = vpop.f32.mrf.mxu0
        %6487 = vdwg.mxu0
        %v6488 = vadd.f32 %v6416, %v6482
        %v6489 = vadd.f32 %v6417, %v6484
        %s6490 = scalar_lea.vmem %s13, 128
        %v6491 = vld [vmem:[%s6490] sm:$0xff]
        %v6492 = vld [vmem:[%s6490 + $0x8] sm:$0xff]
        %v6493 = vld [vmem:[%s6490 + $0x10] sm:$0xff]
        %v6494 = vld [vmem:[%s6490 + $0x18] sm:$0xff]
        %v6495 = vrot.slane %v6205, 2
        %v6500 = vunpack.c.l.b16 %v6491
        %v6501 = vunpack.c.h.b16 %v6491
        %v6502 = vunpack.c.l.b16 %v6492
        %v6503 = vunpack.c.h.b16 %v6492
        %v6504 = vunpack.c.l.b16 %v6493
        %v6505 = vunpack.c.h.b16 %v6493
        %v6506 = vunpack.c.l.b16 %v6494
        %v6507 = vunpack.c.h.b16 %v6494
        %v6508 = vpack.c.b16 %v6502, %v6500
        %v6509 = vpack.c.b16 %v6503, %v6501
        %v6510 = vpack.c.b16 %v6506, %v6504
        %v6511 = vpack.c.b16 %v6507, %v6505
        %v6517 = vsel %vm5056, %v6495, 0
        %6519 = vmatprep.subr.bf16.mxu0 0
        %6520 = vmatpush1.bf16.msra.mxu0 0
        %6521 = vmatprep.subr.bf16.mxu0 0
        %6522 = vmatpush1.bf16.msra.mxu0 0
        %6523 = vmatprep.subr.bf16.mxu0 0
        %6524 = vmatpush1.bf16.msra.mxu0 0
        %6525 = vmatprep.subr.bf16.mxu0 0
        %6526 = vmatpush1.bf16.msra.mxu0 0
        %6527 = vmatprep.subr.bf16.mxu0 0
        %6528 = vmatpush1.bf16.msra.mxu0 0
        %6529 = vmatprep.subr.bf16.mxu0 0
        %6530 = vmatpush1.bf16.msra.mxu0 0
        %6531 = vmatprep.subr.bf16.mxu0 %v6511
        %6532 = vmatpush1.bf16.msra.mxu0 %v6510
        %6533 = vmatprep.subr.bf16.mxu0 %v6509
        %6534 = vmatpush1.bf16.msra.mxu0 %v6508
        %6535 = vmatprep.subr.bf16.mxu0 0
        %6536 = vmatpush2.bf16.msra.mxu0 0
        %6537 = vmatprep.subr.bf16.mxu0 0
        %6538 = vmatpush2.bf16.msra.mxu0 0
        %6539 = vmatprep.subr.bf16.mxu0 0
        %6540 = vmatpush2.bf16.msra.mxu0 0
        %6541 = vmatprep.subr.bf16.mxu0 0
        %6542 = vmatpush2.bf16.msra.mxu0 0
        %6543 = vmatprep.subr.bf16.mxu0 0
        %6544 = vmatpush2.bf16.msra.mxu0 0
        %6545 = vmatprep.subr.bf16.mxu0 0
        %6546 = vmatpush2.bf16.msra.mxu0 0
        %6547 = vmatprep.subr.bf16.mxu0 0
        %6548 = vmatpush2.bf16.msra.mxu0 0
        %6549 = vmatprep.subr.bf16.mxu0 0
        %6550 = vmatpush2.bf16.msra.mxu0 0
        %6551 = vmatprep.mubr.bf16.mxu0 0
        %6552 = vmatmul.mubr.bf16.gmra.mxu0 %v6517
        %v6553 = vpop.f32.mrf.mxu0
        %v6554 = vadd.f32 0.0, %v6553
        %v6555 = vpop.f32.mrf.mxu0
        %v6556 = vadd.f32 0.0, %v6555
        %v6557 = vpop.f32.mrf.mxu0
        %v6558 = vpop.f32.mrf.mxu0
        %6559 = vdwg.mxu0
        %v6560 = vadd.f32 %v6488, %v6554
        %v6561 = vadd.f32 %v6489, %v6556
        %s6562 = scalar_lea.vmem %s13, 160
        %v6563 = vld [vmem:[%s6562] sm:$0xff]
        %v6564 = vld [vmem:[%s6562 + $0x8] sm:$0xff]
        %v6565 = vld [vmem:[%s6562 + $0x10] sm:$0xff]
        %v6566 = vld [vmem:[%s6562 + $0x18] sm:$0xff]
        %v6567 = vrot.slane %v6216, 2
        %v6572 = vunpack.c.l.b16 %v6563
        %v6573 = vunpack.c.h.b16 %v6563
        %v6574 = vunpack.c.l.b16 %v6564
        %v6575 = vunpack.c.h.b16 %v6564
        %v6576 = vunpack.c.l.b16 %v6565
        %v6577 = vunpack.c.h.b16 %v6565
        %v6578 = vunpack.c.l.b16 %v6566
        %v6579 = vunpack.c.h.b16 %v6566
        %v6580 = vpack.c.b16 %v6574, %v6572
        %v6581 = vpack.c.b16 %v6575, %v6573
        %v6582 = vpack.c.b16 %v6578, %v6576
        %v6583 = vpack.c.b16 %v6579, %v6577
        %v6589 = vsel %vm5056, %v6567, 0
        %6591 = vmatprep.subr.bf16.mxu0 0
        %6592 = vmatpush1.bf16.msra.mxu0 0
        %6593 = vmatprep.subr.bf16.mxu0 0
        %6594 = vmatpush1.bf16.msra.mxu0 0
        %6595 = vmatprep.subr.bf16.mxu0 0
        %6596 = vmatpush1.bf16.msra.mxu0 0
        %6597 = vmatprep.subr.bf16.mxu0 0
        %6598 = vmatpush1.bf16.msra.mxu0 0
        %6599 = vmatprep.subr.bf16.mxu0 0
        %6600 = vmatpush1.bf16.msra.mxu0 0
        %6601 = vmatprep.subr.bf16.mxu0 0
        %6602 = vmatpush1.bf16.msra.mxu0 0
        %6603 = vmatprep.subr.bf16.mxu0 %v6583
        %6604 = vmatpush1.bf16.msra.mxu0 %v6582
        %6605 = vmatprep.subr.bf16.mxu0 %v6581
        %6606 = vmatpush1.bf16.msra.mxu0 %v6580
        %6607 = vmatprep.subr.bf16.mxu0 0
        %6608 = vmatpush2.bf16.msra.mxu0 0
        %6609 = vmatprep.subr.bf16.mxu0 0
        %6610 = vmatpush2.bf16.msra.mxu0 0
        %6611 = vmatprep.subr.bf16.mxu0 0
        %6612 = vmatpush2.bf16.msra.mxu0 0
        %6613 = vmatprep.subr.bf16.mxu0 0
        %6614 = vmatpush2.bf16.msra.mxu0 0
        %6615 = vmatprep.subr.bf16.mxu0 0
        %6616 = vmatpush2.bf16.msra.mxu0 0
        %6617 = vmatprep.subr.bf16.mxu0 0
        %6618 = vmatpush2.bf16.msra.mxu0 0
        %6619 = vmatprep.subr.bf16.mxu0 0
        %6620 = vmatpush2.bf16.msra.mxu0 0
        %6621 = vmatprep.subr.bf16.mxu0 0
        %6622 = vmatpush2.bf16.msra.mxu0 0
        %6623 = vmatprep.mubr.bf16.mxu0 0
        %6624 = vmatmul.mubr.bf16.gmra.mxu0 %v6589
        %v6625 = vpop.f32.mrf.mxu0
        %v6626 = vadd.f32 0.0, %v6625
        %v6627 = vpop.f32.mrf.mxu0
        %v6628 = vadd.f32 0.0, %v6627
        %v6629 = vpop.f32.mrf.mxu0
        %v6630 = vpop.f32.mrf.mxu0
        %6631 = vdwg.mxu0
        %v6632 = vadd.f32 %v6560, %v6626
        %v6633 = vadd.f32 %v6561, %v6628
        %s6634 = scalar_lea.vmem %s13, 192
        %v6635 = vld [vmem:[%s6634] sm:$0xff]
        %v6636 = vld [vmem:[%s6634 + $0x8] sm:$0xff]
        %v6637 = vld [vmem:[%s6634 + $0x10] sm:$0xff]
        %v6638 = vld [vmem:[%s6634 + $0x18] sm:$0xff]
        %v6639 = vrot.slane %v6205, 3
        %v6644 = vunpack.c.l.b16 %v6635
        %v6645 = vunpack.c.h.b16 %v6635
        %v6646 = vunpack.c.l.b16 %v6636
        %v6647 = vunpack.c.h.b16 %v6636
        %v6648 = vunpack.c.l.b16 %v6637
        %v6649 = vunpack.c.h.b16 %v6637
        %v6650 = vunpack.c.l.b16 %v6638
        %v6651 = vunpack.c.h.b16 %v6638
        %v6652 = vpack.c.b16 %v6646, %v6644
        %v6653 = vpack.c.b16 %v6647, %v6645
        %v6654 = vpack.c.b16 %v6650, %v6648
        %v6655 = vpack.c.b16 %v6651, %v6649
        %v6661 = vsel %vm5056, %v6639, 0
        %6663 = vmatprep.subr.bf16.mxu0 0
        %6664 = vmatpush1.bf16.msra.mxu0 0
        %6665 = vmatprep.subr.bf16.mxu0 0
        %6666 = vmatpush1.bf16.msra.mxu0 0
        %6667 = vmatprep.subr.bf16.mxu0 0
        %6668 = vmatpush1.bf16.msra.mxu0 0
        %6669 = vmatprep.subr.bf16.mxu0 0
        %6670 = vmatpush1.bf16.msra.mxu0 0
        %6671 = vmatprep.subr.bf16.mxu0 0
        %6672 = vmatpush1.bf16.msra.mxu0 0
        %6673 = vmatprep.subr.bf16.mxu0 0
        %6674 = vmatpush1.bf16.msra.mxu0 0
        %6675 = vmatprep.subr.bf16.mxu0 %v6655
        %6676 = vmatpush1.bf16.msra.mxu0 %v6654
        %6677 = vmatprep.subr.bf16.mxu0 %v6653
        %6678 = vmatpush1.bf16.msra.mxu0 %v6652
        %6679 = vmatprep.subr.bf16.mxu0 0
        %6680 = vmatpush2.bf16.msra.mxu0 0
        %6681 = vmatprep.subr.bf16.mxu0 0
        %6682 = vmatpush2.bf16.msra.mxu0 0
        %6683 = vmatprep.subr.bf16.mxu0 0
        %6684 = vmatpush2.bf16.msra.mxu0 0
        %6685 = vmatprep.subr.bf16.mxu0 0
        %6686 = vmatpush2.bf16.msra.mxu0 0
        %6687 = vmatprep.subr.bf16.mxu0 0
        %6688 = vmatpush2.bf16.msra.mxu0 0
        %6689 = vmatprep.subr.bf16.mxu0 0
        %6690 = vmatpush2.bf16.msra.mxu0 0
        %6691 = vmatprep.subr.bf16.mxu0 0
        %6692 = vmatpush2.bf16.msra.mxu0 0
        %6693 = vmatprep.subr.bf16.mxu0 0
        %6694 = vmatpush2.bf16.msra.mxu0 0
        %6695 = vmatprep.mubr.bf16.mxu0 0
        %6696 = vmatmul.mubr.bf16.gmra.mxu0 %v6661
        %v6697 = vpop.f32.mrf.mxu0
        %v6698 = vadd.f32 0.0, %v6697
        %v6699 = vpop.f32.mrf.mxu0
        %v6700 = vadd.f32 0.0, %v6699
        %v6701 = vpop.f32.mrf.mxu0
        %v6702 = vpop.f32.mrf.mxu0
        %6703 = vdwg.mxu0
        %v6704 = vadd.f32 %v6632, %v6698
        %v6705 = vadd.f32 %v6633, %v6700
        %s6706 = scalar_lea.vmem %s13, 224
        %v6707 = vld [vmem:[%s6706] sm:$0xff]
        %v6708 = vld [vmem:[%s6706 + $0x8] sm:$0xff]
        %v6709 = vld [vmem:[%s6706 + $0x10] sm:$0xff]
        %v6710 = vld [vmem:[%s6706 + $0x18] sm:$0xff]
        %v6711 = vrot.slane %v6216, 3
        %v6716 = vunpack.c.l.b16 %v6707
        %v6717 = vunpack.c.h.b16 %v6707
        %v6718 = vunpack.c.l.b16 %v6708
        %v6719 = vunpack.c.h.b16 %v6708
        %v6720 = vunpack.c.l.b16 %v6709
        %v6721 = vunpack.c.h.b16 %v6709
        %v6722 = vunpack.c.l.b16 %v6710
        %v6723 = vunpack.c.h.b16 %v6710
        %v6724 = vpack.c.b16 %v6718, %v6716
        %v6725 = vpack.c.b16 %v6719, %v6717
        %v6726 = vpack.c.b16 %v6722, %v6720
        %v6727 = vpack.c.b16 %v6723, %v6721
        %v6733 = vsel %vm5056, %v6711, 0
        %6735 = vmatprep.subr.bf16.mxu0 0
        %6736 = vmatpush1.bf16.msra.mxu0 0
        %6737 = vmatprep.subr.bf16.mxu0 0
        %6738 = vmatpush1.bf16.msra.mxu0 0
        %6739 = vmatprep.subr.bf16.mxu0 0
        %6740 = vmatpush1.bf16.msra.mxu0 0
        %6741 = vmatprep.subr.bf16.mxu0 0
        %6742 = vmatpush1.bf16.msra.mxu0 0
        %6743 = vmatprep.subr.bf16.mxu0 0
        %6744 = vmatpush1.bf16.msra.mxu0 0
        %6745 = vmatprep.subr.bf16.mxu0 0
        %6746 = vmatpush1.bf16.msra.mxu0 0
        %6747 = vmatprep.subr.bf16.mxu0 %v6727
        %6748 = vmatpush1.bf16.msra.mxu0 %v6726
        %6749 = vmatprep.subr.bf16.mxu0 %v6725
        %6750 = vmatpush1.bf16.msra.mxu0 %v6724
        %6751 = vmatprep.subr.bf16.mxu0 0
        %6752 = vmatpush2.bf16.msra.mxu0 0
        %6753 = vmatprep.subr.bf16.mxu0 0
        %6754 = vmatpush2.bf16.msra.mxu0 0
        %6755 = vmatprep.subr.bf16.mxu0 0
        %6756 = vmatpush2.bf16.msra.mxu0 0
        %6757 = vmatprep.subr.bf16.mxu0 0
        %6758 = vmatpush2.bf16.msra.mxu0 0
        %6759 = vmatprep.subr.bf16.mxu0 0
        %6760 = vmatpush2.bf16.msra.mxu0 0
        %6761 = vmatprep.subr.bf16.mxu0 0
        %6762 = vmatpush2.bf16.msra.mxu0 0
        %6763 = vmatprep.subr.bf16.mxu0 0
        %6764 = vmatpush2.bf16.msra.mxu0 0
        %6765 = vmatprep.subr.bf16.mxu0 0
        %6766 = vmatpush2.bf16.msra.mxu0 0
        %6767 = vmatprep.mubr.bf16.mxu0 0
        %6768 = vmatmul.mubr.bf16.gmra.mxu0 %v6733
        %v6769 = vpop.f32.mrf.mxu0
        %v6770 = vadd.f32 0.0, %v6769
        %v6771 = vpop.f32.mrf.mxu0
        %v6772 = vadd.f32 0.0, %v6771
        %v6773 = vpop.f32.mrf.mxu0
        %v6774 = vpop.f32.mrf.mxu0
        %6775 = vdwg.mxu0
        %v6776 = vadd.f32 %v6704, %v6770
        %v6777 = vadd.f32 %v6705, %v6772
        %s6778 = scalar_lea.vmem %s13, 256
        %v6779 = vld [vmem:[%s6778] sm:$0xff]
        %v6780 = vld [vmem:[%s6778 + $0x8] sm:$0xff]
        %v6781 = vld [vmem:[%s6778 + $0x10] sm:$0xff]
        %v6782 = vld [vmem:[%s6778 + $0x18] sm:$0xff]
        %v6783 = vrot.slane %v6205, 4
        %v6788 = vunpack.c.l.b16 %v6779
        %v6789 = vunpack.c.h.b16 %v6779
        %v6790 = vunpack.c.l.b16 %v6780
        %v6791 = vunpack.c.h.b16 %v6780
        %v6792 = vunpack.c.l.b16 %v6781
        %v6793 = vunpack.c.h.b16 %v6781
        %v6794 = vunpack.c.l.b16 %v6782
        %v6795 = vunpack.c.h.b16 %v6782
        %v6796 = vpack.c.b16 %v6790, %v6788
        %v6797 = vpack.c.b16 %v6791, %v6789
        %v6798 = vpack.c.b16 %v6794, %v6792
        %v6799 = vpack.c.b16 %v6795, %v6793
        %v6805 = vsel %vm5056, %v6783, 0
        %6807 = vmatprep.subr.bf16.mxu0 0
        %6808 = vmatpush1.bf16.msra.mxu0 0
        %6809 = vmatprep.subr.bf16.mxu0 0
        %6810 = vmatpush1.bf16.msra.mxu0 0
        %6811 = vmatprep.subr.bf16.mxu0 0
        %6812 = vmatpush1.bf16.msra.mxu0 0
        %6813 = vmatprep.subr.bf16.mxu0 0
        %6814 = vmatpush1.bf16.msra.mxu0 0
        %6815 = vmatprep.subr.bf16.mxu0 0
        %6816 = vmatpush1.bf16.msra.mxu0 0
        %6817 = vmatprep.subr.bf16.mxu0 0
        %6818 = vmatpush1.bf16.msra.mxu0 0
        %6819 = vmatprep.subr.bf16.mxu0 %v6799
        %6820 = vmatpush1.bf16.msra.mxu0 %v6798
        %6821 = vmatprep.subr.bf16.mxu0 %v6797
        %6822 = vmatpush1.bf16.msra.mxu0 %v6796
        %6823 = vmatprep.subr.bf16.mxu0 0
        %6824 = vmatpush2.bf16.msra.mxu0 0
        %6825 = vmatprep.subr.bf16.mxu0 0
        %6826 = vmatpush2.bf16.msra.mxu0 0
        %6827 = vmatprep.subr.bf16.mxu0 0
        %6828 = vmatpush2.bf16.msra.mxu0 0
        %6829 = vmatprep.subr.bf16.mxu0 0
        %6830 = vmatpush2.bf16.msra.mxu0 0
        %6831 = vmatprep.subr.bf16.mxu0 0
        %6832 = vmatpush2.bf16.msra.mxu0 0
        %6833 = vmatprep.subr.bf16.mxu0 0
        %6834 = vmatpush2.bf16.msra.mxu0 0
        %6835 = vmatprep.subr.bf16.mxu0 0
        %6836 = vmatpush2.bf16.msra.mxu0 0
        %6837 = vmatprep.subr.bf16.mxu0 0
        %6838 = vmatpush2.bf16.msra.mxu0 0
        %6839 = vmatprep.mubr.bf16.mxu0 0
        %6840 = vmatmul.mubr.bf16.gmra.mxu0 %v6805
        %v6841 = vpop.f32.mrf.mxu0
        %v6842 = vadd.f32 0.0, %v6841
        %v6843 = vpop.f32.mrf.mxu0
        %v6844 = vadd.f32 0.0, %v6843
        %v6845 = vpop.f32.mrf.mxu0
        %v6846 = vpop.f32.mrf.mxu0
        %6847 = vdwg.mxu0
        %v6848 = vadd.f32 %v6776, %v6842
        %v6849 = vadd.f32 %v6777, %v6844
        %v6850 = vld [vmem:[%s14] sm:$0x3]
        %v6852 = vlaneseq
        %v6853 = vshrl.u32 %v6852, 7
        %v6854 = vsub.s32 0, %v6853
        %v6855 = vrot.slane %v6850, %v6854
        %v6856 = vlaneseq
        %v6857 = vshrl.u32 %v6856, 7
        %v6858 = vsub.s32 1, %v6857
        %v6859 = vrot.slane %v6850, %v6858
        %v6862 = vadd.f32 %v6848, %v6855
        %v6863 = vadd.f32 %v6849, %v6859
        %v6864 = vmax.f32 %v6862, 0.0
        %v6865 = vmax.f32 %v6863, 0.0
        %v6866 = vpack.c.bf16 %v6864, %v6864
        %v6867 = vpack.c.bf16 %v6865, %v6865
        %v6868 = vld [vmem:[%s15] sm:$0xf]
        %v6869 = vld [vmem:[%s15 + $0x4] sm:$0xf]
        %v6870 = vld [vmem:[%s15 + $0x8] sm:$0xf]
        %v6871 = vld [vmem:[%s15 + $0xc] sm:$0xf]
        %v6872 = vld [vmem:[%s15 + $0x10] sm:$0xf]
        %v6873 = vld [vmem:[%s15 + $0x14] sm:$0xf]
        %v6874 = vld [vmem:[%s15 + $0x18] sm:$0xf]
        %v6875 = vld [vmem:[%s15 + $0x1c] sm:$0xf]
        %v6876 = vld [vmem:[%s15 + $0x20] sm:$0xf]
        %v6877 = vld [vmem:[%s15 + $0x24] sm:$0xf]
        %v6878 = vld [vmem:[%s15 + $0x28] sm:$0xf]
        %v6879 = vld [vmem:[%s15 + $0x2c] sm:$0xf]
        %v6880 = vld [vmem:[%s15 + $0x30] sm:$0xf]
        %v6881 = vld [vmem:[%s15 + $0x34] sm:$0xf]
        %v6882 = vld [vmem:[%s15 + $0x38] sm:$0xf]
        %v6883 = vld [vmem:[%s15 + $0x3c] sm:$0xf]
        %v6884 = vld [vmem:[%s15 + $0x40] sm:$0xf]
        %v6885 = vld [vmem:[%s15 + $0x44] sm:$0xf]
        %v6886 = vld [vmem:[%s15 + $0x48] sm:$0xf]
        %v6887 = vld [vmem:[%s15 + $0x4c] sm:$0xf]
        %v6888 = vld [vmem:[%s15 + $0x50] sm:$0xf]
        %v6889 = vld [vmem:[%s15 + $0x54] sm:$0xf]
        %v6890 = vld [vmem:[%s15 + $0x58] sm:$0xf]
        %v6891 = vld [vmem:[%s15 + $0x5c] sm:$0xf]
        %v6892 = vld [vmem:[%s15 + $0x60] sm:$0xf]
        %v6893 = vld [vmem:[%s15 + $0x64] sm:$0xf]
        %v6894 = vld [vmem:[%s15 + $0x68] sm:$0xf]
        %v6895 = vld [vmem:[%s15 + $0x6c] sm:$0xf]
        %v6896 = vld [vmem:[%s15 + $0x70] sm:$0xf]
        %v6897 = vld [vmem:[%s15 + $0x74] sm:$0xf]
        %v6898 = vld [vmem:[%s15 + $0x78] sm:$0xf]
        %v6899 = vld [vmem:[%s15 + $0x7c] sm:$0x1]
        %v6900 = vld [vmem:[%s16] sm:$0x1]
        %v6933 = vunpack.c.l.b16 %v6868
        %v6934 = vunpack.c.l.b16 %v6869
        %v6935 = vunpack.c.l.b16 %v6870
        %v6936 = vunpack.c.l.b16 %v6871
        %v6937 = vunpack.c.l.b16 %v6872
        %v6938 = vunpack.c.l.b16 %v6873
        %v6939 = vunpack.c.l.b16 %v6874
        %v6940 = vunpack.c.l.b16 %v6875
        %v6941 = vunpack.c.l.b16 %v6876
        %v6942 = vunpack.c.l.b16 %v6877
        %v6943 = vunpack.c.l.b16 %v6878
        %v6944 = vunpack.c.l.b16 %v6879
        %v6945 = vunpack.c.l.b16 %v6880
        %v6946 = vunpack.c.l.b16 %v6881
        %v6947 = vunpack.c.l.b16 %v6882
        %v6948 = vunpack.c.l.b16 %v6883
        %v6949 = vunpack.c.l.b16 %v6884
        %v6950 = vunpack.c.l.b16 %v6885
        %v6951 = vunpack.c.l.b16 %v6886
        %v6952 = vunpack.c.l.b16 %v6887
        %v6953 = vunpack.c.l.b16 %v6888
        %v6954 = vunpack.c.l.b16 %v6889
        %v6955 = vunpack.c.l.b16 %v6890
        %v6956 = vunpack.c.l.b16 %v6891
        %v6957 = vunpack.c.l.b16 %v6892
        %v6958 = vunpack.c.l.b16 %v6893
        %v6959 = vunpack.c.l.b16 %v6894
        %v6960 = vunpack.c.l.b16 %v6895
        %v6961 = vunpack.c.l.b16 %v6896
        %v6962 = vunpack.c.l.b16 %v6897
        %v6963 = vunpack.c.l.b16 %v6898
        %v6964 = vunpack.c.l.b16 %v6899
        %v6965 = vpack.c.b16 %v6934, %v6933
        %v6966 = vpack.c.b16 %v6936, %v6935
        %v6967 = vpack.c.b16 %v6938, %v6937
        %v6968 = vpack.c.b16 %v6940, %v6939
        %v6969 = vpack.c.b16 %v6942, %v6941
        %v6970 = vpack.c.b16 %v6944, %v6943
        %v6971 = vpack.c.b16 %v6946, %v6945
        %v6972 = vpack.c.b16 %v6948, %v6947
        %v6973 = vpack.c.b16 %v6950, %v6949
        %v6974 = vpack.c.b16 %v6952, %v6951
        %v6975 = vpack.c.b16 %v6954, %v6953
        %v6976 = vpack.c.b16 %v6956, %v6955
        %v6977 = vpack.c.b16 %v6958, %v6957
        %v6978 = vpack.c.b16 %v6960, %v6959
        %v6979 = vpack.c.b16 %v6962, %v6961
        %v6980 = vpack.c.b16 %v6964, %v6963
        %vm6996 = vcmask 998400
        %v6998 = vsel %vm6996, %v6867, 0
        %v7001 = vsel %vm702, %v6980, 0
        %7003 = vmatprep.subr.bf16.mxu0 0
        %7004 = vmatpush1.bf16.msra.mxu0 %v6972
        %7005 = vmatprep.subr.bf16.mxu0 0
        %7006 = vmatpush1.bf16.msra.mxu0 %v6971
        %7007 = vmatprep.subr.bf16.mxu0 0
        %7008 = vmatpush1.bf16.msra.mxu0 %v6970
        %7009 = vmatprep.subr.bf16.mxu0 0
        %7010 = vmatpush1.bf16.msra.mxu0 %v6969
        %7011 = vmatprep.subr.bf16.mxu0 0
        %7012 = vmatpush1.bf16.msra.mxu0 %v6968
        %7013 = vmatprep.subr.bf16.mxu0 0
        %7014 = vmatpush1.bf16.msra.mxu0 %v6967
        %7015 = vmatprep.subr.bf16.mxu0 0
        %7016 = vmatpush1.bf16.msra.mxu0 %v6966
        %7017 = vmatprep.subr.bf16.mxu0 0
        %7018 = vmatpush1.bf16.msra.mxu0 %v6965
        %7019 = vmatprep.subr.bf16.mxu0 0
        %7020 = vmatpush2.bf16.msra.mxu0 %v7001
        %7021 = vmatprep.subr.bf16.mxu0 0
        %7022 = vmatpush2.bf16.msra.mxu0 %v6979
        %7023 = vmatprep.subr.bf16.mxu0 0
        %7024 = vmatpush2.bf16.msra.mxu0 %v6978
        %7025 = vmatprep.subr.bf16.mxu0 0
        %7026 = vmatpush2.bf16.msra.mxu0 %v6977
        %7027 = vmatprep.subr.bf16.mxu0 0
        %7028 = vmatpush2.bf16.msra.mxu0 %v6976
        %7029 = vmatprep.subr.bf16.mxu0 0
        %7030 = vmatpush2.bf16.msra.mxu0 %v6975
        %7031 = vmatprep.subr.bf16.mxu0 0
        %7032 = vmatpush2.bf16.msra.mxu0 %v6974
        %7033 = vmatprep.subr.bf16.mxu0 0
        %7034 = vmatpush2.bf16.msra.mxu0 %v6973
        %7035 = vmatprep.mubr.bf16.mxu0 %v6998
        %7036 = vmatmul.mubr.bf16.gmra.mxu0 %v6866
        %v7037 = vpop.f32.mrf.mxu0
        %v7038 = vadd.f32 %v6900, %v7037
        %v7039 = vpop.f32.mrf.mxu0
        %v7040 = vpop.f32.mrf.mxu0
        %v7041 = vpop.f32.mrf.mxu0
        %7042 = vdwg.mxu0
        %v7043 = vxor.u32 %v7038, 2147483648
        %v7044 = vmul.f32 %v7043, 1.442695
        %v7045 = vpow.pop %v7044
        %v7046 = vadd.f32 %v7045, 1.0
        %v7047 = vrcp.pop %v7046
        %v7048 = vmul.f32 1.0, %v7047
        %vm7049 = vcmask 8192
        %7050 = vst.msk [vmem:[%s541] sm:$0x1] %vm7049, %v7048
        %s7051 = sand.u32 %s401, 1
        %s7052 = scalar_lea.sflag [#allocation6], %s7051
        %s7053 = sand.u32 %s401, 1
        %s7054 = scalar_lea.vmem [#allocation5], %s7053
        // Predicated region
        $region89: #{net_forward.1} parent=87 // pred_check
          %p7055 = pneg %p411
        $region90: #{net_forward.1} parent=87 // pred_check_branch
          %7057 = sbr.rel (%p7055) target = $region92
        $region91: #{net_forward.1} parent=87 // pred_region
          %s7059 = ssub.s32 16, 16
          %7060 = vsyncadd %s7052, %s7059
          %s7061 = smul.addr %s31, 16
          %s7062 = scalar_lea.hbm %s17, %s7061
          %s7064 = sshll.u32 %s7054, 4
          %s7065 = int_to_ptr.vmem [resolvable:$true] %s7064
          %7067 = dma.vmem_to_hbm [thread:$0]  %s7065, 16, %s7062, %s7052
        $region92: #{net_forward.1} parent=87 // pred_fallthru
          _
      $region88: #{net_forward.1} parent=5 // pred_fallthru
        _
      %p7068 = scmp.le.s32.totalorder 2, %s26
      // Predicated region
      $region93: #{net_forward.1} parent=5 // pred_check
        %p7069 = pneg %p7068
      $region94: #{net_forward.1} parent=5 // pred_check_branch
        %7071 = sbr.rel (%p7069) target = $region96
      $region95: #{net_forward.1} parent=5 // pred_region
        %s7072 = ssub.s32 %s26, 2
        // Predicated region
        $region97: #{net_forward.1} parent=95 // pred_check
          %p7073 = pneg %p417
        $region98: #{net_forward.1} parent=95 // pred_check_branch
          %7075 = sbr.rel (%p7073) target = $region100
        $region99: #{net_forward.1} parent=95 // pred_region
          %s7076 = sand.u32 %s402, 1
          %s7077 = scalar_lea.sflag [#allocation6], %s7076
          %s7078 = sand.u32 %s402, 1
          %s7079 = scalar_lea.vmem [#allocation5], %s7078
          %7080 = dma.done %s7077, 16
        $region100: #{net_forward.1} parent=95 // pred_fallthru
          _
      $region96: #{net_forward.1} parent=5 // pred_fallthru
        _
    $region6: #{net_forward.1} parent=1 // loop_footer
      %s30 = sadd.s32 1, %s26
    $region7: #{net_forward.1} parent=1 // loop_footer_branch
      %25 = sbr.rel target = $region3
    $region8: #{net_forward.1} parent=1 // loop_exit
      _
    %7081 = vsyncpa [#allocation6], 1
    %s7082 = scalar_lea.sflag [#allocation6], 1
    %7083 = vsyncpa %s7082, 1

</llo_original>
